<compile_context>
chip_gen: v7x
topology: tpu7x:2x2x1
jax: 0.10.0
libtpu: 0.0.40
codegen_flags: <defaults>
</compile_context>

<pallas_src>
import functools

import numpy as np
import jax
import jax.numpy as jnp
from jax.experimental import pallas as pl
from jax.experimental.pallas import tpu as pltpu

VMEM = pl.BlockSpec(memory_space=pltpu.MemorySpace.VMEM)
BF16 = jnp.bfloat16
F32 = jnp.float32


# ----------------------------- Pallas kernels ------------------------------

def _pose_kernel(x_ref, r_ref, s_ref, scale_ref, shift_ref,
                 rowpool_ref, colpool_ref, w0_ref, b0_ref,
                 rw1_ref, rb1_ref, tw1_ref, tb1_ref,
                 rw2_ref, rb2_ref, tw2_ref, tb2_ref, out_ref,
                 *, inv_pool, hidden):
    """Whole pose branch: 5x (conv+BN+ReLU) on a fixed (B*H, W*C) canvas,
    global average pool, then both Regression MLPs.  All VMEM-resident."""
    x = x_ref[...]                                   # (B*H, W*C) f32
    n_layers, kh = r_ref.shape[0], r_ref.shape[1]
    for l in range(n_layers):
        xb = x.astype(BF16)
        acc = jnp.zeros((x.shape[0], s_ref.shape[-1]), F32)
        for dy in range(kh):
            t = jnp.dot(r_ref[l, dy], xb, preferred_element_type=F32)
            acc = acc + jnp.dot(t.astype(BF16), s_ref[l, dy],
                                preferred_element_type=F32)
        # fused BN (bias folded in) + ReLU, f32
        x = jnp.maximum(acc * scale_ref[l:l + 1, :] + shift_ref[l:l + 1, :], 0.0)

    # AdaptiveAvgPool2d(1) over the valid region via constant pooling matrices
    rs = jnp.dot(rowpool_ref[...], x.astype(BF16), preferred_element_type=F32)
    pooled = jnp.dot(rs.astype(BF16), colpool_ref[...],
                     preferred_element_type=F32) * inv_pool          # (B, C)

    # Regression heads (Dropout is identity in eval); layer-0 weights concatenated
    h0 = jnp.dot(pooled.astype(BF16), w0_ref[...], preferred_element_type=F32)
    h0 = jnp.maximum(h0 + b0_ref[...], 0.0)                          # (B, 2*hidden)
    hr, ht = h0[:, :hidden], h0[:, hidden:]
    hr = jnp.maximum(jnp.dot(hr.astype(BF16), rw1_ref[...],
                             preferred_element_type=F32) + rb1_ref[...], 0.0)
    ht = jnp.maximum(jnp.dot(ht.astype(BF16), tw1_ref[...],
                             preferred_element_type=F32) + tb1_ref[...], 0.0)
    # final layers zero-padded to a shared 12-wide output -> single full store
    outp = (jnp.dot(hr.astype(BF16), rw2_ref[...], preferred_element_type=F32)
            + rb2_ref[...]
            + jnp.dot(ht.astype(BF16), tw2_ref[...], preferred_element_type=F32)
            + tb2_ref[...])
    out_ref[...] = outp


def _dense_kernel(*refs, num_layers):
    """Whole dense branch: deconv+BN+ReLU layers, final conv+BN+ReLU, and the
    separable bilinear x2 upsample -- all as VMEM-resident matmul chains."""
    x_ref = refs[0]
    out_ref = refs[-1]
    ah_ref = refs[1 + 4 * num_layers]
    bw_ref = refs[2 + 4 * num_layers]

    x = x_ref[...]                                   # (B*H, W*C) f32
    for l in range(num_layers):
        r_ref, s_ref, sc_ref, sh_ref = refs[1 + 4 * l: 5 + 4 * l]
        kh = r_ref.shape[0]
        xb = x.astype(BF16)
        acc = jnp.zeros((r_ref.shape[1], s_ref.shape[-1]), F32)
        for dy in range(kh):
            t = jnp.dot(r_ref[dy], xb, preferred_element_type=F32)
            acc = acc + jnp.dot(t.astype(BF16), s_ref[dy],
                                preferred_element_type=F32)
        x = jnp.maximum(acc * sc_ref[...] + sh_ref[...], 0.0)

    # bilinear x2 upsample (align_corners=False), separable constant matmuls
    t = jnp.dot(ah_ref[...], x.astype(BF16), preferred_element_type=F32)
    out_ref[...] = jnp.dot(t.astype(BF16), bw_ref[...],
                           preferred_element_type=F32)


# ------------------ trace-time (numpy) selector-matrix builders -------------

def _conv_selectors(w_oihw, hin, win, stride, pad,
                    canvas_hin=None, canvas_hout=None,
                    canvas_win=None, canvas_wout=None, batch=1):
    """Conv2d on the (B*H, W*C) layout as  out = sum_dy R[dy] @ X @ S[dy].
    w_oihw: numpy (Cout, Cin, kh, kw)."""
    cout, cin, kh, kw = w_oihw.shape
    hout = (hin + 2 * pad - kh) // stride + 1
    wout = (win + 2 * pad - kw) // stride + 1
    chi = canvas_hin or hin
    cho = canvas_hout or hout
    cwi = canvas_win or win
    cwo = canvas_wout or wout
    R = np.zeros((kh, cho, chi), np.float32)
    S = np.zeros((kh, cwi * cin, cwo * cout), np.float32)
    for dy in range(kh):
        for io in range(hout):
            i = stride * io + dy - pad
            if 0 <= i < hin:
                R[dy, io, i] = 1.0
        for jo in range(wout):
            for dx in range(kw):
                j = stride * jo + dx - pad
                if 0 <= j < win:
                    S[dy, j * cin:(j + 1) * cin,
                       jo * cout:(jo + 1) * cout] = w_oihw[:, :, dy, dx].T
    if batch > 1:
        eye = np.eye(batch, dtype=np.float32)
        R = np.stack([np.kron(eye, R[dy]) for dy in range(kh)])
    return R, S, hout, wout


def _deconv_selectors(w_iohw, hin, win, stride, pad, out_pad, batch=1):
    """ConvTranspose2d on the (B*H, W*C) layout as  out = sum_dy R[dy]@X@S[dy].
    w_iohw: numpy (Cin, Cout, kh, kw) (PyTorch ConvTranspose2d layout)."""
    cin, cout, kh, kw = w_iohw.shape
    hout = (hin - 1) * stride - 2 * pad + kh + out_pad
    wout = (win - 1) * stride - 2 * pad + kw + out_pad
    R = np.zeros((kh, hout, hin), np.float32)
    S = np.zeros((kh, win * cin, wout * cout), np.float32)
    for dy in range(kh):
        for i in range(hin):
            io = stride * i - pad + dy
            if 0 <= io < hout:
                R[dy, io, i] = 1.0
        for j in range(win):
            for dx in range(kw):
                jo = stride * j - pad + dx
                if 0 <= jo < wout:
                    S[dy, j * cin:(j + 1) * cin,
                       jo * cout:(jo + 1) * cout] = w_iohw[:, :, dy, dx]
    if batch > 1:
        eye = np.eye(batch, dtype=np.float32)
        R = np.stack([np.kron(eye, R[dy]) for dy in range(kh)])
    return R, S, hout, wout


def _epilogue_rows(scale_c, shift_c, wout, cout, canvas_wout=None):
    """Per-column BN scale / (bias-folded) shift rows; zero outside the valid
    region so canvas padding never becomes nonzero pre-ReLU."""
    cwo = canvas_wout or wout
    sc = np.zeros((1, cwo * cout), np.float32)
    sh = np.zeros((1, cwo * cout), np.float32)
    sc[0, :wout * cout] = np.tile(scale_c, wout)
    sh[0, :wout * cout] = np.tile(shift_c, wout)
    return sc, sh


def _interp_matrix(n):
    """(2n, n) bilinear-resize matrix, scale 2, align_corners=False (PyTorch)."""
    a = np.zeros((2 * n, n), np.float32)
    for i in range(2 * n):
        src = max((i + 0.5) / 2.0 - 0.5, 0.0)
        i0 = int(np.floor(src))
        frac = src - i0
        i1 = min(i0 + 1, n - 1)
        a[i, i0] += 1.0 - frac
        a[i, i1] += frac
    return a


def _np(x):
    return np.asarray(jax.device_get(x), np.float32)


def _get_deconv_cfg(k):
    return {4: (1, 0), 3: (1, 1), 2: (0, 0)}[k]


# --------------------------- parameter creation -----------------------------

def _make_bn(key, c):
    k1, k2, k3, k4 = jax.random.split(key, 4)
    gamma = 1.0 + 0.1 * jax.random.normal(k1, (c,))
    beta = 0.1 * jax.random.normal(k2, (c,))
    mean = 0.1 * jax.random.normal(k3, (c,))
    var = jnp.abs(jax.random.normal(k4, (c,))) + 0.5
    scale = gamma / jnp.sqrt(var + 1e-5)
    shift = beta - mean * scale
    return scale.astype(jnp.float32), shift.astype(jnp.float32)


def init_decoder_params(key, in_channels, out_channels, num_deconv,
                        num_filters, deconv_kernels):
    c = in_channels * 2
    keys = iter(jax.random.split(key, 128))

    def conv_p(cin, cout, k):
        w = 0.05 * jax.random.normal(next(keys), (cout, cin, k, k))
        b = 0.05 * jax.random.normal(next(keys), (cout,))
        s, sh = _make_bn(next(keys), cout)
        return dict(w=w, b=b, bn_scale=s, bn_shift=sh)

    def lin_p(cin, cout):
        w = 0.05 * jax.random.normal(next(keys), (cin, cout))
        b = 0.05 * jax.random.normal(next(keys), (cout,))
        return dict(w=w, b=b)

    params = {
        "pos": conv_p(c, c, 3),
        "down1": [conv_p(c, c, 3), conv_p(c, c, 3)],
        "down2": [conv_p(c, c, 3), conv_p(c, c, 3)],
        "rot": [lin_p(c, 512), lin_p(512, 512), lin_p(512, 9)],
        "trans": [lin_p(c, 512), lin_p(512, 512), lin_p(512, 3)],
    }
    deconvs, cin = [], c
    for i in range(num_deconv):
        k, cout = deconv_kernels[i], num_filters[i]
        w = 0.05 * jax.random.normal(next(keys), (cin, cout, k, k))
        s, sh = _make_bn(next(keys), cout)
        deconvs.append(dict(w=w, bn_scale=s, bn_shift=sh, kernel=k))
        cin = cout
    params["deconvs"] = deconvs
    params["final_conv"] = conv_p(num_filters[-1], out_channels, 3)
    return params


# ---------------- host-side prep: params -> fused-kernel operands -----------

def prepare_decoder(params, batch, in_channels, height, width):
    c = 2 * in_channels
    B, H, W = batch, height, width

    # ----- pose branch: 5 convs on a fixed (H, W*C) canvas -----
    pose_convs = [(params["pos"], 1),
                  (params["down1"][0], 2), (params["down1"][1], 1),
                  (params["down2"][0], 2), (params["down2"][1], 1)]
    r_l, s_l, sc_l, sh_l = [], [], [], []
    hin, win = H, W
    for p, stride in pose_convs:
        w = _np(p["w"])
        bias = _np(p["b"])
        scale = _np(p["bn_scale"])
        shift = _np(p["bn_shift"]) + scale * bias        # fold conv bias into BN
        R, S, hout, wout = _conv_selectors(
            w, hin, win, stride, 1,
            canvas_hin=H, canvas_hout=H, canvas_win=W, canvas_wout=W, batch=B)
        sc, sh = _epilogue_rows(scale, shift, wout, w.shape[0], canvas_wout=W)
        r_l.append(R); s_l.append(S); sc_l.append(sc); sh_l.append(sh)
        hin, win = hout, wout

    rowpool = np.zeros((B, B * H), np.float32)
    for bb in range(B):
        rowpool[bb, bb * H:bb * H + hin] = 1.0
    colpool = np.zeros((W * c, c), np.float32)
    for jo in range(win):
        colpool[jo * c:(jo + 1) * c, :] = np.eye(c, dtype=np.float32)

    rot, trans = params["rot"], params["trans"]
    hidden = int(_np(rot[1]["w"]).shape[0])
    w0 = np.concatenate([_np(rot[0]["w"]), _np(trans[0]["w"])], axis=1)
    b0 = np.concatenate([_np(rot[0]["b"]), _np(trans[0]["b"])])[None, :]
    nr = int(_np(rot[2]["w"]).shape[1])
    nt = int(_np(trans[2]["w"]).shape[1])
    nout = nr + nt
    rw2 = np.zeros((hidden, nout), np.float32); rw2[:, :nr] = _np(rot[2]["w"])
    rb2 = np.zeros((1, nout), np.float32);      rb2[0, :nr] = _np(rot[2]["b"])
    tw2 = np.zeros((hidden, nout), np.float32); tw2[:, nr:] = _np(trans[2]["w"])
    tb2 = np.zeros((1, nout), np.float32);      tb2[0, nr:] = _np(trans[2]["b"])

    pose = dict(
        r=jnp.asarray(np.stack(r_l), BF16),              # (5, 3, B*H, B*H)
        s=jnp.asarray(np.stack(s_l), BF16),              # (5, 3, W*C, W*C)
        scale=jnp.asarray(np.concatenate(sc_l, axis=0), F32),
        shift=jnp.asarray(np.concatenate(sh_l, axis=0), F32),
        rowpool=jnp.asarray(rowpool, BF16),
        colpool=jnp.asarray(colpool, BF16),
        w0=jnp.asarray(w0, BF16), b0=jnp.asarray(b0, F32),
        rw1=jnp.asarray(_np(rot[1]["w"]), BF16),
        rb1=jnp.asarray(_np(rot[1]["b"])[None, :], F32),
        tw1=jnp.asarray(_np(trans[1]["w"]), BF16),
        tb1=jnp.asarray(_np(trans[1]["b"])[None, :], F32),
        rw2=jnp.asarray(rw2, BF16), rb2=jnp.asarray(rb2, F32),
        tw2=jnp.asarray(tw2, BF16), tb2=jnp.asarray(tb2, F32),
        inv_pool=1.0 / float(hin * win),
        hidden=hidden,
        n_out=nout,
    )

    # ----- dense branch: deconvs + final conv + bilinear x2 -----
    layers = []
    hin, win, cin = H, W, c
    for dp in params["deconvs"]:
        k = dp["kernel"]
        pad, opad = _get_deconv_cfg(k)
        w = _np(dp["w"])                                 # (Cin, Cout, k, k)
        cout = w.shape[1]
        R, S, hout, wout = _deconv_selectors(w, hin, win, 2, pad, opad, batch=B)
        sc, sh = _epilogue_rows(_np(dp["bn_scale"]), _np(dp["bn_shift"]), wout, cout)
        layers.append((jnp.asarray(R, BF16), jnp.asarray(S, BF16),
                       jnp.asarray(sc, F32), jnp.asarray(sh, F32)))
        hin, win, cin = hout, wout, cout

    fp = params["final_conv"]
    w = _np(fp["w"])
    bias = _np(fp["b"])
    scale = _np(fp["bn_scale"])
    shift = _np(fp["bn_shift"]) + scale * bias
    cout = w.shape[0]
    R, S, hout, wout = _conv_selectors(w, hin, win, 1, 1, batch=B)
    sc, sh = _epilogue_rows(scale, shift, wout, cout)
    layers.append((jnp.asarray(R, BF16), jnp.asarray(S, BF16),
                   jnp.asarray(sc, F32), jnp.asarray(sh, F32)))
    hin, win, cin = hout, wout, cout

    ah = np.kron(np.eye(B, dtype=np.float32), _interp_matrix(hin))       # rows
    bw = np.kron(_interp_matrix(win).T, np.eye(cin, dtype=np.float32))   # lanes
    dense = dict(
        layers=layers,
        ah=jnp.asarray(ah, BF16), bw=jnp.asarray(bw, BF16),
        out_rows=B * 2 * hin, out_cols=2 * win * cin,
        out_hw=(2 * hin, 2 * win), out_c=int(cin),
    )
    return dict(pose=pose, dense=dense)


# ------------------------------- forward ------------------------------------

def decoder_forward(prep, conv_feats0_nchw):
    x = conv_feats0_nchw
    n = x.shape[0]
    f1, f2 = x[: n // 2], x[n // 2:]                    # chunk(2, dim=0)
    feats = jnp.concatenate([f1, f2], axis=1)           # cat on channels (B,2C,H,W)
    b, c, h, w = feats.shape
    # lane-dense 2-D layout: rows = B*H, lanes = W*C (c-minor)
    x2d = jnp.transpose(feats, (0, 2, 3, 1)).reshape(b * h, w * c).astype(F32)

    pose = prep["pose"]
    out_p = pl.pallas_call(
        functools.partial(_pose_kernel, inv_pool=pose["inv_pool"],
                          hidden=pose["hidden"]),
        out_shape=jax.ShapeDtypeStruct((b, pose["n_out"]), F32),
        in_specs=[VMEM] * 17,
        out_specs=VMEM,
    )(x2d, pose["r"], pose["s"], pose["scale"], pose["shift"],
      pose["rowpool"], pose["colpool"], pose["w0"], pose["b0"],
      pose["rw1"], pose["rb1"], pose["tw1"], pose["tb1"],
      pose["rw2"], pose["rb2"], pose["tw2"], pose["tb2"])

    dense = prep["dense"]
    flat_layers = [a for layer in dense["layers"] for a in layer]
    n_in = 1 + len(flat_layers) + 2
    out2d = pl.pallas_call(
        functools.partial(_dense_kernel, num_layers=len(dense["layers"])),
        out_shape=jax.ShapeDtypeStruct((dense["out_rows"], dense["out_cols"]), F32),
        in_specs=[VMEM] * n_in,
        out_specs=VMEM,
    )(x2d, *flat_layers, dense["ah"], dense["bw"])

    ho, wo = dense["out_hw"]
    out_d = out2d.reshape(b, ho, wo, dense["out_c"]).transpose(0, 3, 1, 2)
    return out_d, out_p


# --------------------------------- main --------------------------------------

if __name__ == "__main__":
    in_channels = 4       # Decoder(in_channels=4, ...) -> internal channels = 8
    out_channels = 4
    num_deconv = 2
    num_filters = [8, 8]
    deconv_kernels = [4, 4]

    key = jax.random.PRNGKey(0)
    # conv_feats[0] in the PyTorch module (NCHW, even batch so chunk(2) works)
    x = jax.random.normal(key, (2, in_channels, 16, 16), jnp.float32)

    params = init_decoder_params(jax.random.PRNGKey(42), in_channels,
                                 out_channels, num_deconv, num_filters,
                                 deconv_kernels)
    prep = prepare_decoder(params, batch=x.shape[0] // 2,
                           in_channels=in_channels,
                           height=x.shape[2], width=x.shape[3])

    fwd = jax.jit(lambda inp: decoder_forward(prep, inp))
    out_d, out_p = fwd(x)
    jax.block_until_ready((out_d, out_p))

    # feats: (1, 8, 16, 16) -> deconv x2 -> 64x64 -> conv -> upsample x2 -> 128x128
    assert out_d.shape == (1, out_channels, 128, 128), out_d.shape
    assert out_p.shape == (1, 12), out_p.shape
    assert jnp.all(jnp.isfinite(out_d)) and jnp.all(jnp.isfinite(out_p))
    print("KERNEL_OK")
</pallas_src>

<mosaic_0001>
module attributes {stable_mosaic.version = 11 : i64} {
  func.func @_dense_kernel(%arg0: memref<16x128xf32, #tpu.memory_space<vmem>>, %arg1: memref<4x32x16xbf16, #tpu.memory_space<vmem>>, %arg2: memref<4x128x256xbf16, #tpu.memory_space<vmem>>, %arg3: memref<1x256xf32, #tpu.memory_space<vmem>>, %arg4: memref<1x256xf32, #tpu.memory_space<vmem>>, %arg5: memref<4x64x32xbf16, #tpu.memory_space<vmem>>, %arg6: memref<4x256x512xbf16, #tpu.memory_space<vmem>>, %arg7: memref<1x512xf32, #tpu.memory_space<vmem>>, %arg8: memref<1x512xf32, #tpu.memory_space<vmem>>, %arg9: memref<3x64x64xbf16, #tpu.memory_space<vmem>>, %arg10: memref<3x512x256xbf16, #tpu.memory_space<vmem>>, %arg11: memref<1x256xf32, #tpu.memory_space<vmem>>, %arg12: memref<1x256xf32, #tpu.memory_space<vmem>>, %arg13: memref<128x64xbf16, #tpu.memory_space<vmem>>, %arg14: memref<256x512xbf16, #tpu.memory_space<vmem>>, %arg15: memref<128x512xf32, #tpu.memory_space<vmem>>) attributes {dimension_semantics = [], scalar_prefetch = 0 : i64, scratch_operands = 0 : i64, tpu.core_type = #tpu.core_type<tc>} {
    %c0 = arith.constant 0 : index
    %c0_0 = arith.constant 0 : index
    %0 = vector.load %arg0[%c0, %c0_0] : memref<16x128xf32, #tpu.memory_space<vmem>>, vector<16x128xf32>
    %1 = arith.truncf %0 : vector<16x128xf32> to vector<16x128xbf16>
    %cst = arith.constant 0.000000e+00 : f32
    %2 = vector.broadcast %cst : f32 to vector<32x256xf32>
    %c0_1 = arith.constant 0 : index
    %c0_2 = arith.constant 0 : index
    %c0_3 = arith.constant 0 : index
    %3 = vector.load %arg1[%c0_1, %c0_2, %c0_3] : memref<4x32x16xbf16, #tpu.memory_space<vmem>>, vector<1x32x16xbf16>
    %4 = vector.shape_cast %3 : vector<1x32x16xbf16> to vector<32x16xbf16>
    %cst_4 = arith.constant dense<0.000000e+00> : vector<32x128xf32>
    %5 = tpu.matmul %4, %1, %cst_4 {dimension_numbers = #tpu.dot_dimension_numbers<[1], [0], [0], [1], [0, 0, 1, 1], [], []>} : vector<32x16xbf16>, vector<16x128xbf16>, vector<32x128xf32> -> vector<32x128xf32>
    %6 = arith.truncf %5 : vector<32x128xf32> to vector<32x128xbf16>
    %c0_5 = arith.constant 0 : index
    %c0_6 = arith.constant 0 : index
    %c0_7 = arith.constant 0 : index
    %7 = vector.load %arg2[%c0_5, %c0_6, %c0_7] : memref<4x128x256xbf16, #tpu.memory_space<vmem>>, vector<1x128x256xbf16>
    %8 = vector.shape_cast %7 : vector<1x128x256xbf16> to vector<128x256xbf16>
    %cst_8 = arith.constant dense<0.000000e+00> : vector<32x256xf32>
    %9 = tpu.matmul %6, %8, %cst_8 {dimension_numbers = #tpu.dot_dimension_numbers<[1], [0], [0], [1], [0, 0, 1, 1], [], []>} : vector<32x128xbf16>, vector<128x256xbf16>, vector<32x256xf32> -> vector<32x256xf32>
    %10 = arith.addf %2, %9 : vector<32x256xf32>
    %c1 = arith.constant 1 : index
    %c0_9 = arith.constant 0 : index
    %c0_10 = arith.constant 0 : index
    %11 = vector.load %arg1[%c1, %c0_9, %c0_10] : memref<4x32x16xbf16, #tpu.memory_space<vmem>>, vector<1x32x16xbf16>
    %12 = vector.shape_cast %11 : vector<1x32x16xbf16> to vector<32x16xbf16>
    %cst_11 = arith.constant dense<0.000000e+00> : vector<32x128xf32>
    %13 = tpu.matmul %12, %1, %cst_11 {dimension_numbers = #tpu.dot_dimension_numbers<[1], [0], [0], [1], [0, 0, 1, 1], [], []>} : vector<32x16xbf16>, vector<16x128xbf16>, vector<32x128xf32> -> vector<32x128xf32>
    %14 = arith.truncf %13 : vector<32x128xf32> to vector<32x128xbf16>
    %c1_12 = arith.constant 1 : index
    %c0_13 = arith.constant 0 : index
    %c0_14 = arith.constant 0 : index
    %15 = vector.load %arg2[%c1_12, %c0_13, %c0_14] : memref<4x128x256xbf16, #tpu.memory_space<vmem>>, vector<1x128x256xbf16>
    %16 = vector.shape_cast %15 : vector<1x128x256xbf16> to vector<128x256xbf16>
    %cst_15 = arith.constant dense<0.000000e+00> : vector<32x256xf32>
    %17 = tpu.matmul %14, %16, %cst_15 {dimension_numbers = #tpu.dot_dimension_numbers<[1], [0], [0], [1], [0, 0, 1, 1], [], []>} : vector<32x128xbf16>, vector<128x256xbf16>, vector<32x256xf32> -> vector<32x256xf32>
    %18 = arith.addf %10, %17 : vector<32x256xf32>
    %c2 = arith.constant 2 : index
    %c0_16 = arith.constant 0 : index
    %c0_17 = arith.constant 0 : index
    %19 = vector.load %arg1[%c2, %c0_16, %c0_17] : memref<4x32x16xbf16, #tpu.memory_space<vmem>>, vector<1x32x16xbf16>
    %20 = vector.shape_cast %19 : vector<1x32x16xbf16> to vector<32x16xbf16>
    %cst_18 = arith.constant dense<0.000000e+00> : vector<32x128xf32>
    %21 = tpu.matmul %20, %1, %cst_18 {dimension_numbers = #tpu.dot_dimension_numbers<[1], [0], [0], [1], [0, 0, 1, 1], [], []>} : vector<32x16xbf16>, vector<16x128xbf16>, vector<32x128xf32> -> vector<32x128xf32>
    %22 = arith.truncf %21 : vector<32x128xf32> to vector<32x128xbf16>
    %c2_19 = arith.constant 2 : index
    %c0_20 = arith.constant 0 : index
    %c0_21 = arith.constant 0 : index
    %23 = vector.load %arg2[%c2_19, %c0_20, %c0_21] : memref<4x128x256xbf16, #tpu.memory_space<vmem>>, vector<1x128x256xbf16>
    %24 = vector.shape_cast %23 : vector<1x128x256xbf16> to vector<128x256xbf16>
    %cst_22 = arith.constant dense<0.000000e+00> : vector<32x256xf32>
    %25 = tpu.matmul %22, %24, %cst_22 {dimension_numbers = #tpu.dot_dimension_numbers<[1], [0], [0], [1], [0, 0, 1, 1], [], []>} : vector<32x128xbf16>, vector<128x256xbf16>, vector<32x256xf32> -> vector<32x256xf32>
    %26 = arith.addf %18, %25 : vector<32x256xf32>
    %c3 = arith.constant 3 : index
    %c0_23 = arith.constant 0 : index
    %c0_24 = arith.constant 0 : index
    %27 = vector.load %arg1[%c3, %c0_23, %c0_24] : memref<4x32x16xbf16, #tpu.memory_space<vmem>>, vector<1x32x16xbf16>
    %28 = vector.shape_cast %27 : vector<1x32x16xbf16> to vector<32x16xbf16>
    %cst_25 = arith.constant dense<0.000000e+00> : vector<32x128xf32>
    %29 = tpu.matmul %28, %1, %cst_25 {dimension_numbers = #tpu.dot_dimension_numbers<[1], [0], [0], [1], [0, 0, 1, 1], [], []>} : vector<32x16xbf16>, vector<16x128xbf16>, vector<32x128xf32> -> vector<32x128xf32>
    %30 = arith.truncf %29 : vector<32x128xf32> to vector<32x128xbf16>
    %c3_26 = arith.constant 3 : index
    %c0_27 = arith.constant 0 : index
    %c0_28 = arith.constant 0 : index
    %31 = vector.load %arg2[%c3_26, %c0_27, %c0_28] : memref<4x128x256xbf16, #tpu.memory_space<vmem>>, vector<1x128x256xbf16>
    %32 = vector.shape_cast %31 : vector<1x128x256xbf16> to vector<128x256xbf16>
    %cst_29 = arith.constant dense<0.000000e+00> : vector<32x256xf32>
    %33 = tpu.matmul %30, %32, %cst_29 {dimension_numbers = #tpu.dot_dimension_numbers<[1], [0], [0], [1], [0, 0, 1, 1], [], []>} : vector<32x128xbf16>, vector<128x256xbf16>, vector<32x256xf32> -> vector<32x256xf32>
    %34 = arith.addf %26, %33 : vector<32x256xf32>
    %c0_30 = arith.constant 0 : index
    %c0_31 = arith.constant 0 : index
    %35 = vector.load %arg3[%c0_30, %c0_31] : memref<1x256xf32, #tpu.memory_space<vmem>>, vector<1x256xf32>
    %36 = vector.broadcast %35 : vector<1x256xf32> to vector<32x256xf32>
    %37 = arith.mulf %34, %36 : vector<32x256xf32>
    %c0_32 = arith.constant 0 : index
    %c0_33 = arith.constant 0 : index
    %38 = vector.load %arg4[%c0_32, %c0_33] : memref<1x256xf32, #tpu.memory_space<vmem>>, vector<1x256xf32>
    %39 = vector.broadcast %38 : vector<1x256xf32> to vector<32x256xf32>
    %40 = arith.addf %37, %39 : vector<32x256xf32>
    %cst_34 = arith.constant 0.000000e+00 : f32
    %41 = vector.broadcast %cst_34 : f32 to vector<32x256xf32>
    %42 = arith.maximumf %40, %41 : vector<32x256xf32>
    %43 = arith.truncf %42 : vector<32x256xf32> to vector<32x256xbf16>
    %cst_35 = arith.constant 0.000000e+00 : f32
    %44 = vector.broadcast %cst_35 : f32 to vector<64x512xf32>
    %c0_36 = arith.constant 0 : index
    %c0_37 = arith.constant 0 : index
    %c0_38 = arith.constant 0 : index
    %45 = vector.load %arg5[%c0_36, %c0_37, %c0_38] : memref<4x64x32xbf16, #tpu.memory_space<vmem>>, vector<1x64x32xbf16>
    %46 = vector.shape_cast %45 : vector<1x64x32xbf16> to vector<64x32xbf16>
    %cst_39 = arith.constant dense<0.000000e+00> : vector<64x256xf32>
    %47 = tpu.matmul %46, %43, %cst_39 {dimension_numbers = #tpu.dot_dimension_numbers<[1], [0], [0], [1], [0, 0, 1, 1], [], []>} : vector<64x32xbf16>, vector<32x256xbf16>, vector<64x256xf32> -> vector<64x256xf32>
    %48 = arith.truncf %47 : vector<64x256xf32> to vector<64x256xbf16>
    %c0_40 = arith.constant 0 : index
    %c0_41 = arith.constant 0 : index
    %c0_42 = arith.constant 0 : index
    %49 = vector.load %arg6[%c0_40, %c0_41, %c0_42] : memref<4x256x512xbf16, #tpu.memory_space<vmem>>, vector<1x256x512xbf16>
    %50 = vector.shape_cast %49 : vector<1x256x512xbf16> to vector<256x512xbf16>
    %cst_43 = arith.constant dense<0.000000e+00> : vector<64x512xf32>
    %51 = tpu.matmul %48, %50, %cst_43 {dimension_numbers = #tpu.dot_dimension_numbers<[1], [0], [0], [1], [0, 0, 1, 1], [], []>} : vector<64x256xbf16>, vector<256x512xbf16>, vector<64x512xf32> -> vector<64x512xf32>
    %52 = arith.addf %44, %51 : vector<64x512xf32>
    %c1_44 = arith.constant 1 : index
    %c0_45 = arith.constant 0 : index
    %c0_46 = arith.constant 0 : index
    %53 = vector.load %arg5[%c1_44, %c0_45, %c0_46] : memref<4x64x32xbf16, #tpu.memory_space<vmem>>, vector<1x64x32xbf16>
    %54 = vector.shape_cast %53 : vector<1x64x32xbf16> to vector<64x32xbf16>
    %cst_47 = arith.constant dense<0.000000e+00> : vector<64x256xf32>
    %55 = tpu.matmul %54, %43, %cst_47 {dimension_numbers = #tpu.dot_dimension_numbers<[1], [0], [0], [1], [0, 0, 1, 1], [], []>} : vector<64x32xbf16>, vector<32x256xbf16>, vector<64x256xf32> -> vector<64x256xf32>
    %56 = arith.truncf %55 : vector<64x256xf32> to vector<64x256xbf16>
    %c1_48 = arith.constant 1 : index
    %c0_49 = arith.constant 0 : index
    %c0_50 = arith.constant 0 : index
    %57 = vector.load %arg6[%c1_48, %c0_49, %c0_50] : memref<4x256x512xbf16, #tpu.memory_space<vmem>>, vector<1x256x512xbf16>
    %58 = vector.shape_cast %57 : vector<1x256x512xbf16> to vector<256x512xbf16>
    %cst_51 = arith.constant dense<0.000000e+00> : vector<64x512xf32>
    %59 = tpu.matmul %56, %58, %cst_51 {dimension_numbers = #tpu.dot_dimension_numbers<[1], [0], [0], [1], [0, 0, 1, 1], [], []>} : vector<64x256xbf16>, vector<256x512xbf16>, vector<64x512xf32> -> vector<64x512xf32>
    %60 = arith.addf %52, %59 : vector<64x512xf32>
    %c2_52 = arith.constant 2 : index
    %c0_53 = arith.constant 0 : index
    %c0_54 = arith.constant 0 : index
    %61 = vector.load %arg5[%c2_52, %c0_53, %c0_54] : memref<4x64x32xbf16, #tpu.memory_space<vmem>>, vector<1x64x32xbf16>
    %62 = vector.shape_cast %61 : vector<1x64x32xbf16> to vector<64x32xbf16>
    %cst_55 = arith.constant dense<0.000000e+00> : vector<64x256xf32>
    %63 = tpu.matmul %62, %43, %cst_55 {dimension_numbers = #tpu.dot_dimension_numbers<[1], [0], [0], [1], [0, 0, 1, 1], [], []>} : vector<64x32xbf16>, vector<32x256xbf16>, vector<64x256xf32> -> vector<64x256xf32>
    %64 = arith.truncf %63 : vector<64x256xf32> to vector<64x256xbf16>
    %c2_56 = arith.constant 2 : index
    %c0_57 = arith.constant 0 : index
    %c0_58 = arith.constant 0 : index
    %65 = vector.load %arg6[%c2_56, %c0_57, %c0_58] : memref<4x256x512xbf16, #tpu.memory_space<vmem>>, vector<1x256x512xbf16>
    %66 = vector.shape_cast %65 : vector<1x256x512xbf16> to vector<256x512xbf16>
    %cst_59 = arith.constant dense<0.000000e+00> : vector<64x512xf32>
    %67 = tpu.matmul %64, %66, %cst_59 {dimension_numbers = #tpu.dot_dimension_numbers<[1], [0], [0], [1], [0, 0, 1, 1], [], []>} : vector<64x256xbf16>, vector<256x512xbf16>, vector<64x512xf32> -> vector<64x512xf32>
    %68 = arith.addf %60, %67 : vector<64x512xf32>
    %c3_60 = arith.constant 3 : index
    %c0_61 = arith.constant 0 : index
    %c0_62 = arith.constant 0 : index
    %69 = vector.load %arg5[%c3_60, %c0_61, %c0_62] : memref<4x64x32xbf16, #tpu.memory_space<vmem>>, vector<1x64x32xbf16>
    %70 = vector.shape_cast %69 : vector<1x64x32xbf16> to vector<64x32xbf16>
    %cst_63 = arith.constant dense<0.000000e+00> : vector<64x256xf32>
    %71 = tpu.matmul %70, %43, %cst_63 {dimension_numbers = #tpu.dot_dimension_numbers<[1], [0], [0], [1], [0, 0, 1, 1], [], []>} : vector<64x32xbf16>, vector<32x256xbf16>, vector<64x256xf32> -> vector<64x256xf32>
    %72 = arith.truncf %71 : vector<64x256xf32> to vector<64x256xbf16>
    %c3_64 = arith.constant 3 : index
    %c0_65 = arith.constant 0 : index
    %c0_66 = arith.constant 0 : index
    %73 = vector.load %arg6[%c3_64, %c0_65, %c0_66] : memref<4x256x512xbf16, #tpu.memory_space<vmem>>, vector<1x256x512xbf16>
    %74 = vector.shape_cast %73 : vector<1x256x512xbf16> to vector<256x512xbf16>
    %cst_67 = arith.constant dense<0.000000e+00> : vector<64x512xf32>
    %75 = tpu.matmul %72, %74, %cst_67 {dimension_numbers = #tpu.dot_dimension_numbers<[1], [0], [0], [1], [0, 0, 1, 1], [], []>} : vector<64x256xbf16>, vector<256x512xbf16>, vector<64x512xf32> -> vector<64x512xf32>
    %76 = arith.addf %68, %75 : vector<64x512xf32>
    %c0_68 = arith.constant 0 : index
    %c0_69 = arith.constant 0 : index
    %77 = vector.load %arg7[%c0_68, %c0_69] : memref<1x512xf32, #tpu.memory_space<vmem>>, vector<1x512xf32>
    %78 = vector.broadcast %77 : vector<1x512xf32> to vector<64x512xf32>
    %79 = arith.mulf %76, %78 : vector<64x512xf32>
    %c0_70 = arith.constant 0 : index
    %c0_71 = arith.constant 0 : index
    %80 = vector.load %arg8[%c0_70, %c0_71] : memref<1x512xf32, #tpu.memory_space<vmem>>, vector<1x512xf32>
    %81 = vector.broadcast %80 : vector<1x512xf32> to vector<64x512xf32>
    %82 = arith.addf %79, %81 : vector<64x512xf32>
    %cst_72 = arith.constant 0.000000e+00 : f32
    %83 = vector.broadcast %cst_72 : f32 to vector<64x512xf32>
    %84 = arith.maximumf %82, %83 : vector<64x512xf32>
    %85 = arith.truncf %84 : vector<64x512xf32> to vector<64x512xbf16>
    %cst_73 = arith.constant 0.000000e+00 : f32
    %86 = vector.broadcast %cst_73 : f32 to vector<64x256xf32>
    %c0_74 = arith.constant 0 : index
    %c0_75 = arith.constant 0 : index
    %c0_76 = arith.constant 0 : index
    %87 = vector.load %arg9[%c0_74, %c0_75, %c0_76] : memref<3x64x64xbf16, #tpu.memory_space<vmem>>, vector<1x64x64xbf16>
    %88 = vector.shape_cast %87 : vector<1x64x64xbf16> to vector<64x64xbf16>
    %cst_77 = arith.constant dense<0.000000e+00> : vector<64x512xf32>
    %89 = tpu.matmul %88, %85, %cst_77 {dimension_numbers = #tpu.dot_dimension_numbers<[1], [0], [0], [1], [0, 0, 1, 1], [], []>} : vector<64x64xbf16>, vector<64x512xbf16>, vector<64x512xf32> -> vector<64x512xf32>
    %90 = arith.truncf %89 : vector<64x512xf32> to vector<64x512xbf16>
    %c0_78 = arith.constant 0 : index
    %c0_79 = arith.constant 0 : index
    %c0_80 = arith.constant 0 : index
    %91 = vector.load %arg10[%c0_78, %c0_79, %c0_80] : memref<3x512x256xbf16, #tpu.memory_space<vmem>>, vector<1x512x256xbf16>
    %92 = vector.shape_cast %91 : vector<1x512x256xbf16> to vector<512x256xbf16>
    %cst_81 = arith.constant dense<0.000000e+00> : vector<64x256xf32>
    %93 = tpu.matmul %90, %92, %cst_81 {dimension_numbers = #tpu.dot_dimension_numbers<[1], [0], [0], [1], [0, 0, 1, 1], [], []>} : vector<64x512xbf16>, vector<512x256xbf16>, vector<64x256xf32> -> vector<64x256xf32>
    %94 = arith.addf %86, %93 : vector<64x256xf32>
    %c1_82 = arith.constant 1 : index
    %c0_83 = arith.constant 0 : index
    %c0_84 = arith.constant 0 : index
    %95 = vector.load %arg9[%c1_82, %c0_83, %c0_84] : memref<3x64x64xbf16, #tpu.memory_space<vmem>>, vector<1x64x64xbf16>
    %96 = vector.shape_cast %95 : vector<1x64x64xbf16> to vector<64x64xbf16>
    %cst_85 = arith.constant dense<0.000000e+00> : vector<64x512xf32>
    %97 = tpu.matmul %96, %85, %cst_85 {dimension_numbers = #tpu.dot_dimension_numbers<[1], [0], [0], [1], [0, 0, 1, 1], [], []>} : vector<64x64xbf16>, vector<64x512xbf16>, vector<64x512xf32> -> vector<64x512xf32>
    %98 = arith.truncf %97 : vector<64x512xf32> to vector<64x512xbf16>
    %c1_86 = arith.constant 1 : index
    %c0_87 = arith.constant 0 : index
    %c0_88 = arith.constant 0 : index
    %99 = vector.load %arg10[%c1_86, %c0_87, %c0_88] : memref<3x512x256xbf16, #tpu.memory_space<vmem>>, vector<1x512x256xbf16>
    %100 = vector.shape_cast %99 : vector<1x512x256xbf16> to vector<512x256xbf16>
    %cst_89 = arith.constant dense<0.000000e+00> : vector<64x256xf32>
    %101 = tpu.matmul %98, %100, %cst_89 {dimension_numbers = #tpu.dot_dimension_numbers<[1], [0], [0], [1], [0, 0, 1, 1], [], []>} : vector<64x512xbf16>, vector<512x256xbf16>, vector<64x256xf32> -> vector<64x256xf32>
    %102 = arith.addf %94, %101 : vector<64x256xf32>
    %c2_90 = arith.constant 2 : index
    %c0_91 = arith.constant 0 : index
    %c0_92 = arith.constant 0 : index
    %103 = vector.load %arg9[%c2_90, %c0_91, %c0_92] : memref<3x64x64xbf16, #tpu.memory_space<vmem>>, vector<1x64x64xbf16>
    %104 = vector.shape_cast %103 : vector<1x64x64xbf16> to vector<64x64xbf16>
    %cst_93 = arith.constant dense<0.000000e+00> : vector<64x512xf32>
    %105 = tpu.matmul %104, %85, %cst_93 {dimension_numbers = #tpu.dot_dimension_numbers<[1], [0], [0], [1], [0, 0, 1, 1], [], []>} : vector<64x64xbf16>, vector<64x512xbf16>, vector<64x512xf32> -> vector<64x512xf32>
    %106 = arith.truncf %105 : vector<64x512xf32> to vector<64x512xbf16>
    %c2_94 = arith.constant 2 : index
    %c0_95 = arith.constant 0 : index
    %c0_96 = arith.constant 0 : index
    %107 = vector.load %arg10[%c2_94, %c0_95, %c0_96] : memref<3x512x256xbf16, #tpu.memory_space<vmem>>, vector<1x512x256xbf16>
    %108 = vector.shape_cast %107 : vector<1x512x256xbf16> to vector<512x256xbf16>
    %cst_97 = arith.constant dense<0.000000e+00> : vector<64x256xf32>
    %109 = tpu.matmul %106, %108, %cst_97 {dimension_numbers = #tpu.dot_dimension_numbers<[1], [0], [0], [1], [0, 0, 1, 1], [], []>} : vector<64x512xbf16>, vector<512x256xbf16>, vector<64x256xf32> -> vector<64x256xf32>
    %110 = arith.addf %102, %109 : vector<64x256xf32>
    %c0_98 = arith.constant 0 : index
    %c0_99 = arith.constant 0 : index
    %111 = vector.load %arg11[%c0_98, %c0_99] : memref<1x256xf32, #tpu.memory_space<vmem>>, vector<1x256xf32>
    %112 = vector.broadcast %111 : vector<1x256xf32> to vector<64x256xf32>
    %113 = arith.mulf %110, %112 : vector<64x256xf32>
    %c0_100 = arith.constant 0 : index
    %c0_101 = arith.constant 0 : index
    %114 = vector.load %arg12[%c0_100, %c0_101] : memref<1x256xf32, #tpu.memory_space<vmem>>, vector<1x256xf32>
    %115 = vector.broadcast %114 : vector<1x256xf32> to vector<64x256xf32>
    %116 = arith.addf %113, %115 : vector<64x256xf32>
    %cst_102 = arith.constant 0.000000e+00 : f32
    %117 = vector.broadcast %cst_102 : f32 to vector<64x256xf32>
    %118 = arith.maximumf %116, %117 : vector<64x256xf32>
    %c0_103 = arith.constant 0 : index
    %c0_104 = arith.constant 0 : index
    %119 = vector.load %arg13[%c0_103, %c0_104] : memref<128x64xbf16, #tpu.memory_space<vmem>>, vector<128x64xbf16>
    %120 = arith.truncf %118 : vector<64x256xf32> to vector<64x256xbf16>
    %cst_105 = arith.constant dense<0.000000e+00> : vector<128x256xf32>
    %121 = tpu.matmul %119, %120, %cst_105 {dimension_numbers = #tpu.dot_dimension_numbers<[1], [0], [0], [1], [0, 0, 1, 1], [], []>} : vector<128x64xbf16>, vector<64x256xbf16>, vector<128x256xf32> -> vector<128x256xf32>
    %122 = arith.truncf %121 : vector<128x256xf32> to vector<128x256xbf16>
    %c0_106 = arith.constant 0 : index
    %c0_107 = arith.constant 0 : index
    %123 = vector.load %arg14[%c0_106, %c0_107] : memref<256x512xbf16, #tpu.memory_space<vmem>>, vector<256x512xbf16>
    %cst_108 = arith.constant dense<0.000000e+00> : vector<128x512xf32>
    %124 = tpu.matmul %122, %123, %cst_108 {dimension_numbers = #tpu.dot_dimension_numbers<[1], [0], [0], [1], [0, 0, 1, 1], [], []>} : vector<128x256xbf16>, vector<256x512xbf16>, vector<128x512xf32> -> vector<128x512xf32>
    %c0_109 = arith.constant 0 : index
    %c0_110 = arith.constant 0 : index
    %125 = vector.load %arg15[%c0_109, %c0_110] : memref<128x512xf32, #tpu.memory_space<vmem>>, vector<128x512xf32>
    tpu.vector_store %arg15[%c0_109, %c0_110], %124 {strides = array<i32>} : memref<128x512xf32, #tpu.memory_space<vmem>>, vector<128x512xf32>,
    return
  }
}

module attributes {stable_mosaic.version = 11 : i64} {
  func.func @_pose_kernel(%arg0: memref<16x128xf32, #tpu.memory_space<vmem>>, %arg1: memref<5x3x16x16xbf16, #tpu.memory_space<vmem>>, %arg2: memref<5x3x128x128xbf16, #tpu.memory_space<vmem>>, %arg3: memref<5x128xf32, #tpu.memory_space<vmem>>, %arg4: memref<5x128xf32, #tpu.memory_space<vmem>>, %arg5: memref<1x16xbf16, #tpu.memory_space<vmem>>, %arg6: memref<128x8xbf16, #tpu.memory_space<vmem>>, %arg7: memref<8x1024xbf16, #tpu.memory_space<vmem>>, %arg8: memref<1x1024xf32, #tpu.memory_space<vmem>>, %arg9: memref<512x512xbf16, #tpu.memory_space<vmem>>, %arg10: memref<1x512xf32, #tpu.memory_space<vmem>>, %arg11: memref<512x512xbf16, #tpu.memory_space<vmem>>, %arg12: memref<1x512xf32, #tpu.memory_space<vmem>>, %arg13: memref<512x12xbf16, #tpu.memory_space<vmem>>, %arg14: memref<1x12xf32, #tpu.memory_space<vmem>>, %arg15: memref<512x12xbf16, #tpu.memory_space<vmem>>, %arg16: memref<1x12xf32, #tpu.memory_space<vmem>>, %arg17: memref<1x12xf32, #tpu.memory_space<vmem>>) attributes {dimension_semantics = [], scalar_prefetch = 0 : i64, scratch_operands = 0 : i64, tpu.core_type = #tpu.core_type<tc>} {
    %c0 = arith.constant 0 : index
    %c0_0 = arith.constant 0 : index
    %0 = vector.load %arg0[%c0, %c0_0] : memref<16x128xf32, #tpu.memory_space<vmem>>, vector<16x128xf32>
    %1 = arith.truncf %0 : vector<16x128xf32> to vector<16x128xbf16>
    %cst = arith.constant 0.000000e+00 : f32
    %2 = vector.broadcast %cst : f32 to vector<16x128xf32>
    %c0_1 = arith.constant 0 : index
    %c0_2 = arith.constant 0 : index
    %c0_3 = arith.constant 0 : index
    %c0_4 = arith.constant 0 : index
    %3 = vector.load %arg1[%c0_1, %c0_2, %c0_3, %c0_4] : memref<5x3x16x16xbf16, #tpu.memory_space<vmem>>, vector<1x1x16x16xbf16>
    %4 = vector.shape_cast %3 : vector<1x1x16x16xbf16> to vector<16x16xbf16>
    %cst_5 = arith.constant dense<0.000000e+00> : vector<16x128xf32>
    %5 = tpu.matmul %4, %1, %cst_5 {dimension_numbers = #tpu.dot_dimension_numbers<[1], [0], [0], [1], [0, 0, 1, 1], [], []>} : vector<16x16xbf16>, vector<16x128xbf16>, vector<16x128xf32> -> vector<16x128xf32>
    %6 = arith.truncf %5 : vector<16x128xf32> to vector<16x128xbf16>
    %c0_6 = arith.constant 0 : index
    %c0_7 = arith.constant 0 : index
    %c0_8 = arith.constant 0 : index
    %c0_9 = arith.constant 0 : index
    %7 = vector.load %arg2[%c0_6, %c0_7, %c0_8, %c0_9] : memref<5x3x128x128xbf16, #tpu.memory_space<vmem>>, vector<1x1x128x128xbf16>
    %8 = vector.shape_cast %7 : vector<1x1x128x128xbf16> to vector<128x128xbf16>
    %cst_10 = arith.constant dense<0.000000e+00> : vector<16x128xf32>
    %9 = tpu.matmul %6, %8, %cst_10 {dimension_numbers = #tpu.dot_dimension_numbers<[1], [0], [0], [1], [0, 0, 1, 1], [], []>} : vector<16x128xbf16>, vector<128x128xbf16>, vector<16x128xf32> -> vector<16x128xf32>
    %10 = arith.addf %2, %9 : vector<16x128xf32>
    %c0_11 = arith.constant 0 : index
    %c1 = arith.constant 1 : index
    %c0_12 = arith.constant 0 : index
    %c0_13 = arith.constant 0 : index
    %11 = vector.load %arg1[%c0_11, %c1, %c0_12, %c0_13] : memref<5x3x16x16xbf16, #tpu.memory_space<vmem>>, vector<1x1x16x16xbf16>
    %12 = vector.shape_cast %11 : vector<1x1x16x16xbf16> to vector<16x16xbf16>
    %cst_14 = arith.constant dense<0.000000e+00> : vector<16x128xf32>
    %13 = tpu.matmul %12, %1, %cst_14 {dimension_numbers = #tpu.dot_dimension_numbers<[1], [0], [0], [1], [0, 0, 1, 1], [], []>} : vector<16x16xbf16>, vector<16x128xbf16>, vector<16x128xf32> -> vector<16x128xf32>
    %14 = arith.truncf %13 : vector<16x128xf32> to vector<16x128xbf16>
    %c0_15 = arith.constant 0 : index
    %c1_16 = arith.constant 1 : index
    %c0_17 = arith.constant 0 : index
    %c0_18 = arith.constant 0 : index
    %15 = vector.load %arg2[%c0_15, %c1_16, %c0_17, %c0_18] : memref<5x3x128x128xbf16, #tpu.memory_space<vmem>>, vector<1x1x128x128xbf16>
    %16 = vector.shape_cast %15 : vector<1x1x128x128xbf16> to vector<128x128xbf16>
    %cst_19 = arith.constant dense<0.000000e+00> : vector<16x128xf32>
    %17 = tpu.matmul %14, %16, %cst_19 {dimension_numbers = #tpu.dot_dimension_numbers<[1], [0], [0], [1], [0, 0, 1, 1], [], []>} : vector<16x128xbf16>, vector<128x128xbf16>, vector<16x128xf32> -> vector<16x128xf32>
    %18 = arith.addf %10, %17 : vector<16x128xf32>
    %c0_20 = arith.constant 0 : index
    %c2 = arith.constant 2 : index
    %c0_21 = arith.constant 0 : index
    %c0_22 = arith.constant 0 : index
    %19 = vector.load %arg1[%c0_20, %c2, %c0_21, %c0_22] : memref<5x3x16x16xbf16, #tpu.memory_space<vmem>>, vector<1x1x16x16xbf16>
    %20 = vector.shape_cast %19 : vector<1x1x16x16xbf16> to vector<16x16xbf16>
    %cst_23 = arith.constant dense<0.000000e+00> : vector<16x128xf32>
    %21 = tpu.matmul %20, %1, %cst_23 {dimension_numbers = #tpu.dot_dimension_numbers<[1], [0], [0], [1], [0, 0, 1, 1], [], []>} : vector<16x16xbf16>, vector<16x128xbf16>, vector<16x128xf32> -> vector<16x128xf32>
    %22 = arith.truncf %21 : vector<16x128xf32> to vector<16x128xbf16>
    %c0_24 = arith.constant 0 : index
    %c2_25 = arith.constant 2 : index
    %c0_26 = arith.constant 0 : index
    %c0_27 = arith.constant 0 : index
    %23 = vector.load %arg2[%c0_24, %c2_25, %c0_26, %c0_27] : memref<5x3x128x128xbf16, #tpu.memory_space<vmem>>, vector<1x1x128x128xbf16>
    %24 = vector.shape_cast %23 : vector<1x1x128x128xbf16> to vector<128x128xbf16>
    %cst_28 = arith.constant dense<0.000000e+00> : vector<16x128xf32>
    %25 = tpu.matmul %22, %24, %cst_28 {dimension_numbers = #tpu.dot_dimension_numbers<[1], [0], [0], [1], [0, 0, 1, 1], [], []>} : vector<16x128xbf16>, vector<128x128xbf16>, vector<16x128xf32> -> vector<16x128xf32>
    %26 = arith.addf %18, %25 : vector<16x128xf32>
    %c0_29 = arith.constant 0 : index
    %c0_30 = arith.constant 0 : index
    %27 = vector.load %arg3[%c0_29, %c0_30] : memref<5x128xf32, #tpu.memory_space<vmem>>, vector<1x128xf32>
    %28 = vector.broadcast %27 : vector<1x128xf32> to vector<16x128xf32>
    %29 = arith.mulf %26, %28 : vector<16x128xf32>
    %c0_31 = arith.constant 0 : index
    %c0_32 = arith.constant 0 : index
    %30 = vector.load %arg4[%c0_31, %c0_32] : memref<5x128xf32, #tpu.memory_space<vmem>>, vector<1x128xf32>
    %31 = vector.broadcast %30 : vector<1x128xf32> to vector<16x128xf32>
    %32 = arith.addf %29, %31 : vector<16x128xf32>
    %cst_33 = arith.constant 0.000000e+00 : f32
    %33 = vector.broadcast %cst_33 : f32 to vector<16x128xf32>
    %34 = arith.maximumf %32, %33 : vector<16x128xf32>
    %35 = arith.truncf %34 : vector<16x128xf32> to vector<16x128xbf16>
    %cst_34 = arith.constant 0.000000e+00 : f32
    %36 = vector.broadcast %cst_34 : f32 to vector<16x128xf32>
    %c1_35 = arith.constant 1 : index
    %c0_36 = arith.constant 0 : index
    %c0_37 = arith.constant 0 : index
    %c0_38 = arith.constant 0 : index
    %37 = vector.load %arg1[%c1_35, %c0_36, %c0_37, %c0_38] : memref<5x3x16x16xbf16, #tpu.memory_space<vmem>>, vector<1x1x16x16xbf16>
    %38 = vector.shape_cast %37 : vector<1x1x16x16xbf16> to vector<16x16xbf16>
    %cst_39 = arith.constant dense<0.000000e+00> : vector<16x128xf32>
    %39 = tpu.matmul %38, %35, %cst_39 {dimension_numbers = #tpu.dot_dimension_numbers<[1], [0], [0], [1], [0, 0, 1, 1], [], []>} : vector<16x16xbf16>, vector<16x128xbf16>, vector<16x128xf32> -> vector<16x128xf32>
    %40 = arith.truncf %39 : vector<16x128xf32> to vector<16x128xbf16>
    %c1_40 = arith.constant 1 : index
    %c0_41 = arith.constant 0 : index
    %c0_42 = arith.constant 0 : index
    %c0_43 = arith.constant 0 : index
    %41 = vector.load %arg2[%c1_40, %c0_41, %c0_42, %c0_43] : memref<5x3x128x128xbf16, #tpu.memory_space<vmem>>, vector<1x1x128x128xbf16>
    %42 = vector.shape_cast %41 : vector<1x1x128x128xbf16> to vector<128x128xbf16>
    %cst_44 = arith.constant dense<0.000000e+00> : vector<16x128xf32>
    %43 = tpu.matmul %40, %42, %cst_44 {dimension_numbers = #tpu.dot_dimension_numbers<[1], [0], [0], [1], [0, 0, 1, 1], [], []>} : vector<16x128xbf16>, vector<128x128xbf16>, vector<16x128xf32> -> vector<16x128xf32>
    %44 = arith.addf %36, %43 : vector<16x128xf32>
    %c1_45 = arith.constant 1 : index
    %c1_46 = arith.constant 1 : index
    %c0_47 = arith.constant 0 : index
    %c0_48 = arith.constant 0 : index
    %45 = vector.load %arg1[%c1_45, %c1_46, %c0_47, %c0_48] : memref<5x3x16x16xbf16, #tpu.memory_space<vmem>>, vector<1x1x16x16xbf16>
    %46 = vector.shape_cast %45 : vector<1x1x16x16xbf16> to vector<16x16xbf16>
    %cst_49 = arith.constant dense<0.000000e+00> : vector<16x128xf32>
    %47 = tpu.matmul %46, %35, %cst_49 {dimension_numbers = #tpu.dot_dimension_numbers<[1], [0], [0], [1], [0, 0, 1, 1], [], []>} : vector<16x16xbf16>, vector<16x128xbf16>, vector<16x128xf32> -> vector<16x128xf32>
    %48 = arith.truncf %47 : vector<16x128xf32> to vector<16x128xbf16>
    %c1_50 = arith.constant 1 : index
    %c1_51 = arith.constant 1 : index
    %c0_52 = arith.constant 0 : index
    %c0_53 = arith.constant 0 : index
    %49 = vector.load %arg2[%c1_50, %c1_51, %c0_52, %c0_53] : memref<5x3x128x128xbf16, #tpu.memory_space<vmem>>, vector<1x1x128x128xbf16>
    %50 = vector.shape_cast %49 : vector<1x1x128x128xbf16> to vector<128x128xbf16>
    %cst_54 = arith.constant dense<0.000000e+00> : vector<16x128xf32>
    %51 = tpu.matmul %48, %50, %cst_54 {dimension_numbers = #tpu.dot_dimension_numbers<[1], [0], [0], [1], [0, 0, 1, 1], [], []>} : vector<16x128xbf16>, vector<128x128xbf16>, vector<16x128xf32> -> vector<16x128xf32>
    %52 = arith.addf %44, %51 : vector<16x128xf32>
    %c1_55 = arith.constant 1 : index
    %c2_56 = arith.constant 2 : index
    %c0_57 = arith.constant 0 : index
    %c0_58 = arith.constant 0 : index
    %53 = vector.load %arg1[%c1_55, %c2_56, %c0_57, %c0_58] : memref<5x3x16x16xbf16, #tpu.memory_space<vmem>>, vector<1x1x16x16xbf16>
    %54 = vector.shape_cast %53 : vector<1x1x16x16xbf16> to vector<16x16xbf16>
    %cst_59 = arith.constant dense<0.000000e+00> : vector<16x128xf32>
    %55 = tpu.matmul %54, %35, %cst_59 {dimension_numbers = #tpu.dot_dimension_numbers<[1], [0], [0], [1], [0, 0, 1, 1], [], []>} : vector<16x16xbf16>, vector<16x128xbf16>, vector<16x128xf32> -> vector<16x128xf32>
    %56 = arith.truncf %55 : vector<16x128xf32> to vector<16x128xbf16>
    %c1_60 = arith.constant 1 : index
    %c2_61 = arith.constant 2 : index
    %c0_62 = arith.constant 0 : index
    %c0_63 = arith.constant 0 : index
    %57 = vector.load %arg2[%c1_60, %c2_61, %c0_62, %c0_63] : memref<5x3x128x128xbf16, #tpu.memory_space<vmem>>, vector<1x1x128x128xbf16>
    %58 = vector.shape_cast %57 : vector<1x1x128x128xbf16> to vector<128x128xbf16>
    %cst_64 = arith.constant dense<0.000000e+00> : vector<16x128xf32>
    %59 = tpu.matmul %56, %58, %cst_64 {dimension_numbers = #tpu.dot_dimension_numbers<[1], [0], [0], [1], [0, 0, 1, 1], [], []>} : vector<16x128xbf16>, vector<128x128xbf16>, vector<16x128xf32> -> vector<16x128xf32>
    %60 = arith.addf %52, %59 : vector<16x128xf32>
    %c1_65 = arith.constant 1 : index
    %c0_66 = arith.constant 0 : index
    %61 = vector.load %arg3[%c1_65, %c0_66] : memref<5x128xf32, #tpu.memory_space<vmem>>, vector<1x128xf32>
    %62 = vector.broadcast %61 : vector<1x128xf32> to vector<16x128xf32>
    %63 = arith.mulf %60, %62 : vector<16x128xf32>
    %c1_67 = arith.constant 1 : index
    %c0_68 = arith.constant 0 : index
    %64 = vector.load %arg4[%c1_67, %c0_68] : memref<5x128xf32, #tpu.memory_space<vmem>>, vector<1x128xf32>
    %65 = vector.broadcast %64 : vector<1x128xf32> to vector<16x128xf32>
    %66 = arith.addf %63, %65 : vector<16x128xf32>
    %cst_69 = arith.constant 0.000000e+00 : f32
    %67 = vector.broadcast %cst_69 : f32 to vector<16x128xf32>
    %68 = arith.maximumf %66, %67 : vector<16x128xf32>
    %69 = arith.truncf %68 : vector<16x128xf32> to vector<16x128xbf16>
    %cst_70 = arith.constant 0.000000e+00 : f32
    %70 = vector.broadcast %cst_70 : f32 to vector<16x128xf32>
    %c2_71 = arith.constant 2 : index
    %c0_72 = arith.constant 0 : index
    %c0_73 = arith.constant 0 : index
    %c0_74 = arith.constant 0 : index
    %71 = vector.load %arg1[%c2_71, %c0_72, %c0_73, %c0_74] : memref<5x3x16x16xbf16, #tpu.memory_space<vmem>>, vector<1x1x16x16xbf16>
    %72 = vector.shape_cast %71 : vector<1x1x16x16xbf16> to vector<16x16xbf16>
    %cst_75 = arith.constant dense<0.000000e+00> : vector<16x128xf32>
    %73 = tpu.matmul %72, %69, %cst_75 {dimension_numbers = #tpu.dot_dimension_numbers<[1], [0], [0], [1], [0, 0, 1, 1], [], []>} : vector<16x16xbf16>, vector<16x128xbf16>, vector<16x128xf32> -> vector<16x128xf32>
    %74 = arith.truncf %73 : vector<16x128xf32> to vector<16x128xbf16>
    %c2_76 = arith.constant 2 : index
    %c0_77 = arith.constant 0 : index
    %c0_78 = arith.constant 0 : index
    %c0_79 = arith.constant 0 : index
    %75 = vector.load %arg2[%c2_76, %c0_77, %c0_78, %c0_79] : memref<5x3x128x128xbf16, #tpu.memory_space<vmem>>, vector<1x1x128x128xbf16>
    %76 = vector.shape_cast %75 : vector<1x1x128x128xbf16> to vector<128x128xbf16>
    %cst_80 = arith.constant dense<0.000000e+00> : vector<16x128xf32>
    %77 = tpu.matmul %74, %76, %cst_80 {dimension_numbers = #tpu.dot_dimension_numbers<[1], [0], [0], [1], [0, 0, 1, 1], [], []>} : vector<16x128xbf16>, vector<128x128xbf16>, vector<16x128xf32> -> vector<16x128xf32>
    %78 = arith.addf %70, %77 : vector<16x128xf32>
    %c2_81 = arith.constant 2 : index
    %c1_82 = arith.constant 1 : index
    %c0_83 = arith.constant 0 : index
    %c0_84 = arith.constant 0 : index
    %79 = vector.load %arg1[%c2_81, %c1_82, %c0_83, %c0_84] : memref<5x3x16x16xbf16, #tpu.memory_space<vmem>>, vector<1x1x16x16xbf16>
    %80 = vector.shape_cast %79 : vector<1x1x16x16xbf16> to vector<16x16xbf16>
    %cst_85 = arith.constant dense<0.000000e+00> : vector<16x128xf32>
    %81 = tpu.matmul %80, %69, %cst_85 {dimension_numbers = #tpu.dot_dimension_numbers<[1], [0], [0], [1], [0, 0, 1, 1], [], []>} : vector<16x16xbf16>, vector<16x128xbf16>, vector<16x128xf32> -> vector<16x128xf32>
    %82 = arith.truncf %81 : vector<16x128xf32> to vector<16x128xbf16>
    %c2_86 = arith.constant 2 : index
    %c1_87 = arith.constant 1 : index
    %c0_88 = arith.constant 0 : index
    %c0_89 = arith.constant 0 : index
    %83 = vector.load %arg2[%c2_86, %c1_87, %c0_88, %c0_89] : memref<5x3x128x128xbf16, #tpu.memory_space<vmem>>, vector<1x1x128x128xbf16>
    %84 = vector.shape_cast %83 : vector<1x1x128x128xbf16> to vector<128x128xbf16>
    %cst_90 = arith.constant dense<0.000000e+00> : vector<16x128xf32>
    %85 = tpu.matmul %82, %84, %cst_90 {dimension_numbers = #tpu.dot_dimension_numbers<[1], [0], [0], [1], [0, 0, 1, 1], [], []>} : vector<16x128xbf16>, vector<128x128xbf16>, vector<16x128xf32> -> vector<16x128xf32>
    %86 = arith.addf %78, %85 : vector<16x128xf32>
    %c2_91 = arith.constant 2 : index
    %c2_92 = arith.constant 2 : index
    %c0_93 = arith.constant 0 : index
    %c0_94 = arith.constant 0 : index
    %87 = vector.load %arg1[%c2_91, %c2_92, %c0_93, %c0_94] : memref<5x3x16x16xbf16, #tpu.memory_space<vmem>>, vector<1x1x16x16xbf16>
    %88 = vector.shape_cast %87 : vector<1x1x16x16xbf16> to vector<16x16xbf16>
    %cst_95 = arith.constant dense<0.000000e+00> : vector<16x128xf32>
    %89 = tpu.matmul %88, %69, %cst_95 {dimension_numbers = #tpu.dot_dimension_numbers<[1], [0], [0], [1], [0, 0, 1, 1], [], []>} : vector<16x16xbf16>, vector<16x128xbf16>, vector<16x128xf32> -> vector<16x128xf32>
    %90 = arith.truncf %89 : vector<16x128xf32> to vector<16x128xbf16>
    %c2_96 = arith.constant 2 : index
    %c2_97 = arith.constant 2 : index
    %c0_98 = arith.constant 0 : index
    %c0_99 = arith.constant 0 : index
    %91 = vector.load %arg2[%c2_96, %c2_97, %c0_98, %c0_99] : memref<5x3x128x128xbf16, #tpu.memory_space<vmem>>, vector<1x1x128x128xbf16>
    %92 = vector.shape_cast %91 : vector<1x1x128x128xbf16> to vector<128x128xbf16>
    %cst_100 = arith.constant dense<0.000000e+00> : vector<16x128xf32>
    %93 = tpu.matmul %90, %92, %cst_100 {dimension_numbers = #tpu.dot_dimension_numbers<[1], [0], [0], [1], [0, 0, 1, 1], [], []>} : vector<16x128xbf16>, vector<128x128xbf16>, vector<16x128xf32> -> vector<16x128xf32>
    %94 = arith.addf %86, %93 : vector<16x128xf32>
    %c2_101 = arith.constant 2 : index
    %c0_102 = arith.constant 0 : index
    %95 = vector.load %arg3[%c2_101, %c0_102] : memref<5x128xf32, #tpu.memory_space<vmem>>, vector<1x128xf32>
    %96 = vector.broadcast %95 : vector<1x128xf32> to vector<16x128xf32>
    %97 = arith.mulf %94, %96 : vector<16x128xf32>
    %c2_103 = arith.constant 2 : index
    %c0_104 = arith.constant 0 : index
    %98 = vector.load %arg4[%c2_103, %c0_104] : memref<5x128xf32, #tpu.memory_space<vmem>>, vector<1x128xf32>
    %99 = vector.broadcast %98 : vector<1x128xf32> to vector<16x128xf32>
    %100 = arith.addf %97, %99 : vector<16x128xf32>
    %cst_105 = arith.constant 0.000000e+00 : f32
    %101 = vector.broadcast %cst_105 : f32 to vector<16x128xf32>
    %102 = arith.maximumf %100, %101 : vector<16x128xf32>
    %103 = arith.truncf %102 : vector<16x128xf32> to vector<16x128xbf16>
    %cst_106 = arith.constant 0.000000e+00 : f32
    %104 = vector.broadcast %cst_106 : f32 to vector<16x128xf32>
    %c3 = arith.constant 3 : index
    %c0_107 = arith.constant 0 : index
    %c0_108 = arith.constant 0 : index
    %c0_109 = arith.constant 0 : index
    %105 = vector.load %arg1[%c3, %c0_107, %c0_108, %c0_109] : memref<5x3x16x16xbf16, #tpu.memory_space<vmem>>, vector<1x1x16x16xbf16>
    %106 = vector.shape_cast %105 : vector<1x1x16x16xbf16> to vector<16x16xbf16>
    %cst_110 = arith.constant dense<0.000000e+00> : vector<16x128xf32>
    %107 = tpu.matmul %106, %103, %cst_110 {dimension_numbers = #tpu.dot_dimension_numbers<[1], [0], [0], [1], [0, 0, 1, 1], [], []>} : vector<16x16xbf16>, vector<16x128xbf16>, vector<16x128xf32> -> vector<16x128xf32>
    %108 = arith.truncf %107 : vector<16x128xf32> to vector<16x128xbf16>
    %c3_111 = arith.constant 3 : index
    %c0_112 = arith.constant 0 : index
    %c0_113 = arith.constant 0 : index
    %c0_114 = arith.constant 0 : index
    %109 = vector.load %arg2[%c3_111, %c0_112, %c0_113, %c0_114] : memref<5x3x128x128xbf16, #tpu.memory_space<vmem>>, vector<1x1x128x128xbf16>
    %110 = vector.shape_cast %109 : vector<1x1x128x128xbf16> to vector<128x128xbf16>
    %cst_115 = arith.constant dense<0.000000e+00> : vector<16x128xf32>
    %111 = tpu.matmul %108, %110, %cst_115 {dimension_numbers = #tpu.dot_dimension_numbers<[1], [0], [0], [1], [0, 0, 1, 1], [], []>} : vector<16x128xbf16>, vector<128x128xbf16>, vector<16x128xf32> -> vector<16x128xf32>
    %112 = arith.addf %104, %111 : vector<16x128xf32>
    %c3_116 = arith.constant 3 : index
    %c1_117 = arith.constant 1 : index
    %c0_118 = arith.constant 0 : index
    %c0_119 = arith.constant 0 : index
    %113 = vector.load %arg1[%c3_116, %c1_117, %c0_118, %c0_119] : memref<5x3x16x16xbf16, #tpu.memory_space<vmem>>, vector<1x1x16x16xbf16>
    %114 = vector.shape_cast %113 : vector<1x1x16x16xbf16> to vector<16x16xbf16>
    %cst_120 = arith.constant dense<0.000000e+00> : vector<16x128xf32>
    %115 = tpu.matmul %114, %103, %cst_120 {dimension_numbers = #tpu.dot_dimension_numbers<[1], [0], [0], [1], [0, 0, 1, 1], [], []>} : vector<16x16xbf16>, vector<16x128xbf16>, vector<16x128xf32> -> vector<16x128xf32>
    %116 = arith.truncf %115 : vector<16x128xf32> to vector<16x128xbf16>
    %c3_121 = arith.constant 3 : index
    %c1_122 = arith.constant 1 : index
    %c0_123 = arith.constant 0 : index
    %c0_124 = arith.constant 0 : index
    %117 = vector.load %arg2[%c3_121, %c1_122, %c0_123, %c0_124] : memref<5x3x128x128xbf16, #tpu.memory_space<vmem>>, vector<1x1x128x128xbf16>
    %118 = vector.shape_cast %117 : vector<1x1x128x128xbf16> to vector<128x128xbf16>
    %cst_125 = arith.constant dense<0.000000e+00> : vector<16x128xf32>
    %119 = tpu.matmul %116, %118, %cst_125 {dimension_numbers = #tpu.dot_dimension_numbers<[1], [0], [0], [1], [0, 0, 1, 1], [], []>} : vector<16x128xbf16>, vector<128x128xbf16>, vector<16x128xf32> -> vector<16x128xf32>
    %120 = arith.addf %112, %119 : vector<16x128xf32>
    %c3_126 = arith.constant 3 : index
    %c2_127 = arith.constant 2 : index
    %c0_128 = arith.constant 0 : index
    %c0_129 = arith.constant 0 : index
    %121 = vector.load %arg1[%c3_126, %c2_127, %c0_128, %c0_129] : memref<5x3x16x16xbf16, #tpu.memory_space<vmem>>, vector<1x1x16x16xbf16>
    %122 = vector.shape_cast %121 : vector<1x1x16x16xbf16> to vector<16x16xbf16>
    %cst_130 = arith.constant dense<0.000000e+00> : vector<16x128xf32>
    %123 = tpu.matmul %122, %103, %cst_130 {dimension_numbers = #tpu.dot_dimension_numbers<[1], [0], [0], [1], [0, 0, 1, 1], [], []>} : vector<16x16xbf16>, vector<16x128xbf16>, vector<16x128xf32> -> vector<16x128xf32>
    %124 = arith.truncf %123 : vector<16x128xf32> to vector<16x128xbf16>
    %c3_131 = arith.constant 3 : index
    %c2_132 = arith.constant 2 : index
    %c0_133 = arith.constant 0 : index
    %c0_134 = arith.constant 0 : index
    %125 = vector.load %arg2[%c3_131, %c2_132, %c0_133, %c0_134] : memref<5x3x128x128xbf16, #tpu.memory_space<vmem>>, vector<1x1x128x128xbf16>
    %126 = vector.shape_cast %125 : vector<1x1x128x128xbf16> to vector<128x128xbf16>
    %cst_135 = arith.constant dense<0.000000e+00> : vector<16x128xf32>
    %127 = tpu.matmul %124, %126, %cst_135 {dimension_numbers = #tpu.dot_dimension_numbers<[1], [0], [0], [1], [0, 0, 1, 1], [], []>} : vector<16x128xbf16>, vector<128x128xbf16>, vector<16x128xf32> -> vector<16x128xf32>
    %128 = arith.addf %120, %127 : vector<16x128xf32>
    %c3_136 = arith.constant 3 : index
    %c0_137 = arith.constant 0 : index
    %129 = vector.load %arg3[%c3_136, %c0_137] : memref<5x128xf32, #tpu.memory_space<vmem>>, vector<1x128xf32>
    %130 = vector.broadcast %129 : vector<1x128xf32> to vector<16x128xf32>
    %131 = arith.mulf %128, %130 : vector<16x128xf32>
    %c3_138 = arith.constant 3 : index
    %c0_139 = arith.constant 0 : index
    %132 = vector.load %arg4[%c3_138, %c0_139] : memref<5x128xf32, #tpu.memory_space<vmem>>, vector<1x128xf32>
    %133 = vector.broadcast %132 : vector<1x128xf32> to vector<16x128xf32>
    %134 = arith.addf %131, %133 : vector<16x128xf32>
    %cst_140 = arith.constant 0.000000e+00 : f32
    %135 = vector.broadcast %cst_140 : f32 to vector<16x128xf32>
    %136 = arith.maximumf %134, %135 : vector<16x128xf32>
    %137 = arith.truncf %136 : vector<16x128xf32> to vector<16x128xbf16>
    %cst_141 = arith.constant 0.000000e+00 : f32
    %138 = vector.broadcast %cst_141 : f32 to vector<16x128xf32>
    %c4 = arith.constant 4 : index
    %c0_142 = arith.constant 0 : index
    %c0_143 = arith.constant 0 : index
    %c0_144 = arith.constant 0 : index
    %139 = vector.load %arg1[%c4, %c0_142, %c0_143, %c0_144] : memref<5x3x16x16xbf16, #tpu.memory_space<vmem>>, vector<1x1x16x16xbf16>
    %140 = vector.shape_cast %139 : vector<1x1x16x16xbf16> to vector<16x16xbf16>
    %cst_145 = arith.constant dense<0.000000e+00> : vector<16x128xf32>
    %141 = tpu.matmul %140, %137, %cst_145 {dimension_numbers = #tpu.dot_dimension_numbers<[1], [0], [0], [1], [0, 0, 1, 1], [], []>} : vector<16x16xbf16>, vector<16x128xbf16>, vector<16x128xf32> -> vector<16x128xf32>
    %142 = arith.truncf %141 : vector<16x128xf32> to vector<16x128xbf16>
    %c4_146 = arith.constant 4 : index
    %c0_147 = arith.constant 0 : index
    %c0_148 = arith.constant 0 : index
    %c0_149 = arith.constant 0 : index
    %143 = vector.load %arg2[%c4_146, %c0_147, %c0_148, %c0_149] : memref<5x3x128x128xbf16, #tpu.memory_space<vmem>>, vector<1x1x128x128xbf16>
    %144 = vector.shape_cast %143 : vector<1x1x128x128xbf16> to vector<128x128xbf16>
    %cst_150 = arith.constant dense<0.000000e+00> : vector<16x128xf32>
    %145 = tpu.matmul %142, %144, %cst_150 {dimension_numbers = #tpu.dot_dimension_numbers<[1], [0], [0], [1], [0, 0, 1, 1], [], []>} : vector<16x128xbf16>, vector<128x128xbf16>, vector<16x128xf32> -> vector<16x128xf32>
    %146 = arith.addf %138, %145 : vector<16x128xf32>
    %c4_151 = arith.constant 4 : index
    %c1_152 = arith.constant 1 : index
    %c0_153 = arith.constant 0 : index
    %c0_154 = arith.constant 0 : index
    %147 = vector.load %arg1[%c4_151, %c1_152, %c0_153, %c0_154] : memref<5x3x16x16xbf16, #tpu.memory_space<vmem>>, vector<1x1x16x16xbf16>
    %148 = vector.shape_cast %147 : vector<1x1x16x16xbf16> to vector<16x16xbf16>
    %cst_155 = arith.constant dense<0.000000e+00> : vector<16x128xf32>
    %149 = tpu.matmul %148, %137, %cst_155 {dimension_numbers = #tpu.dot_dimension_numbers<[1], [0], [0], [1], [0, 0, 1, 1], [], []>} : vector<16x16xbf16>, vector<16x128xbf16>, vector<16x128xf32> -> vector<16x128xf32>
    %150 = arith.truncf %149 : vector<16x128xf32> to vector<16x128xbf16>
    %c4_156 = arith.constant 4 : index
    %c1_157 = arith.constant 1 : index
    %c0_158 = arith.constant 0 : index
    %c0_159 = arith.constant 0 : index
    %151 = vector.load %arg2[%c4_156, %c1_157, %c0_158, %c0_159] : memref<5x3x128x128xbf16, #tpu.memory_space<vmem>>, vector<1x1x128x128xbf16>
    %152 = vector.shape_cast %151 : vector<1x1x128x128xbf16> to vector<128x128xbf16>
    %cst_160 = arith.constant dense<0.000000e+00> : vector<16x128xf32>
    %153 = tpu.matmul %150, %152, %cst_160 {dimension_numbers = #tpu.dot_dimension_numbers<[1], [0], [0], [1], [0, 0, 1, 1], [], []>} : vector<16x128xbf16>, vector<128x128xbf16>, vector<16x128xf32> -> vector<16x128xf32>
    %154 = arith.addf %146, %153 : vector<16x128xf32>
    %c4_161 = arith.constant 4 : index
    %c2_162 = arith.constant 2 : index
    %c0_163 = arith.constant 0 : index
    %c0_164 = arith.constant 0 : index
    %155 = vector.load %arg1[%c4_161, %c2_162, %c0_163, %c0_164] : memref<5x3x16x16xbf16, #tpu.memory_space<vmem>>, vector<1x1x16x16xbf16>
    %156 = vector.shape_cast %155 : vector<1x1x16x16xbf16> to vector<16x16xbf16>
    %cst_165 = arith.constant dense<0.000000e+00> : vector<16x128xf32>
    %157 = tpu.matmul %156, %137, %cst_165 {dimension_numbers = #tpu.dot_dimension_numbers<[1], [0], [0], [1], [0, 0, 1, 1], [], []>} : vector<16x16xbf16>, vector<16x128xbf16>, vector<16x128xf32> -> vector<16x128xf32>
    %158 = arith.truncf %157 : vector<16x128xf32> to vector<16x128xbf16>
    %c4_166 = arith.constant 4 : index
    %c2_167 = arith.constant 2 : index
    %c0_168 = arith.constant 0 : index
    %c0_169 = arith.constant 0 : index
    %159 = vector.load %arg2[%c4_166, %c2_167, %c0_168, %c0_169] : memref<5x3x128x128xbf16, #tpu.memory_space<vmem>>, vector<1x1x128x128xbf16>
    %160 = vector.shape_cast %159 : vector<1x1x128x128xbf16> to vector<128x128xbf16>
    %cst_170 = arith.constant dense<0.000000e+00> : vector<16x128xf32>
    %161 = tpu.matmul %158, %160, %cst_170 {dimension_numbers = #tpu.dot_dimension_numbers<[1], [0], [0], [1], [0, 0, 1, 1], [], []>} : vector<16x128xbf16>, vector<128x128xbf16>, vector<16x128xf32> -> vector<16x128xf32>
    %162 = arith.addf %154, %161 : vector<16x128xf32>
    %c4_171 = arith.constant 4 : index
    %c0_172 = arith.constant 0 : index
    %163 = vector.load %arg3[%c4_171, %c0_172] : memref<5x128xf32, #tpu.memory_space<vmem>>, vector<1x128xf32>
    %164 = vector.broadcast %163 : vector<1x128xf32> to vector<16x128xf32>
    %165 = arith.mulf %162, %164 : vector<16x128xf32>
    %c4_173 = arith.constant 4 : index
    %c0_174 = arith.constant 0 : index
    %166 = vector.load %arg4[%c4_173, %c0_174] : memref<5x128xf32, #tpu.memory_space<vmem>>, vector<1x128xf32>
    %167 = vector.broadcast %166 : vector<1x128xf32> to vector<16x128xf32>
    %168 = arith.addf %165, %167 : vector<16x128xf32>
    %cst_175 = arith.constant 0.000000e+00 : f32
    %169 = vector.broadcast %cst_175 : f32 to vector<16x128xf32>
    %170 = arith.maximumf %168, %169 : vector<16x128xf32>
    %c0_176 = arith.constant 0 : index
    %c0_177 = arith.constant 0 : index
    %171 = vector.load %arg5[%c0_176, %c0_177] : memref<1x16xbf16, #tpu.memory_space<vmem>>, vector<1x16xbf16>
    %172 = arith.truncf %170 : vector<16x128xf32> to vector<16x128xbf16>
    %cst_178 = arith.constant dense<0.000000e+00> : vector<1x128xf32>
    %173 = tpu.matmul %171, %172, %cst_178 {dimension_numbers = #tpu.dot_dimension_numbers<[1], [0], [0], [1], [0, 0, 1, 1], [], []>} : vector<1x16xbf16>, vector<16x128xbf16>, vector<1x128xf32> -> vector<1x128xf32>
    %174 = arith.truncf %173 : vector<1x128xf32> to vector<1x128xbf16>
    %c0_179 = arith.constant 0 : index
    %c0_180 = arith.constant 0 : index
    %175 = vector.load %arg6[%c0_179, %c0_180] : memref<128x8xbf16, #tpu.memory_space<vmem>>, vector<128x8xbf16>
    %cst_181 = arith.constant dense<0.000000e+00> : vector<1x8xf32>
    %176 = tpu.matmul %174, %175, %cst_181 {dimension_numbers = #tpu.dot_dimension_numbers<[1], [0], [0], [1], [0, 0, 1, 1], [], []>} : vector<1x128xbf16>, vector<128x8xbf16>, vector<1x8xf32> -> vector<1x8xf32>
    %cst_182 = arith.constant 6.250000e-02 : f32
    %177 = vector.broadcast %cst_182 : f32 to vector<1x8xf32>
    %178 = arith.mulf %176, %177 : vector<1x8xf32>
    %179 = arith.truncf %178 : vector<1x8xf32> to vector<1x8xbf16>
    %c0_183 = arith.constant 0 : index
    %c0_184 = arith.constant 0 : index
    %180 = vector.load %arg7[%c0_183, %c0_184] : memref<8x1024xbf16, #tpu.memory_space<vmem>>, vector<8x1024xbf16>
    %cst_185 = arith.constant dense<0.000000e+00> : vector<1x1024xf32>
    %181 = tpu.matmul %179, %180, %cst_185 {dimension_numbers = #tpu.dot_dimension_numbers<[1], [0], [0], [1], [0, 0, 1, 1], [], []>} : vector<1x8xbf16>, vector<8x1024xbf16>, vector<1x1024xf32> -> vector<1x1024xf32>
    %c0_186 = arith.constant 0 : index
    %c0_187 = arith.constant 0 : index
    %182 = vector.load %arg8[%c0_186, %c0_187] : memref<1x1024xf32, #tpu.memory_space<vmem>>, vector<1x1024xf32>
    %183 = arith.addf %181, %182 : vector<1x1024xf32>
    %cst_188 = arith.constant 0.000000e+00 : f32
    %184 = vector.broadcast %cst_188 : f32 to vector<1x1024xf32>
    %185 = arith.maximumf %183, %184 : vector<1x1024xf32>
    %186 = vector.extract_strided_slice %185 {offsets = [0, 0], sizes = [1, 512], strides = [1, 1]} : vector<1x1024xf32> to vector<1x512xf32>
    %187 = vector.extract_strided_slice %185 {offsets = [0, 512], sizes = [1, 512], strides = [1, 1]} : vector<1x1024xf32> to vector<1x512xf32>
    %188 = arith.truncf %186 : vector<1x512xf32> to vector<1x512xbf16>
    %c0_189 = arith.constant 0 : index
    %c0_190 = arith.constant 0 : index
    %189 = vector.load %arg9[%c0_189, %c0_190] : memref<512x512xbf16, #tpu.memory_space<vmem>>, vector<512x512xbf16>
    %cst_191 = arith.constant dense<0.000000e+00> : vector<1x512xf32>
    %190 = tpu.matmul %188, %189, %cst_191 {dimension_numbers = #tpu.dot_dimension_numbers<[1], [0], [0], [1], [0, 0, 1, 1], [], []>} : vector<1x512xbf16>, vector<512x512xbf16>, vector<1x512xf32> -> vector<1x512xf32>
    %c0_192 = arith.constant 0 : index
    %c0_193 = arith.constant 0 : index
    %191 = vector.load %arg10[%c0_192, %c0_193] : memref<1x512xf32, #tpu.memory_space<vmem>>, vector<1x512xf32>
    %192 = arith.addf %190, %191 : vector<1x512xf32>
    %cst_194 = arith.constant 0.000000e+00 : f32
    %193 = vector.broadcast %cst_194 : f32 to vector<1x512xf32>
    %194 = arith.maximumf %192, %193 : vector<1x512xf32>
    %195 = arith.truncf %187 : vector<1x512xf32> to vector<1x512xbf16>
    %c0_195 = arith.constant 0 : index
    %c0_196 = arith.constant 0 : index
    %196 = vector.load %arg11[%c0_195, %c0_196] : memref<512x512xbf16, #tpu.memory_space<vmem>>, vector<512x512xbf16>
    %cst_197 = arith.constant dense<0.000000e+00> : vector<1x512xf32>
    %197 = tpu.matmul %195, %196, %cst_197 {dimension_numbers = #tpu.dot_dimension_numbers<[1], [0], [0], [1], [0, 0, 1, 1], [], []>} : vector<1x512xbf16>, vector<512x512xbf16>, vector<1x512xf32> -> vector<1x512xf32>
    %c0_198 = arith.constant 0 : index
    %c0_199 = arith.constant 0 : index
    %198 = vector.load %arg12[%c0_198, %c0_199] : memref<1x512xf32, #tpu.memory_space<vmem>>, vector<1x512xf32>
    %199 = arith.addf %197, %198 : vector<1x512xf32>
    %cst_200 = arith.constant 0.000000e+00 : f32
    %200 = vector.broadcast %cst_200 : f32 to vector<1x512xf32>
    %201 = arith.maximumf %199, %200 : vector<1x512xf32>
    %202 = arith.truncf %194 : vector<1x512xf32> to vector<1x512xbf16>
    %c0_201 = arith.constant 0 : index
    %c0_202 = arith.constant 0 : index
    %203 = vector.load %arg13[%c0_201, %c0_202] : memref<512x12xbf16, #tpu.memory_space<vmem>>, vector<512x12xbf16>
    %cst_203 = arith.constant dense<0.000000e+00> : vector<1x12xf32>
    %204 = tpu.matmul %202, %203, %cst_203 {dimension_numbers = #tpu.dot_dimension_numbers<[1], [0], [0], [1], [0, 0, 1, 1], [], []>} : vector<1x512xbf16>, vector<512x12xbf16>, vector<1x12xf32> -> vector<1x12xf32>
    %c0_204 = arith.constant 0 : index
    %c0_205 = arith.constant 0 : index
    %205 = vector.load %arg14[%c0_204, %c0_205] : memref<1x12xf32, #tpu.memory_space<vmem>>, vector<1x12xf32>
    %206 = arith.addf %204, %205 : vector<1x12xf32>
    %207 = arith.truncf %201 : vector<1x512xf32> to vector<1x512xbf16>
    %c0_206 = arith.constant 0 : index
    %c0_207 = arith.constant 0 : index
    %208 = vector.load %arg15[%c0_206, %c0_207] : memref<512x12xbf16, #tpu.memory_space<vmem>>, vector<512x12xbf16>
    %cst_208 = arith.constant dense<0.000000e+00> : vector<1x12xf32>
    %209 = tpu.matmul %207, %208, %cst_208 {dimension_numbers = #tpu.dot_dimension_numbers<[1], [0], [0], [1], [0, 0, 1, 1], [], []>} : vector<1x512xbf16>, vector<512x12xbf16>, vector<1x12xf32> -> vector<1x12xf32>
    %210 = arith.addf %206, %209 : vector<1x12xf32>
    %c0_209 = arith.constant 0 : index
    %c0_210 = arith.constant 0 : index
    %211 = vector.load %arg16[%c0_209, %c0_210] : memref<1x12xf32, #tpu.memory_space<vmem>>, vector<1x12xf32>
    %212 = arith.addf %210, %211 : vector<1x12xf32>
    %c0_211 = arith.constant 0 : index
    %c0_212 = arith.constant 0 : index
    %213 = vector.load %arg17[%c0_211, %c0_212] : memref<1x12xf32, #tpu.memory_space<vmem>>, vector<1x12xf32>
    tpu.vector_store %arg17[%c0_211, %c0_212], %212 {strides = array<i32>} : memref<1x12xf32, #tpu.memory_space<vmem>>, vector<1x12xf32>,
    return
  }
}

</mosaic_0001>

<llo_original>
// kernel: _lambda_.2
$region0: #{_lambda_.2}
  #allocation0 [shape = 'u32[]', space=smem, size = 0x4, offset = 0x4, fixed_abs, tag = 'smem constant byte address 0x4 - core index']
  #allocation1 [shape = 'u32[144,128]{1,0:T(1,128)}', space=vmem, size = 0x12000, scoped, tag = 'internal scratch']
  %s0 = inlined_call_operand.vmem [shape: f32[16,128], index: 0, kind: input, shape index: {}]
  %s1 = inlined_call_operand.vmem [shape: bf16[5,3,16,16], index: 1, kind: input, shape index: {}]
  %s2 = inlined_call_operand.vmem [shape: bf16[5,3,128,128], index: 2, kind: input, shape index: {}]
  %s3 = inlined_call_operand.vmem [shape: f32[5,128], index: 3, kind: input, shape index: {}]
  %s4 = inlined_call_operand.vmem [shape: f32[5,128], index: 4, kind: input, shape index: {}]
  %s5 = inlined_call_operand.vmem [shape: bf16[1,16], index: 5, kind: input, shape index: {}]
  %s6 = inlined_call_operand.vmem [shape: bf16[128,8], index: 6, kind: input, shape index: {}]
  %s7 = inlined_call_operand.vmem [shape: bf16[8,1024], index: 7, kind: input, shape index: {}]
  %s8 = inlined_call_operand.vmem [shape: f32[1,1024], index: 8, kind: input, shape index: {}]
  %s9 = inlined_call_operand.vmem [shape: bf16[512,512], index: 9, kind: input, shape index: {}]
  %s10 = inlined_call_operand.vmem [shape: f32[1,512], index: 10, kind: input, shape index: {}]
  %s11 = inlined_call_operand.vmem [shape: bf16[512,512], index: 11, kind: input, shape index: {}]
  %s12 = inlined_call_operand.vmem [shape: f32[1,512], index: 12, kind: input, shape index: {}]
  %s13 = inlined_call_operand.vmem [shape: bf16[512,12], index: 13, kind: input, shape index: {}]
  %s14 = inlined_call_operand.vmem [shape: f32[1,12], index: 14, kind: input, shape index: {}]
  %s15 = inlined_call_operand.vmem [shape: bf16[512,12], index: 15, kind: input, shape index: {}]
  %s16 = inlined_call_operand.vmem [shape: f32[1,12], index: 16, kind: input, shape index: {}]
  %s17 = inlined_call_operand.hbm [shape: f32[1,12], index: 17, kind: output, shape index: {}]
  %s18 = sld [smem:[#allocation0]]
  $region78: #{_lambda_.2} parent=0
    _
  %s20 = ssub.s32 1, %s18
  %s21 = scalar_select 0, %s20, %s18
  $region1: #{_lambda_.2} parent=0
    #allocation2 [shape = 'u8[512]{0}', space=vmem, size = 0x400, scoped, tag = 'output window, operand 0, single buffered']
    #allocation3 [shape = 's32[1]{0}', space=sflag, size = 0x4, scoped, tag = 'scoped memory for _lambda_.2']
    %22 = vsyncpa [#allocation3], 0
    // Predicated region
    $region2: #{_lambda_.2} parent=1 // pred_check
      _
    $region3: #{_lambda_.2} parent=1 // pred_check_branch
      %24 = sbr.rel (0) target = $region5
    $region4: #{_lambda_.2} parent=1 // pred_region
      _
    $region5: #{_lambda_.2} parent=1 // pred_fallthru
      _
    // Predicated region
    $region6: #{_lambda_.2} parent=1 // pred_check
      _
    $region7: #{_lambda_.2} parent=1 // pred_check_branch
      %26 = sbr.rel (0) target = $region9
    $region8: #{_lambda_.2} parent=1 // pred_region
      _
    $region9: #{_lambda_.2} parent=1 // pred_fallthru
      _
    // Predicated region
    $region10: #{_lambda_.2} parent=1 // pred_check
      _
    $region11: #{_lambda_.2} parent=1 // pred_check_branch
      %28 = sbr.rel (0) target = $region13
    $region12: #{_lambda_.2} parent=1 // pred_region
      _
    $region13: #{_lambda_.2} parent=1 // pred_fallthru
      _
    // Predicated region
    $region14: #{_lambda_.2} parent=1 // pred_check
      _
    $region15: #{_lambda_.2} parent=1 // pred_check_branch
      %30 = sbr.rel (0) target = $region17
    $region16: #{_lambda_.2} parent=1 // pred_region
      _
    $region17: #{_lambda_.2} parent=1 // pred_fallthru
      _
    // Predicated region
    $region18: #{_lambda_.2} parent=1 // pred_check
      _
    $region19: #{_lambda_.2} parent=1 // pred_check_branch
      %32 = sbr.rel (0) target = $region21
    $region20: #{_lambda_.2} parent=1 // pred_region
      _
    $region21: #{_lambda_.2} parent=1 // pred_fallthru
      _
    // Predicated region
    $region22: #{_lambda_.2} parent=1 // pred_check
      _
    $region23: #{_lambda_.2} parent=1 // pred_check_branch
      %34 = sbr.rel (0) target = $region25
    $region24: #{_lambda_.2} parent=1 // pred_region
      _
    $region25: #{_lambda_.2} parent=1 // pred_fallthru
      _
    // Predicated region
    $region26: #{_lambda_.2} parent=1 // pred_check
      _
    $region27: #{_lambda_.2} parent=1 // pred_check_branch
      %36 = sbr.rel (0) target = $region29
    $region28: #{_lambda_.2} parent=1 // pred_region
      _
    $region29: #{_lambda_.2} parent=1 // pred_fallthru
      _
    // Predicated region
    $region30: #{_lambda_.2} parent=1 // pred_check
      _
    $region31: #{_lambda_.2} parent=1 // pred_check_branch
      %38 = sbr.rel (0) target = $region33
    $region32: #{_lambda_.2} parent=1 // pred_region
      _
    $region33: #{_lambda_.2} parent=1 // pred_fallthru
      _
    // Predicated region
    $region34: #{_lambda_.2} parent=1 // pred_check
      _
    $region35: #{_lambda_.2} parent=1 // pred_check_branch
      %40 = sbr.rel (0) target = $region37
    $region36: #{_lambda_.2} parent=1 // pred_region
      _
    $region37: #{_lambda_.2} parent=1 // pred_fallthru
      _
    // Predicated region
    $region38: #{_lambda_.2} parent=1 // pred_check
      _
    $region39: #{_lambda_.2} parent=1 // pred_check_branch
      %42 = sbr.rel (0) target = $region41
    $region40: #{_lambda_.2} parent=1 // pred_region
      _
    $region41: #{_lambda_.2} parent=1 // pred_fallthru
      _
    // Predicated region
    $region42: #{_lambda_.2} parent=1 // pred_check
      _
    $region43: #{_lambda_.2} parent=1 // pred_check_branch
      %44 = sbr.rel (0) target = $region45
    $region44: #{_lambda_.2} parent=1 // pred_region
      _
    $region45: #{_lambda_.2} parent=1 // pred_fallthru
      _
    // Predicated region
    $region46: #{_lambda_.2} parent=1 // pred_check
      _
    $region47: #{_lambda_.2} parent=1 // pred_check_branch
      %46 = sbr.rel (0) target = $region49
    $region48: #{_lambda_.2} parent=1 // pred_region
      _
    $region49: #{_lambda_.2} parent=1 // pred_fallthru
      _
    // Predicated region
    $region50: #{_lambda_.2} parent=1 // pred_check
      _
    $region51: #{_lambda_.2} parent=1 // pred_check_branch
      %48 = sbr.rel (0) target = $region53
    $region52: #{_lambda_.2} parent=1 // pred_region
      _
    $region53: #{_lambda_.2} parent=1 // pred_fallthru
      _
    // Predicated region
    $region54: #{_lambda_.2} parent=1 // pred_check
      _
    $region55: #{_lambda_.2} parent=1 // pred_check_branch
      %50 = sbr.rel (0) target = $region57
    $region56: #{_lambda_.2} parent=1 // pred_region
      _
    $region57: #{_lambda_.2} parent=1 // pred_fallthru
      _
    // Predicated region
    $region58: #{_lambda_.2} parent=1 // pred_check
      _
    $region59: #{_lambda_.2} parent=1 // pred_check_branch
      %52 = sbr.rel (0) target = $region61
    $region60: #{_lambda_.2} parent=1 // pred_region
      _
    $region61: #{_lambda_.2} parent=1 // pred_fallthru
      _
    // Predicated region
    $region62: #{_lambda_.2} parent=1 // pred_check
      _
    $region63: #{_lambda_.2} parent=1 // pred_check_branch
      %54 = sbr.rel (0) target = $region65
    $region64: #{_lambda_.2} parent=1 // pred_region
      _
    $region65: #{_lambda_.2} parent=1 // pred_fallthru
      _
    // Predicated region
    $region66: #{_lambda_.2} parent=1 // pred_check
      _
    $region67: #{_lambda_.2} parent=1 // pred_check_branch
      %56 = sbr.rel (0) target = $region69
    $region68: #{_lambda_.2} parent=1 // pred_region
      _
    $region69: #{_lambda_.2} parent=1 // pred_fallthru
      _
    %v58 = vld [vmem:[%s0] sm:$0xff]
    %v59 = vld [vmem:[%s0 + $0x8] sm:$0xff]
    %v60 = vpack.c.bf16 %v59, %v58
    %v61 = vld [vmem:[%s1] sm:$0xf]
    %v62 = vld [vmem:[%s1 + $0x4] sm:$0xf]
    %v65 = vunpack.c.l.b16 %v61
    %v66 = vunpack.c.l.b16 %v62
    %v67 = vpack.c.b16 %v66, %v65
    %vm68 = vcmask 130048
    %v70 = vsel %vm68, %v67, 0
    %72 = vmatprep.subr.bf16.mxu0 0
    %73 = vmatpush1.bf16.msra.mxu0 %v60
    %74 = vmatprep.subr.bf16.mxu0 0
    %75 = vmatpush1.bf16.msra.mxu0 0
    %76 = vmatprep.subr.bf16.mxu0 0
    %77 = vmatpush1.bf16.msra.mxu0 0
    %78 = vmatprep.subr.bf16.mxu0 0
    %79 = vmatpush1.bf16.msra.mxu0 0
    %80 = vmatprep.subr.bf16.mxu0 0
    %81 = vmatpush1.bf16.msra.mxu0 0
    %82 = vmatprep.subr.bf16.mxu0 0
    %83 = vmatpush1.bf16.msra.mxu0 0
    %84 = vmatprep.subr.bf16.mxu0 0
    %85 = vmatpush1.bf16.msra.mxu0 0
    %86 = vmatprep.subr.bf16.mxu0 0
    %87 = vmatpush1.bf16.msra.mxu0 0
    %88 = vmatprep.subr.bf16.mxu0 0
    %89 = vmatpush1.bf16.msra.mxu0 0
    %90 = vmatprep.subr.bf16.mxu0 0
    %91 = vmatpush1.bf16.msra.mxu0 0
    %92 = vmatprep.subr.bf16.mxu0 0
    %93 = vmatpush1.bf16.msra.mxu0 0
    %94 = vmatprep.subr.bf16.mxu0 0
    %95 = vmatpush1.bf16.msra.mxu0 0
    %96 = vmatprep.subr.bf16.mxu0 0
    %97 = vmatpush1.bf16.msra.mxu0 0
    %98 = vmatprep.subr.bf16.mxu0 0
    %99 = vmatpush1.bf16.msra.mxu0 0
    %100 = vmatprep.subr.bf16.mxu0 0
    %101 = vmatpush1.bf16.msra.mxu0 0
    %102 = vmatprep.subr.bf16.mxu0 0
    %103 = vmatpush1.bf16.msra.mxu0 0
    %104 = vmatprep.mubr.bf16.mxu0 0
    %105 = vmatmul.mubr.bf16.gmra.mrb[0].mxu0 %v70
    %v106 = vpop.f32.mrb[0].mxu0
    %v107 = vadd.f32 0.0, %v106
    %v108 = vpop.f32.mrb[0].mxu0
    %v109 = vpop.f32.mrb[0].mxu0
    %v110 = vadd.f32 0.0, %v109
    %v111 = vpop.f32.mrb[0].mxu0
    %112 = vdwg.mxu0
    %v113 = vpack.c.bf16 %v110, %v107
    %v114 = vld [vmem:[%s2] sm:$0xf]
    %v115 = vld [vmem:[%s2 + $0x4] sm:$0xf]
    %v116 = vld [vmem:[%s2 + $0x8] sm:$0xf]
    %v117 = vld [vmem:[%s2 + $0xc] sm:$0xf]
    %v118 = vld [vmem:[%s2 + $0x10] sm:$0xf]
    %v119 = vld [vmem:[%s2 + $0x14] sm:$0xf]
    %v120 = vld [vmem:[%s2 + $0x18] sm:$0xf]
    %v121 = vld [vmem:[%s2 + $0x1c] sm:$0xf]
    %v122 = vld [vmem:[%s2 + $0x20] sm:$0xf]
    %v123 = vld [vmem:[%s2 + $0x24] sm:$0xf]
    %v124 = vld [vmem:[%s2 + $0x28] sm:$0xf]
    %v125 = vld [vmem:[%s2 + $0x2c] sm:$0xf]
    %v126 = vld [vmem:[%s2 + $0x30] sm:$0xf]
    %v127 = vld [vmem:[%s2 + $0x34] sm:$0xf]
    %v128 = vld [vmem:[%s2 + $0x38] sm:$0xf]
    %v129 = vld [vmem:[%s2 + $0x3c] sm:$0xf]
    %s130 = scalar_lea.vmem %s1, 8
    %v131 = vld [vmem:[%s130] sm:$0xf]
    %v132 = vld [vmem:[%s130 + $0x4] sm:$0xf]
    %v135 = vunpack.c.l.b16 %v131
    %v136 = vunpack.c.l.b16 %v132
    %v137 = vpack.c.b16 %v136, %v135
    %v139 = vsel %vm68, %v137, 0
    %141 = vmatprep.subr.bf16.mxu0 0
    %142 = vmatpush1.bf16.msra.mxu0 %v60
    %143 = vmatprep.subr.bf16.mxu0 0
    %144 = vmatpush1.bf16.msra.mxu0 0
    %145 = vmatprep.subr.bf16.mxu0 0
    %146 = vmatpush1.bf16.msra.mxu0 0
    %147 = vmatprep.subr.bf16.mxu0 0
    %148 = vmatpush1.bf16.msra.mxu0 0
    %149 = vmatprep.subr.bf16.mxu0 0
    %150 = vmatpush1.bf16.msra.mxu0 0
    %151 = vmatprep.subr.bf16.mxu0 0
    %152 = vmatpush1.bf16.msra.mxu0 0
    %153 = vmatprep.subr.bf16.mxu0 0
    %154 = vmatpush1.bf16.msra.mxu0 0
    %155 = vmatprep.subr.bf16.mxu0 0
    %156 = vmatpush1.bf16.msra.mxu0 0
    %157 = vmatprep.subr.bf16.mxu0 0
    %158 = vmatpush1.bf16.msra.mxu0 0
    %159 = vmatprep.subr.bf16.mxu0 0
    %160 = vmatpush1.bf16.msra.mxu0 0
    %161 = vmatprep.subr.bf16.mxu0 0
    %162 = vmatpush1.bf16.msra.mxu0 0
    %163 = vmatprep.subr.bf16.mxu0 0
    %164 = vmatpush1.bf16.msra.mxu0 0
    %165 = vmatprep.subr.bf16.mxu0 0
    %166 = vmatpush1.bf16.msra.mxu0 0
    %167 = vmatprep.subr.bf16.mxu0 0
    %168 = vmatpush1.bf16.msra.mxu0 0
    %169 = vmatprep.subr.bf16.mxu0 0
    %170 = vmatpush1.bf16.msra.mxu0 0
    %171 = vmatprep.subr.bf16.mxu0 0
    %172 = vmatpush1.bf16.msra.mxu0 0
    %173 = vmatprep.mubr.bf16.mxu0 0
    %174 = vmatmul.mubr.bf16.gmra.mrb[0].mxu0 %v139
    %v175 = vpop.f32.mrb[0].mxu0
    %v176 = vadd.f32 0.0, %v175
    %v177 = vpop.f32.mrb[0].mxu0
    %v178 = vpop.f32.mrb[0].mxu0
    %v179 = vadd.f32 0.0, %v178
    %v180 = vpop.f32.mrb[0].mxu0
    %181 = vdwg.mxu0
    %v182 = vpack.c.bf16 %v179, %v176
    %s183 = scalar_lea.vmem %s2, 64
    %v184 = vld [vmem:[%s183] sm:$0xf]
    %v185 = vld [vmem:[%s183 + $0x4] sm:$0xf]
    %v186 = vld [vmem:[%s183 + $0x8] sm:$0xf]
    %v187 = vld [vmem:[%s183 + $0xc] sm:$0xf]
    %v188 = vld [vmem:[%s183 + $0x10] sm:$0xf]
    %v189 = vld [vmem:[%s183 + $0x14] sm:$0xf]
    %v190 = vld [vmem:[%s183 + $0x18] sm:$0xf]
    %v191 = vld [vmem:[%s183 + $0x1c] sm:$0xf]
    %v192 = vld [vmem:[%s183 + $0x20] sm:$0xf]
    %v193 = vld [vmem:[%s183 + $0x24] sm:$0xf]
    %v194 = vld [vmem:[%s183 + $0x28] sm:$0xf]
    %v195 = vld [vmem:[%s183 + $0x2c] sm:$0xf]
    %v196 = vld [vmem:[%s183 + $0x30] sm:$0xf]
    %v197 = vld [vmem:[%s183 + $0x34] sm:$0xf]
    %v198 = vld [vmem:[%s183 + $0x38] sm:$0xf]
    %v199 = vld [vmem:[%s183 + $0x3c] sm:$0xf]
    %v216 = vunpack.c.l.b16 %v184
    %v217 = vunpack.c.l.b16 %v185
    %v218 = vunpack.c.l.b16 %v186
    %v219 = vunpack.c.l.b16 %v187
    %v220 = vunpack.c.l.b16 %v188
    %v221 = vunpack.c.l.b16 %v189
    %v222 = vunpack.c.l.b16 %v190
    %v223 = vunpack.c.l.b16 %v191
    %v224 = vunpack.c.l.b16 %v192
    %v225 = vunpack.c.l.b16 %v193
    %v226 = vunpack.c.l.b16 %v194
    %v227 = vunpack.c.l.b16 %v195
    %v228 = vunpack.c.l.b16 %v196
    %v229 = vunpack.c.l.b16 %v197
    %v230 = vunpack.c.l.b16 %v198
    %v231 = vunpack.c.l.b16 %v199
    %v232 = vpack.c.b16 %v217, %v216
    %v233 = vpack.c.b16 %v219, %v218
    %v234 = vpack.c.b16 %v221, %v220
    %v235 = vpack.c.b16 %v223, %v222
    %v236 = vpack.c.b16 %v225, %v224
    %v237 = vpack.c.b16 %v227, %v226
    %v238 = vpack.c.b16 %v229, %v228
    %v239 = vpack.c.b16 %v231, %v230
    %248 = vmatprep.subr.bf16.mxu0 0
    %249 = vmatpush1.bf16.msra.mxu0 %v232
    %250 = vmatprep.subr.bf16.mxu0 0
    %251 = vmatpush1.bf16.msra.mxu0 %v233
    %252 = vmatprep.subr.bf16.mxu0 0
    %253 = vmatpush1.bf16.msra.mxu0 %v234
    %254 = vmatprep.subr.bf16.mxu0 0
    %255 = vmatpush1.bf16.msra.mxu0 %v235
    %256 = vmatprep.subr.bf16.mxu0 0
    %257 = vmatpush1.bf16.msra.mxu0 %v236
    %258 = vmatprep.subr.bf16.mxu0 0
    %259 = vmatpush1.bf16.msra.mxu0 %v237
    %260 = vmatprep.subr.bf16.mxu0 0
    %261 = vmatpush1.bf16.msra.mxu0 %v238
    %262 = vmatprep.subr.bf16.mxu0 0
    %263 = vmatpush1.bf16.msra.mxu0 %v239
    %264 = vmatprep.subr.bf16.mxu0 0
    %265 = vmatpush1.bf16.msra.mxu0 0
    %266 = vmatprep.subr.bf16.mxu0 0
    %267 = vmatpush1.bf16.msra.mxu0 0
    %268 = vmatprep.subr.bf16.mxu0 0
    %269 = vmatpush1.bf16.msra.mxu0 0
    %270 = vmatprep.subr.bf16.mxu0 0
    %271 = vmatpush1.bf16.msra.mxu0 0
    %272 = vmatprep.subr.bf16.mxu0 0
    %273 = vmatpush1.bf16.msra.mxu0 0
    %274 = vmatprep.subr.bf16.mxu0 0
    %275 = vmatpush1.bf16.msra.mxu0 0
    %276 = vmatprep.subr.bf16.mxu0 0
    %277 = vmatpush1.bf16.msra.mxu0 0
    %278 = vmatprep.subr.bf16.mxu0 0
    %279 = vmatpush1.bf16.msra.mxu0 0
    %280 = vmatprep.mubr.bf16.mxu0 0
    %281 = vmatmul.mubr.bf16.gmra.mrb[0].mxu0 %v182
    %v282 = vpop.f32.mrb[0].mxu0
    %v283 = vadd.f32 0.0, %v282
    %v284 = vpop.f32.mrb[0].mxu0
    %v285 = vpop.f32.mrb[0].mxu0
    %v286 = vadd.f32 0.0, %v285
    %v287 = vpop.f32.mrb[0].mxu0
    %288 = vdwg.mxu0
    %v305 = vunpack.c.l.b16 %v114
    %v306 = vunpack.c.l.b16 %v115
    %v307 = vunpack.c.l.b16 %v116
    %v308 = vunpack.c.l.b16 %v117
    %v309 = vunpack.c.l.b16 %v118
    %v310 = vunpack.c.l.b16 %v119
    %v311 = vunpack.c.l.b16 %v120
    %v312 = vunpack.c.l.b16 %v121
    %v313 = vunpack.c.l.b16 %v122
    %v314 = vunpack.c.l.b16 %v123
    %v315 = vunpack.c.l.b16 %v124
    %v316 = vunpack.c.l.b16 %v125
    %v317 = vunpack.c.l.b16 %v126
    %v318 = vunpack.c.l.b16 %v127
    %v319 = vunpack.c.l.b16 %v128
    %v320 = vunpack.c.l.b16 %v129
    %v321 = vpack.c.b16 %v306, %v305
    %v322 = vpack.c.b16 %v308, %v307
    %v323 = vpack.c.b16 %v310, %v309
    %v324 = vpack.c.b16 %v312, %v311
    %v325 = vpack.c.b16 %v314, %v313
    %v326 = vpack.c.b16 %v316, %v315
    %v327 = vpack.c.b16 %v318, %v317
    %v328 = vpack.c.b16 %v320, %v319
    %337 = vmatprep.subr.bf16.mxu0 0
    %338 = vmatpush1.bf16.msra.mxu0 %v321
    %339 = vmatprep.subr.bf16.mxu0 0
    %340 = vmatpush1.bf16.msra.mxu0 %v322
    %341 = vmatprep.subr.bf16.mxu0 0
    %342 = vmatpush1.bf16.msra.mxu0 %v323
    %343 = vmatprep.subr.bf16.mxu0 0
    %344 = vmatpush1.bf16.msra.mxu0 %v324
    %345 = vmatprep.subr.bf16.mxu0 0
    %346 = vmatpush1.bf16.msra.mxu0 %v325
    %347 = vmatprep.subr.bf16.mxu0 0
    %348 = vmatpush1.bf16.msra.mxu0 %v326
    %349 = vmatprep.subr.bf16.mxu0 0
    %350 = vmatpush1.bf16.msra.mxu0 %v327
    %351 = vmatprep.subr.bf16.mxu0 0
    %352 = vmatpush1.bf16.msra.mxu0 %v328
    %353 = vmatprep.subr.bf16.mxu0 0
    %354 = vmatpush1.bf16.msra.mxu0 0
    %355 = vmatprep.subr.bf16.mxu0 0
    %356 = vmatpush1.bf16.msra.mxu0 0
    %357 = vmatprep.subr.bf16.mxu0 0
    %358 = vmatpush1.bf16.msra.mxu0 0
    %359 = vmatprep.subr.bf16.mxu0 0
    %360 = vmatpush1.bf16.msra.mxu0 0
    %361 = vmatprep.subr.bf16.mxu0 0
    %362 = vmatpush1.bf16.msra.mxu0 0
    %363 = vmatprep.subr.bf16.mxu0 0
    %364 = vmatpush1.bf16.msra.mxu0 0
    %365 = vmatprep.subr.bf16.mxu0 0
    %366 = vmatpush1.bf16.msra.mxu0 0
    %367 = vmatprep.subr.bf16.mxu0 0
    %368 = vmatpush1.bf16.msra.mxu0 0
    %369 = vmatprep.mubr.bf16.mxu0 0
    %370 = vmatmul.mubr.bf16.gmra.mrb[0].mxu0 %v113
    %v371 = vpop.f32.mrb[0].mxu0
    %v372 = vadd.f32 %v283, %v371
    %v373 = vpop.f32.mrb[0].mxu0
    %v374 = vpop.f32.mrb[0].mxu0
    %v375 = vadd.f32 %v286, %v374
    %v376 = vpop.f32.mrb[0].mxu0
    %377 = vdwg.mxu0
    %s378 = scalar_lea.vmem %s1, 16
    %v379 = vld [vmem:[%s378] sm:$0xf]
    %v380 = vld [vmem:[%s378 + $0x4] sm:$0xf]
    %v383 = vunpack.c.l.b16 %v379
    %v384 = vunpack.c.l.b16 %v380
    %v385 = vpack.c.b16 %v384, %v383
    %v387 = vsel %vm68, %v385, 0
    %389 = vmatprep.subr.bf16.mxu0 0
    %390 = vmatpush1.bf16.msra.mxu0 %v60
    %391 = vmatprep.subr.bf16.mxu0 0
    %392 = vmatpush1.bf16.msra.mxu0 0
    %393 = vmatprep.subr.bf16.mxu0 0
    %394 = vmatpush1.bf16.msra.mxu0 0
    %395 = vmatprep.subr.bf16.mxu0 0
    %396 = vmatpush1.bf16.msra.mxu0 0
    %397 = vmatprep.subr.bf16.mxu0 0
    %398 = vmatpush1.bf16.msra.mxu0 0
    %399 = vmatprep.subr.bf16.mxu0 0
    %400 = vmatpush1.bf16.msra.mxu0 0
    %401 = vmatprep.subr.bf16.mxu0 0
    %402 = vmatpush1.bf16.msra.mxu0 0
    %403 = vmatprep.subr.bf16.mxu0 0
    %404 = vmatpush1.bf16.msra.mxu0 0
    %405 = vmatprep.subr.bf16.mxu0 0
    %406 = vmatpush1.bf16.msra.mxu0 0
    %407 = vmatprep.subr.bf16.mxu0 0
    %408 = vmatpush1.bf16.msra.mxu0 0
    %409 = vmatprep.subr.bf16.mxu0 0
    %410 = vmatpush1.bf16.msra.mxu0 0
    %411 = vmatprep.subr.bf16.mxu0 0
    %412 = vmatpush1.bf16.msra.mxu0 0
    %413 = vmatprep.subr.bf16.mxu0 0
    %414 = vmatpush1.bf16.msra.mxu0 0
    %415 = vmatprep.subr.bf16.mxu0 0
    %416 = vmatpush1.bf16.msra.mxu0 0
    %417 = vmatprep.subr.bf16.mxu0 0
    %418 = vmatpush1.bf16.msra.mxu0 0
    %419 = vmatprep.subr.bf16.mxu0 0
    %420 = vmatpush1.bf16.msra.mxu0 0
    %421 = vmatprep.mubr.bf16.mxu0 0
    %422 = vmatmul.mubr.bf16.gmra.mrb[0].mxu0 %v387
    %v423 = vpop.f32.mrb[0].mxu0
    %v424 = vadd.f32 0.0, %v423
    %v425 = vpop.f32.mrb[0].mxu0
    %v426 = vpop.f32.mrb[0].mxu0
    %v427 = vadd.f32 0.0, %v426
    %v428 = vpop.f32.mrb[0].mxu0
    %429 = vdwg.mxu0
    %v430 = vpack.c.bf16 %v427, %v424
    %s431 = scalar_lea.vmem %s2, 128
    %v432 = vld [vmem:[%s431] sm:$0xf]
    %v433 = vld [vmem:[%s431 + $0x4] sm:$0xf]
    %v434 = vld [vmem:[%s431 + $0x8] sm:$0xf]
    %v435 = vld [vmem:[%s431 + $0xc] sm:$0xf]
    %v436 = vld [vmem:[%s431 + $0x10] sm:$0xf]
    %v437 = vld [vmem:[%s431 + $0x14] sm:$0xf]
    %v438 = vld [vmem:[%s431 + $0x18] sm:$0xf]
    %v439 = vld [vmem:[%s431 + $0x1c] sm:$0xf]
    %v440 = vld [vmem:[%s431 + $0x20] sm:$0xf]
    %v441 = vld [vmem:[%s431 + $0x24] sm:$0xf]
    %v442 = vld [vmem:[%s431 + $0x28] sm:$0xf]
    %v443 = vld [vmem:[%s431 + $0x2c] sm:$0xf]
    %v444 = vld [vmem:[%s431 + $0x30] sm:$0xf]
    %v445 = vld [vmem:[%s431 + $0x34] sm:$0xf]
    %v446 = vld [vmem:[%s431 + $0x38] sm:$0xf]
    %v447 = vld [vmem:[%s431 + $0x3c] sm:$0xf]
    %v464 = vunpack.c.l.b16 %v432
    %v465 = vunpack.c.l.b16 %v433
    %v466 = vunpack.c.l.b16 %v434
    %v467 = vunpack.c.l.b16 %v435
    %v468 = vunpack.c.l.b16 %v436
    %v469 = vunpack.c.l.b16 %v437
    %v470 = vunpack.c.l.b16 %v438
    %v471 = vunpack.c.l.b16 %v439
    %v472 = vunpack.c.l.b16 %v440
    %v473 = vunpack.c.l.b16 %v441
    %v474 = vunpack.c.l.b16 %v442
    %v475 = vunpack.c.l.b16 %v443
    %v476 = vunpack.c.l.b16 %v444
    %v477 = vunpack.c.l.b16 %v445
    %v478 = vunpack.c.l.b16 %v446
    %v479 = vunpack.c.l.b16 %v447
    %v480 = vpack.c.b16 %v465, %v464
    %v481 = vpack.c.b16 %v467, %v466
    %v482 = vpack.c.b16 %v469, %v468
    %v483 = vpack.c.b16 %v471, %v470
    %v484 = vpack.c.b16 %v473, %v472
    %v485 = vpack.c.b16 %v475, %v474
    %v486 = vpack.c.b16 %v477, %v476
    %v487 = vpack.c.b16 %v479, %v478
    %496 = vmatprep.subr.bf16.mxu0 0
    %497 = vmatpush1.bf16.msra.mxu0 %v480
    %498 = vmatprep.subr.bf16.mxu0 0
    %499 = vmatpush1.bf16.msra.mxu0 %v481
    %500 = vmatprep.subr.bf16.mxu0 0
    %501 = vmatpush1.bf16.msra.mxu0 %v482
    %502 = vmatprep.subr.bf16.mxu0 0
    %503 = vmatpush1.bf16.msra.mxu0 %v483
    %504 = vmatprep.subr.bf16.mxu0 0
    %505 = vmatpush1.bf16.msra.mxu0 %v484
    %506 = vmatprep.subr.bf16.mxu0 0
    %507 = vmatpush1.bf16.msra.mxu0 %v485
    %508 = vmatprep.subr.bf16.mxu0 0
    %509 = vmatpush1.bf16.msra.mxu0 %v486
    %510 = vmatprep.subr.bf16.mxu0 0
    %511 = vmatpush1.bf16.msra.mxu0 %v487
    %512 = vmatprep.subr.bf16.mxu0 0
    %513 = vmatpush1.bf16.msra.mxu0 0
    %514 = vmatprep.subr.bf16.mxu0 0
    %515 = vmatpush1.bf16.msra.mxu0 0
    %516 = vmatprep.subr.bf16.mxu0 0
    %517 = vmatpush1.bf16.msra.mxu0 0
    %518 = vmatprep.subr.bf16.mxu0 0
    %519 = vmatpush1.bf16.msra.mxu0 0
    %520 = vmatprep.subr.bf16.mxu0 0
    %521 = vmatpush1.bf16.msra.mxu0 0
    %522 = vmatprep.subr.bf16.mxu0 0
    %523 = vmatpush1.bf16.msra.mxu0 0
    %524 = vmatprep.subr.bf16.mxu0 0
    %525 = vmatpush1.bf16.msra.mxu0 0
    %526 = vmatprep.subr.bf16.mxu0 0
    %527 = vmatpush1.bf16.msra.mxu0 0
    %528 = vmatprep.mubr.bf16.mxu0 0
    %529 = vmatmul.mubr.bf16.gmra.mrb[0].mxu0 %v430
    %v530 = vpop.f32.mrb[0].mxu0
    %v531 = vadd.f32 0.0, %v530
    %v532 = vpop.f32.mrb[0].mxu0
    %v533 = vpop.f32.mrb[0].mxu0
    %v534 = vadd.f32 0.0, %v533
    %v535 = vpop.f32.mrb[0].mxu0
    %536 = vdwg.mxu0
    %v537 = vadd.f32 %v372, %v531
    %v538 = vadd.f32 %v375, %v534
    %v539 = vld [vmem:[%s3] sm:$0x1]
    %v540 = vlaneseq
    %v541 = vshrl.u32 %v540, 7
    %v542 = vsub.s32 0, %v541
    %v543 = vrot.slane %v539, %v542
    %v544 = vmul.f32 %v537, %v543
    %v545 = vmul.f32 %v538, %v543
    %v546 = vld [vmem:[%s4] sm:$0x1]
    %v547 = vlaneseq
    %v548 = vshrl.u32 %v547, 7
    %v549 = vsub.s32 0, %v548
    %v550 = vrot.slane %v546, %v549
    %v551 = vadd.f32 %v544, %v550
    %v552 = vadd.f32 %v545, %v550
    %v553 = vmax.f32 %v551, 0.0
    %v554 = vmax.f32 %v552, 0.0
    %v555 = vpack.c.bf16 %v554, %v553
    %s556 = scalar_lea.vmem %s1, 24
    %v557 = vld [vmem:[%s556] sm:$0xf]
    %v558 = vld [vmem:[%s556 + $0x4] sm:$0xf]
    %v561 = vunpack.c.l.b16 %v557
    %v562 = vunpack.c.l.b16 %v558
    %v563 = vpack.c.b16 %v562, %v561
    %v565 = vsel %vm68, %v563, 0
    %567 = vmatprep.subr.bf16.mxu0 0
    %568 = vmatpush1.bf16.msra.mxu0 %v555
    %569 = vmatprep.subr.bf16.mxu0 0
    %570 = vmatpush1.bf16.msra.mxu0 0
    %571 = vmatprep.subr.bf16.mxu0 0
    %572 = vmatpush1.bf16.msra.mxu0 0
    %573 = vmatprep.subr.bf16.mxu0 0
    %574 = vmatpush1.bf16.msra.mxu0 0
    %575 = vmatprep.subr.bf16.mxu0 0
    %576 = vmatpush1.bf16.msra.mxu0 0
    %577 = vmatprep.subr.bf16.mxu0 0
    %578 = vmatpush1.bf16.msra.mxu0 0
    %579 = vmatprep.subr.bf16.mxu0 0
    %580 = vmatpush1.bf16.msra.mxu0 0
    %581 = vmatprep.subr.bf16.mxu0 0
    %582 = vmatpush1.bf16.msra.mxu0 0
    %583 = vmatprep.subr.bf16.mxu0 0
    %584 = vmatpush1.bf16.msra.mxu0 0
    %585 = vmatprep.subr.bf16.mxu0 0
    %586 = vmatpush1.bf16.msra.mxu0 0
    %587 = vmatprep.subr.bf16.mxu0 0
    %588 = vmatpush1.bf16.msra.mxu0 0
    %589 = vmatprep.subr.bf16.mxu0 0
    %590 = vmatpush1.bf16.msra.mxu0 0
    %591 = vmatprep.subr.bf16.mxu0 0
    %592 = vmatpush1.bf16.msra.mxu0 0
    %593 = vmatprep.subr.bf16.mxu0 0
    %594 = vmatpush1.bf16.msra.mxu0 0
    %595 = vmatprep.subr.bf16.mxu0 0
    %596 = vmatpush1.bf16.msra.mxu0 0
    %597 = vmatprep.subr.bf16.mxu0 0
    %598 = vmatpush1.bf16.msra.mxu0 0
    %599 = vmatprep.mubr.bf16.mxu0 0
    %600 = vmatmul.mubr.bf16.gmra.mrb[0].mxu0 %v565
    %v601 = vpop.f32.mrb[0].mxu0
    %v602 = vadd.f32 0.0, %v601
    %v603 = vpop.f32.mrb[0].mxu0
    %v604 = vpop.f32.mrb[0].mxu0
    %v605 = vadd.f32 0.0, %v604
    %v606 = vpop.f32.mrb[0].mxu0
    %607 = vdwg.mxu0
    %v608 = vpack.c.bf16 %v605, %v602
    %s609 = scalar_lea.vmem %s2, 192
    %v610 = vld [vmem:[%s609] sm:$0xf]
    %v611 = vld [vmem:[%s609 + $0x4] sm:$0xf]
    %v612 = vld [vmem:[%s609 + $0x8] sm:$0xf]
    %v613 = vld [vmem:[%s609 + $0xc] sm:$0xf]
    %v614 = vld [vmem:[%s609 + $0x10] sm:$0xf]
    %v615 = vld [vmem:[%s609 + $0x14] sm:$0xf]
    %v616 = vld [vmem:[%s609 + $0x18] sm:$0xf]
    %v617 = vld [vmem:[%s609 + $0x1c] sm:$0xf]
    %v618 = vld [vmem:[%s609 + $0x20] sm:$0xf]
    %v619 = vld [vmem:[%s609 + $0x24] sm:$0xf]
    %v620 = vld [vmem:[%s609 + $0x28] sm:$0xf]
    %v621 = vld [vmem:[%s609 + $0x2c] sm:$0xf]
    %v622 = vld [vmem:[%s609 + $0x30] sm:$0xf]
    %v623 = vld [vmem:[%s609 + $0x34] sm:$0xf]
    %v624 = vld [vmem:[%s609 + $0x38] sm:$0xf]
    %v625 = vld [vmem:[%s609 + $0x3c] sm:$0xf]
    %s626 = scalar_lea.vmem %s1, 32
    %v627 = vld [vmem:[%s626] sm:$0xf]
    %v628 = vld [vmem:[%s626 + $0x4] sm:$0xf]
    %v631 = vunpack.c.l.b16 %v627
    %v632 = vunpack.c.l.b16 %v628
    %v633 = vpack.c.b16 %v632, %v631
    %v635 = vsel %vm68, %v633, 0
    %637 = vmatprep.subr.bf16.mxu0 0
    %638 = vmatpush1.bf16.msra.mxu0 %v555
    %639 = vmatprep.subr.bf16.mxu0 0
    %640 = vmatpush1.bf16.msra.mxu0 0
    %641 = vmatprep.subr.bf16.mxu0 0
    %642 = vmatpush1.bf16.msra.mxu0 0
    %643 = vmatprep.subr.bf16.mxu0 0
    %644 = vmatpush1.bf16.msra.mxu0 0
    %645 = vmatprep.subr.bf16.mxu0 0
    %646 = vmatpush1.bf16.msra.mxu0 0
    %647 = vmatprep.subr.bf16.mxu0 0
    %648 = vmatpush1.bf16.msra.mxu0 0
    %649 = vmatprep.subr.bf16.mxu0 0
    %650 = vmatpush1.bf16.msra.mxu0 0
    %651 = vmatprep.subr.bf16.mxu0 0
    %652 = vmatpush1.bf16.msra.mxu0 0
    %653 = vmatprep.subr.bf16.mxu0 0
    %654 = vmatpush1.bf16.msra.mxu0 0
    %655 = vmatprep.subr.bf16.mxu0 0
    %656 = vmatpush1.bf16.msra.mxu0 0
    %657 = vmatprep.subr.bf16.mxu0 0
    %658 = vmatpush1.bf16.msra.mxu0 0
    %659 = vmatprep.subr.bf16.mxu0 0
    %660 = vmatpush1.bf16.msra.mxu0 0
    %661 = vmatprep.subr.bf16.mxu0 0
    %662 = vmatpush1.bf16.msra.mxu0 0
    %663 = vmatprep.subr.bf16.mxu0 0
    %664 = vmatpush1.bf16.msra.mxu0 0
    %665 = vmatprep.subr.bf16.mxu0 0
    %666 = vmatpush1.bf16.msra.mxu0 0
    %667 = vmatprep.subr.bf16.mxu0 0
    %668 = vmatpush1.bf16.msra.mxu0 0
    %669 = vmatprep.mubr.bf16.mxu0 0
    %670 = vmatmul.mubr.bf16.gmra.mrb[0].mxu0 %v635
    %v671 = vpop.f32.mrb[0].mxu0
    %v672 = vadd.f32 0.0, %v671
    %v673 = vpop.f32.mrb[0].mxu0
    %v674 = vpop.f32.mrb[0].mxu0
    %v675 = vadd.f32 0.0, %v674
    %v676 = vpop.f32.mrb[0].mxu0
    %677 = vdwg.mxu0
    %v678 = vpack.c.bf16 %v675, %v672
    %s679 = scalar_lea.vmem %s2, 256
    %v680 = vld [vmem:[%s679] sm:$0xf]
    %v681 = vld [vmem:[%s679 + $0x4] sm:$0xf]
    %v682 = vld [vmem:[%s679 + $0x8] sm:$0xf]
    %v683 = vld [vmem:[%s679 + $0xc] sm:$0xf]
    %v684 = vld [vmem:[%s679 + $0x10] sm:$0xf]
    %v685 = vld [vmem:[%s679 + $0x14] sm:$0xf]
    %v686 = vld [vmem:[%s679 + $0x18] sm:$0xf]
    %v687 = vld [vmem:[%s679 + $0x1c] sm:$0xf]
    %v688 = vld [vmem:[%s679 + $0x20] sm:$0xf]
    %v689 = vld [vmem:[%s679 + $0x24] sm:$0xf]
    %v690 = vld [vmem:[%s679 + $0x28] sm:$0xf]
    %v691 = vld [vmem:[%s679 + $0x2c] sm:$0xf]
    %v692 = vld [vmem:[%s679 + $0x30] sm:$0xf]
    %v693 = vld [vmem:[%s679 + $0x34] sm:$0xf]
    %v694 = vld [vmem:[%s679 + $0x38] sm:$0xf]
    %v695 = vld [vmem:[%s679 + $0x3c] sm:$0xf]
    %v712 = vunpack.c.l.b16 %v680
    %v713 = vunpack.c.l.b16 %v681
    %v714 = vunpack.c.l.b16 %v682
    %v715 = vunpack.c.l.b16 %v683
    %v716 = vunpack.c.l.b16 %v684
    %v717 = vunpack.c.l.b16 %v685
    %v718 = vunpack.c.l.b16 %v686
    %v719 = vunpack.c.l.b16 %v687
    %v720 = vunpack.c.l.b16 %v688
    %v721 = vunpack.c.l.b16 %v689
    %v722 = vunpack.c.l.b16 %v690
    %v723 = vunpack.c.l.b16 %v691
    %v724 = vunpack.c.l.b16 %v692
    %v725 = vunpack.c.l.b16 %v693
    %v726 = vunpack.c.l.b16 %v694
    %v727 = vunpack.c.l.b16 %v695
    %v728 = vpack.c.b16 %v713, %v712
    %v729 = vpack.c.b16 %v715, %v714
    %v730 = vpack.c.b16 %v717, %v716
    %v731 = vpack.c.b16 %v719, %v718
    %v732 = vpack.c.b16 %v721, %v720
    %v733 = vpack.c.b16 %v723, %v722
    %v734 = vpack.c.b16 %v725, %v724
    %v735 = vpack.c.b16 %v727, %v726
    %744 = vmatprep.subr.bf16.mxu0 0
    %745 = vmatpush1.bf16.msra.mxu0 %v728
    %746 = vmatprep.subr.bf16.mxu0 0
    %747 = vmatpush1.bf16.msra.mxu0 %v729
    %748 = vmatprep.subr.bf16.mxu0 0
    %749 = vmatpush1.bf16.msra.mxu0 %v730
    %750 = vmatprep.subr.bf16.mxu0 0
    %751 = vmatpush1.bf16.msra.mxu0 %v731
    %752 = vmatprep.subr.bf16.mxu0 0
    %753 = vmatpush1.bf16.msra.mxu0 %v732
    %754 = vmatprep.subr.bf16.mxu0 0
    %755 = vmatpush1.bf16.msra.mxu0 %v733
    %756 = vmatprep.subr.bf16.mxu0 0
    %757 = vmatpush1.bf16.msra.mxu0 %v734
    %758 = vmatprep.subr.bf16.mxu0 0
    %759 = vmatpush1.bf16.msra.mxu0 %v735
    %760 = vmatprep.subr.bf16.mxu0 0
    %761 = vmatpush1.bf16.msra.mxu0 0
    %762 = vmatprep.subr.bf16.mxu0 0
    %763 = vmatpush1.bf16.msra.mxu0 0
    %764 = vmatprep.subr.bf16.mxu0 0
    %765 = vmatpush1.bf16.msra.mxu0 0
    %766 = vmatprep.subr.bf16.mxu0 0
    %767 = vmatpush1.bf16.msra.mxu0 0
    %768 = vmatprep.subr.bf16.mxu0 0
    %769 = vmatpush1.bf16.msra.mxu0 0
    %770 = vmatprep.subr.bf16.mxu0 0
    %771 = vmatpush1.bf16.msra.mxu0 0
    %772 = vmatprep.subr.bf16.mxu0 0
    %773 = vmatpush1.bf16.msra.mxu0 0
    %774 = vmatprep.subr.bf16.mxu0 0
    %775 = vmatpush1.bf16.msra.mxu0 0
    %776 = vmatprep.mubr.bf16.mxu0 0
    %777 = vmatmul.mubr.bf16.gmra.mrb[0].mxu0 %v678
    %v778 = vpop.f32.mrb[0].mxu0
    %v779 = vadd.f32 0.0, %v778
    %v780 = vpop.f32.mrb[0].mxu0
    %v781 = vpop.f32.mrb[0].mxu0
    %v782 = vadd.f32 0.0, %v781
    %v783 = vpop.f32.mrb[0].mxu0
    %784 = vdwg.mxu0
    %v801 = vunpack.c.l.b16 %v610
    %v802 = vunpack.c.l.b16 %v611
    %v803 = vunpack.c.l.b16 %v612
    %v804 = vunpack.c.l.b16 %v613
    %v805 = vunpack.c.l.b16 %v614
    %v806 = vunpack.c.l.b16 %v615
    %v807 = vunpack.c.l.b16 %v616
    %v808 = vunpack.c.l.b16 %v617
    %v809 = vunpack.c.l.b16 %v618
    %v810 = vunpack.c.l.b16 %v619
    %v811 = vunpack.c.l.b16 %v620
    %v812 = vunpack.c.l.b16 %v621
    %v813 = vunpack.c.l.b16 %v622
    %v814 = vunpack.c.l.b16 %v623
    %v815 = vunpack.c.l.b16 %v624
    %v816 = vunpack.c.l.b16 %v625
    %v817 = vpack.c.b16 %v802, %v801
    %v818 = vpack.c.b16 %v804, %v803
    %v819 = vpack.c.b16 %v806, %v805
    %v820 = vpack.c.b16 %v808, %v807
    %v821 = vpack.c.b16 %v810, %v809
    %v822 = vpack.c.b16 %v812, %v811
    %v823 = vpack.c.b16 %v814, %v813
    %v824 = vpack.c.b16 %v816, %v815
    %833 = vmatprep.subr.bf16.mxu0 0
    %834 = vmatpush1.bf16.msra.mxu0 %v817
    %835 = vmatprep.subr.bf16.mxu0 0
    %836 = vmatpush1.bf16.msra.mxu0 %v818
    %837 = vmatprep.subr.bf16.mxu0 0
    %838 = vmatpush1.bf16.msra.mxu0 %v819
    %839 = vmatprep.subr.bf16.mxu0 0
    %840 = vmatpush1.bf16.msra.mxu0 %v820
    %841 = vmatprep.subr.bf16.mxu0 0
    %842 = vmatpush1.bf16.msra.mxu0 %v821
    %843 = vmatprep.subr.bf16.mxu0 0
    %844 = vmatpush1.bf16.msra.mxu0 %v822
    %845 = vmatprep.subr.bf16.mxu0 0
    %846 = vmatpush1.bf16.msra.mxu0 %v823
    %847 = vmatprep.subr.bf16.mxu0 0
    %848 = vmatpush1.bf16.msra.mxu0 %v824
    %849 = vmatprep.subr.bf16.mxu0 0
    %850 = vmatpush1.bf16.msra.mxu0 0
    %851 = vmatprep.subr.bf16.mxu0 0
    %852 = vmatpush1.bf16.msra.mxu0 0
    %853 = vmatprep.subr.bf16.mxu0 0
    %854 = vmatpush1.bf16.msra.mxu0 0
    %855 = vmatprep.subr.bf16.mxu0 0
    %856 = vmatpush1.bf16.msra.mxu0 0
    %857 = vmatprep.subr.bf16.mxu0 0
    %858 = vmatpush1.bf16.msra.mxu0 0
    %859 = vmatprep.subr.bf16.mxu0 0
    %860 = vmatpush1.bf16.msra.mxu0 0
    %861 = vmatprep.subr.bf16.mxu0 0
    %862 = vmatpush1.bf16.msra.mxu0 0
    %863 = vmatprep.subr.bf16.mxu0 0
    %864 = vmatpush1.bf16.msra.mxu0 0
    %865 = vmatprep.mubr.bf16.mxu0 0
    %866 = vmatmul.mubr.bf16.gmra.mrb[0].mxu0 %v608
    %v867 = vpop.f32.mrb[0].mxu0
    %v868 = vadd.f32 %v779, %v867
    %v869 = vpop.f32.mrb[0].mxu0
    %v870 = vpop.f32.mrb[0].mxu0
    %v871 = vadd.f32 %v782, %v870
    %v872 = vpop.f32.mrb[0].mxu0
    %873 = vdwg.mxu0
    %s874 = scalar_lea.vmem %s1, 40
    %v875 = vld [vmem:[%s874] sm:$0xf]
    %v876 = vld [vmem:[%s874 + $0x4] sm:$0xf]
    %v879 = vunpack.c.l.b16 %v875
    %v880 = vunpack.c.l.b16 %v876
    %v881 = vpack.c.b16 %v880, %v879
    %v883 = vsel %vm68, %v881, 0
    %885 = vmatprep.subr.bf16.mxu0 0
    %886 = vmatpush1.bf16.msra.mxu0 %v555
    %887 = vmatprep.subr.bf16.mxu0 0
    %888 = vmatpush1.bf16.msra.mxu0 0
    %889 = vmatprep.subr.bf16.mxu0 0
    %890 = vmatpush1.bf16.msra.mxu0 0
    %891 = vmatprep.subr.bf16.mxu0 0
    %892 = vmatpush1.bf16.msra.mxu0 0
    %893 = vmatprep.subr.bf16.mxu0 0
    %894 = vmatpush1.bf16.msra.mxu0 0
    %895 = vmatprep.subr.bf16.mxu0 0
    %896 = vmatpush1.bf16.msra.mxu0 0
    %897 = vmatprep.subr.bf16.mxu0 0
    %898 = vmatpush1.bf16.msra.mxu0 0
    %899 = vmatprep.subr.bf16.mxu0 0
    %900 = vmatpush1.bf16.msra.mxu0 0
    %901 = vmatprep.subr.bf16.mxu0 0
    %902 = vmatpush1.bf16.msra.mxu0 0
    %903 = vmatprep.subr.bf16.mxu0 0
    %904 = vmatpush1.bf16.msra.mxu0 0
    %905 = vmatprep.subr.bf16.mxu0 0
    %906 = vmatpush1.bf16.msra.mxu0 0
    %907 = vmatprep.subr.bf16.mxu0 0
    %908 = vmatpush1.bf16.msra.mxu0 0
    %909 = vmatprep.subr.bf16.mxu0 0
    %910 = vmatpush1.bf16.msra.mxu0 0
    %911 = vmatprep.subr.bf16.mxu0 0
    %912 = vmatpush1.bf16.msra.mxu0 0
    %913 = vmatprep.subr.bf16.mxu0 0
    %914 = vmatpush1.bf16.msra.mxu0 0
    %915 = vmatprep.subr.bf16.mxu0 0
    %916 = vmatpush1.bf16.msra.mxu0 0
    %917 = vmatprep.mubr.bf16.mxu0 0
    %918 = vmatmul.mubr.bf16.gmra.mrb[0].mxu0 %v883
    %v919 = vpop.f32.mrb[0].mxu0
    %v920 = vadd.f32 0.0, %v919
    %v921 = vpop.f32.mrb[0].mxu0
    %v922 = vpop.f32.mrb[0].mxu0
    %v923 = vadd.f32 0.0, %v922
    %v924 = vpop.f32.mrb[0].mxu0
    %925 = vdwg.mxu0
    %v926 = vpack.c.bf16 %v923, %v920
    %s927 = scalar_lea.vmem %s2, 320
    %v928 = vld [vmem:[%s927] sm:$0xf]
    %v929 = vld [vmem:[%s927 + $0x4] sm:$0xf]
    %v930 = vld [vmem:[%s927 + $0x8] sm:$0xf]
    %v931 = vld [vmem:[%s927 + $0xc] sm:$0xf]
    %v932 = vld [vmem:[%s927 + $0x10] sm:$0xf]
    %v933 = vld [vmem:[%s927 + $0x14] sm:$0xf]
    %v934 = vld [vmem:[%s927 + $0x18] sm:$0xf]
    %v935 = vld [vmem:[%s927 + $0x1c] sm:$0xf]
    %v936 = vld [vmem:[%s927 + $0x20] sm:$0xf]
    %v937 = vld [vmem:[%s927 + $0x24] sm:$0xf]
    %v938 = vld [vmem:[%s927 + $0x28] sm:$0xf]
    %v939 = vld [vmem:[%s927 + $0x2c] sm:$0xf]
    %v940 = vld [vmem:[%s927 + $0x30] sm:$0xf]
    %v941 = vld [vmem:[%s927 + $0x34] sm:$0xf]
    %v942 = vld [vmem:[%s927 + $0x38] sm:$0xf]
    %v943 = vld [vmem:[%s927 + $0x3c] sm:$0xf]
    %v960 = vunpack.c.l.b16 %v928
    %v961 = vunpack.c.l.b16 %v929
    %v962 = vunpack.c.l.b16 %v930
    %v963 = vunpack.c.l.b16 %v931
    %v964 = vunpack.c.l.b16 %v932
    %v965 = vunpack.c.l.b16 %v933
    %v966 = vunpack.c.l.b16 %v934
    %v967 = vunpack.c.l.b16 %v935
    %v968 = vunpack.c.l.b16 %v936
    %v969 = vunpack.c.l.b16 %v937
    %v970 = vunpack.c.l.b16 %v938
    %v971 = vunpack.c.l.b16 %v939
    %v972 = vunpack.c.l.b16 %v940
    %v973 = vunpack.c.l.b16 %v941
    %v974 = vunpack.c.l.b16 %v942
    %v975 = vunpack.c.l.b16 %v943
    %v976 = vpack.c.b16 %v961, %v960
    %v977 = vpack.c.b16 %v963, %v962
    %v978 = vpack.c.b16 %v965, %v964
    %v979 = vpack.c.b16 %v967, %v966
    %v980 = vpack.c.b16 %v969, %v968
    %v981 = vpack.c.b16 %v971, %v970
    %v982 = vpack.c.b16 %v973, %v972
    %v983 = vpack.c.b16 %v975, %v974
    %992 = vmatprep.subr.bf16.mxu0 0
    %993 = vmatpush1.bf16.msra.mxu0 %v976
    %994 = vmatprep.subr.bf16.mxu0 0
    %995 = vmatpush1.bf16.msra.mxu0 %v977
    %996 = vmatprep.subr.bf16.mxu0 0
    %997 = vmatpush1.bf16.msra.mxu0 %v978
    %998 = vmatprep.subr.bf16.mxu0 0
    %999 = vmatpush1.bf16.msra.mxu0 %v979
    %1000 = vmatprep.subr.bf16.mxu0 0
    %1001 = vmatpush1.bf16.msra.mxu0 %v980
    %1002 = vmatprep.subr.bf16.mxu0 0
    %1003 = vmatpush1.bf16.msra.mxu0 %v981
    %1004 = vmatprep.subr.bf16.mxu0 0
    %1005 = vmatpush1.bf16.msra.mxu0 %v982
    %1006 = vmatprep.subr.bf16.mxu0 0
    %1007 = vmatpush1.bf16.msra.mxu0 %v983
    %1008 = vmatprep.subr.bf16.mxu0 0
    %1009 = vmatpush1.bf16.msra.mxu0 0
    %1010 = vmatprep.subr.bf16.mxu0 0
    %1011 = vmatpush1.bf16.msra.mxu0 0
    %1012 = vmatprep.subr.bf16.mxu0 0
    %1013 = vmatpush1.bf16.msra.mxu0 0
    %1014 = vmatprep.subr.bf16.mxu0 0
    %1015 = vmatpush1.bf16.msra.mxu0 0
    %1016 = vmatprep.subr.bf16.mxu0 0
    %1017 = vmatpush1.bf16.msra.mxu0 0
    %1018 = vmatprep.subr.bf16.mxu0 0
    %1019 = vmatpush1.bf16.msra.mxu0 0
    %1020 = vmatprep.subr.bf16.mxu0 0
    %1021 = vmatpush1.bf16.msra.mxu0 0
    %1022 = vmatprep.subr.bf16.mxu0 0
    %1023 = vmatpush1.bf16.msra.mxu0 0
    %1024 = vmatprep.mubr.bf16.mxu0 0
    %1025 = vmatmul.mubr.bf16.gmra.mrb[0].mxu0 %v926
    %v1026 = vpop.f32.mrb[0].mxu0
    %v1027 = vadd.f32 0.0, %v1026
    %v1028 = vpop.f32.mrb[0].mxu0
    %v1029 = vpop.f32.mrb[0].mxu0
    %v1030 = vadd.f32 0.0, %v1029
    %v1031 = vpop.f32.mrb[0].mxu0
    %1032 = vdwg.mxu0
    %v1033 = vadd.f32 %v868, %v1027
    %v1034 = vadd.f32 %v871, %v1030
    %v1035 = vld [vmem:[%s3 + $0x1] sm:$0x1]
    %v1036 = vlaneseq
    %v1037 = vshrl.u32 %v1036, 7
    %v1038 = vsub.s32 0, %v1037
    %v1039 = vrot.slane %v1035, %v1038
    %v1040 = vmul.f32 %v1033, %v1039
    %v1041 = vmul.f32 %v1034, %v1039
    %v1042 = vld [vmem:[%s4 + $0x1] sm:$0x1]
    %v1043 = vlaneseq
    %v1044 = vshrl.u32 %v1043, 7
    %v1045 = vsub.s32 0, %v1044
    %v1046 = vrot.slane %v1042, %v1045
    %v1047 = vadd.f32 %v1040, %v1046
    %v1048 = vadd.f32 %v1041, %v1046
    %v1049 = vmax.f32 %v1047, 0.0
    %v1050 = vmax.f32 %v1048, 0.0
    %v1051 = vpack.c.bf16 %v1050, %v1049
    %s1052 = scalar_lea.vmem %s1, 48
    %v1053 = vld [vmem:[%s1052] sm:$0xf]
    %v1054 = vld [vmem:[%s1052 + $0x4] sm:$0xf]
    %v1057 = vunpack.c.l.b16 %v1053
    %v1058 = vunpack.c.l.b16 %v1054
    %v1059 = vpack.c.b16 %v1058, %v1057
    %v1061 = vsel %vm68, %v1059, 0
    %1063 = vmatprep.subr.bf16.mxu0 0
    %1064 = vmatpush1.bf16.msra.mxu0 %v1051
    %1065 = vmatprep.subr.bf16.mxu0 0
    %1066 = vmatpush1.bf16.msra.mxu0 0
    %1067 = vmatprep.subr.bf16.mxu0 0
    %1068 = vmatpush1.bf16.msra.mxu0 0
    %1069 = vmatprep.subr.bf16.mxu0 0
    %1070 = vmatpush1.bf16.msra.mxu0 0
    %1071 = vmatprep.subr.bf16.mxu0 0
    %1072 = vmatpush1.bf16.msra.mxu0 0
    %1073 = vmatprep.subr.bf16.mxu0 0
    %1074 = vmatpush1.bf16.msra.mxu0 0
    %1075 = vmatprep.subr.bf16.mxu0 0
    %1076 = vmatpush1.bf16.msra.mxu0 0
    %1077 = vmatprep.subr.bf16.mxu0 0
    %1078 = vmatpush1.bf16.msra.mxu0 0
    %1079 = vmatprep.subr.bf16.mxu0 0
    %1080 = vmatpush1.bf16.msra.mxu0 0
    %1081 = vmatprep.subr.bf16.mxu0 0
    %1082 = vmatpush1.bf16.msra.mxu0 0
    %1083 = vmatprep.subr.bf16.mxu0 0
    %1084 = vmatpush1.bf16.msra.mxu0 0
    %1085 = vmatprep.subr.bf16.mxu0 0
    %1086 = vmatpush1.bf16.msra.mxu0 0
    %1087 = vmatprep.subr.bf16.mxu0 0
    %1088 = vmatpush1.bf16.msra.mxu0 0
    %1089 = vmatprep.subr.bf16.mxu0 0
    %1090 = vmatpush1.bf16.msra.mxu0 0
    %1091 = vmatprep.subr.bf16.mxu0 0
    %1092 = vmatpush1.bf16.msra.mxu0 0
    %1093 = vmatprep.subr.bf16.mxu0 0
    %1094 = vmatpush1.bf16.msra.mxu0 0
    %1095 = vmatprep.mubr.bf16.mxu0 0
    %1096 = vmatmul.mubr.bf16.gmra.mrb[0].mxu0 %v1061
    %v1097 = vpop.f32.mrb[0].mxu0
    %v1098 = vadd.f32 0.0, %v1097
    %v1099 = vpop.f32.mrb[0].mxu0
    %v1100 = vpop.f32.mrb[0].mxu0
    %v1101 = vadd.f32 0.0, %v1100
    %v1102 = vpop.f32.mrb[0].mxu0
    %1103 = vdwg.mxu0
    %v1104 = vpack.c.bf16 %v1101, %v1098
    %s1105 = scalar_lea.vmem %s2, 384
    %v1106 = vld [vmem:[%s1105] sm:$0xf]
    %v1107 = vld [vmem:[%s1105 + $0x4] sm:$0xf]
    %v1108 = vld [vmem:[%s1105 + $0x8] sm:$0xf]
    %v1109 = vld [vmem:[%s1105 + $0xc] sm:$0xf]
    %v1110 = vld [vmem:[%s1105 + $0x10] sm:$0xf]
    %v1111 = vld [vmem:[%s1105 + $0x14] sm:$0xf]
    %v1112 = vld [vmem:[%s1105 + $0x18] sm:$0xf]
    %v1113 = vld [vmem:[%s1105 + $0x1c] sm:$0xf]
    %v1114 = vld [vmem:[%s1105 + $0x20] sm:$0xf]
    %v1115 = vld [vmem:[%s1105 + $0x24] sm:$0xf]
    %v1116 = vld [vmem:[%s1105 + $0x28] sm:$0xf]
    %v1117 = vld [vmem:[%s1105 + $0x2c] sm:$0xf]
    %v1118 = vld [vmem:[%s1105 + $0x30] sm:$0xf]
    %v1119 = vld [vmem:[%s1105 + $0x34] sm:$0xf]
    %v1120 = vld [vmem:[%s1105 + $0x38] sm:$0xf]
    %v1121 = vld [vmem:[%s1105 + $0x3c] sm:$0xf]
    %s1122 = scalar_lea.vmem %s1, 56
    %v1123 = vld [vmem:[%s1122] sm:$0xf]
    %v1124 = vld [vmem:[%s1122 + $0x4] sm:$0xf]
    %v1127 = vunpack.c.l.b16 %v1123
    %v1128 = vunpack.c.l.b16 %v1124
    %v1129 = vpack.c.b16 %v1128, %v1127
    %v1131 = vsel %vm68, %v1129, 0
    %1133 = vmatprep.subr.bf16.mxu0 0
    %1134 = vmatpush1.bf16.msra.mxu0 %v1051
    %1135 = vmatprep.subr.bf16.mxu0 0
    %1136 = vmatpush1.bf16.msra.mxu0 0
    %1137 = vmatprep.subr.bf16.mxu0 0
    %1138 = vmatpush1.bf16.msra.mxu0 0
    %1139 = vmatprep.subr.bf16.mxu0 0
    %1140 = vmatpush1.bf16.msra.mxu0 0
    %1141 = vmatprep.subr.bf16.mxu0 0
    %1142 = vmatpush1.bf16.msra.mxu0 0
    %1143 = vmatprep.subr.bf16.mxu0 0
    %1144 = vmatpush1.bf16.msra.mxu0 0
    %1145 = vmatprep.subr.bf16.mxu0 0
    %1146 = vmatpush1.bf16.msra.mxu0 0
    %1147 = vmatprep.subr.bf16.mxu0 0
    %1148 = vmatpush1.bf16.msra.mxu0 0
    %1149 = vmatprep.subr.bf16.mxu0 0
    %1150 = vmatpush1.bf16.msra.mxu0 0
    %1151 = vmatprep.subr.bf16.mxu0 0
    %1152 = vmatpush1.bf16.msra.mxu0 0
    %1153 = vmatprep.subr.bf16.mxu0 0
    %1154 = vmatpush1.bf16.msra.mxu0 0
    %1155 = vmatprep.subr.bf16.mxu0 0
    %1156 = vmatpush1.bf16.msra.mxu0 0
    %1157 = vmatprep.subr.bf16.mxu0 0
    %1158 = vmatpush1.bf16.msra.mxu0 0
    %1159 = vmatprep.subr.bf16.mxu0 0
    %1160 = vmatpush1.bf16.msra.mxu0 0
    %1161 = vmatprep.subr.bf16.mxu0 0
    %1162 = vmatpush1.bf16.msra.mxu0 0
    %1163 = vmatprep.subr.bf16.mxu0 0
    %1164 = vmatpush1.bf16.msra.mxu0 0
    %1165 = vmatprep.mubr.bf16.mxu0 0
    %1166 = vmatmul.mubr.bf16.gmra.mrb[0].mxu0 %v1131
    %v1167 = vpop.f32.mrb[0].mxu0
    %v1168 = vadd.f32 0.0, %v1167
    %v1169 = vpop.f32.mrb[0].mxu0
    %v1170 = vpop.f32.mrb[0].mxu0
    %v1171 = vadd.f32 0.0, %v1170
    %v1172 = vpop.f32.mrb[0].mxu0
    %1173 = vdwg.mxu0
    %v1174 = vpack.c.bf16 %v1171, %v1168
    %s1175 = scalar_lea.vmem %s2, 448
    %v1176 = vld [vmem:[%s1175] sm:$0xf]
    %v1177 = vld [vmem:[%s1175 + $0x4] sm:$0xf]
    %v1178 = vld [vmem:[%s1175 + $0x8] sm:$0xf]
    %v1179 = vld [vmem:[%s1175 + $0xc] sm:$0xf]
    %v1180 = vld [vmem:[%s1175 + $0x10] sm:$0xf]
    %v1181 = vld [vmem:[%s1175 + $0x14] sm:$0xf]
    %v1182 = vld [vmem:[%s1175 + $0x18] sm:$0xf]
    %v1183 = vld [vmem:[%s1175 + $0x1c] sm:$0xf]
    %v1184 = vld [vmem:[%s1175 + $0x20] sm:$0xf]
    %v1185 = vld [vmem:[%s1175 + $0x24] sm:$0xf]
    %v1186 = vld [vmem:[%s1175 + $0x28] sm:$0xf]
    %v1187 = vld [vmem:[%s1175 + $0x2c] sm:$0xf]
    %v1188 = vld [vmem:[%s1175 + $0x30] sm:$0xf]
    %v1189 = vld [vmem:[%s1175 + $0x34] sm:$0xf]
    %v1190 = vld [vmem:[%s1175 + $0x38] sm:$0xf]
    %v1191 = vld [vmem:[%s1175 + $0x3c] sm:$0xf]
    %v1208 = vunpack.c.l.b16 %v1176
    %v1209 = vunpack.c.l.b16 %v1177
    %v1210 = vunpack.c.l.b16 %v1178
    %v1211 = vunpack.c.l.b16 %v1179
    %v1212 = vunpack.c.l.b16 %v1180
    %v1213 = vunpack.c.l.b16 %v1181
    %v1214 = vunpack.c.l.b16 %v1182
    %v1215 = vunpack.c.l.b16 %v1183
    %v1216 = vunpack.c.l.b16 %v1184
    %v1217 = vunpack.c.l.b16 %v1185
    %v1218 = vunpack.c.l.b16 %v1186
    %v1219 = vunpack.c.l.b16 %v1187
    %v1220 = vunpack.c.l.b16 %v1188
    %v1221 = vunpack.c.l.b16 %v1189
    %v1222 = vunpack.c.l.b16 %v1190
    %v1223 = vunpack.c.l.b16 %v1191
    %v1224 = vpack.c.b16 %v1209, %v1208
    %v1225 = vpack.c.b16 %v1211, %v1210
    %v1226 = vpack.c.b16 %v1213, %v1212
    %v1227 = vpack.c.b16 %v1215, %v1214
    %v1228 = vpack.c.b16 %v1217, %v1216
    %v1229 = vpack.c.b16 %v1219, %v1218
    %v1230 = vpack.c.b16 %v1221, %v1220
    %v1231 = vpack.c.b16 %v1223, %v1222
    %1240 = vmatprep.subr.bf16.mxu0 0
    %1241 = vmatpush1.bf16.msra.mxu0 %v1224
    %1242 = vmatprep.subr.bf16.mxu0 0
    %1243 = vmatpush1.bf16.msra.mxu0 %v1225
    %1244 = vmatprep.subr.bf16.mxu0 0
    %1245 = vmatpush1.bf16.msra.mxu0 %v1226
    %1246 = vmatprep.subr.bf16.mxu0 0
    %1247 = vmatpush1.bf16.msra.mxu0 %v1227
    %1248 = vmatprep.subr.bf16.mxu0 0
    %1249 = vmatpush1.bf16.msra.mxu0 %v1228
    %1250 = vmatprep.subr.bf16.mxu0 0
    %1251 = vmatpush1.bf16.msra.mxu0 %v1229
    %1252 = vmatprep.subr.bf16.mxu0 0
    %1253 = vmatpush1.bf16.msra.mxu0 %v1230
    %1254 = vmatprep.subr.bf16.mxu0 0
    %1255 = vmatpush1.bf16.msra.mxu0 %v1231
    %1256 = vmatprep.subr.bf16.mxu0 0
    %1257 = vmatpush1.bf16.msra.mxu0 0
    %1258 = vmatprep.subr.bf16.mxu0 0
    %1259 = vmatpush1.bf16.msra.mxu0 0
    %1260 = vmatprep.subr.bf16.mxu0 0
    %1261 = vmatpush1.bf16.msra.mxu0 0
    %1262 = vmatprep.subr.bf16.mxu0 0
    %1263 = vmatpush1.bf16.msra.mxu0 0
    %1264 = vmatprep.subr.bf16.mxu0 0
    %1265 = vmatpush1.bf16.msra.mxu0 0
    %1266 = vmatprep.subr.bf16.mxu0 0
    %1267 = vmatpush1.bf16.msra.mxu0 0
    %1268 = vmatprep.subr.bf16.mxu0 0
    %1269 = vmatpush1.bf16.msra.mxu0 0
    %1270 = vmatprep.subr.bf16.mxu0 0
    %1271 = vmatpush1.bf16.msra.mxu0 0
    %1272 = vmatprep.mubr.bf16.mxu0 0
    %1273 = vmatmul.mubr.bf16.gmra.mrb[0].mxu0 %v1174
    %v1274 = vpop.f32.mrb[0].mxu0
    %v1275 = vadd.f32 0.0, %v1274
    %v1276 = vpop.f32.mrb[0].mxu0
    %v1277 = vpop.f32.mrb[0].mxu0
    %v1278 = vadd.f32 0.0, %v1277
    %v1279 = vpop.f32.mrb[0].mxu0
    %1280 = vdwg.mxu0
    %v1297 = vunpack.c.l.b16 %v1106
    %v1298 = vunpack.c.l.b16 %v1107
    %v1299 = vunpack.c.l.b16 %v1108
    %v1300 = vunpack.c.l.b16 %v1109
    %v1301 = vunpack.c.l.b16 %v1110
    %v1302 = vunpack.c.l.b16 %v1111
    %v1303 = vunpack.c.l.b16 %v1112
    %v1304 = vunpack.c.l.b16 %v1113
    %v1305 = vunpack.c.l.b16 %v1114
    %v1306 = vunpack.c.l.b16 %v1115
    %v1307 = vunpack.c.l.b16 %v1116
    %v1308 = vunpack.c.l.b16 %v1117
    %v1309 = vunpack.c.l.b16 %v1118
    %v1310 = vunpack.c.l.b16 %v1119
    %v1311 = vunpack.c.l.b16 %v1120
    %v1312 = vunpack.c.l.b16 %v1121
    %v1313 = vpack.c.b16 %v1298, %v1297
    %v1314 = vpack.c.b16 %v1300, %v1299
    %v1315 = vpack.c.b16 %v1302, %v1301
    %v1316 = vpack.c.b16 %v1304, %v1303
    %v1317 = vpack.c.b16 %v1306, %v1305
    %v1318 = vpack.c.b16 %v1308, %v1307
    %v1319 = vpack.c.b16 %v1310, %v1309
    %v1320 = vpack.c.b16 %v1312, %v1311
    %1329 = vmatprep.subr.bf16.mxu0 0
    %1330 = vmatpush1.bf16.msra.mxu0 %v1313
    %1331 = vmatprep.subr.bf16.mxu0 0
    %1332 = vmatpush1.bf16.msra.mxu0 %v1314
    %1333 = vmatprep.subr.bf16.mxu0 0
    %1334 = vmatpush1.bf16.msra.mxu0 %v1315
    %1335 = vmatprep.subr.bf16.mxu0 0
    %1336 = vmatpush1.bf16.msra.mxu0 %v1316
    %1337 = vmatprep.subr.bf16.mxu0 0
    %1338 = vmatpush1.bf16.msra.mxu0 %v1317
    %1339 = vmatprep.subr.bf16.mxu0 0
    %1340 = vmatpush1.bf16.msra.mxu0 %v1318
    %1341 = vmatprep.subr.bf16.mxu0 0
    %1342 = vmatpush1.bf16.msra.mxu0 %v1319
    %1343 = vmatprep.subr.bf16.mxu0 0
    %1344 = vmatpush1.bf16.msra.mxu0 %v1320
    %1345 = vmatprep.subr.bf16.mxu0 0
    %1346 = vmatpush1.bf16.msra.mxu0 0
    %1347 = vmatprep.subr.bf16.mxu0 0
    %1348 = vmatpush1.bf16.msra.mxu0 0
    %1349 = vmatprep.subr.bf16.mxu0 0
    %1350 = vmatpush1.bf16.msra.mxu0 0
    %1351 = vmatprep.subr.bf16.mxu0 0
    %1352 = vmatpush1.bf16.msra.mxu0 0
    %1353 = vmatprep.subr.bf16.mxu0 0
    %1354 = vmatpush1.bf16.msra.mxu0 0
    %1355 = vmatprep.subr.bf16.mxu0 0
    %1356 = vmatpush1.bf16.msra.mxu0 0
    %1357 = vmatprep.subr.bf16.mxu0 0
    %1358 = vmatpush1.bf16.msra.mxu0 0
    %1359 = vmatprep.subr.bf16.mxu0 0
    %1360 = vmatpush1.bf16.msra.mxu0 0
    %1361 = vmatprep.mubr.bf16.mxu0 0
    %1362 = vmatmul.mubr.bf16.gmra.mrb[0].mxu0 %v1104
    %v1363 = vpop.f32.mrb[0].mxu0
    %v1364 = vadd.f32 %v1275, %v1363
    %v1365 = vpop.f32.mrb[0].mxu0
    %v1366 = vpop.f32.mrb[0].mxu0
    %v1367 = vadd.f32 %v1278, %v1366
    %v1368 = vpop.f32.mrb[0].mxu0
    %1369 = vdwg.mxu0
    %s1370 = scalar_lea.vmem %s1, 64
    %v1371 = vld [vmem:[%s1370] sm:$0xf]
    %v1372 = vld [vmem:[%s1370 + $0x4] sm:$0xf]
    %v1375 = vunpack.c.l.b16 %v1371
    %v1376 = vunpack.c.l.b16 %v1372
    %v1377 = vpack.c.b16 %v1376, %v1375
    %v1379 = vsel %vm68, %v1377, 0
    %1381 = vmatprep.subr.bf16.mxu0 0
    %1382 = vmatpush1.bf16.msra.mxu0 %v1051
    %1383 = vmatprep.subr.bf16.mxu0 0
    %1384 = vmatpush1.bf16.msra.mxu0 0
    %1385 = vmatprep.subr.bf16.mxu0 0
    %1386 = vmatpush1.bf16.msra.mxu0 0
    %1387 = vmatprep.subr.bf16.mxu0 0
    %1388 = vmatpush1.bf16.msra.mxu0 0
    %1389 = vmatprep.subr.bf16.mxu0 0
    %1390 = vmatpush1.bf16.msra.mxu0 0
    %1391 = vmatprep.subr.bf16.mxu0 0
    %1392 = vmatpush1.bf16.msra.mxu0 0
    %1393 = vmatprep.subr.bf16.mxu0 0
    %1394 = vmatpush1.bf16.msra.mxu0 0
    %1395 = vmatprep.subr.bf16.mxu0 0
    %1396 = vmatpush1.bf16.msra.mxu0 0
    %1397 = vmatprep.subr.bf16.mxu0 0
    %1398 = vmatpush1.bf16.msra.mxu0 0
    %1399 = vmatprep.subr.bf16.mxu0 0
    %1400 = vmatpush1.bf16.msra.mxu0 0
    %1401 = vmatprep.subr.bf16.mxu0 0
    %1402 = vmatpush1.bf16.msra.mxu0 0
    %1403 = vmatprep.subr.bf16.mxu0 0
    %1404 = vmatpush1.bf16.msra.mxu0 0
    %1405 = vmatprep.subr.bf16.mxu0 0
    %1406 = vmatpush1.bf16.msra.mxu0 0
    %1407 = vmatprep.subr.bf16.mxu0 0
    %1408 = vmatpush1.bf16.msra.mxu0 0
    %1409 = vmatprep.subr.bf16.mxu0 0
    %1410 = vmatpush1.bf16.msra.mxu0 0
    %1411 = vmatprep.subr.bf16.mxu0 0
    %1412 = vmatpush1.bf16.msra.mxu0 0
    %1413 = vmatprep.mubr.bf16.mxu0 0
    %1414 = vmatmul.mubr.bf16.gmra.mrb[0].mxu0 %v1379
    %v1415 = vpop.f32.mrb[0].mxu0
    %v1416 = vadd.f32 0.0, %v1415
    %v1417 = vpop.f32.mrb[0].mxu0
    %v1418 = vpop.f32.mrb[0].mxu0
    %v1419 = vadd.f32 0.0, %v1418
    %v1420 = vpop.f32.mrb[0].mxu0
    %1421 = vdwg.mxu0
    %v1422 = vpack.c.bf16 %v1419, %v1416
    %s1423 = scalar_lea.vmem %s2, 512
    %v1424 = vld [vmem:[%s1423] sm:$0xf]
    %v1425 = vld [vmem:[%s1423 + $0x4] sm:$0xf]
    %v1426 = vld [vmem:[%s1423 + $0x8] sm:$0xf]
    %v1427 = vld [vmem:[%s1423 + $0xc] sm:$0xf]
    %v1428 = vld [vmem:[%s1423 + $0x10] sm:$0xf]
    %v1429 = vld [vmem:[%s1423 + $0x14] sm:$0xf]
    %v1430 = vld [vmem:[%s1423 + $0x18] sm:$0xf]
    %v1431 = vld [vmem:[%s1423 + $0x1c] sm:$0xf]
    %v1432 = vld [vmem:[%s1423 + $0x20] sm:$0xf]
    %v1433 = vld [vmem:[%s1423 + $0x24] sm:$0xf]
    %v1434 = vld [vmem:[%s1423 + $0x28] sm:$0xf]
    %v1435 = vld [vmem:[%s1423 + $0x2c] sm:$0xf]
    %v1436 = vld [vmem:[%s1423 + $0x30] sm:$0xf]
    %v1437 = vld [vmem:[%s1423 + $0x34] sm:$0xf]
    %v1438 = vld [vmem:[%s1423 + $0x38] sm:$0xf]
    %v1439 = vld [vmem:[%s1423 + $0x3c] sm:$0xf]
    %v1456 = vunpack.c.l.b16 %v1424
    %v1457 = vunpack.c.l.b16 %v1425
    %v1458 = vunpack.c.l.b16 %v1426
    %v1459 = vunpack.c.l.b16 %v1427
    %v1460 = vunpack.c.l.b16 %v1428
    %v1461 = vunpack.c.l.b16 %v1429
    %v1462 = vunpack.c.l.b16 %v1430
    %v1463 = vunpack.c.l.b16 %v1431
    %v1464 = vunpack.c.l.b16 %v1432
    %v1465 = vunpack.c.l.b16 %v1433
    %v1466 = vunpack.c.l.b16 %v1434
    %v1467 = vunpack.c.l.b16 %v1435
    %v1468 = vunpack.c.l.b16 %v1436
    %v1469 = vunpack.c.l.b16 %v1437
    %v1470 = vunpack.c.l.b16 %v1438
    %v1471 = vunpack.c.l.b16 %v1439
    %v1472 = vpack.c.b16 %v1457, %v1456
    %v1473 = vpack.c.b16 %v1459, %v1458
    %v1474 = vpack.c.b16 %v1461, %v1460
    %v1475 = vpack.c.b16 %v1463, %v1462
    %v1476 = vpack.c.b16 %v1465, %v1464
    %v1477 = vpack.c.b16 %v1467, %v1466
    %v1478 = vpack.c.b16 %v1469, %v1468
    %v1479 = vpack.c.b16 %v1471, %v1470
    %1488 = vmatprep.subr.bf16.mxu0 0
    %1489 = vmatpush1.bf16.msra.mxu0 %v1472
    %1490 = vmatprep.subr.bf16.mxu0 0
    %1491 = vmatpush1.bf16.msra.mxu0 %v1473
    %1492 = vmatprep.subr.bf16.mxu0 0
    %1493 = vmatpush1.bf16.msra.mxu0 %v1474
    %1494 = vmatprep.subr.bf16.mxu0 0
    %1495 = vmatpush1.bf16.msra.mxu0 %v1475
    %1496 = vmatprep.subr.bf16.mxu0 0
    %1497 = vmatpush1.bf16.msra.mxu0 %v1476
    %1498 = vmatprep.subr.bf16.mxu0 0
    %1499 = vmatpush1.bf16.msra.mxu0 %v1477
    %1500 = vmatprep.subr.bf16.mxu0 0
    %1501 = vmatpush1.bf16.msra.mxu0 %v1478
    %1502 = vmatprep.subr.bf16.mxu0 0
    %1503 = vmatpush1.bf16.msra.mxu0 %v1479
    %1504 = vmatprep.subr.bf16.mxu0 0
    %1505 = vmatpush1.bf16.msra.mxu0 0
    %1506 = vmatprep.subr.bf16.mxu0 0
    %1507 = vmatpush1.bf16.msra.mxu0 0
    %1508 = vmatprep.subr.bf16.mxu0 0
    %1509 = vmatpush1.bf16.msra.mxu0 0
    %1510 = vmatprep.subr.bf16.mxu0 0
    %1511 = vmatpush1.bf16.msra.mxu0 0
    %1512 = vmatprep.subr.bf16.mxu0 0
    %1513 = vmatpush1.bf16.msra.mxu0 0
    %1514 = vmatprep.subr.bf16.mxu0 0
    %1515 = vmatpush1.bf16.msra.mxu0 0
    %1516 = vmatprep.subr.bf16.mxu0 0
    %1517 = vmatpush1.bf16.msra.mxu0 0
    %1518 = vmatprep.subr.bf16.mxu0 0
    %1519 = vmatpush1.bf16.msra.mxu0 0
    %1520 = vmatprep.mubr.bf16.mxu0 0
    %1521 = vmatmul.mubr.bf16.gmra.mrb[0].mxu0 %v1422
    %v1522 = vpop.f32.mrb[0].mxu0
    %v1523 = vadd.f32 0.0, %v1522
    %v1524 = vpop.f32.mrb[0].mxu0
    %v1525 = vpop.f32.mrb[0].mxu0
    %v1526 = vadd.f32 0.0, %v1525
    %v1527 = vpop.f32.mrb[0].mxu0
    %1528 = vdwg.mxu0
    %v1529 = vadd.f32 %v1364, %v1523
    %v1530 = vadd.f32 %v1367, %v1526
    %v1531 = vld [vmem:[%s3 + $0x2] sm:$0x1]
    %v1532 = vlaneseq
    %v1533 = vshrl.u32 %v1532, 7
    %v1534 = vsub.s32 0, %v1533
    %v1535 = vrot.slane %v1531, %v1534
    %v1536 = vmul.f32 %v1529, %v1535
    %v1537 = vmul.f32 %v1530, %v1535
    %v1538 = vld [vmem:[%s4 + $0x2] sm:$0x1]
    %v1539 = vlaneseq
    %v1540 = vshrl.u32 %v1539, 7
    %v1541 = vsub.s32 0, %v1540
    %v1542 = vrot.slane %v1538, %v1541
    %v1543 = vadd.f32 %v1536, %v1542
    %v1544 = vadd.f32 %v1537, %v1542
    %v1545 = vmax.f32 %v1543, 0.0
    %v1546 = vmax.f32 %v1544, 0.0
    %v1547 = vpack.c.bf16 %v1546, %v1545
    %s1548 = scalar_lea.vmem %s1, 72
    %v1549 = vld [vmem:[%s1548] sm:$0xf]
    %v1550 = vld [vmem:[%s1548 + $0x4] sm:$0xf]
    %v1553 = vunpack.c.l.b16 %v1549
    %v1554 = vunpack.c.l.b16 %v1550
    %v1555 = vpack.c.b16 %v1554, %v1553
    %v1557 = vsel %vm68, %v1555, 0
    %1559 = vmatprep.subr.bf16.mxu0 0
    %1560 = vmatpush1.bf16.msra.mxu0 %v1547
    %1561 = vmatprep.subr.bf16.mxu0 0
    %1562 = vmatpush1.bf16.msra.mxu0 0
    %1563 = vmatprep.subr.bf16.mxu0 0
    %1564 = vmatpush1.bf16.msra.mxu0 0
    %1565 = vmatprep.subr.bf16.mxu0 0
    %1566 = vmatpush1.bf16.msra.mxu0 0
    %1567 = vmatprep.subr.bf16.mxu0 0
    %1568 = vmatpush1.bf16.msra.mxu0 0
    %1569 = vmatprep.subr.bf16.mxu0 0
    %1570 = vmatpush1.bf16.msra.mxu0 0
    %1571 = vmatprep.subr.bf16.mxu0 0
    %1572 = vmatpush1.bf16.msra.mxu0 0
    %1573 = vmatprep.subr.bf16.mxu0 0
    %1574 = vmatpush1.bf16.msra.mxu0 0
    %1575 = vmatprep.subr.bf16.mxu0 0
    %1576 = vmatpush1.bf16.msra.mxu0 0
    %1577 = vmatprep.subr.bf16.mxu0 0
    %1578 = vmatpush1.bf16.msra.mxu0 0
    %1579 = vmatprep.subr.bf16.mxu0 0
    %1580 = vmatpush1.bf16.msra.mxu0 0
    %1581 = vmatprep.subr.bf16.mxu0 0
    %1582 = vmatpush1.bf16.msra.mxu0 0
    %1583 = vmatprep.subr.bf16.mxu0 0
    %1584 = vmatpush1.bf16.msra.mxu0 0
    %1585 = vmatprep.subr.bf16.mxu0 0
    %1586 = vmatpush1.bf16.msra.mxu0 0
    %1587 = vmatprep.subr.bf16.mxu0 0
    %1588 = vmatpush1.bf16.msra.mxu0 0
    %1589 = vmatprep.subr.bf16.mxu0 0
    %1590 = vmatpush1.bf16.msra.mxu0 0
    %1591 = vmatprep.mubr.bf16.mxu0 0
    %1592 = vmatmul.mubr.bf16.gmra.mrb[0].mxu0 %v1557
    %v1593 = vpop.f32.mrb[0].mxu0
    %v1594 = vadd.f32 0.0, %v1593
    %v1595 = vpop.f32.mrb[0].mxu0
    %v1596 = vpop.f32.mrb[0].mxu0
    %v1597 = vadd.f32 0.0, %v1596
    %v1598 = vpop.f32.mrb[0].mxu0
    %1599 = vdwg.mxu0
    %v1600 = vpack.c.bf16 %v1597, %v1594
    %s1601 = scalar_lea.vmem %s2, 576
    %v1602 = vld [vmem:[%s1601] sm:$0xf]
    %v1603 = vld [vmem:[%s1601 + $0x4] sm:$0xf]
    %v1604 = vld [vmem:[%s1601 + $0x8] sm:$0xf]
    %v1605 = vld [vmem:[%s1601 + $0xc] sm:$0xf]
    %v1606 = vld [vmem:[%s1601 + $0x10] sm:$0xf]
    %v1607 = vld [vmem:[%s1601 + $0x14] sm:$0xf]
    %v1608 = vld [vmem:[%s1601 + $0x18] sm:$0xf]
    %v1609 = vld [vmem:[%s1601 + $0x1c] sm:$0xf]
    %v1610 = vld [vmem:[%s1601 + $0x20] sm:$0xf]
    %v1611 = vld [vmem:[%s1601 + $0x24] sm:$0xf]
    %v1612 = vld [vmem:[%s1601 + $0x28] sm:$0xf]
    %v1613 = vld [vmem:[%s1601 + $0x2c] sm:$0xf]
    %v1614 = vld [vmem:[%s1601 + $0x30] sm:$0xf]
    %v1615 = vld [vmem:[%s1601 + $0x34] sm:$0xf]
    %v1616 = vld [vmem:[%s1601 + $0x38] sm:$0xf]
    %v1617 = vld [vmem:[%s1601 + $0x3c] sm:$0xf]
    %s1618 = scalar_lea.vmem %s1, 80
    %v1619 = vld [vmem:[%s1618] sm:$0xf]
    %v1620 = vld [vmem:[%s1618 + $0x4] sm:$0xf]
    %v1623 = vunpack.c.l.b16 %v1619
    %v1624 = vunpack.c.l.b16 %v1620
    %v1625 = vpack.c.b16 %v1624, %v1623
    %v1627 = vsel %vm68, %v1625, 0
    %1629 = vmatprep.subr.bf16.mxu0 0
    %1630 = vmatpush1.bf16.msra.mxu0 %v1547
    %1631 = vmatprep.subr.bf16.mxu0 0
    %1632 = vmatpush1.bf16.msra.mxu0 0
    %1633 = vmatprep.subr.bf16.mxu0 0
    %1634 = vmatpush1.bf16.msra.mxu0 0
    %1635 = vmatprep.subr.bf16.mxu0 0
    %1636 = vmatpush1.bf16.msra.mxu0 0
    %1637 = vmatprep.subr.bf16.mxu0 0
    %1638 = vmatpush1.bf16.msra.mxu0 0
    %1639 = vmatprep.subr.bf16.mxu0 0
    %1640 = vmatpush1.bf16.msra.mxu0 0
    %1641 = vmatprep.subr.bf16.mxu0 0
    %1642 = vmatpush1.bf16.msra.mxu0 0
    %1643 = vmatprep.subr.bf16.mxu0 0
    %1644 = vmatpush1.bf16.msra.mxu0 0
    %1645 = vmatprep.subr.bf16.mxu0 0
    %1646 = vmatpush1.bf16.msra.mxu0 0
    %1647 = vmatprep.subr.bf16.mxu0 0
    %1648 = vmatpush1.bf16.msra.mxu0 0
    %1649 = vmatprep.subr.bf16.mxu0 0
    %1650 = vmatpush1.bf16.msra.mxu0 0
    %1651 = vmatprep.subr.bf16.mxu0 0
    %1652 = vmatpush1.bf16.msra.mxu0 0
    %1653 = vmatprep.subr.bf16.mxu0 0
    %1654 = vmatpush1.bf16.msra.mxu0 0
    %1655 = vmatprep.subr.bf16.mxu0 0
    %1656 = vmatpush1.bf16.msra.mxu0 0
    %1657 = vmatprep.subr.bf16.mxu0 0
    %1658 = vmatpush1.bf16.msra.mxu0 0
    %1659 = vmatprep.subr.bf16.mxu0 0
    %1660 = vmatpush1.bf16.msra.mxu0 0
    %1661 = vmatprep.mubr.bf16.mxu0 0
    %1662 = vmatmul.mubr.bf16.gmra.mrb[0].mxu0 %v1627
    %v1663 = vpop.f32.mrb[0].mxu0
    %v1664 = vadd.f32 0.0, %v1663
    %v1665 = vpop.f32.mrb[0].mxu0
    %v1666 = vpop.f32.mrb[0].mxu0
    %v1667 = vadd.f32 0.0, %v1666
    %v1668 = vpop.f32.mrb[0].mxu0
    %1669 = vdwg.mxu0
    %v1670 = vpack.c.bf16 %v1667, %v1664
    %s1671 = scalar_lea.vmem %s2, 640
    %v1672 = vld [vmem:[%s1671] sm:$0xf]
    %v1673 = vld [vmem:[%s1671 + $0x4] sm:$0xf]
    %v1674 = vld [vmem:[%s1671 + $0x8] sm:$0xf]
    %v1675 = vld [vmem:[%s1671 + $0xc] sm:$0xf]
    %v1676 = vld [vmem:[%s1671 + $0x10] sm:$0xf]
    %v1677 = vld [vmem:[%s1671 + $0x14] sm:$0xf]
    %v1678 = vld [vmem:[%s1671 + $0x18] sm:$0xf]
    %v1679 = vld [vmem:[%s1671 + $0x1c] sm:$0xf]
    %v1680 = vld [vmem:[%s1671 + $0x20] sm:$0xf]
    %v1681 = vld [vmem:[%s1671 + $0x24] sm:$0xf]
    %v1682 = vld [vmem:[%s1671 + $0x28] sm:$0xf]
    %v1683 = vld [vmem:[%s1671 + $0x2c] sm:$0xf]
    %v1684 = vld [vmem:[%s1671 + $0x30] sm:$0xf]
    %v1685 = vld [vmem:[%s1671 + $0x34] sm:$0xf]
    %v1686 = vld [vmem:[%s1671 + $0x38] sm:$0xf]
    %v1687 = vld [vmem:[%s1671 + $0x3c] sm:$0xf]
    %v1704 = vunpack.c.l.b16 %v1672
    %v1705 = vunpack.c.l.b16 %v1673
    %v1706 = vunpack.c.l.b16 %v1674
    %v1707 = vunpack.c.l.b16 %v1675
    %v1708 = vunpack.c.l.b16 %v1676
    %v1709 = vunpack.c.l.b16 %v1677
    %v1710 = vunpack.c.l.b16 %v1678
    %v1711 = vunpack.c.l.b16 %v1679
    %v1712 = vunpack.c.l.b16 %v1680
    %v1713 = vunpack.c.l.b16 %v1681
    %v1714 = vunpack.c.l.b16 %v1682
    %v1715 = vunpack.c.l.b16 %v1683
    %v1716 = vunpack.c.l.b16 %v1684
    %v1717 = vunpack.c.l.b16 %v1685
    %v1718 = vunpack.c.l.b16 %v1686
    %v1719 = vunpack.c.l.b16 %v1687
    %v1720 = vpack.c.b16 %v1705, %v1704
    %v1721 = vpack.c.b16 %v1707, %v1706
    %v1722 = vpack.c.b16 %v1709, %v1708
    %v1723 = vpack.c.b16 %v1711, %v1710
    %v1724 = vpack.c.b16 %v1713, %v1712
    %v1725 = vpack.c.b16 %v1715, %v1714
    %v1726 = vpack.c.b16 %v1717, %v1716
    %v1727 = vpack.c.b16 %v1719, %v1718
    %1736 = vmatprep.subr.bf16.mxu0 0
    %1737 = vmatpush1.bf16.msra.mxu0 %v1720
    %1738 = vmatprep.subr.bf16.mxu0 0
    %1739 = vmatpush1.bf16.msra.mxu0 %v1721
    %1740 = vmatprep.subr.bf16.mxu0 0
    %1741 = vmatpush1.bf16.msra.mxu0 %v1722
    %1742 = vmatprep.subr.bf16.mxu0 0
    %1743 = vmatpush1.bf16.msra.mxu0 %v1723
    %1744 = vmatprep.subr.bf16.mxu0 0
    %1745 = vmatpush1.bf16.msra.mxu0 %v1724
    %1746 = vmatprep.subr.bf16.mxu0 0
    %1747 = vmatpush1.bf16.msra.mxu0 %v1725
    %1748 = vmatprep.subr.bf16.mxu0 0
    %1749 = vmatpush1.bf16.msra.mxu0 %v1726
    %1750 = vmatprep.subr.bf16.mxu0 0
    %1751 = vmatpush1.bf16.msra.mxu0 %v1727
    %1752 = vmatprep.subr.bf16.mxu0 0
    %1753 = vmatpush1.bf16.msra.mxu0 0
    %1754 = vmatprep.subr.bf16.mxu0 0
    %1755 = vmatpush1.bf16.msra.mxu0 0
    %1756 = vmatprep.subr.bf16.mxu0 0
    %1757 = vmatpush1.bf16.msra.mxu0 0
    %1758 = vmatprep.subr.bf16.mxu0 0
    %1759 = vmatpush1.bf16.msra.mxu0 0
    %1760 = vmatprep.subr.bf16.mxu0 0
    %1761 = vmatpush1.bf16.msra.mxu0 0
    %1762 = vmatprep.subr.bf16.mxu0 0
    %1763 = vmatpush1.bf16.msra.mxu0 0
    %1764 = vmatprep.subr.bf16.mxu0 0
    %1765 = vmatpush1.bf16.msra.mxu0 0
    %1766 = vmatprep.subr.bf16.mxu0 0
    %1767 = vmatpush1.bf16.msra.mxu0 0
    %1768 = vmatprep.mubr.bf16.mxu0 0
    %1769 = vmatmul.mubr.bf16.gmra.mrb[0].mxu0 %v1670
    %v1770 = vpop.f32.mrb[0].mxu0
    %v1771 = vadd.f32 0.0, %v1770
    %v1772 = vpop.f32.mrb[0].mxu0
    %v1773 = vpop.f32.mrb[0].mxu0
    %v1774 = vadd.f32 0.0, %v1773
    %v1775 = vpop.f32.mrb[0].mxu0
    %1776 = vdwg.mxu0
    %v1793 = vunpack.c.l.b16 %v1602
    %v1794 = vunpack.c.l.b16 %v1603
    %v1795 = vunpack.c.l.b16 %v1604
    %v1796 = vunpack.c.l.b16 %v1605
    %v1797 = vunpack.c.l.b16 %v1606
    %v1798 = vunpack.c.l.b16 %v1607
    %v1799 = vunpack.c.l.b16 %v1608
    %v1800 = vunpack.c.l.b16 %v1609
    %v1801 = vunpack.c.l.b16 %v1610
    %v1802 = vunpack.c.l.b16 %v1611
    %v1803 = vunpack.c.l.b16 %v1612
    %v1804 = vunpack.c.l.b16 %v1613
    %v1805 = vunpack.c.l.b16 %v1614
    %v1806 = vunpack.c.l.b16 %v1615
    %v1807 = vunpack.c.l.b16 %v1616
    %v1808 = vunpack.c.l.b16 %v1617
    %v1809 = vpack.c.b16 %v1794, %v1793
    %v1810 = vpack.c.b16 %v1796, %v1795
    %v1811 = vpack.c.b16 %v1798, %v1797
    %v1812 = vpack.c.b16 %v1800, %v1799
    %v1813 = vpack.c.b16 %v1802, %v1801
    %v1814 = vpack.c.b16 %v1804, %v1803
    %v1815 = vpack.c.b16 %v1806, %v1805
    %v1816 = vpack.c.b16 %v1808, %v1807
    %1825 = vmatprep.subr.bf16.mxu0 0
    %1826 = vmatpush1.bf16.msra.mxu0 %v1809
    %1827 = vmatprep.subr.bf16.mxu0 0
    %1828 = vmatpush1.bf16.msra.mxu0 %v1810
    %1829 = vmatprep.subr.bf16.mxu0 0
    %1830 = vmatpush1.bf16.msra.mxu0 %v1811
    %1831 = vmatprep.subr.bf16.mxu0 0
    %1832 = vmatpush1.bf16.msra.mxu0 %v1812
    %1833 = vmatprep.subr.bf16.mxu0 0
    %1834 = vmatpush1.bf16.msra.mxu0 %v1813
    %1835 = vmatprep.subr.bf16.mxu0 0
    %1836 = vmatpush1.bf16.msra.mxu0 %v1814
    %1837 = vmatprep.subr.bf16.mxu0 0
    %1838 = vmatpush1.bf16.msra.mxu0 %v1815
    %1839 = vmatprep.subr.bf16.mxu0 0
    %1840 = vmatpush1.bf16.msra.mxu0 %v1816
    %1841 = vmatprep.subr.bf16.mxu0 0
    %1842 = vmatpush1.bf16.msra.mxu0 0
    %1843 = vmatprep.subr.bf16.mxu0 0
    %1844 = vmatpush1.bf16.msra.mxu0 0
    %1845 = vmatprep.subr.bf16.mxu0 0
    %1846 = vmatpush1.bf16.msra.mxu0 0
    %1847 = vmatprep.subr.bf16.mxu0 0
    %1848 = vmatpush1.bf16.msra.mxu0 0
    %1849 = vmatprep.subr.bf16.mxu0 0
    %1850 = vmatpush1.bf16.msra.mxu0 0
    %1851 = vmatprep.subr.bf16.mxu0 0
    %1852 = vmatpush1.bf16.msra.mxu0 0
    %1853 = vmatprep.subr.bf16.mxu0 0
    %1854 = vmatpush1.bf16.msra.mxu0 0
    %1855 = vmatprep.subr.bf16.mxu0 0
    %1856 = vmatpush1.bf16.msra.mxu0 0
    %1857 = vmatprep.mubr.bf16.mxu0 0
    %1858 = vmatmul.mubr.bf16.gmra.mrb[0].mxu0 %v1600
    %v1859 = vpop.f32.mrb[0].mxu0
    %v1860 = vadd.f32 %v1771, %v1859
    %v1861 = vpop.f32.mrb[0].mxu0
    %v1862 = vpop.f32.mrb[0].mxu0
    %v1863 = vadd.f32 %v1774, %v1862
    %v1864 = vpop.f32.mrb[0].mxu0
    %1865 = vdwg.mxu0
    %s1866 = scalar_lea.vmem %s1, 88
    %v1867 = vld [vmem:[%s1866] sm:$0xf]
    %v1868 = vld [vmem:[%s1866 + $0x4] sm:$0xf]
    %v1871 = vunpack.c.l.b16 %v1867
    %v1872 = vunpack.c.l.b16 %v1868
    %v1873 = vpack.c.b16 %v1872, %v1871
    %v1875 = vsel %vm68, %v1873, 0
    %1877 = vmatprep.subr.bf16.mxu0 0
    %1878 = vmatpush1.bf16.msra.mxu0 %v1547
    %1879 = vmatprep.subr.bf16.mxu0 0
    %1880 = vmatpush1.bf16.msra.mxu0 0
    %1881 = vmatprep.subr.bf16.mxu0 0
    %1882 = vmatpush1.bf16.msra.mxu0 0
    %1883 = vmatprep.subr.bf16.mxu0 0
    %1884 = vmatpush1.bf16.msra.mxu0 0
    %1885 = vmatprep.subr.bf16.mxu0 0
    %1886 = vmatpush1.bf16.msra.mxu0 0
    %1887 = vmatprep.subr.bf16.mxu0 0
    %1888 = vmatpush1.bf16.msra.mxu0 0
    %1889 = vmatprep.subr.bf16.mxu0 0
    %1890 = vmatpush1.bf16.msra.mxu0 0
    %1891 = vmatprep.subr.bf16.mxu0 0
    %1892 = vmatpush1.bf16.msra.mxu0 0
    %1893 = vmatprep.subr.bf16.mxu0 0
    %1894 = vmatpush1.bf16.msra.mxu0 0
    %1895 = vmatprep.subr.bf16.mxu0 0
    %1896 = vmatpush1.bf16.msra.mxu0 0
    %1897 = vmatprep.subr.bf16.mxu0 0
    %1898 = vmatpush1.bf16.msra.mxu0 0
    %1899 = vmatprep.subr.bf16.mxu0 0
    %1900 = vmatpush1.bf16.msra.mxu0 0
    %1901 = vmatprep.subr.bf16.mxu0 0
    %1902 = vmatpush1.bf16.msra.mxu0 0
    %1903 = vmatprep.subr.bf16.mxu0 0
    %1904 = vmatpush1.bf16.msra.mxu0 0
    %1905 = vmatprep.subr.bf16.mxu0 0
    %1906 = vmatpush1.bf16.msra.mxu0 0
    %1907 = vmatprep.subr.bf16.mxu0 0
    %1908 = vmatpush1.bf16.msra.mxu0 0
    %1909 = vmatprep.mubr.bf16.mxu0 0
    %1910 = vmatmul.mubr.bf16.gmra.mrb[0].mxu0 %v1875
    %v1911 = vpop.f32.mrb[0].mxu0
    %v1912 = vadd.f32 0.0, %v1911
    %v1913 = vpop.f32.mrb[0].mxu0
    %v1914 = vpop.f32.mrb[0].mxu0
    %v1915 = vadd.f32 0.0, %v1914
    %v1916 = vpop.f32.mrb[0].mxu0
    %1917 = vdwg.mxu0
    %v1918 = vpack.c.bf16 %v1915, %v1912
    %s1919 = scalar_lea.vmem %s2, 704
    %v1920 = vld [vmem:[%s1919] sm:$0xf]
    %v1921 = vld [vmem:[%s1919 + $0x4] sm:$0xf]
    %v1922 = vld [vmem:[%s1919 + $0x8] sm:$0xf]
    %v1923 = vld [vmem:[%s1919 + $0xc] sm:$0xf]
    %v1924 = vld [vmem:[%s1919 + $0x10] sm:$0xf]
    %v1925 = vld [vmem:[%s1919 + $0x14] sm:$0xf]
    %v1926 = vld [vmem:[%s1919 + $0x18] sm:$0xf]
    %v1927 = vld [vmem:[%s1919 + $0x1c] sm:$0xf]
    %v1928 = vld [vmem:[%s1919 + $0x20] sm:$0xf]
    %v1929 = vld [vmem:[%s1919 + $0x24] sm:$0xf]
    %v1930 = vld [vmem:[%s1919 + $0x28] sm:$0xf]
    %v1931 = vld [vmem:[%s1919 + $0x2c] sm:$0xf]
    %v1932 = vld [vmem:[%s1919 + $0x30] sm:$0xf]
    %v1933 = vld [vmem:[%s1919 + $0x34] sm:$0xf]
    %v1934 = vld [vmem:[%s1919 + $0x38] sm:$0xf]
    %v1935 = vld [vmem:[%s1919 + $0x3c] sm:$0xf]
    %v1952 = vunpack.c.l.b16 %v1920
    %v1953 = vunpack.c.l.b16 %v1921
    %v1954 = vunpack.c.l.b16 %v1922
    %v1955 = vunpack.c.l.b16 %v1923
    %v1956 = vunpack.c.l.b16 %v1924
    %v1957 = vunpack.c.l.b16 %v1925
    %v1958 = vunpack.c.l.b16 %v1926
    %v1959 = vunpack.c.l.b16 %v1927
    %v1960 = vunpack.c.l.b16 %v1928
    %v1961 = vunpack.c.l.b16 %v1929
    %v1962 = vunpack.c.l.b16 %v1930
    %v1963 = vunpack.c.l.b16 %v1931
    %v1964 = vunpack.c.l.b16 %v1932
    %v1965 = vunpack.c.l.b16 %v1933
    %v1966 = vunpack.c.l.b16 %v1934
    %v1967 = vunpack.c.l.b16 %v1935
    %v1968 = vpack.c.b16 %v1953, %v1952
    %v1969 = vpack.c.b16 %v1955, %v1954
    %v1970 = vpack.c.b16 %v1957, %v1956
    %v1971 = vpack.c.b16 %v1959, %v1958
    %v1972 = vpack.c.b16 %v1961, %v1960
    %v1973 = vpack.c.b16 %v1963, %v1962
    %v1974 = vpack.c.b16 %v1965, %v1964
    %v1975 = vpack.c.b16 %v1967, %v1966
    %1984 = vmatprep.subr.bf16.mxu0 0
    %1985 = vmatpush1.bf16.msra.mxu0 %v1968
    %1986 = vmatprep.subr.bf16.mxu0 0
    %1987 = vmatpush1.bf16.msra.mxu0 %v1969
    %1988 = vmatprep.subr.bf16.mxu0 0
    %1989 = vmatpush1.bf16.msra.mxu0 %v1970
    %1990 = vmatprep.subr.bf16.mxu0 0
    %1991 = vmatpush1.bf16.msra.mxu0 %v1971
    %1992 = vmatprep.subr.bf16.mxu0 0
    %1993 = vmatpush1.bf16.msra.mxu0 %v1972
    %1994 = vmatprep.subr.bf16.mxu0 0
    %1995 = vmatpush1.bf16.msra.mxu0 %v1973
    %1996 = vmatprep.subr.bf16.mxu0 0
    %1997 = vmatpush1.bf16.msra.mxu0 %v1974
    %1998 = vmatprep.subr.bf16.mxu0 0
    %1999 = vmatpush1.bf16.msra.mxu0 %v1975
    %2000 = vmatprep.subr.bf16.mxu0 0
    %2001 = vmatpush1.bf16.msra.mxu0 0
    %2002 = vmatprep.subr.bf16.mxu0 0
    %2003 = vmatpush1.bf16.msra.mxu0 0
    %2004 = vmatprep.subr.bf16.mxu0 0
    %2005 = vmatpush1.bf16.msra.mxu0 0
    %2006 = vmatprep.subr.bf16.mxu0 0
    %2007 = vmatpush1.bf16.msra.mxu0 0
    %2008 = vmatprep.subr.bf16.mxu0 0
    %2009 = vmatpush1.bf16.msra.mxu0 0
    %2010 = vmatprep.subr.bf16.mxu0 0
    %2011 = vmatpush1.bf16.msra.mxu0 0
    %2012 = vmatprep.subr.bf16.mxu0 0
    %2013 = vmatpush1.bf16.msra.mxu0 0
    %2014 = vmatprep.subr.bf16.mxu0 0
    %2015 = vmatpush1.bf16.msra.mxu0 0
    %2016 = vmatprep.mubr.bf16.mxu0 0
    %2017 = vmatmul.mubr.bf16.gmra.mrb[0].mxu0 %v1918
    %v2018 = vpop.f32.mrb[0].mxu0
    %v2019 = vadd.f32 0.0, %v2018
    %v2020 = vpop.f32.mrb[0].mxu0
    %v2021 = vpop.f32.mrb[0].mxu0
    %v2022 = vadd.f32 0.0, %v2021
    %v2023 = vpop.f32.mrb[0].mxu0
    %2024 = vdwg.mxu0
    %v2025 = vadd.f32 %v1860, %v2019
    %v2026 = vadd.f32 %v1863, %v2022
    %v2027 = vld [vmem:[%s3 + $0x3] sm:$0x1]
    %v2028 = vlaneseq
    %v2029 = vshrl.u32 %v2028, 7
    %v2030 = vsub.s32 0, %v2029
    %v2031 = vrot.slane %v2027, %v2030
    %v2032 = vmul.f32 %v2025, %v2031
    %v2033 = vmul.f32 %v2026, %v2031
    %v2034 = vld [vmem:[%s4 + $0x3] sm:$0x1]
    %v2035 = vlaneseq
    %v2036 = vshrl.u32 %v2035, 7
    %v2037 = vsub.s32 0, %v2036
    %v2038 = vrot.slane %v2034, %v2037
    %v2039 = vadd.f32 %v2032, %v2038
    %v2040 = vadd.f32 %v2033, %v2038
    %v2041 = vmax.f32 %v2039, 0.0
    %v2042 = vmax.f32 %v2040, 0.0
    %v2043 = vpack.c.bf16 %v2042, %v2041
    %s2044 = scalar_lea.vmem %s1, 96
    %v2045 = vld [vmem:[%s2044] sm:$0xf]
    %v2046 = vld [vmem:[%s2044 + $0x4] sm:$0xf]
    %v2049 = vunpack.c.l.b16 %v2045
    %v2050 = vunpack.c.l.b16 %v2046
    %v2051 = vpack.c.b16 %v2050, %v2049
    %v2053 = vsel %vm68, %v2051, 0
    %2055 = vmatprep.subr.bf16.mxu0 0
    %2056 = vmatpush1.bf16.msra.mxu0 %v2043
    %2057 = vmatprep.subr.bf16.mxu0 0
    %2058 = vmatpush1.bf16.msra.mxu0 0
    %2059 = vmatprep.subr.bf16.mxu0 0
    %2060 = vmatpush1.bf16.msra.mxu0 0
    %2061 = vmatprep.subr.bf16.mxu0 0
    %2062 = vmatpush1.bf16.msra.mxu0 0
    %2063 = vmatprep.subr.bf16.mxu0 0
    %2064 = vmatpush1.bf16.msra.mxu0 0
    %2065 = vmatprep.subr.bf16.mxu0 0
    %2066 = vmatpush1.bf16.msra.mxu0 0
    %2067 = vmatprep.subr.bf16.mxu0 0
    %2068 = vmatpush1.bf16.msra.mxu0 0
    %2069 = vmatprep.subr.bf16.mxu0 0
    %2070 = vmatpush1.bf16.msra.mxu0 0
    %2071 = vmatprep.subr.bf16.mxu0 0
    %2072 = vmatpush1.bf16.msra.mxu0 0
    %2073 = vmatprep.subr.bf16.mxu0 0
    %2074 = vmatpush1.bf16.msra.mxu0 0
    %2075 = vmatprep.subr.bf16.mxu0 0
    %2076 = vmatpush1.bf16.msra.mxu0 0
    %2077 = vmatprep.subr.bf16.mxu0 0
    %2078 = vmatpush1.bf16.msra.mxu0 0
    %2079 = vmatprep.subr.bf16.mxu0 0
    %2080 = vmatpush1.bf16.msra.mxu0 0
    %2081 = vmatprep.subr.bf16.mxu0 0
    %2082 = vmatpush1.bf16.msra.mxu0 0
    %2083 = vmatprep.subr.bf16.mxu0 0
    %2084 = vmatpush1.bf16.msra.mxu0 0
    %2085 = vmatprep.subr.bf16.mxu0 0
    %2086 = vmatpush1.bf16.msra.mxu0 0
    %2087 = vmatprep.mubr.bf16.mxu0 0
    %2088 = vmatmul.mubr.bf16.gmra.mrb[0].mxu0 %v2053
    %v2089 = vpop.f32.mrb[0].mxu0
    %v2090 = vadd.f32 0.0, %v2089
    %v2091 = vpop.f32.mrb[0].mxu0
    %v2092 = vpop.f32.mrb[0].mxu0
    %v2093 = vadd.f32 0.0, %v2092
    %v2094 = vpop.f32.mrb[0].mxu0
    %2095 = vdwg.mxu0
    %v2096 = vpack.c.bf16 %v2093, %v2090
    %s2097 = scalar_lea.vmem %s2, 768
    %v2098 = vld [vmem:[%s2097] sm:$0xf]
    %v2099 = vld [vmem:[%s2097 + $0x4] sm:$0xf]
    %v2100 = vld [vmem:[%s2097 + $0x8] sm:$0xf]
    %v2101 = vld [vmem:[%s2097 + $0xc] sm:$0xf]
    %v2102 = vld [vmem:[%s2097 + $0x10] sm:$0xf]
    %v2103 = vld [vmem:[%s2097 + $0x14] sm:$0xf]
    %v2104 = vld [vmem:[%s2097 + $0x18] sm:$0xf]
    %v2105 = vld [vmem:[%s2097 + $0x1c] sm:$0xf]
    %v2106 = vld [vmem:[%s2097 + $0x20] sm:$0xf]
    %v2107 = vld [vmem:[%s2097 + $0x24] sm:$0xf]
    %v2108 = vld [vmem:[%s2097 + $0x28] sm:$0xf]
    %v2109 = vld [vmem:[%s2097 + $0x2c] sm:$0xf]
    %v2110 = vld [vmem:[%s2097 + $0x30] sm:$0xf]
    %v2111 = vld [vmem:[%s2097 + $0x34] sm:$0xf]
    %v2112 = vld [vmem:[%s2097 + $0x38] sm:$0xf]
    %v2113 = vld [vmem:[%s2097 + $0x3c] sm:$0xf]
    %s2114 = scalar_lea.vmem %s1, 104
    %v2115 = vld [vmem:[%s2114] sm:$0xf]
    %v2116 = vld [vmem:[%s2114 + $0x4] sm:$0xf]
    %v2119 = vunpack.c.l.b16 %v2115
    %v2120 = vunpack.c.l.b16 %v2116
    %v2121 = vpack.c.b16 %v2120, %v2119
    %v2123 = vsel %vm68, %v2121, 0
    %2125 = vmatprep.subr.bf16.mxu0 0
    %2126 = vmatpush1.bf16.msra.mxu0 %v2043
    %2127 = vmatprep.subr.bf16.mxu0 0
    %2128 = vmatpush1.bf16.msra.mxu0 0
    %2129 = vmatprep.subr.bf16.mxu0 0
    %2130 = vmatpush1.bf16.msra.mxu0 0
    %2131 = vmatprep.subr.bf16.mxu0 0
    %2132 = vmatpush1.bf16.msra.mxu0 0
    %2133 = vmatprep.subr.bf16.mxu0 0
    %2134 = vmatpush1.bf16.msra.mxu0 0
    %2135 = vmatprep.subr.bf16.mxu0 0
    %2136 = vmatpush1.bf16.msra.mxu0 0
    %2137 = vmatprep.subr.bf16.mxu0 0
    %2138 = vmatpush1.bf16.msra.mxu0 0
    %2139 = vmatprep.subr.bf16.mxu0 0
    %2140 = vmatpush1.bf16.msra.mxu0 0
    %2141 = vmatprep.subr.bf16.mxu0 0
    %2142 = vmatpush1.bf16.msra.mxu0 0
    %2143 = vmatprep.subr.bf16.mxu0 0
    %2144 = vmatpush1.bf16.msra.mxu0 0
    %2145 = vmatprep.subr.bf16.mxu0 0
    %2146 = vmatpush1.bf16.msra.mxu0 0
    %2147 = vmatprep.subr.bf16.mxu0 0
    %2148 = vmatpush1.bf16.msra.mxu0 0
    %2149 = vmatprep.subr.bf16.mxu0 0
    %2150 = vmatpush1.bf16.msra.mxu0 0
    %2151 = vmatprep.subr.bf16.mxu0 0
    %2152 = vmatpush1.bf16.msra.mxu0 0
    %2153 = vmatprep.subr.bf16.mxu0 0
    %2154 = vmatpush1.bf16.msra.mxu0 0
    %2155 = vmatprep.subr.bf16.mxu0 0
    %2156 = vmatpush1.bf16.msra.mxu0 0
    %2157 = vmatprep.mubr.bf16.mxu0 0
    %2158 = vmatmul.mubr.bf16.gmra.mrb[0].mxu0 %v2123
    %v2159 = vpop.f32.mrb[0].mxu0
    %v2160 = vadd.f32 0.0, %v2159
    %v2161 = vpop.f32.mrb[0].mxu0
    %v2162 = vpop.f32.mrb[0].mxu0
    %v2163 = vadd.f32 0.0, %v2162
    %v2164 = vpop.f32.mrb[0].mxu0
    %2165 = vdwg.mxu0
    %v2166 = vpack.c.bf16 %v2163, %v2160
    %s2167 = scalar_lea.vmem %s2, 832
    %v2168 = vld [vmem:[%s2167] sm:$0xf]
    %v2169 = vld [vmem:[%s2167 + $0x4] sm:$0xf]
    %v2170 = vld [vmem:[%s2167 + $0x8] sm:$0xf]
    %v2171 = vld [vmem:[%s2167 + $0xc] sm:$0xf]
    %v2172 = vld [vmem:[%s2167 + $0x10] sm:$0xf]
    %v2173 = vld [vmem:[%s2167 + $0x14] sm:$0xf]
    %v2174 = vld [vmem:[%s2167 + $0x18] sm:$0xf]
    %v2175 = vld [vmem:[%s2167 + $0x1c] sm:$0xf]
    %v2176 = vld [vmem:[%s2167 + $0x20] sm:$0xf]
    %v2177 = vld [vmem:[%s2167 + $0x24] sm:$0xf]
    %v2178 = vld [vmem:[%s2167 + $0x28] sm:$0xf]
    %v2179 = vld [vmem:[%s2167 + $0x2c] sm:$0xf]
    %v2180 = vld [vmem:[%s2167 + $0x30] sm:$0xf]
    %v2181 = vld [vmem:[%s2167 + $0x34] sm:$0xf]
    %v2182 = vld [vmem:[%s2167 + $0x38] sm:$0xf]
    %v2183 = vld [vmem:[%s2167 + $0x3c] sm:$0xf]
    %v2200 = vunpack.c.l.b16 %v2168
    %v2201 = vunpack.c.l.b16 %v2169
    %v2202 = vunpack.c.l.b16 %v2170
    %v2203 = vunpack.c.l.b16 %v2171
    %v2204 = vunpack.c.l.b16 %v2172
    %v2205 = vunpack.c.l.b16 %v2173
    %v2206 = vunpack.c.l.b16 %v2174
    %v2207 = vunpack.c.l.b16 %v2175
    %v2208 = vunpack.c.l.b16 %v2176
    %v2209 = vunpack.c.l.b16 %v2177
    %v2210 = vunpack.c.l.b16 %v2178
    %v2211 = vunpack.c.l.b16 %v2179
    %v2212 = vunpack.c.l.b16 %v2180
    %v2213 = vunpack.c.l.b16 %v2181
    %v2214 = vunpack.c.l.b16 %v2182
    %v2215 = vunpack.c.l.b16 %v2183
    %v2216 = vpack.c.b16 %v2201, %v2200
    %v2217 = vpack.c.b16 %v2203, %v2202
    %v2218 = vpack.c.b16 %v2205, %v2204
    %v2219 = vpack.c.b16 %v2207, %v2206
    %v2220 = vpack.c.b16 %v2209, %v2208
    %v2221 = vpack.c.b16 %v2211, %v2210
    %v2222 = vpack.c.b16 %v2213, %v2212
    %v2223 = vpack.c.b16 %v2215, %v2214
    %2232 = vmatprep.subr.bf16.mxu0 0
    %2233 = vmatpush1.bf16.msra.mxu0 %v2216
    %2234 = vmatprep.subr.bf16.mxu0 0
    %2235 = vmatpush1.bf16.msra.mxu0 %v2217
    %2236 = vmatprep.subr.bf16.mxu0 0
    %2237 = vmatpush1.bf16.msra.mxu0 %v2218
    %2238 = vmatprep.subr.bf16.mxu0 0
    %2239 = vmatpush1.bf16.msra.mxu0 %v2219
    %2240 = vmatprep.subr.bf16.mxu0 0
    %2241 = vmatpush1.bf16.msra.mxu0 %v2220
    %2242 = vmatprep.subr.bf16.mxu0 0
    %2243 = vmatpush1.bf16.msra.mxu0 %v2221
    %2244 = vmatprep.subr.bf16.mxu0 0
    %2245 = vmatpush1.bf16.msra.mxu0 %v2222
    %2246 = vmatprep.subr.bf16.mxu0 0
    %2247 = vmatpush1.bf16.msra.mxu0 %v2223
    %2248 = vmatprep.subr.bf16.mxu0 0
    %2249 = vmatpush1.bf16.msra.mxu0 0
    %2250 = vmatprep.subr.bf16.mxu0 0
    %2251 = vmatpush1.bf16.msra.mxu0 0
    %2252 = vmatprep.subr.bf16.mxu0 0
    %2253 = vmatpush1.bf16.msra.mxu0 0
    %2254 = vmatprep.subr.bf16.mxu0 0
    %2255 = vmatpush1.bf16.msra.mxu0 0
    %2256 = vmatprep.subr.bf16.mxu0 0
    %2257 = vmatpush1.bf16.msra.mxu0 0
    %2258 = vmatprep.subr.bf16.mxu0 0
    %2259 = vmatpush1.bf16.msra.mxu0 0
    %2260 = vmatprep.subr.bf16.mxu0 0
    %2261 = vmatpush1.bf16.msra.mxu0 0
    %2262 = vmatprep.subr.bf16.mxu0 0
    %2263 = vmatpush1.bf16.msra.mxu0 0
    %2264 = vmatprep.mubr.bf16.mxu0 0
    %2265 = vmatmul.mubr.bf16.gmra.mrb[0].mxu0 %v2166
    %v2266 = vpop.f32.mrb[0].mxu0
    %v2267 = vadd.f32 0.0, %v2266
    %v2268 = vpop.f32.mrb[0].mxu0
    %v2269 = vpop.f32.mrb[0].mxu0
    %v2270 = vadd.f32 0.0, %v2269
    %v2271 = vpop.f32.mrb[0].mxu0
    %2272 = vdwg.mxu0
    %v2289 = vunpack.c.l.b16 %v2098
    %v2290 = vunpack.c.l.b16 %v2099
    %v2291 = vunpack.c.l.b16 %v2100
    %v2292 = vunpack.c.l.b16 %v2101
    %v2293 = vunpack.c.l.b16 %v2102
    %v2294 = vunpack.c.l.b16 %v2103
    %v2295 = vunpack.c.l.b16 %v2104
    %v2296 = vunpack.c.l.b16 %v2105
    %v2297 = vunpack.c.l.b16 %v2106
    %v2298 = vunpack.c.l.b16 %v2107
    %v2299 = vunpack.c.l.b16 %v2108
    %v2300 = vunpack.c.l.b16 %v2109
    %v2301 = vunpack.c.l.b16 %v2110
    %v2302 = vunpack.c.l.b16 %v2111
    %v2303 = vunpack.c.l.b16 %v2112
    %v2304 = vunpack.c.l.b16 %v2113
    %v2305 = vpack.c.b16 %v2290, %v2289
    %v2306 = vpack.c.b16 %v2292, %v2291
    %v2307 = vpack.c.b16 %v2294, %v2293
    %v2308 = vpack.c.b16 %v2296, %v2295
    %v2309 = vpack.c.b16 %v2298, %v2297
    %v2310 = vpack.c.b16 %v2300, %v2299
    %v2311 = vpack.c.b16 %v2302, %v2301
    %v2312 = vpack.c.b16 %v2304, %v2303
    %2321 = vmatprep.subr.bf16.mxu0 0
    %2322 = vmatpush1.bf16.msra.mxu0 %v2305
    %2323 = vmatprep.subr.bf16.mxu0 0
    %2324 = vmatpush1.bf16.msra.mxu0 %v2306
    %2325 = vmatprep.subr.bf16.mxu0 0
    %2326 = vmatpush1.bf16.msra.mxu0 %v2307
    %2327 = vmatprep.subr.bf16.mxu0 0
    %2328 = vmatpush1.bf16.msra.mxu0 %v2308
    %2329 = vmatprep.subr.bf16.mxu0 0
    %2330 = vmatpush1.bf16.msra.mxu0 %v2309
    %2331 = vmatprep.subr.bf16.mxu0 0
    %2332 = vmatpush1.bf16.msra.mxu0 %v2310
    %2333 = vmatprep.subr.bf16.mxu0 0
    %2334 = vmatpush1.bf16.msra.mxu0 %v2311
    %2335 = vmatprep.subr.bf16.mxu0 0
    %2336 = vmatpush1.bf16.msra.mxu0 %v2312
    %2337 = vmatprep.subr.bf16.mxu0 0
    %2338 = vmatpush1.bf16.msra.mxu0 0
    %2339 = vmatprep.subr.bf16.mxu0 0
    %2340 = vmatpush1.bf16.msra.mxu0 0
    %2341 = vmatprep.subr.bf16.mxu0 0
    %2342 = vmatpush1.bf16.msra.mxu0 0
    %2343 = vmatprep.subr.bf16.mxu0 0
    %2344 = vmatpush1.bf16.msra.mxu0 0
    %2345 = vmatprep.subr.bf16.mxu0 0
    %2346 = vmatpush1.bf16.msra.mxu0 0
    %2347 = vmatprep.subr.bf16.mxu0 0
    %2348 = vmatpush1.bf16.msra.mxu0 0
    %2349 = vmatprep.subr.bf16.mxu0 0
    %2350 = vmatpush1.bf16.msra.mxu0 0
    %2351 = vmatprep.subr.bf16.mxu0 0
    %2352 = vmatpush1.bf16.msra.mxu0 0
    %2353 = vmatprep.mubr.bf16.mxu0 0
    %2354 = vmatmul.mubr.bf16.gmra.mrb[0].mxu0 %v2096
    %v2355 = vpop.f32.mrb[0].mxu0
    %v2356 = vadd.f32 %v2267, %v2355
    %v2357 = vpop.f32.mrb[0].mxu0
    %v2358 = vpop.f32.mrb[0].mxu0
    %v2359 = vadd.f32 %v2270, %v2358
    %v2360 = vpop.f32.mrb[0].mxu0
    %2361 = vdwg.mxu0
    %s2362 = scalar_lea.vmem %s1, 112
    %v2363 = vld [vmem:[%s2362] sm:$0xf]
    %v2364 = vld [vmem:[%s2362 + $0x4] sm:$0xf]
    %v2367 = vunpack.c.l.b16 %v2363
    %v2368 = vunpack.c.l.b16 %v2364
    %v2369 = vpack.c.b16 %v2368, %v2367
    %v2371 = vsel %vm68, %v2369, 0
    %2373 = vmatprep.subr.bf16.mxu0 0
    %2374 = vmatpush1.bf16.msra.mxu0 %v2043
    %2375 = vmatprep.subr.bf16.mxu0 0
    %2376 = vmatpush1.bf16.msra.mxu0 0
    %2377 = vmatprep.subr.bf16.mxu0 0
    %2378 = vmatpush1.bf16.msra.mxu0 0
    %2379 = vmatprep.subr.bf16.mxu0 0
    %2380 = vmatpush1.bf16.msra.mxu0 0
    %2381 = vmatprep.subr.bf16.mxu0 0
    %2382 = vmatpush1.bf16.msra.mxu0 0
    %2383 = vmatprep.subr.bf16.mxu0 0
    %2384 = vmatpush1.bf16.msra.mxu0 0
    %2385 = vmatprep.subr.bf16.mxu0 0
    %2386 = vmatpush1.bf16.msra.mxu0 0
    %2387 = vmatprep.subr.bf16.mxu0 0
    %2388 = vmatpush1.bf16.msra.mxu0 0
    %2389 = vmatprep.subr.bf16.mxu0 0
    %2390 = vmatpush1.bf16.msra.mxu0 0
    %2391 = vmatprep.subr.bf16.mxu0 0
    %2392 = vmatpush1.bf16.msra.mxu0 0
    %2393 = vmatprep.subr.bf16.mxu0 0
    %2394 = vmatpush1.bf16.msra.mxu0 0
    %2395 = vmatprep.subr.bf16.mxu0 0
    %2396 = vmatpush1.bf16.msra.mxu0 0
    %2397 = vmatprep.subr.bf16.mxu0 0
    %2398 = vmatpush1.bf16.msra.mxu0 0
    %2399 = vmatprep.subr.bf16.mxu0 0
    %2400 = vmatpush1.bf16.msra.mxu0 0
    %2401 = vmatprep.subr.bf16.mxu0 0
    %2402 = vmatpush1.bf16.msra.mxu0 0
    %2403 = vmatprep.subr.bf16.mxu0 0
    %2404 = vmatpush1.bf16.msra.mxu0 0
    %2405 = vmatprep.mubr.bf16.mxu0 0
    %2406 = vmatmul.mubr.bf16.gmra.mrb[0].mxu0 %v2371
    %v2407 = vpop.f32.mrb[0].mxu0
    %v2408 = vadd.f32 0.0, %v2407
    %v2409 = vpop.f32.mrb[0].mxu0
    %v2410 = vpop.f32.mrb[0].mxu0
    %v2411 = vadd.f32 0.0, %v2410
    %v2412 = vpop.f32.mrb[0].mxu0
    %2413 = vdwg.mxu0
    %v2414 = vpack.c.bf16 %v2411, %v2408
    %s2415 = scalar_lea.vmem %s2, 896
    %v2416 = vld [vmem:[%s2415] sm:$0xf]
    %v2417 = vld [vmem:[%s2415 + $0x4] sm:$0xf]
    %v2418 = vld [vmem:[%s2415 + $0x8] sm:$0xf]
    %v2419 = vld [vmem:[%s2415 + $0xc] sm:$0xf]
    %v2420 = vld [vmem:[%s2415 + $0x10] sm:$0xf]
    %v2421 = vld [vmem:[%s2415 + $0x14] sm:$0xf]
    %v2422 = vld [vmem:[%s2415 + $0x18] sm:$0xf]
    %v2423 = vld [vmem:[%s2415 + $0x1c] sm:$0xf]
    %v2424 = vld [vmem:[%s2415 + $0x20] sm:$0xf]
    %v2425 = vld [vmem:[%s2415 + $0x24] sm:$0xf]
    %v2426 = vld [vmem:[%s2415 + $0x28] sm:$0xf]
    %v2427 = vld [vmem:[%s2415 + $0x2c] sm:$0xf]
    %v2428 = vld [vmem:[%s2415 + $0x30] sm:$0xf]
    %v2429 = vld [vmem:[%s2415 + $0x34] sm:$0xf]
    %v2430 = vld [vmem:[%s2415 + $0x38] sm:$0xf]
    %v2431 = vld [vmem:[%s2415 + $0x3c] sm:$0xf]
    %v2448 = vunpack.c.l.b16 %v2416
    %v2449 = vunpack.c.l.b16 %v2417
    %v2450 = vunpack.c.l.b16 %v2418
    %v2451 = vunpack.c.l.b16 %v2419
    %v2452 = vunpack.c.l.b16 %v2420
    %v2453 = vunpack.c.l.b16 %v2421
    %v2454 = vunpack.c.l.b16 %v2422
    %v2455 = vunpack.c.l.b16 %v2423
    %v2456 = vunpack.c.l.b16 %v2424
    %v2457 = vunpack.c.l.b16 %v2425
    %v2458 = vunpack.c.l.b16 %v2426
    %v2459 = vunpack.c.l.b16 %v2427
    %v2460 = vunpack.c.l.b16 %v2428
    %v2461 = vunpack.c.l.b16 %v2429
    %v2462 = vunpack.c.l.b16 %v2430
    %v2463 = vunpack.c.l.b16 %v2431
    %v2464 = vpack.c.b16 %v2449, %v2448
    %v2465 = vpack.c.b16 %v2451, %v2450
    %v2466 = vpack.c.b16 %v2453, %v2452
    %v2467 = vpack.c.b16 %v2455, %v2454
    %v2468 = vpack.c.b16 %v2457, %v2456
    %v2469 = vpack.c.b16 %v2459, %v2458
    %v2470 = vpack.c.b16 %v2461, %v2460
    %v2471 = vpack.c.b16 %v2463, %v2462
    %2480 = vmatprep.subr.bf16.mxu0 0
    %2481 = vmatpush1.bf16.msra.mxu0 %v2464
    %2482 = vmatprep.subr.bf16.mxu0 0
    %2483 = vmatpush1.bf16.msra.mxu0 %v2465
    %2484 = vmatprep.subr.bf16.mxu0 0
    %2485 = vmatpush1.bf16.msra.mxu0 %v2466
    %2486 = vmatprep.subr.bf16.mxu0 0
    %2487 = vmatpush1.bf16.msra.mxu0 %v2467
    %2488 = vmatprep.subr.bf16.mxu0 0
    %2489 = vmatpush1.bf16.msra.mxu0 %v2468
    %2490 = vmatprep.subr.bf16.mxu0 0
    %2491 = vmatpush1.bf16.msra.mxu0 %v2469
    %2492 = vmatprep.subr.bf16.mxu0 0
    %2493 = vmatpush1.bf16.msra.mxu0 %v2470
    %2494 = vmatprep.subr.bf16.mxu0 0
    %2495 = vmatpush1.bf16.msra.mxu0 %v2471
    %2496 = vmatprep.subr.bf16.mxu0 0
    %2497 = vmatpush1.bf16.msra.mxu0 0
    %2498 = vmatprep.subr.bf16.mxu0 0
    %2499 = vmatpush1.bf16.msra.mxu0 0
    %2500 = vmatprep.subr.bf16.mxu0 0
    %2501 = vmatpush1.bf16.msra.mxu0 0
    %2502 = vmatprep.subr.bf16.mxu0 0
    %2503 = vmatpush1.bf16.msra.mxu0 0
    %2504 = vmatprep.subr.bf16.mxu0 0
    %2505 = vmatpush1.bf16.msra.mxu0 0
    %2506 = vmatprep.subr.bf16.mxu0 0
    %2507 = vmatpush1.bf16.msra.mxu0 0
    %2508 = vmatprep.subr.bf16.mxu0 0
    %2509 = vmatpush1.bf16.msra.mxu0 0
    %2510 = vmatprep.subr.bf16.mxu0 0
    %2511 = vmatpush1.bf16.msra.mxu0 0
    %2512 = vmatprep.mubr.bf16.mxu0 0
    %2513 = vmatmul.mubr.bf16.gmra.mrb[0].mxu0 %v2414
    %v2514 = vpop.f32.mrb[0].mxu0
    %v2515 = vadd.f32 0.0, %v2514
    %v2516 = vpop.f32.mrb[0].mxu0
    %v2517 = vpop.f32.mrb[0].mxu0
    %v2518 = vadd.f32 0.0, %v2517
    %v2519 = vpop.f32.mrb[0].mxu0
    %2520 = vdwg.mxu0
    %v2521 = vadd.f32 %v2356, %v2515
    %v2522 = vadd.f32 %v2359, %v2518
    %v2523 = vld [vmem:[%s3 + $0x4] sm:$0x1]
    %v2524 = vlaneseq
    %v2525 = vshrl.u32 %v2524, 7
    %v2526 = vsub.s32 0, %v2525
    %v2527 = vrot.slane %v2523, %v2526
    %v2528 = vmul.f32 %v2521, %v2527
    %v2529 = vmul.f32 %v2522, %v2527
    %v2530 = vld [vmem:[%s4 + $0x4] sm:$0x1]
    %v2531 = vlaneseq
    %v2532 = vshrl.u32 %v2531, 7
    %v2533 = vsub.s32 0, %v2532
    %v2534 = vrot.slane %v2530, %v2533
    %v2535 = vadd.f32 %v2528, %v2534
    %v2536 = vadd.f32 %v2529, %v2534
    %v2537 = vmax.f32 %v2535, 0.0
    %v2538 = vmax.f32 %v2536, 0.0
    %v2539 = vld [vmem:[%s5] sm:$0x1]
    %v2540 = vpack.c.bf16 %v2538, %v2537
    %v2542 = vsel %vm68, %v2539, 0
    %2544 = vmatprep.subr.bf16.mxu0 0
    %2545 = vmatpush1.bf16.msra.mxu0 %v2540
    %2546 = vmatprep.subr.bf16.mxu0 0
    %2547 = vmatpush1.bf16.msra.mxu0 0
    %2548 = vmatprep.subr.bf16.mxu0 0
    %2549 = vmatpush1.bf16.msra.mxu0 0
    %2550 = vmatprep.subr.bf16.mxu0 0
    %2551 = vmatpush1.bf16.msra.mxu0 0
    %2552 = vmatprep.subr.bf16.mxu0 0
    %2553 = vmatpush1.bf16.msra.mxu0 0
    %2554 = vmatprep.subr.bf16.mxu0 0
    %2555 = vmatpush1.bf16.msra.mxu0 0
    %2556 = vmatprep.subr.bf16.mxu0 0
    %2557 = vmatpush1.bf16.msra.mxu0 0
    %2558 = vmatprep.subr.bf16.mxu0 0
    %2559 = vmatpush1.bf16.msra.mxu0 0
    %2560 = vmatprep.subr.bf16.mxu0 0
    %2561 = vmatpush1.bf16.msra.mxu0 0
    %2562 = vmatprep.subr.bf16.mxu0 0
    %2563 = vmatpush1.bf16.msra.mxu0 0
    %2564 = vmatprep.subr.bf16.mxu0 0
    %2565 = vmatpush1.bf16.msra.mxu0 0
    %2566 = vmatprep.subr.bf16.mxu0 0
    %2567 = vmatpush1.bf16.msra.mxu0 0
    %2568 = vmatprep.subr.bf16.mxu0 0
    %2569 = vmatpush1.bf16.msra.mxu0 0
    %2570 = vmatprep.subr.bf16.mxu0 0
    %2571 = vmatpush1.bf16.msra.mxu0 0
    %2572 = vmatprep.subr.bf16.mxu0 0
    %2573 = vmatpush1.bf16.msra.mxu0 0
    %2574 = vmatprep.subr.bf16.mxu0 0
    %2575 = vmatpush1.bf16.msra.mxu0 0
    %2576 = vmatprep.mubr.bf16.mxu0 0
    %2577 = vmatmul.mubr.bf16.gmra.mrb[0].mxu0 %v2542
    %v2578 = vpop.f32.mrb[0].mxu0
    %v2579 = vadd.f32 0.0, %v2578
    %v2580 = vpop.f32.mrb[0].mxu0
    %v2581 = vpop.f32.mrb[0].mxu0
    %v2582 = vpop.f32.mrb[0].mxu0
    %2583 = vdwg.mxu0
    %v2584 = vpack.c.bf16 %v2579, %v2579
    %v2585 = vld [vmem:[%s6] sm:$0xf]
    %v2586 = vld [vmem:[%s6 + $0x4] sm:$0xf]
    %v2587 = vld [vmem:[%s6 + $0x8] sm:$0xf]
    %v2588 = vld [vmem:[%s6 + $0xc] sm:$0xf]
    %v2589 = vld [vmem:[%s6 + $0x10] sm:$0xf]
    %v2590 = vld [vmem:[%s6 + $0x14] sm:$0xf]
    %v2591 = vld [vmem:[%s6 + $0x18] sm:$0xf]
    %v2592 = vld [vmem:[%s6 + $0x1c] sm:$0xf]
    %v2593 = vld [vmem:[%s6 + $0x20] sm:$0xf]
    %v2594 = vld [vmem:[%s6 + $0x24] sm:$0xf]
    %v2595 = vld [vmem:[%s6 + $0x28] sm:$0xf]
    %v2596 = vld [vmem:[%s6 + $0x2c] sm:$0xf]
    %v2597 = vld [vmem:[%s6 + $0x30] sm:$0xf]
    %v2598 = vld [vmem:[%s6 + $0x34] sm:$0xf]
    %v2599 = vld [vmem:[%s6 + $0x38] sm:$0xf]
    %v2600 = vld [vmem:[%s6 + $0x3c] sm:$0xf]
    %v2617 = vunpack.c.l.b16 %v2585
    %v2618 = vunpack.c.l.b16 %v2586
    %v2619 = vunpack.c.l.b16 %v2587
    %v2620 = vunpack.c.l.b16 %v2588
    %v2621 = vunpack.c.l.b16 %v2589
    %v2622 = vunpack.c.l.b16 %v2590
    %v2623 = vunpack.c.l.b16 %v2591
    %v2624 = vunpack.c.l.b16 %v2592
    %v2625 = vunpack.c.l.b16 %v2593
    %v2626 = vunpack.c.l.b16 %v2594
    %v2627 = vunpack.c.l.b16 %v2595
    %v2628 = vunpack.c.l.b16 %v2596
    %v2629 = vunpack.c.l.b16 %v2597
    %v2630 = vunpack.c.l.b16 %v2598
    %v2631 = vunpack.c.l.b16 %v2599
    %v2632 = vunpack.c.l.b16 %v2600
    %v2633 = vpack.c.b16 %v2618, %v2617
    %v2634 = vpack.c.b16 %v2620, %v2619
    %v2635 = vpack.c.b16 %v2622, %v2621
    %v2636 = vpack.c.b16 %v2624, %v2623
    %v2637 = vpack.c.b16 %v2626, %v2625
    %v2638 = vpack.c.b16 %v2628, %v2627
    %v2639 = vpack.c.b16 %v2630, %v2629
    %v2640 = vpack.c.b16 %v2632, %v2631
    %2649 = vmatprep.subr.bf16.mxu0 0
    %2650 = vmatpush1.bf16.msra.mxu0 %v2633
    %2651 = vmatprep.subr.bf16.mxu0 0
    %2652 = vmatpush1.bf16.msra.mxu0 %v2634
    %2653 = vmatprep.subr.bf16.mxu0 0
    %2654 = vmatpush1.bf16.msra.mxu0 %v2635
    %2655 = vmatprep.subr.bf16.mxu0 0
    %2656 = vmatpush1.bf16.msra.mxu0 %v2636
    %2657 = vmatprep.subr.bf16.mxu0 0
    %2658 = vmatpush1.bf16.msra.mxu0 %v2637
    %2659 = vmatprep.subr.bf16.mxu0 0
    %2660 = vmatpush1.bf16.msra.mxu0 %v2638
    %2661 = vmatprep.subr.bf16.mxu0 0
    %2662 = vmatpush1.bf16.msra.mxu0 %v2639
    %2663 = vmatprep.subr.bf16.mxu0 0
    %2664 = vmatpush1.bf16.msra.mxu0 %v2640
    %2665 = vmatprep.subr.bf16.mxu0 0
    %2666 = vmatpush1.bf16.msra.mxu0 0
    %2667 = vmatprep.subr.bf16.mxu0 0
    %2668 = vmatpush1.bf16.msra.mxu0 0
    %2669 = vmatprep.subr.bf16.mxu0 0
    %2670 = vmatpush1.bf16.msra.mxu0 0
    %2671 = vmatprep.subr.bf16.mxu0 0
    %2672 = vmatpush1.bf16.msra.mxu0 0
    %2673 = vmatprep.subr.bf16.mxu0 0
    %2674 = vmatpush1.bf16.msra.mxu0 0
    %2675 = vmatprep.subr.bf16.mxu0 0
    %2676 = vmatpush1.bf16.msra.mxu0 0
    %2677 = vmatprep.subr.bf16.mxu0 0
    %2678 = vmatpush1.bf16.msra.mxu0 0
    %2679 = vmatprep.subr.bf16.mxu0 0
    %2680 = vmatpush1.bf16.msra.mxu0 0
    %2681 = vmatprep.mubr.bf16.mxu0 0
    %2682 = vmatmul.mubr.bf16.gmra.mrb[0].mxu0 %v2584
    %v2683 = vpop.f32.mrb[0].mxu0
    %v2684 = vadd.f32 0.0, %v2683
    %v2685 = vpop.f32.mrb[0].mxu0
    %v2686 = vpop.f32.mrb[0].mxu0
    %v2687 = vpop.f32.mrb[0].mxu0
    %2688 = vdwg.mxu0
    %v2689 = vmul.f32 %v2684, 0.0625
    %v2690 = vpack.c.bf16 %v2689, %v2689
    %v2691 = vld [vmem:[%s7] sm:$0xff]
    %v2692 = vld [vmem:[%s7 + $0x8] sm:$0xff]
    %v2693 = vld [vmem:[%s7 + $0x10] sm:$0xff]
    %v2694 = vld [vmem:[%s7 + $0x18] sm:$0xff]
    %v2695 = vld [vmem:[%s8] sm:$0xff]
    %v2700 = vunpack.c.l.b16 %v2691
    %v2701 = vunpack.c.h.b16 %v2691
    %v2702 = vunpack.c.l.b16 %v2692
    %v2703 = vunpack.c.h.b16 %v2692
    %v2704 = vunpack.c.l.b16 %v2693
    %v2705 = vunpack.c.h.b16 %v2693
    %v2706 = vunpack.c.l.b16 %v2694
    %v2707 = vunpack.c.h.b16 %v2694
    %v2708 = vpack.c.b16 %v2700, %v2700
    %v2709 = vpack.c.b16 %v2701, %v2701
    %v2710 = vpack.c.b16 %v2702, %v2702
    %v2711 = vpack.c.b16 %v2703, %v2703
    %v2712 = vpack.c.b16 %v2704, %v2704
    %v2713 = vpack.c.b16 %v2705, %v2705
    %v2714 = vpack.c.b16 %v2706, %v2706
    %v2715 = vpack.c.b16 %v2707, %v2707
    %v2717 = vlaneseq
    %v2718 = vshrl.u32 %v2717, 7
    %v2719 = vsub.s32 0, %v2718
    %v2720 = vrot.slane %v2695, %v2719
    %v2721 = vlaneseq
    %v2722 = vshrl.u32 %v2721, 7
    %v2723 = vsub.s32 1, %v2722
    %v2724 = vrot.slane %v2695, %v2723
    %v2725 = vlaneseq
    %v2726 = vshrl.u32 %v2725, 7
    %v2727 = vsub.s32 2, %v2726
    %v2728 = vrot.slane %v2695, %v2727
    %v2729 = vlaneseq
    %v2730 = vshrl.u32 %v2729, 7
    %v2731 = vsub.s32 3, %v2730
    %v2732 = vrot.slane %v2695, %v2731
    %v2733 = vlaneseq
    %v2734 = vshrl.u32 %v2733, 7
    %v2735 = vsub.s32 4, %v2734
    %v2736 = vrot.slane %v2695, %v2735
    %v2737 = vlaneseq
    %v2738 = vshrl.u32 %v2737, 7
    %v2739 = vsub.s32 5, %v2738
    %v2740 = vrot.slane %v2695, %v2739
    %v2741 = vlaneseq
    %v2742 = vshrl.u32 %v2741, 7
    %v2743 = vsub.s32 6, %v2742
    %v2744 = vrot.slane %v2695, %v2743
    %v2745 = vlaneseq
    %v2746 = vshrl.u32 %v2745, 7
    %v2747 = vsub.s32 7, %v2746
    %v2748 = vrot.slane %v2695, %v2747
    %vm2757 = vcmask 64512
    %v2759 = vsel %vm2757, %v2690, 0
    %vm2761 = vcmask 1043456
    %v2763 = vsel %vm2761, %v2708, 0
    %v2766 = vsel %vm2761, %v2709, 0
    %v2769 = vsel %vm2761, %v2710, 0
    %v2772 = vsel %vm2761, %v2711, 0
    %v2775 = vsel %vm2761, %v2712, 0
    %v2778 = vsel %vm2761, %v2713, 0
    %v2781 = vsel %vm2761, %v2714, 0
    %v2784 = vsel %vm2761, %v2715, 0
    %2786 = vmatprep.subr.bf16.mxu0 %v2766
    %2787 = vmatpush1.bf16.msra.mxu0 %v2763
    %2788 = vmatprep.subr.bf16.mxu0 0
    %2789 = vmatpush1.bf16.msra.mxu0 0
    %2790 = vmatprep.subr.bf16.mxu0 0
    %2791 = vmatpush1.bf16.msra.mxu0 0
    %2792 = vmatprep.subr.bf16.mxu0 0
    %2793 = vmatpush1.bf16.msra.mxu0 0
    %2794 = vmatprep.subr.bf16.mxu0 0
    %2795 = vmatpush1.bf16.msra.mxu0 0
    %2796 = vmatprep.subr.bf16.mxu0 0
    %2797 = vmatpush1.bf16.msra.mxu0 0
    %2798 = vmatprep.subr.bf16.mxu0 0
    %2799 = vmatpush1.bf16.msra.mxu0 0
    %2800 = vmatprep.subr.bf16.mxu0 0
    %2801 = vmatpush1.bf16.msra.mxu0 0
    %2802 = vmatprep.subr.bf16.mxu0 0
    %2803 = vmatpush1.bf16.msra.mxu0 0
    %2804 = vmatprep.subr.bf16.mxu0 0
    %2805 = vmatpush1.bf16.msra.mxu0 0
    %2806 = vmatprep.subr.bf16.mxu0 0
    %2807 = vmatpush1.bf16.msra.mxu0 0
    %2808 = vmatprep.subr.bf16.mxu0 0
    %2809 = vmatpush1.bf16.msra.mxu0 0
    %2810 = vmatprep.subr.bf16.mxu0 0
    %2811 = vmatpush1.bf16.msra.mxu0 0
    %2812 = vmatprep.subr.bf16.mxu0 0
    %2813 = vmatpush1.bf16.msra.mxu0 0
    %2814 = vmatprep.subr.bf16.mxu0 0
    %2815 = vmatpush1.bf16.msra.mxu0 0
    %2816 = vmatprep.subr.bf16.mxu0 0
    %2817 = vmatpush1.bf16.msra.mxu0 0
    %2818 = vmatprep.mubr.bf16.mxu0 0
    %2819 = vmatmul.mubr.bf16.gmra.mrb[0].mxu0 %v2759
    %v2820 = vpop.f32.mrb[0].mxu0
    %v2821 = vadd.f32 %v2720, %v2820
    %v2822 = vpop.f32.mrb[0].mxu0
    %v2823 = vadd.f32 %v2724, %v2822
    %v2824 = vpop.f32.mrb[0].mxu0
    %v2825 = vpop.f32.mrb[0].mxu0
    %2826 = vdwg.mxu0
    %2827 = vmatprep.subr.bf16.mxu0 %v2772
    %2828 = vmatpush1.bf16.msra.mxu0 %v2769
    %2829 = vmatprep.subr.bf16.mxu0 0
    %2830 = vmatpush1.bf16.msra.mxu0 0
    %2831 = vmatprep.subr.bf16.mxu0 0
    %2832 = vmatpush1.bf16.msra.mxu0 0
    %2833 = vmatprep.subr.bf16.mxu0 0
    %2834 = vmatpush1.bf16.msra.mxu0 0
    %2835 = vmatprep.subr.bf16.mxu0 0
    %2836 = vmatpush1.bf16.msra.mxu0 0
    %2837 = vmatprep.subr.bf16.mxu0 0
    %2838 = vmatpush1.bf16.msra.mxu0 0
    %2839 = vmatprep.subr.bf16.mxu0 0
    %2840 = vmatpush1.bf16.msra.mxu0 0
    %2841 = vmatprep.subr.bf16.mxu0 0
    %2842 = vmatpush1.bf16.msra.mxu0 0
    %2843 = vmatprep.subr.bf16.mxu0 0
    %2844 = vmatpush1.bf16.msra.mxu0 0
    %2845 = vmatprep.subr.bf16.mxu0 0
    %2846 = vmatpush1.bf16.msra.mxu0 0
    %2847 = vmatprep.subr.bf16.mxu0 0
    %2848 = vmatpush1.bf16.msra.mxu0 0
    %2849 = vmatprep.subr.bf16.mxu0 0
    %2850 = vmatpush1.bf16.msra.mxu0 0
    %2851 = vmatprep.subr.bf16.mxu0 0
    %2852 = vmatpush1.bf16.msra.mxu0 0
    %2853 = vmatprep.subr.bf16.mxu0 0
    %2854 = vmatpush1.bf16.msra.mxu0 0
    %2855 = vmatprep.subr.bf16.mxu0 0
    %2856 = vmatpush1.bf16.msra.mxu0 0
    %2857 = vmatprep.subr.bf16.mxu0 0
    %2858 = vmatpush1.bf16.msra.mxu0 0
    %2859 = vmatprep.mubr.bf16.mxu0 0
    %2860 = vmatmul.mubr.bf16.gmra.mrb[0].mxu0 %v2759
    %v2861 = vpop.f32.mrb[0].mxu0
    %v2862 = vadd.f32 %v2728, %v2861
    %v2863 = vpop.f32.mrb[0].mxu0
    %v2864 = vadd.f32 %v2732, %v2863
    %v2865 = vpop.f32.mrb[0].mxu0
    %v2866 = vpop.f32.mrb[0].mxu0
    %2867 = vdwg.mxu0
    %2868 = vmatprep.subr.bf16.mxu0 %v2778
    %2869 = vmatpush1.bf16.msra.mxu0 %v2775
    %2870 = vmatprep.subr.bf16.mxu0 0
    %2871 = vmatpush1.bf16.msra.mxu0 0
    %2872 = vmatprep.subr.bf16.mxu0 0
    %2873 = vmatpush1.bf16.msra.mxu0 0
    %2874 = vmatprep.subr.bf16.mxu0 0
    %2875 = vmatpush1.bf16.msra.mxu0 0
    %2876 = vmatprep.subr.bf16.mxu0 0
    %2877 = vmatpush1.bf16.msra.mxu0 0
    %2878 = vmatprep.subr.bf16.mxu0 0
    %2879 = vmatpush1.bf16.msra.mxu0 0
    %2880 = vmatprep.subr.bf16.mxu0 0
    %2881 = vmatpush1.bf16.msra.mxu0 0
    %2882 = vmatprep.subr.bf16.mxu0 0
    %2883 = vmatpush1.bf16.msra.mxu0 0
    %2884 = vmatprep.subr.bf16.mxu0 0
    %2885 = vmatpush1.bf16.msra.mxu0 0
    %2886 = vmatprep.subr.bf16.mxu0 0
    %2887 = vmatpush1.bf16.msra.mxu0 0
    %2888 = vmatprep.subr.bf16.mxu0 0
    %2889 = vmatpush1.bf16.msra.mxu0 0
    %2890 = vmatprep.subr.bf16.mxu0 0
    %2891 = vmatpush1.bf16.msra.mxu0 0
    %2892 = vmatprep.subr.bf16.mxu0 0
    %2893 = vmatpush1.bf16.msra.mxu0 0
    %2894 = vmatprep.subr.bf16.mxu0 0
    %2895 = vmatpush1.bf16.msra.mxu0 0
    %2896 = vmatprep.subr.bf16.mxu0 0
    %2897 = vmatpush1.bf16.msra.mxu0 0
    %2898 = vmatprep.subr.bf16.mxu0 0
    %2899 = vmatpush1.bf16.msra.mxu0 0
    %2900 = vmatprep.mubr.bf16.mxu0 0
    %2901 = vmatmul.mubr.bf16.gmra.mrb[0].mxu0 %v2759
    %v2902 = vpop.f32.mrb[0].mxu0
    %v2903 = vadd.f32 %v2736, %v2902
    %v2904 = vpop.f32.mrb[0].mxu0
    %v2905 = vadd.f32 %v2740, %v2904
    %v2906 = vpop.f32.mrb[0].mxu0
    %v2907 = vpop.f32.mrb[0].mxu0
    %2908 = vdwg.mxu0
    %2909 = vmatprep.subr.bf16.mxu0 %v2784
    %2910 = vmatpush1.bf16.msra.mxu0 %v2781
    %2911 = vmatprep.subr.bf16.mxu0 0
    %2912 = vmatpush1.bf16.msra.mxu0 0
    %2913 = vmatprep.subr.bf16.mxu0 0
    %2914 = vmatpush1.bf16.msra.mxu0 0
    %2915 = vmatprep.subr.bf16.mxu0 0
    %2916 = vmatpush1.bf16.msra.mxu0 0
    %2917 = vmatprep.subr.bf16.mxu0 0
    %2918 = vmatpush1.bf16.msra.mxu0 0
    %2919 = vmatprep.subr.bf16.mxu0 0
    %2920 = vmatpush1.bf16.msra.mxu0 0
    %2921 = vmatprep.subr.bf16.mxu0 0
    %2922 = vmatpush1.bf16.msra.mxu0 0
    %2923 = vmatprep.subr.bf16.mxu0 0
    %2924 = vmatpush1.bf16.msra.mxu0 0
    %2925 = vmatprep.subr.bf16.mxu0 0
    %2926 = vmatpush1.bf16.msra.mxu0 0
    %2927 = vmatprep.subr.bf16.mxu0 0
    %2928 = vmatpush1.bf16.msra.mxu0 0
    %2929 = vmatprep.subr.bf16.mxu0 0
    %2930 = vmatpush1.bf16.msra.mxu0 0
    %2931 = vmatprep.subr.bf16.mxu0 0
    %2932 = vmatpush1.bf16.msra.mxu0 0
    %2933 = vmatprep.subr.bf16.mxu0 0
    %2934 = vmatpush1.bf16.msra.mxu0 0
    %2935 = vmatprep.subr.bf16.mxu0 0
    %2936 = vmatpush1.bf16.msra.mxu0 0
    %2937 = vmatprep.subr.bf16.mxu0 0
    %2938 = vmatpush1.bf16.msra.mxu0 0
    %2939 = vmatprep.subr.bf16.mxu0 0
    %2940 = vmatpush1.bf16.msra.mxu0 0
    %2941 = vmatprep.mubr.bf16.mxu0 0
    %2942 = vmatmul.mubr.bf16.gmra.mrb[0].mxu0 %v2759
    %v2943 = vpop.f32.mrb[0].mxu0
    %v2944 = vadd.f32 %v2744, %v2943
    %v2945 = vpop.f32.mrb[0].mxu0
    %v2946 = vadd.f32 %v2748, %v2945
    %v2947 = vpop.f32.mrb[0].mxu0
    %v2948 = vpop.f32.mrb[0].mxu0
    %2949 = vdwg.mxu0
    %v2950 = vmax.f32 %v2821, 0.0
    %v2951 = vmax.f32 %v2823, 0.0
    %v2952 = vmax.f32 %v2862, 0.0
    %v2953 = vmax.f32 %v2864, 0.0
    %v2954 = vmax.f32 %v2903, 0.0
    %v2955 = vmax.f32 %v2905, 0.0
    %v2956 = vmax.f32 %v2944, 0.0
    %v2957 = vmax.f32 %v2946, 0.0
    %v2958 = vpack.c.bf16 %v2950, %v2950
    %v2959 = vpack.c.bf16 %v2951, %v2951
    %v2960 = vpack.c.bf16 %v2952, %v2952
    %v2961 = vpack.c.bf16 %v2953, %v2953
    %v2962 = vld [vmem:[%s9] sm:$0xff]
    %v2963 = vld [vmem:[%s9 + $0x8] sm:$0xff]
    %v2964 = vld [vmem:[%s9 + $0x10] sm:$0xff]
    %v2965 = vld [vmem:[%s9 + $0x18] sm:$0xff]
    %v2966 = vld [vmem:[%s9 + $0x20] sm:$0xff]
    %v2967 = vld [vmem:[%s9 + $0x28] sm:$0xff]
    %v2968 = vld [vmem:[%s9 + $0x30] sm:$0xff]
    %v2969 = vld [vmem:[%s9 + $0x38] sm:$0xff]
    %v2970 = vld [vmem:[%s9 + $0x40] sm:$0xff]
    %v2971 = vld [vmem:[%s9 + $0x48] sm:$0xff]
    %v2972 = vld [vmem:[%s9 + $0x50] sm:$0xff]
    %v2973 = vld [vmem:[%s9 + $0x58] sm:$0xff]
    %v2974 = vld [vmem:[%s9 + $0x60] sm:$0xff]
    %v2975 = vld [vmem:[%s9 + $0x68] sm:$0xff]
    %v2976 = vld [vmem:[%s9 + $0x70] sm:$0xff]
    %v2977 = vld [vmem:[%s9 + $0x78] sm:$0xff]
    %v2978 = vld [vmem:[%s9 + $0x80] sm:$0xff]
    %v2979 = vld [vmem:[%s9 + $0x88] sm:$0xff]
    %v2980 = vld [vmem:[%s9 + $0x90] sm:$0xff]
    %v2981 = vld [vmem:[%s9 + $0x98] sm:$0xff]
    %v2982 = vld [vmem:[%s9 + $0xa0] sm:$0xff]
    %v2983 = vld [vmem:[%s9 + $0xa8] sm:$0xff]
    %v2984 = vld [vmem:[%s9 + $0xb0] sm:$0xff]
    %v2985 = vld [vmem:[%s9 + $0xb8] sm:$0xff]
    %v2986 = vld [vmem:[%s9 + $0xc0] sm:$0xff]
    %v2987 = vld [vmem:[%s9 + $0xc8] sm:$0xff]
    %v2988 = vld [vmem:[%s9 + $0xd0] sm:$0xff]
    %v2989 = vld [vmem:[%s9 + $0xd8] sm:$0xff]
    %v2990 = vld [vmem:[%s9 + $0xe0] sm:$0xff]
    %v2991 = vld [vmem:[%s9 + $0xe8] sm:$0xff]
    %v2992 = vld [vmem:[%s9 + $0xf0] sm:$0xff]
    %v2993 = vld [vmem:[%s9 + $0xf8] sm:$0xff]
    %v2994 = vld [vmem:[%s9 + $0x100] sm:$0xff]
    %v2995 = vld [vmem:[%s9 + $0x108] sm:$0xff]
    %v2996 = vld [vmem:[%s9 + $0x110] sm:$0xff]
    %v2997 = vld [vmem:[%s9 + $0x118] sm:$0xff]
    %v2998 = vld [vmem:[%s9 + $0x120] sm:$0xff]
    %v2999 = vld [vmem:[%s9 + $0x128] sm:$0xff]
    %v3000 = vld [vmem:[%s9 + $0x130] sm:$0xff]
    %v3001 = vld [vmem:[%s9 + $0x138] sm:$0xff]
    %v3002 = vld [vmem:[%s9 + $0x140] sm:$0xff]
    %v3003 = vld [vmem:[%s9 + $0x148] sm:$0xff]
    %v3004 = vld [vmem:[%s9 + $0x150] sm:$0xff]
    %v3005 = vld [vmem:[%s9 + $0x158] sm:$0xff]
    %v3006 = vld [vmem:[%s9 + $0x160] sm:$0xff]
    %v3007 = vld [vmem:[%s9 + $0x168] sm:$0xff]
    %v3008 = vld [vmem:[%s9 + $0x170] sm:$0xff]
    %v3009 = vld [vmem:[%s9 + $0x178] sm:$0xff]
    %v3010 = vld [vmem:[%s9 + $0x180] sm:$0xff]
    %v3011 = vld [vmem:[%s9 + $0x188] sm:$0xff]
    %v3012 = vld [vmem:[%s9 + $0x190] sm:$0xff]
    %v3013 = vld [vmem:[%s9 + $0x198] sm:$0xff]
    %v3014 = vld [vmem:[%s9 + $0x1a0] sm:$0xff]
    %v3015 = vld [vmem:[%s9 + $0x1a8] sm:$0xff]
    %v3016 = vld [vmem:[%s9 + $0x1b0] sm:$0xff]
    %v3017 = vld [vmem:[%s9 + $0x1b8] sm:$0xff]
    %v3018 = vld [vmem:[%s9 + $0x1c0] sm:$0xff]
    %v3019 = vld [vmem:[%s9 + $0x1c8] sm:$0xff]
    %v3020 = vld [vmem:[%s9 + $0x1d0] sm:$0xff]
    %v3021 = vld [vmem:[%s9 + $0x1d8] sm:$0xff]
    %v3022 = vld [vmem:[%s9 + $0x1e0] sm:$0xff]
    %v3023 = vld [vmem:[%s9 + $0x1e8] sm:$0xff]
    %v3024 = vld [vmem:[%s9 + $0x1f0] sm:$0xff]
    %v3025 = vld [vmem:[%s9 + $0x1f8] sm:$0xff]
    %v3026 = vld [vmem:[%s9 + $0x200] sm:$0xff]
    %v3027 = vld [vmem:[%s9 + $0x208] sm:$0xff]
    %v3028 = vld [vmem:[%s9 + $0x210] sm:$0xff]
    %v3029 = vld [vmem:[%s9 + $0x218] sm:$0xff]
    %v3030 = vld [vmem:[%s9 + $0x220] sm:$0xff]
    %v3031 = vld [vmem:[%s9 + $0x228] sm:$0xff]
    %v3032 = vld [vmem:[%s9 + $0x230] sm:$0xff]
    %v3033 = vld [vmem:[%s9 + $0x238] sm:$0xff]
    %v3034 = vld [vmem:[%s9 + $0x240] sm:$0xff]
    %v3035 = vld [vmem:[%s9 + $0x248] sm:$0xff]
    %v3036 = vld [vmem:[%s9 + $0x250] sm:$0xff]
    %v3037 = vld [vmem:[%s9 + $0x258] sm:$0xff]
    %v3038 = vld [vmem:[%s9 + $0x260] sm:$0xff]
    %v3039 = vld [vmem:[%s9 + $0x268] sm:$0xff]
    %v3040 = vld [vmem:[%s9 + $0x270] sm:$0xff]
    %v3041 = vld [vmem:[%s9 + $0x278] sm:$0xff]
    %v3042 = vld [vmem:[%s9 + $0x280] sm:$0xff]
    %v3043 = vld [vmem:[%s9 + $0x288] sm:$0xff]
    %v3044 = vld [vmem:[%s9 + $0x290] sm:$0xff]
    %v3045 = vld [vmem:[%s9 + $0x298] sm:$0xff]
    %v3046 = vld [vmem:[%s9 + $0x2a0] sm:$0xff]
    %v3047 = vld [vmem:[%s9 + $0x2a8] sm:$0xff]
    %v3048 = vld [vmem:[%s9 + $0x2b0] sm:$0xff]
    %v3049 = vld [vmem:[%s9 + $0x2b8] sm:$0xff]
    %v3050 = vld [vmem:[%s9 + $0x2c0] sm:$0xff]
    %v3051 = vld [vmem:[%s9 + $0x2c8] sm:$0xff]
    %v3052 = vld [vmem:[%s9 + $0x2d0] sm:$0xff]
    %v3053 = vld [vmem:[%s9 + $0x2d8] sm:$0xff]
    %v3054 = vld [vmem:[%s9 + $0x2e0] sm:$0xff]
    %v3055 = vld [vmem:[%s9 + $0x2e8] sm:$0xff]
    %v3056 = vld [vmem:[%s9 + $0x2f0] sm:$0xff]
    %v3057 = vld [vmem:[%s9 + $0x2f8] sm:$0xff]
    %v3058 = vld [vmem:[%s9 + $0x300] sm:$0xff]
    %v3059 = vld [vmem:[%s9 + $0x308] sm:$0xff]
    %v3060 = vld [vmem:[%s9 + $0x310] sm:$0xff]
    %v3061 = vld [vmem:[%s9 + $0x318] sm:$0xff]
    %v3062 = vld [vmem:[%s9 + $0x320] sm:$0xff]
    %v3063 = vld [vmem:[%s9 + $0x328] sm:$0xff]
    %v3064 = vld [vmem:[%s9 + $0x330] sm:$0xff]
    %v3065 = vld [vmem:[%s9 + $0x338] sm:$0xff]
    %v3066 = vld [vmem:[%s9 + $0x340] sm:$0xff]
    %v3067 = vld [vmem:[%s9 + $0x348] sm:$0xff]
    %v3068 = vld [vmem:[%s9 + $0x350] sm:$0xff]
    %v3069 = vld [vmem:[%s9 + $0x358] sm:$0xff]
    %v3070 = vld [vmem:[%s9 + $0x360] sm:$0xff]
    %v3071 = vld [vmem:[%s9 + $0x368] sm:$0xff]
    %v3072 = vld [vmem:[%s9 + $0x370] sm:$0xff]
    %v3073 = vld [vmem:[%s9 + $0x378] sm:$0xff]
    %v3074 = vld [vmem:[%s9 + $0x380] sm:$0xff]
    %v3075 = vld [vmem:[%s9 + $0x388] sm:$0xff]
    %v3076 = vld [vmem:[%s9 + $0x390] sm:$0xff]
    %v3077 = vld [vmem:[%s9 + $0x398] sm:$0xff]
    %v3078 = vld [vmem:[%s9 + $0x3a0] sm:$0xff]
    %v3079 = vld [vmem:[%s9 + $0x3a8] sm:$0xff]
    %v3080 = vld [vmem:[%s9 + $0x3b0] sm:$0xff]
    %v3081 = vld [vmem:[%s9 + $0x3b8] sm:$0xff]
    %v3082 = vld [vmem:[%s9 + $0x3c0] sm:$0xff]
    %v3083 = vld [vmem:[%s9 + $0x3c8] sm:$0xff]
    %v3084 = vld [vmem:[%s9 + $0x3d0] sm:$0xff]
    %v3085 = vld [vmem:[%s9 + $0x3d8] sm:$0xff]
    %v3086 = vld [vmem:[%s9 + $0x3e0] sm:$0xff]
    %v3087 = vld [vmem:[%s9 + $0x3e8] sm:$0xff]
    %v3088 = vld [vmem:[%s9 + $0x3f0] sm:$0xff]
    %v3089 = vld [vmem:[%s9 + $0x3f8] sm:$0xff]
    %v3090 = vld [vmem:[%s10] sm:$0xf]
    %v3219 = vunpack.c.l.b16 %v2962
    %v3220 = vunpack.c.h.b16 %v2962
    %v3221 = vunpack.c.l.b16 %v2963
    %v3222 = vunpack.c.h.b16 %v2963
    %v3223 = vunpack.c.l.b16 %v2964
    %v3224 = vunpack.c.h.b16 %v2964
    %v3225 = vunpack.c.l.b16 %v2965
    %v3226 = vunpack.c.h.b16 %v2965
    %v3227 = vunpack.c.l.b16 %v2966
    %v3228 = vunpack.c.h.b16 %v2966
    %v3229 = vunpack.c.l.b16 %v2967
    %v3230 = vunpack.c.h.b16 %v2967
    %v3231 = vunpack.c.l.b16 %v2968
    %v3232 = vunpack.c.h.b16 %v2968
    %v3233 = vunpack.c.l.b16 %v2969
    %v3234 = vunpack.c.h.b16 %v2969
    %v3235 = vunpack.c.l.b16 %v2970
    %v3236 = vunpack.c.h.b16 %v2970
    %v3237 = vunpack.c.l.b16 %v2971
    %v3238 = vunpack.c.h.b16 %v2971
    %v3239 = vunpack.c.l.b16 %v2972
    %v3240 = vunpack.c.h.b16 %v2972
    %v3241 = vunpack.c.l.b16 %v2973
    %v3242 = vunpack.c.h.b16 %v2973
    %v3243 = vunpack.c.l.b16 %v2974
    %v3244 = vunpack.c.h.b16 %v2974
    %v3245 = vunpack.c.l.b16 %v2975
    %v3246 = vunpack.c.h.b16 %v2975
    %v3247 = vunpack.c.l.b16 %v2976
    %v3248 = vunpack.c.h.b16 %v2976
    %v3249 = vunpack.c.l.b16 %v2977
    %v3250 = vunpack.c.h.b16 %v2977
    %v3251 = vunpack.c.l.b16 %v2978
    %v3252 = vunpack.c.h.b16 %v2978
    %v3253 = vunpack.c.l.b16 %v2979
    %v3254 = vunpack.c.h.b16 %v2979
    %v3255 = vunpack.c.l.b16 %v2980
    %v3256 = vunpack.c.h.b16 %v2980
    %v3257 = vunpack.c.l.b16 %v2981
    %v3258 = vunpack.c.h.b16 %v2981
    %v3259 = vunpack.c.l.b16 %v2982
    %v3260 = vunpack.c.h.b16 %v2982
    %v3261 = vunpack.c.l.b16 %v2983
    %v3262 = vunpack.c.h.b16 %v2983
    %v3263 = vunpack.c.l.b16 %v2984
    %v3264 = vunpack.c.h.b16 %v2984
    %v3265 = vunpack.c.l.b16 %v2985
    %v3266 = vunpack.c.h.b16 %v2985
    %v3267 = vunpack.c.l.b16 %v2986
    %v3268 = vunpack.c.h.b16 %v2986
    %v3269 = vunpack.c.l.b16 %v2987
    %v3270 = vunpack.c.h.b16 %v2987
    %v3271 = vunpack.c.l.b16 %v2988
    %v3272 = vunpack.c.h.b16 %v2988
    %v3273 = vunpack.c.l.b16 %v2989
    %v3274 = vunpack.c.h.b16 %v2989
    %v3275 = vunpack.c.l.b16 %v2990
    %v3276 = vunpack.c.h.b16 %v2990
    %v3277 = vunpack.c.l.b16 %v2991
    %v3278 = vunpack.c.h.b16 %v2991
    %v3279 = vunpack.c.l.b16 %v2992
    %v3280 = vunpack.c.h.b16 %v2992
    %v3281 = vunpack.c.l.b16 %v2993
    %v3282 = vunpack.c.h.b16 %v2993
    %v3283 = vunpack.c.l.b16 %v2994
    %v3284 = vunpack.c.h.b16 %v2994
    %v3285 = vunpack.c.l.b16 %v2995
    %v3286 = vunpack.c.h.b16 %v2995
    %v3287 = vunpack.c.l.b16 %v2996
    %v3288 = vunpack.c.h.b16 %v2996
    %v3289 = vunpack.c.l.b16 %v2997
    %v3290 = vunpack.c.h.b16 %v2997
    %v3291 = vunpack.c.l.b16 %v2998
    %v3292 = vunpack.c.h.b16 %v2998
    %v3293 = vunpack.c.l.b16 %v2999
    %v3294 = vunpack.c.h.b16 %v2999
    %v3295 = vunpack.c.l.b16 %v3000
    %v3296 = vunpack.c.h.b16 %v3000
    %v3297 = vunpack.c.l.b16 %v3001
    %v3298 = vunpack.c.h.b16 %v3001
    %v3299 = vunpack.c.l.b16 %v3002
    %v3300 = vunpack.c.h.b16 %v3002
    %v3301 = vunpack.c.l.b16 %v3003
    %v3302 = vunpack.c.h.b16 %v3003
    %v3303 = vunpack.c.l.b16 %v3004
    %v3304 = vunpack.c.h.b16 %v3004
    %v3305 = vunpack.c.l.b16 %v3005
    %v3306 = vunpack.c.h.b16 %v3005
    %v3307 = vunpack.c.l.b16 %v3006
    %v3308 = vunpack.c.h.b16 %v3006
    %v3309 = vunpack.c.l.b16 %v3007
    %v3310 = vunpack.c.h.b16 %v3007
    %v3311 = vunpack.c.l.b16 %v3008
    %v3312 = vunpack.c.h.b16 %v3008
    %v3313 = vunpack.c.l.b16 %v3009
    %v3314 = vunpack.c.h.b16 %v3009
    %v3315 = vunpack.c.l.b16 %v3010
    %v3316 = vunpack.c.h.b16 %v3010
    %v3317 = vunpack.c.l.b16 %v3011
    %v3318 = vunpack.c.h.b16 %v3011
    %v3319 = vunpack.c.l.b16 %v3012
    %v3320 = vunpack.c.h.b16 %v3012
    %v3321 = vunpack.c.l.b16 %v3013
    %v3322 = vunpack.c.h.b16 %v3013
    %v3323 = vunpack.c.l.b16 %v3014
    %v3324 = vunpack.c.h.b16 %v3014
    %v3325 = vunpack.c.l.b16 %v3015
    %v3326 = vunpack.c.h.b16 %v3015
    %v3327 = vunpack.c.l.b16 %v3016
    %v3328 = vunpack.c.h.b16 %v3016
    %v3329 = vunpack.c.l.b16 %v3017
    %v3330 = vunpack.c.h.b16 %v3017
    %v3331 = vunpack.c.l.b16 %v3018
    %v3332 = vunpack.c.h.b16 %v3018
    %v3333 = vunpack.c.l.b16 %v3019
    %v3334 = vunpack.c.h.b16 %v3019
    %v3335 = vunpack.c.l.b16 %v3020
    %v3336 = vunpack.c.h.b16 %v3020
    %v3337 = vunpack.c.l.b16 %v3021
    %v3338 = vunpack.c.h.b16 %v3021
    %v3339 = vunpack.c.l.b16 %v3022
    %v3340 = vunpack.c.h.b16 %v3022
    %v3341 = vunpack.c.l.b16 %v3023
    %v3342 = vunpack.c.h.b16 %v3023
    %v3343 = vunpack.c.l.b16 %v3024
    %v3344 = vunpack.c.h.b16 %v3024
    %v3345 = vunpack.c.l.b16 %v3025
    %v3346 = vunpack.c.h.b16 %v3025
    %v3347 = vunpack.c.l.b16 %v3026
    %v3348 = vunpack.c.h.b16 %v3026
    %v3349 = vunpack.c.l.b16 %v3027
    %v3350 = vunpack.c.h.b16 %v3027
    %v3351 = vunpack.c.l.b16 %v3028
    %v3352 = vunpack.c.h.b16 %v3028
    %v3353 = vunpack.c.l.b16 %v3029
    %v3354 = vunpack.c.h.b16 %v3029
    %v3355 = vunpack.c.l.b16 %v3030
    %v3356 = vunpack.c.h.b16 %v3030
    %v3357 = vunpack.c.l.b16 %v3031
    %v3358 = vunpack.c.h.b16 %v3031
    %v3359 = vunpack.c.l.b16 %v3032
    %v3360 = vunpack.c.h.b16 %v3032
    %v3361 = vunpack.c.l.b16 %v3033
    %v3362 = vunpack.c.h.b16 %v3033
    %v3363 = vunpack.c.l.b16 %v3034
    %v3364 = vunpack.c.h.b16 %v3034
    %v3365 = vunpack.c.l.b16 %v3035
    %v3366 = vunpack.c.h.b16 %v3035
    %v3367 = vunpack.c.l.b16 %v3036
    %v3368 = vunpack.c.h.b16 %v3036
    %v3369 = vunpack.c.l.b16 %v3037
    %v3370 = vunpack.c.h.b16 %v3037
    %v3371 = vunpack.c.l.b16 %v3038
    %v3372 = vunpack.c.h.b16 %v3038
    %v3373 = vunpack.c.l.b16 %v3039
    %v3374 = vunpack.c.h.b16 %v3039
    %v3375 = vunpack.c.l.b16 %v3040
    %v3376 = vunpack.c.h.b16 %v3040
    %v3377 = vunpack.c.l.b16 %v3041
    %v3378 = vunpack.c.h.b16 %v3041
    %v3379 = vunpack.c.l.b16 %v3042
    %v3380 = vunpack.c.h.b16 %v3042
    %v3381 = vunpack.c.l.b16 %v3043
    %v3382 = vunpack.c.h.b16 %v3043
    %v3383 = vunpack.c.l.b16 %v3044
    %v3384 = vunpack.c.h.b16 %v3044
    %v3385 = vunpack.c.l.b16 %v3045
    %v3386 = vunpack.c.h.b16 %v3045
    %v3387 = vunpack.c.l.b16 %v3046
    %v3388 = vunpack.c.h.b16 %v3046
    %v3389 = vunpack.c.l.b16 %v3047
    %v3390 = vunpack.c.h.b16 %v3047
    %v3391 = vunpack.c.l.b16 %v3048
    %v3392 = vunpack.c.h.b16 %v3048
    %v3393 = vunpack.c.l.b16 %v3049
    %v3394 = vunpack.c.h.b16 %v3049
    %v3395 = vunpack.c.l.b16 %v3050
    %v3396 = vunpack.c.h.b16 %v3050
    %v3397 = vunpack.c.l.b16 %v3051
    %v3398 = vunpack.c.h.b16 %v3051
    %v3399 = vunpack.c.l.b16 %v3052
    %v3400 = vunpack.c.h.b16 %v3052
    %v3401 = vunpack.c.l.b16 %v3053
    %v3402 = vunpack.c.h.b16 %v3053
    %v3403 = vunpack.c.l.b16 %v3054
    %v3404 = vunpack.c.h.b16 %v3054
    %v3405 = vunpack.c.l.b16 %v3055
    %v3406 = vunpack.c.h.b16 %v3055
    %v3407 = vunpack.c.l.b16 %v3056
    %v3408 = vunpack.c.h.b16 %v3056
    %v3409 = vunpack.c.l.b16 %v3057
    %v3410 = vunpack.c.h.b16 %v3057
    %v3411 = vunpack.c.l.b16 %v3058
    %v3412 = vunpack.c.h.b16 %v3058
    %v3413 = vunpack.c.l.b16 %v3059
    %v3414 = vunpack.c.h.b16 %v3059
    %v3415 = vunpack.c.l.b16 %v3060
    %v3416 = vunpack.c.h.b16 %v3060
    %v3417 = vunpack.c.l.b16 %v3061
    %v3418 = vunpack.c.h.b16 %v3061
    %v3419 = vunpack.c.l.b16 %v3062
    %v3420 = vunpack.c.h.b16 %v3062
    %v3421 = vunpack.c.l.b16 %v3063
    %v3422 = vunpack.c.h.b16 %v3063
    %v3423 = vunpack.c.l.b16 %v3064
    %v3424 = vunpack.c.h.b16 %v3064
    %v3425 = vunpack.c.l.b16 %v3065
    %v3426 = vunpack.c.h.b16 %v3065
    %v3427 = vunpack.c.l.b16 %v3066
    %v3428 = vunpack.c.h.b16 %v3066
    %v3429 = vunpack.c.l.b16 %v3067
    %v3430 = vunpack.c.h.b16 %v3067
    %v3431 = vunpack.c.l.b16 %v3068
    %v3432 = vunpack.c.h.b16 %v3068
    %v3433 = vunpack.c.l.b16 %v3069
    %v3434 = vunpack.c.h.b16 %v3069
    %v3435 = vunpack.c.l.b16 %v3070
    %v3436 = vunpack.c.h.b16 %v3070
    %v3437 = vunpack.c.l.b16 %v3071
    %v3438 = vunpack.c.h.b16 %v3071
    %v3439 = vunpack.c.l.b16 %v3072
    %v3440 = vunpack.c.h.b16 %v3072
    %v3441 = vunpack.c.l.b16 %v3073
    %v3442 = vunpack.c.h.b16 %v3073
    %v3443 = vunpack.c.l.b16 %v3074
    %v3444 = vunpack.c.h.b16 %v3074
    %v3445 = vunpack.c.l.b16 %v3075
    %v3446 = vunpack.c.h.b16 %v3075
    %v3447 = vunpack.c.l.b16 %v3076
    %v3448 = vunpack.c.h.b16 %v3076
    %v3449 = vunpack.c.l.b16 %v3077
    %v3450 = vunpack.c.h.b16 %v3077
    %v3451 = vunpack.c.l.b16 %v3078
    %v3452 = vunpack.c.h.b16 %v3078
    %v3453 = vunpack.c.l.b16 %v3079
    %v3454 = vunpack.c.h.b16 %v3079
    %v3455 = vunpack.c.l.b16 %v3080
    %v3456 = vunpack.c.h.b16 %v3080
    %v3457 = vunpack.c.l.b16 %v3081
    %v3458 = vunpack.c.h.b16 %v3081
    %v3459 = vunpack.c.l.b16 %v3082
    %v3460 = vunpack.c.h.b16 %v3082
    %v3461 = vunpack.c.l.b16 %v3083
    %v3462 = vunpack.c.h.b16 %v3083
    %v3463 = vunpack.c.l.b16 %v3084
    %v3464 = vunpack.c.h.b16 %v3084
    %v3465 = vunpack.c.l.b16 %v3085
    %v3466 = vunpack.c.h.b16 %v3085
    %v3467 = vunpack.c.l.b16 %v3086
    %v3468 = vunpack.c.h.b16 %v3086
    %v3469 = vunpack.c.l.b16 %v3087
    %v3470 = vunpack.c.h.b16 %v3087
    %v3471 = vunpack.c.l.b16 %v3088
    %v3472 = vunpack.c.h.b16 %v3088
    %v3473 = vunpack.c.l.b16 %v3089
    %v3474 = vunpack.c.h.b16 %v3089
    %v3475 = vpack.c.b16 %v3223, %v3219
    %v3476 = vpack.c.b16 %v3224, %v3220
    %v3477 = vpack.c.b16 %v3225, %v3221
    %v3478 = vpack.c.b16 %v3226, %v3222
    %v3479 = vpack.c.b16 %v3231, %v3227
    %v3480 = vpack.c.b16 %v3232, %v3228
    %v3481 = vpack.c.b16 %v3233, %v3229
    %v3482 = vpack.c.b16 %v3234, %v3230
    %v3483 = vpack.c.b16 %v3239, %v3235
    %v3484 = vpack.c.b16 %v3240, %v3236
    %v3485 = vpack.c.b16 %v3241, %v3237
    %v3486 = vpack.c.b16 %v3242, %v3238
    %v3487 = vpack.c.b16 %v3247, %v3243
    %v3488 = vpack.c.b16 %v3248, %v3244
    %v3489 = vpack.c.b16 %v3249, %v3245
    %v3490 = vpack.c.b16 %v3250, %v3246
    %v3491 = vpack.c.b16 %v3255, %v3251
    %v3492 = vpack.c.b16 %v3256, %v3252
    %v3493 = vpack.c.b16 %v3257, %v3253
    %v3494 = vpack.c.b16 %v3258, %v3254
    %v3495 = vpack.c.b16 %v3263, %v3259
    %v3496 = vpack.c.b16 %v3264, %v3260
    %v3497 = vpack.c.b16 %v3265, %v3261
    %v3498 = vpack.c.b16 %v3266, %v3262
    %v3499 = vpack.c.b16 %v3271, %v3267
    %v3500 = vpack.c.b16 %v3272, %v3268
    %v3501 = vpack.c.b16 %v3273, %v3269
    %v3502 = vpack.c.b16 %v3274, %v3270
    %v3503 = vpack.c.b16 %v3279, %v3275
    %v3504 = vpack.c.b16 %v3280, %v3276
    %v3505 = vpack.c.b16 %v3281, %v3277
    %v3506 = vpack.c.b16 %v3282, %v3278
    %v3507 = vpack.c.b16 %v3287, %v3283
    %v3508 = vpack.c.b16 %v3288, %v3284
    %v3509 = vpack.c.b16 %v3289, %v3285
    %v3510 = vpack.c.b16 %v3290, %v3286
    %v3511 = vpack.c.b16 %v3295, %v3291
    %v3512 = vpack.c.b16 %v3296, %v3292
    %v3513 = vpack.c.b16 %v3297, %v3293
    %v3514 = vpack.c.b16 %v3298, %v3294
    %v3515 = vpack.c.b16 %v3303, %v3299
    %v3516 = vpack.c.b16 %v3304, %v3300
    %v3517 = vpack.c.b16 %v3305, %v3301
    %v3518 = vpack.c.b16 %v3306, %v3302
    %v3519 = vpack.c.b16 %v3311, %v3307
    %v3520 = vpack.c.b16 %v3312, %v3308
    %v3521 = vpack.c.b16 %v3313, %v3309
    %v3522 = vpack.c.b16 %v3314, %v3310
    %v3523 = vpack.c.b16 %v3319, %v3315
    %v3524 = vpack.c.b16 %v3320, %v3316
    %v3525 = vpack.c.b16 %v3321, %v3317
    %v3526 = vpack.c.b16 %v3322, %v3318
    %v3527 = vpack.c.b16 %v3327, %v3323
    %v3528 = vpack.c.b16 %v3328, %v3324
    %v3529 = vpack.c.b16 %v3329, %v3325
    %v3530 = vpack.c.b16 %v3330, %v3326
    %v3531 = vpack.c.b16 %v3335, %v3331
    %v3532 = vpack.c.b16 %v3336, %v3332
    %v3533 = vpack.c.b16 %v3337, %v3333
    %v3534 = vpack.c.b16 %v3338, %v3334
    %v3535 = vpack.c.b16 %v3343, %v3339
    %v3536 = vpack.c.b16 %v3344, %v3340
    %v3537 = vpack.c.b16 %v3345, %v3341
    %v3538 = vpack.c.b16 %v3346, %v3342
    %v3539 = vpack.c.b16 %v3351, %v3347
    %v3540 = vpack.c.b16 %v3352, %v3348
    %v3541 = vpack.c.b16 %v3353, %v3349
    %v3542 = vpack.c.b16 %v3354, %v3350
    %v3543 = vpack.c.b16 %v3359, %v3355
    %v3544 = vpack.c.b16 %v3360, %v3356
    %v3545 = vpack.c.b16 %v3361, %v3357
    %v3546 = vpack.c.b16 %v3362, %v3358
    %v3547 = vpack.c.b16 %v3367, %v3363
    %v3548 = vpack.c.b16 %v3368, %v3364
    %v3549 = vpack.c.b16 %v3369, %v3365
    %v3550 = vpack.c.b16 %v3370, %v3366
    %v3551 = vpack.c.b16 %v3375, %v3371
    %v3552 = vpack.c.b16 %v3376, %v3372
    %v3553 = vpack.c.b16 %v3377, %v3373
    %v3554 = vpack.c.b16 %v3378, %v3374
    %v3555 = vpack.c.b16 %v3383, %v3379
    %v3556 = vpack.c.b16 %v3384, %v3380
    %v3557 = vpack.c.b16 %v3385, %v3381
    %v3558 = vpack.c.b16 %v3386, %v3382
    %v3559 = vpack.c.b16 %v3391, %v3387
    %v3560 = vpack.c.b16 %v3392, %v3388
    %v3561 = vpack.c.b16 %v3393, %v3389
    %v3562 = vpack.c.b16 %v3394, %v3390
    %v3563 = vpack.c.b16 %v3399, %v3395
    %v3564 = vpack.c.b16 %v3400, %v3396
    %v3565 = vpack.c.b16 %v3401, %v3397
    %v3566 = vpack.c.b16 %v3402, %v3398
    %v3567 = vpack.c.b16 %v3407, %v3403
    %v3568 = vpack.c.b16 %v3408, %v3404
    %v3569 = vpack.c.b16 %v3409, %v3405
    %v3570 = vpack.c.b16 %v3410, %v3406
    %v3571 = vpack.c.b16 %v3415, %v3411
    %v3572 = vpack.c.b16 %v3416, %v3412
    %v3573 = vpack.c.b16 %v3417, %v3413
    %v3574 = vpack.c.b16 %v3418, %v3414
    %v3575 = vpack.c.b16 %v3423, %v3419
    %v3576 = vpack.c.b16 %v3424, %v3420
    %v3577 = vpack.c.b16 %v3425, %v3421
    %v3578 = vpack.c.b16 %v3426, %v3422
    %v3579 = vpack.c.b16 %v3431, %v3427
    %v3580 = vpack.c.b16 %v3432, %v3428
    %v3581 = vpack.c.b16 %v3433, %v3429
    %v3582 = vpack.c.b16 %v3434, %v3430
    %v3583 = vpack.c.b16 %v3439, %v3435
    %v3584 = vpack.c.b16 %v3440, %v3436
    %v3585 = vpack.c.b16 %v3441, %v3437
    %v3586 = vpack.c.b16 %v3442, %v3438
    %v3587 = vpack.c.b16 %v3447, %v3443
    %v3588 = vpack.c.b16 %v3448, %v3444
    %v3589 = vpack.c.b16 %v3449, %v3445
    %v3590 = vpack.c.b16 %v3450, %v3446
    %v3591 = vpack.c.b16 %v3455, %v3451
    %v3592 = vpack.c.b16 %v3456, %v3452
    %v3593 = vpack.c.b16 %v3457, %v3453
    %v3594 = vpack.c.b16 %v3458, %v3454
    %v3595 = vpack.c.b16 %v3463, %v3459
    %v3596 = vpack.c.b16 %v3464, %v3460
    %v3597 = vpack.c.b16 %v3465, %v3461
    %v3598 = vpack.c.b16 %v3466, %v3462
    %v3599 = vpack.c.b16 %v3471, %v3467
    %v3600 = vpack.c.b16 %v3472, %v3468
    %v3601 = vpack.c.b16 %v3473, %v3469
    %v3602 = vpack.c.b16 %v3474, %v3470
    %v3732 = vlaneseq
    %v3733 = vshrl.u32 %v3732, 7
    %v3734 = vsub.s32 0, %v3733
    %v3735 = vrot.slane %v3090, %v3734
    %v3736 = vlaneseq
    %v3737 = vshrl.u32 %v3736, 7
    %v3738 = vsub.s32 1, %v3737
    %v3739 = vrot.slane %v3090, %v3738
    %v3740 = vlaneseq
    %v3741 = vshrl.u32 %v3740, 7
    %v3742 = vsub.s32 2, %v3741
    %v3743 = vrot.slane %v3090, %v3742
    %v3744 = vlaneseq
    %v3745 = vshrl.u32 %v3744, 7
    %v3746 = vsub.s32 3, %v3745
    %v3747 = vrot.slane %v3090, %v3746
    %3752 = vmatprep.subr.bf16.mxu0 %v3476
    %3753 = vmatpush1.bf16.msra.mxu0 %v3475
    %3754 = vmatprep.subr.bf16.mxu0 %v3480
    %3755 = vmatpush1.bf16.msra.mxu0 %v3479
    %3756 = vmatprep.subr.bf16.mxu0 %v3484
    %3757 = vmatpush1.bf16.msra.mxu0 %v3483
    %3758 = vmatprep.subr.bf16.mxu0 %v3488
    %3759 = vmatpush1.bf16.msra.mxu0 %v3487
    %3760 = vmatprep.subr.bf16.mxu0 %v3492
    %3761 = vmatpush1.bf16.msra.mxu0 %v3491
    %3762 = vmatprep.subr.bf16.mxu0 %v3496
    %3763 = vmatpush1.bf16.msra.mxu0 %v3495
    %3764 = vmatprep.subr.bf16.mxu0 %v3500
    %3765 = vmatpush1.bf16.msra.mxu0 %v3499
    %3766 = vmatprep.subr.bf16.mxu0 %v3504
    %3767 = vmatpush1.bf16.msra.mxu0 %v3503
    %3768 = vmatprep.subr.bf16.mxu0 %v3508
    %3769 = vmatpush1.bf16.msra.mxu0 %v3507
    %3770 = vmatprep.subr.bf16.mxu0 %v3512
    %3771 = vmatpush1.bf16.msra.mxu0 %v3511
    %3772 = vmatprep.subr.bf16.mxu0 %v3516
    %3773 = vmatpush1.bf16.msra.mxu0 %v3515
    %3774 = vmatprep.subr.bf16.mxu0 %v3520
    %3775 = vmatpush1.bf16.msra.mxu0 %v3519
    %3776 = vmatprep.subr.bf16.mxu0 %v3524
    %3777 = vmatpush1.bf16.msra.mxu0 %v3523
    %3778 = vmatprep.subr.bf16.mxu0 %v3528
    %3779 = vmatpush1.bf16.msra.mxu0 %v3527
    %3780 = vmatprep.subr.bf16.mxu0 %v3532
    %3781 = vmatpush1.bf16.msra.mxu0 %v3531
    %3782 = vmatprep.subr.bf16.mxu0 %v3536
    %3783 = vmatpush1.bf16.msra.mxu0 %v3535
    %3784 = vmatprep.mubr.bf16.mxu0 %v2959
    %3785 = vmatmul.mubr.bf16.gmra.mrb[0].mxu0 %v2958
    %v3786 = vpop.f32.mrb[0].mxu0
    %v3787 = vadd.f32 %v3735, %v3786
    %v3788 = vpop.f32.mrb[0].mxu0
    %v3789 = vadd.f32 %v3739, %v3788
    %v3790 = vpop.f32.mrb[0].mxu0
    %v3791 = vpop.f32.mrb[0].mxu0
    %3792 = vdwg.mxu0
    %3793 = vmatprep.subr.bf16.mxu0 %v3540
    %3794 = vmatpush1.bf16.msra.mxu0 %v3539
    %3795 = vmatprep.subr.bf16.mxu0 %v3544
    %3796 = vmatpush1.bf16.msra.mxu0 %v3543
    %3797 = vmatprep.subr.bf16.mxu0 %v3548
    %3798 = vmatpush1.bf16.msra.mxu0 %v3547
    %3799 = vmatprep.subr.bf16.mxu0 %v3552
    %3800 = vmatpush1.bf16.msra.mxu0 %v3551
    %3801 = vmatprep.subr.bf16.mxu0 %v3556
    %3802 = vmatpush1.bf16.msra.mxu0 %v3555
    %3803 = vmatprep.subr.bf16.mxu0 %v3560
    %3804 = vmatpush1.bf16.msra.mxu0 %v3559
    %3805 = vmatprep.subr.bf16.mxu0 %v3564
    %3806 = vmatpush1.bf16.msra.mxu0 %v3563
    %3807 = vmatprep.subr.bf16.mxu0 %v3568
    %3808 = vmatpush1.bf16.msra.mxu0 %v3567
    %3809 = vmatprep.subr.bf16.mxu0 %v3572
    %3810 = vmatpush1.bf16.msra.mxu0 %v3571
    %3811 = vmatprep.subr.bf16.mxu0 %v3576
    %3812 = vmatpush1.bf16.msra.mxu0 %v3575
    %3813 = vmatprep.subr.bf16.mxu0 %v3580
    %3814 = vmatpush1.bf16.msra.mxu0 %v3579
    %3815 = vmatprep.subr.bf16.mxu0 %v3584
    %3816 = vmatpush1.bf16.msra.mxu0 %v3583
    %3817 = vmatprep.subr.bf16.mxu0 %v3588
    %3818 = vmatpush1.bf16.msra.mxu0 %v3587
    %3819 = vmatprep.subr.bf16.mxu0 %v3592
    %3820 = vmatpush1.bf16.msra.mxu0 %v3591
    %3821 = vmatprep.subr.bf16.mxu0 %v3596
    %3822 = vmatpush1.bf16.msra.mxu0 %v3595
    %3823 = vmatprep.subr.bf16.mxu0 %v3600
    %3824 = vmatpush1.bf16.msra.mxu0 %v3599
    %3825 = vmatprep.mubr.bf16.mxu0 %v2961
    %3826 = vmatmul.mubr.bf16.gmra.mrb[0].mxu0 %v2960
    %v3827 = vpop.f32.mrb[0].mxu0
    %v3828 = vadd.f32 %v3787, %v3827
    %v3829 = vpop.f32.mrb[0].mxu0
    %v3830 = vadd.f32 %v3789, %v3829
    %v3831 = vpop.f32.mrb[0].mxu0
    %v3832 = vpop.f32.mrb[0].mxu0
    %3833 = vdwg.mxu0
    %3834 = vmatprep.subr.bf16.mxu0 %v3478
    %3835 = vmatpush1.bf16.msra.mxu0 %v3477
    %3836 = vmatprep.subr.bf16.mxu0 %v3482
    %3837 = vmatpush1.bf16.msra.mxu0 %v3481
    %3838 = vmatprep.subr.bf16.mxu0 %v3486
    %3839 = vmatpush1.bf16.msra.mxu0 %v3485
    %3840 = vmatprep.subr.bf16.mxu0 %v3490
    %3841 = vmatpush1.bf16.msra.mxu0 %v3489
    %3842 = vmatprep.subr.bf16.mxu0 %v3494
    %3843 = vmatpush1.bf16.msra.mxu0 %v3493
    %3844 = vmatprep.subr.bf16.mxu0 %v3498
    %3845 = vmatpush1.bf16.msra.mxu0 %v3497
    %3846 = vmatprep.subr.bf16.mxu0 %v3502
    %3847 = vmatpush1.bf16.msra.mxu0 %v3501
    %3848 = vmatprep.subr.bf16.mxu0 %v3506
    %3849 = vmatpush1.bf16.msra.mxu0 %v3505
    %3850 = vmatprep.subr.bf16.mxu0 %v3510
    %3851 = vmatpush1.bf16.msra.mxu0 %v3509
    %3852 = vmatprep.subr.bf16.mxu0 %v3514
    %3853 = vmatpush1.bf16.msra.mxu0 %v3513
    %3854 = vmatprep.subr.bf16.mxu0 %v3518
    %3855 = vmatpush1.bf16.msra.mxu0 %v3517
    %3856 = vmatprep.subr.bf16.mxu0 %v3522
    %3857 = vmatpush1.bf16.msra.mxu0 %v3521
    %3858 = vmatprep.subr.bf16.mxu0 %v3526
    %3859 = vmatpush1.bf16.msra.mxu0 %v3525
    %3860 = vmatprep.subr.bf16.mxu0 %v3530
    %3861 = vmatpush1.bf16.msra.mxu0 %v3529
    %3862 = vmatprep.subr.bf16.mxu0 %v3534
    %3863 = vmatpush1.bf16.msra.mxu0 %v3533
    %3864 = vmatprep.subr.bf16.mxu0 %v3538
    %3865 = vmatpush1.bf16.msra.mxu0 %v3537
    %3866 = vmatprep.mubr.bf16.mxu0 %v2959
    %3867 = vmatmul.mubr.bf16.gmra.mrb[0].mxu0 %v2958
    %v3868 = vpop.f32.mrb[0].mxu0
    %v3869 = vadd.f32 %v3743, %v3868
    %v3870 = vpop.f32.mrb[0].mxu0
    %v3871 = vadd.f32 %v3747, %v3870
    %v3872 = vpop.f32.mrb[0].mxu0
    %v3873 = vpop.f32.mrb[0].mxu0
    %3874 = vdwg.mxu0
    %3875 = vmatprep.subr.bf16.mxu0 %v3542
    %3876 = vmatpush1.bf16.msra.mxu0 %v3541
    %3877 = vmatprep.subr.bf16.mxu0 %v3546
    %3878 = vmatpush1.bf16.msra.mxu0 %v3545
    %3879 = vmatprep.subr.bf16.mxu0 %v3550
    %3880 = vmatpush1.bf16.msra.mxu0 %v3549
    %3881 = vmatprep.subr.bf16.mxu0 %v3554
    %3882 = vmatpush1.bf16.msra.mxu0 %v3553
    %3883 = vmatprep.subr.bf16.mxu0 %v3558
    %3884 = vmatpush1.bf16.msra.mxu0 %v3557
    %3885 = vmatprep.subr.bf16.mxu0 %v3562
    %3886 = vmatpush1.bf16.msra.mxu0 %v3561
    %3887 = vmatprep.subr.bf16.mxu0 %v3566
    %3888 = vmatpush1.bf16.msra.mxu0 %v3565
    %3889 = vmatprep.subr.bf16.mxu0 %v3570
    %3890 = vmatpush1.bf16.msra.mxu0 %v3569
    %3891 = vmatprep.subr.bf16.mxu0 %v3574
    %3892 = vmatpush1.bf16.msra.mxu0 %v3573
    %3893 = vmatprep.subr.bf16.mxu0 %v3578
    %3894 = vmatpush1.bf16.msra.mxu0 %v3577
    %3895 = vmatprep.subr.bf16.mxu0 %v3582
    %3896 = vmatpush1.bf16.msra.mxu0 %v3581
    %3897 = vmatprep.subr.bf16.mxu0 %v3586
    %3898 = vmatpush1.bf16.msra.mxu0 %v3585
    %3899 = vmatprep.subr.bf16.mxu0 %v3590
    %3900 = vmatpush1.bf16.msra.mxu0 %v3589
    %3901 = vmatprep.subr.bf16.mxu0 %v3594
    %3902 = vmatpush1.bf16.msra.mxu0 %v3593
    %3903 = vmatprep.subr.bf16.mxu0 %v3598
    %3904 = vmatpush1.bf16.msra.mxu0 %v3597
    %3905 = vmatprep.subr.bf16.mxu0 %v3602
    %3906 = vmatpush1.bf16.msra.mxu0 %v3601
    %3907 = vmatprep.mubr.bf16.mxu0 %v2961
    %3908 = vmatmul.mubr.bf16.gmra.mrb[0].mxu0 %v2960
    %v3909 = vpop.f32.mrb[0].mxu0
    %v3910 = vadd.f32 %v3869, %v3909
    %v3911 = vpop.f32.mrb[0].mxu0
    %v3912 = vadd.f32 %v3871, %v3911
    %v3913 = vpop.f32.mrb[0].mxu0
    %v3914 = vpop.f32.mrb[0].mxu0
    %3915 = vdwg.mxu0
    %v3916 = vmax.f32 %v3828, 0.0
    %v3917 = vmax.f32 %v3830, 0.0
    %v3918 = vmax.f32 %v3910, 0.0
    %v3919 = vmax.f32 %v3912, 0.0
    %v3920 = vpack.c.bf16 %v2954, %v2954
    %v3921 = vpack.c.bf16 %v2955, %v2955
    %v3922 = vpack.c.bf16 %v2956, %v2956
    %v3923 = vpack.c.bf16 %v2957, %v2957
    %v3924 = vld [vmem:[%s11] sm:$0xff]
    %v3925 = vld [vmem:[%s11 + $0x8] sm:$0xff]
    %v3926 = vld [vmem:[%s11 + $0x10] sm:$0xff]
    %v3927 = vld [vmem:[%s11 + $0x18] sm:$0xff]
    %v3928 = vld [vmem:[%s11 + $0x20] sm:$0xff]
    %v3929 = vld [vmem:[%s11 + $0x28] sm:$0xff]
    %v3930 = vld [vmem:[%s11 + $0x30] sm:$0xff]
    %v3931 = vld [vmem:[%s11 + $0x38] sm:$0xff]
    %v3932 = vld [vmem:[%s11 + $0x40] sm:$0xff]
    %v3933 = vld [vmem:[%s11 + $0x48] sm:$0xff]
    %v3934 = vld [vmem:[%s11 + $0x50] sm:$0xff]
    %v3935 = vld [vmem:[%s11 + $0x58] sm:$0xff]
    %v3936 = vld [vmem:[%s11 + $0x60] sm:$0xff]
    %v3937 = vld [vmem:[%s11 + $0x68] sm:$0xff]
    %v3938 = vld [vmem:[%s11 + $0x70] sm:$0xff]
    %v3939 = vld [vmem:[%s11 + $0x78] sm:$0xff]
    %v3940 = vld [vmem:[%s11 + $0x80] sm:$0xff]
    %v3941 = vld [vmem:[%s11 + $0x88] sm:$0xff]
    %v3942 = vld [vmem:[%s11 + $0x90] sm:$0xff]
    %v3943 = vld [vmem:[%s11 + $0x98] sm:$0xff]
    %v3944 = vld [vmem:[%s11 + $0xa0] sm:$0xff]
    %v3945 = vld [vmem:[%s11 + $0xa8] sm:$0xff]
    %v3946 = vld [vmem:[%s11 + $0xb0] sm:$0xff]
    %v3947 = vld [vmem:[%s11 + $0xb8] sm:$0xff]
    %v3948 = vld [vmem:[%s11 + $0xc0] sm:$0xff]
    %v3949 = vld [vmem:[%s11 + $0xc8] sm:$0xff]
    %v3950 = vld [vmem:[%s11 + $0xd0] sm:$0xff]
    %v3951 = vld [vmem:[%s11 + $0xd8] sm:$0xff]
    %v3952 = vld [vmem:[%s11 + $0xe0] sm:$0xff]
    %v3953 = vld [vmem:[%s11 + $0xe8] sm:$0xff]
    %v3954 = vld [vmem:[%s11 + $0xf0] sm:$0xff]
    %v3955 = vld [vmem:[%s11 + $0xf8] sm:$0xff]
    %v3956 = vld [vmem:[%s11 + $0x100] sm:$0xff]
    %v3957 = vld [vmem:[%s11 + $0x108] sm:$0xff]
    %v3958 = vld [vmem:[%s11 + $0x110] sm:$0xff]
    %v3959 = vld [vmem:[%s11 + $0x118] sm:$0xff]
    %v3960 = vld [vmem:[%s11 + $0x120] sm:$0xff]
    %v3961 = vld [vmem:[%s11 + $0x128] sm:$0xff]
    %v3962 = vld [vmem:[%s11 + $0x130] sm:$0xff]
    %v3963 = vld [vmem:[%s11 + $0x138] sm:$0xff]
    %v3964 = vld [vmem:[%s11 + $0x140] sm:$0xff]
    %v3965 = vld [vmem:[%s11 + $0x148] sm:$0xff]
    %v3966 = vld [vmem:[%s11 + $0x150] sm:$0xff]
    %v3967 = vld [vmem:[%s11 + $0x158] sm:$0xff]
    %v3968 = vld [vmem:[%s11 + $0x160] sm:$0xff]
    %v3969 = vld [vmem:[%s11 + $0x168] sm:$0xff]
    %v3970 = vld [vmem:[%s11 + $0x170] sm:$0xff]
    %v3971 = vld [vmem:[%s11 + $0x178] sm:$0xff]
    %v3972 = vld [vmem:[%s11 + $0x180] sm:$0xff]
    %v3973 = vld [vmem:[%s11 + $0x188] sm:$0xff]
    %v3974 = vld [vmem:[%s11 + $0x190] sm:$0xff]
    %v3975 = vld [vmem:[%s11 + $0x198] sm:$0xff]
    %v3976 = vld [vmem:[%s11 + $0x1a0] sm:$0xff]
    %v3977 = vld [vmem:[%s11 + $0x1a8] sm:$0xff]
    %v3978 = vld [vmem:[%s11 + $0x1b0] sm:$0xff]
    %v3979 = vld [vmem:[%s11 + $0x1b8] sm:$0xff]
    %v3980 = vld [vmem:[%s11 + $0x1c0] sm:$0xff]
    %v3981 = vld [vmem:[%s11 + $0x1c8] sm:$0xff]
    %v3982 = vld [vmem:[%s11 + $0x1d0] sm:$0xff]
    %v3983 = vld [vmem:[%s11 + $0x1d8] sm:$0xff]
    %v3984 = vld [vmem:[%s11 + $0x1e0] sm:$0xff]
    %v3985 = vld [vmem:[%s11 + $0x1e8] sm:$0xff]
    %v3986 = vld [vmem:[%s11 + $0x1f0] sm:$0xff]
    %v3987 = vld [vmem:[%s11 + $0x1f8] sm:$0xff]
    %v3988 = vld [vmem:[%s11 + $0x200] sm:$0xff]
    %v3989 = vld [vmem:[%s11 + $0x208] sm:$0xff]
    %v3990 = vld [vmem:[%s11 + $0x210] sm:$0xff]
    %v3991 = vld [vmem:[%s11 + $0x218] sm:$0xff]
    %v3992 = vld [vmem:[%s11 + $0x220] sm:$0xff]
    %v3993 = vld [vmem:[%s11 + $0x228] sm:$0xff]
    %v3994 = vld [vmem:[%s11 + $0x230] sm:$0xff]
    %v3995 = vld [vmem:[%s11 + $0x238] sm:$0xff]
    %v3996 = vld [vmem:[%s11 + $0x240] sm:$0xff]
    %v3997 = vld [vmem:[%s11 + $0x248] sm:$0xff]
    %v3998 = vld [vmem:[%s11 + $0x250] sm:$0xff]
    %v3999 = vld [vmem:[%s11 + $0x258] sm:$0xff]
    %v4000 = vld [vmem:[%s11 + $0x260] sm:$0xff]
    %v4001 = vld [vmem:[%s11 + $0x268] sm:$0xff]
    %v4002 = vld [vmem:[%s11 + $0x270] sm:$0xff]
    %v4003 = vld [vmem:[%s11 + $0x278] sm:$0xff]
    %v4004 = vld [vmem:[%s11 + $0x280] sm:$0xff]
    %v4005 = vld [vmem:[%s11 + $0x288] sm:$0xff]
    %v4006 = vld [vmem:[%s11 + $0x290] sm:$0xff]
    %v4007 = vld [vmem:[%s11 + $0x298] sm:$0xff]
    %v4008 = vld [vmem:[%s11 + $0x2a0] sm:$0xff]
    %v4009 = vld [vmem:[%s11 + $0x2a8] sm:$0xff]
    %v4010 = vld [vmem:[%s11 + $0x2b0] sm:$0xff]
    %v4011 = vld [vmem:[%s11 + $0x2b8] sm:$0xff]
    %v4012 = vld [vmem:[%s11 + $0x2c0] sm:$0xff]
    %v4013 = vld [vmem:[%s11 + $0x2c8] sm:$0xff]
    %v4014 = vld [vmem:[%s11 + $0x2d0] sm:$0xff]
    %v4015 = vld [vmem:[%s11 + $0x2d8] sm:$0xff]
    %v4016 = vld [vmem:[%s11 + $0x2e0] sm:$0xff]
    %v4017 = vld [vmem:[%s11 + $0x2e8] sm:$0xff]
    %v4018 = vld [vmem:[%s11 + $0x2f0] sm:$0xff]
    %v4019 = vld [vmem:[%s11 + $0x2f8] sm:$0xff]
    %v4020 = vld [vmem:[%s11 + $0x300] sm:$0xff]
    %v4021 = vld [vmem:[%s11 + $0x308] sm:$0xff]
    %v4022 = vld [vmem:[%s11 + $0x310] sm:$0xff]
    %v4023 = vld [vmem:[%s11 + $0x318] sm:$0xff]
    %v4024 = vld [vmem:[%s11 + $0x320] sm:$0xff]
    %v4025 = vld [vmem:[%s11 + $0x328] sm:$0xff]
    %v4026 = vld [vmem:[%s11 + $0x330] sm:$0xff]
    %v4027 = vld [vmem:[%s11 + $0x338] sm:$0xff]
    %v4028 = vld [vmem:[%s11 + $0x340] sm:$0xff]
    %v4029 = vld [vmem:[%s11 + $0x348] sm:$0xff]
    %v4030 = vld [vmem:[%s11 + $0x350] sm:$0xff]
    %v4031 = vld [vmem:[%s11 + $0x358] sm:$0xff]
    %v4032 = vld [vmem:[%s11 + $0x360] sm:$0xff]
    %v4033 = vld [vmem:[%s11 + $0x368] sm:$0xff]
    %v4034 = vld [vmem:[%s11 + $0x370] sm:$0xff]
    %v4035 = vld [vmem:[%s11 + $0x378] sm:$0xff]
    %v4036 = vld [vmem:[%s11 + $0x380] sm:$0xff]
    %v4037 = vld [vmem:[%s11 + $0x388] sm:$0xff]
    %v4038 = vld [vmem:[%s11 + $0x390] sm:$0xff]
    %v4039 = vld [vmem:[%s11 + $0x398] sm:$0xff]
    %v4040 = vld [vmem:[%s11 + $0x3a0] sm:$0xff]
    %v4041 = vld [vmem:[%s11 + $0x3a8] sm:$0xff]
    %v4042 = vld [vmem:[%s11 + $0x3b0] sm:$0xff]
    %v4043 = vld [vmem:[%s11 + $0x3b8] sm:$0xff]
    %v4044 = vld [vmem:[%s11 + $0x3c0] sm:$0xff]
    %v4045 = vld [vmem:[%s11 + $0x3c8] sm:$0xff]
    %v4046 = vld [vmem:[%s11 + $0x3d0] sm:$0xff]
    %v4047 = vld [vmem:[%s11 + $0x3d8] sm:$0xff]
    %v4048 = vld [vmem:[%s11 + $0x3e0] sm:$0xff]
    %v4049 = vld [vmem:[%s11 + $0x3e8] sm:$0xff]
    %v4050 = vld [vmem:[%s11 + $0x3f0] sm:$0xff]
    %v4051 = vld [vmem:[%s11 + $0x3f8] sm:$0xff]
    %v4052 = vld [vmem:[%s12] sm:$0xf]
    %v4181 = vunpack.c.l.b16 %v3924
    %v4182 = vunpack.c.h.b16 %v3924
    %v4183 = vunpack.c.l.b16 %v3925
    %v4184 = vunpack.c.h.b16 %v3925
    %v4185 = vunpack.c.l.b16 %v3926
    %v4186 = vunpack.c.h.b16 %v3926
    %v4187 = vunpack.c.l.b16 %v3927
    %v4188 = vunpack.c.h.b16 %v3927
    %v4189 = vunpack.c.l.b16 %v3928
    %v4190 = vunpack.c.h.b16 %v3928
    %v4191 = vunpack.c.l.b16 %v3929
    %v4192 = vunpack.c.h.b16 %v3929
    %v4193 = vunpack.c.l.b16 %v3930
    %v4194 = vunpack.c.h.b16 %v3930
    %v4195 = vunpack.c.l.b16 %v3931
    %v4196 = vunpack.c.h.b16 %v3931
    %v4197 = vunpack.c.l.b16 %v3932
    %v4198 = vunpack.c.h.b16 %v3932
    %v4199 = vunpack.c.l.b16 %v3933
    %v4200 = vunpack.c.h.b16 %v3933
    %v4201 = vunpack.c.l.b16 %v3934
    %v4202 = vunpack.c.h.b16 %v3934
    %v4203 = vunpack.c.l.b16 %v3935
    %v4204 = vunpack.c.h.b16 %v3935
    %v4205 = vunpack.c.l.b16 %v3936
    %v4206 = vunpack.c.h.b16 %v3936
    %v4207 = vunpack.c.l.b16 %v3937
    %v4208 = vunpack.c.h.b16 %v3937
    %v4209 = vunpack.c.l.b16 %v3938
    %v4210 = vunpack.c.h.b16 %v3938
    %v4211 = vunpack.c.l.b16 %v3939
    %v4212 = vunpack.c.h.b16 %v3939
    %v4213 = vunpack.c.l.b16 %v3940
    %v4214 = vunpack.c.h.b16 %v3940
    %v4215 = vunpack.c.l.b16 %v3941
    %v4216 = vunpack.c.h.b16 %v3941
    %v4217 = vunpack.c.l.b16 %v3942
    %v4218 = vunpack.c.h.b16 %v3942
    %v4219 = vunpack.c.l.b16 %v3943
    %v4220 = vunpack.c.h.b16 %v3943
    %v4221 = vunpack.c.l.b16 %v3944
    %v4222 = vunpack.c.h.b16 %v3944
    %v4223 = vunpack.c.l.b16 %v3945
    %v4224 = vunpack.c.h.b16 %v3945
    %v4225 = vunpack.c.l.b16 %v3946
    %v4226 = vunpack.c.h.b16 %v3946
    %v4227 = vunpack.c.l.b16 %v3947
    %v4228 = vunpack.c.h.b16 %v3947
    %v4229 = vunpack.c.l.b16 %v3948
    %v4230 = vunpack.c.h.b16 %v3948
    %v4231 = vunpack.c.l.b16 %v3949
    %v4232 = vunpack.c.h.b16 %v3949
    %v4233 = vunpack.c.l.b16 %v3950
    %v4234 = vunpack.c.h.b16 %v3950
    %v4235 = vunpack.c.l.b16 %v3951
    %v4236 = vunpack.c.h.b16 %v3951
    %v4237 = vunpack.c.l.b16 %v3952
    %v4238 = vunpack.c.h.b16 %v3952
    %v4239 = vunpack.c.l.b16 %v3953
    %v4240 = vunpack.c.h.b16 %v3953
    %v4241 = vunpack.c.l.b16 %v3954
    %v4242 = vunpack.c.h.b16 %v3954
    %v4243 = vunpack.c.l.b16 %v3955
    %v4244 = vunpack.c.h.b16 %v3955
    %v4245 = vunpack.c.l.b16 %v3956
    %v4246 = vunpack.c.h.b16 %v3956
    %v4247 = vunpack.c.l.b16 %v3957
    %v4248 = vunpack.c.h.b16 %v3957
    %v4249 = vunpack.c.l.b16 %v3958
    %v4250 = vunpack.c.h.b16 %v3958
    %v4251 = vunpack.c.l.b16 %v3959
    %v4252 = vunpack.c.h.b16 %v3959
    %v4253 = vunpack.c.l.b16 %v3960
    %v4254 = vunpack.c.h.b16 %v3960
    %v4255 = vunpack.c.l.b16 %v3961
    %v4256 = vunpack.c.h.b16 %v3961
    %v4257 = vunpack.c.l.b16 %v3962
    %v4258 = vunpack.c.h.b16 %v3962
    %v4259 = vunpack.c.l.b16 %v3963
    %v4260 = vunpack.c.h.b16 %v3963
    %v4261 = vunpack.c.l.b16 %v3964
    %v4262 = vunpack.c.h.b16 %v3964
    %v4263 = vunpack.c.l.b16 %v3965
    %v4264 = vunpack.c.h.b16 %v3965
    %v4265 = vunpack.c.l.b16 %v3966
    %v4266 = vunpack.c.h.b16 %v3966
    %v4267 = vunpack.c.l.b16 %v3967
    %v4268 = vunpack.c.h.b16 %v3967
    %v4269 = vunpack.c.l.b16 %v3968
    %v4270 = vunpack.c.h.b16 %v3968
    %v4271 = vunpack.c.l.b16 %v3969
    %v4272 = vunpack.c.h.b16 %v3969
    %v4273 = vunpack.c.l.b16 %v3970
    %v4274 = vunpack.c.h.b16 %v3970
    %v4275 = vunpack.c.l.b16 %v3971
    %v4276 = vunpack.c.h.b16 %v3971
    %v4277 = vunpack.c.l.b16 %v3972
    %v4278 = vunpack.c.h.b16 %v3972
    %v4279 = vunpack.c.l.b16 %v3973
    %v4280 = vunpack.c.h.b16 %v3973
    %v4281 = vunpack.c.l.b16 %v3974
    %v4282 = vunpack.c.h.b16 %v3974
    %v4283 = vunpack.c.l.b16 %v3975
    %v4284 = vunpack.c.h.b16 %v3975
    %v4285 = vunpack.c.l.b16 %v3976
    %v4286 = vunpack.c.h.b16 %v3976
    %v4287 = vunpack.c.l.b16 %v3977
    %v4288 = vunpack.c.h.b16 %v3977
    %v4289 = vunpack.c.l.b16 %v3978
    %v4290 = vunpack.c.h.b16 %v3978
    %v4291 = vunpack.c.l.b16 %v3979
    %v4292 = vunpack.c.h.b16 %v3979
    %v4293 = vunpack.c.l.b16 %v3980
    %v4294 = vunpack.c.h.b16 %v3980
    %v4295 = vunpack.c.l.b16 %v3981
    %v4296 = vunpack.c.h.b16 %v3981
    %v4297 = vunpack.c.l.b16 %v3982
    %v4298 = vunpack.c.h.b16 %v3982
    %v4299 = vunpack.c.l.b16 %v3983
    %v4300 = vunpack.c.h.b16 %v3983
    %v4301 = vunpack.c.l.b16 %v3984
    %v4302 = vunpack.c.h.b16 %v3984
    %v4303 = vunpack.c.l.b16 %v3985
    %v4304 = vunpack.c.h.b16 %v3985
    %v4305 = vunpack.c.l.b16 %v3986
    %v4306 = vunpack.c.h.b16 %v3986
    %v4307 = vunpack.c.l.b16 %v3987
    %v4308 = vunpack.c.h.b16 %v3987
    %v4309 = vunpack.c.l.b16 %v3988
    %v4310 = vunpack.c.h.b16 %v3988
    %v4311 = vunpack.c.l.b16 %v3989
    %v4312 = vunpack.c.h.b16 %v3989
    %v4313 = vunpack.c.l.b16 %v3990
    %v4314 = vunpack.c.h.b16 %v3990
    %v4315 = vunpack.c.l.b16 %v3991
    %v4316 = vunpack.c.h.b16 %v3991
    %v4317 = vunpack.c.l.b16 %v3992
    %v4318 = vunpack.c.h.b16 %v3992
    %v4319 = vunpack.c.l.b16 %v3993
    %v4320 = vunpack.c.h.b16 %v3993
    %v4321 = vunpack.c.l.b16 %v3994
    %v4322 = vunpack.c.h.b16 %v3994
    %v4323 = vunpack.c.l.b16 %v3995
    %v4324 = vunpack.c.h.b16 %v3995
    %v4325 = vunpack.c.l.b16 %v3996
    %v4326 = vunpack.c.h.b16 %v3996
    %v4327 = vunpack.c.l.b16 %v3997
    %v4328 = vunpack.c.h.b16 %v3997
    %v4329 = vunpack.c.l.b16 %v3998
    %v4330 = vunpack.c.h.b16 %v3998
    %v4331 = vunpack.c.l.b16 %v3999
    %v4332 = vunpack.c.h.b16 %v3999
    %v4333 = vunpack.c.l.b16 %v4000
    %v4334 = vunpack.c.h.b16 %v4000
    %v4335 = vunpack.c.l.b16 %v4001
    %v4336 = vunpack.c.h.b16 %v4001
    %v4337 = vunpack.c.l.b16 %v4002
    %v4338 = vunpack.c.h.b16 %v4002
    %v4339 = vunpack.c.l.b16 %v4003
    %v4340 = vunpack.c.h.b16 %v4003
    %v4341 = vunpack.c.l.b16 %v4004
    %v4342 = vunpack.c.h.b16 %v4004
    %v4343 = vunpack.c.l.b16 %v4005
    %v4344 = vunpack.c.h.b16 %v4005
    %v4345 = vunpack.c.l.b16 %v4006
    %v4346 = vunpack.c.h.b16 %v4006
    %v4347 = vunpack.c.l.b16 %v4007
    %v4348 = vunpack.c.h.b16 %v4007
    %v4349 = vunpack.c.l.b16 %v4008
    %v4350 = vunpack.c.h.b16 %v4008
    %v4351 = vunpack.c.l.b16 %v4009
    %v4352 = vunpack.c.h.b16 %v4009
    %v4353 = vunpack.c.l.b16 %v4010
    %v4354 = vunpack.c.h.b16 %v4010
    %v4355 = vunpack.c.l.b16 %v4011
    %v4356 = vunpack.c.h.b16 %v4011
    %v4357 = vunpack.c.l.b16 %v4012
    %v4358 = vunpack.c.h.b16 %v4012
    %v4359 = vunpack.c.l.b16 %v4013
    %v4360 = vunpack.c.h.b16 %v4013
    %v4361 = vunpack.c.l.b16 %v4014
    %v4362 = vunpack.c.h.b16 %v4014
    %v4363 = vunpack.c.l.b16 %v4015
    %v4364 = vunpack.c.h.b16 %v4015
    %v4365 = vunpack.c.l.b16 %v4016
    %v4366 = vunpack.c.h.b16 %v4016
    %v4367 = vunpack.c.l.b16 %v4017
    %v4368 = vunpack.c.h.b16 %v4017
    %v4369 = vunpack.c.l.b16 %v4018
    %v4370 = vunpack.c.h.b16 %v4018
    %v4371 = vunpack.c.l.b16 %v4019
    %v4372 = vunpack.c.h.b16 %v4019
    %v4373 = vunpack.c.l.b16 %v4020
    %v4374 = vunpack.c.h.b16 %v4020
    %v4375 = vunpack.c.l.b16 %v4021
    %v4376 = vunpack.c.h.b16 %v4021
    %v4377 = vunpack.c.l.b16 %v4022
    %v4378 = vunpack.c.h.b16 %v4022
    %v4379 = vunpack.c.l.b16 %v4023
    %v4380 = vunpack.c.h.b16 %v4023
    %v4381 = vunpack.c.l.b16 %v4024
    %v4382 = vunpack.c.h.b16 %v4024
    %v4383 = vunpack.c.l.b16 %v4025
    %v4384 = vunpack.c.h.b16 %v4025
    %v4385 = vunpack.c.l.b16 %v4026
    %v4386 = vunpack.c.h.b16 %v4026
    %v4387 = vunpack.c.l.b16 %v4027
    %v4388 = vunpack.c.h.b16 %v4027
    %v4389 = vunpack.c.l.b16 %v4028
    %v4390 = vunpack.c.h.b16 %v4028
    %v4391 = vunpack.c.l.b16 %v4029
    %v4392 = vunpack.c.h.b16 %v4029
    %v4393 = vunpack.c.l.b16 %v4030
    %v4394 = vunpack.c.h.b16 %v4030
    %v4395 = vunpack.c.l.b16 %v4031
    %v4396 = vunpack.c.h.b16 %v4031
    %v4397 = vunpack.c.l.b16 %v4032
    %v4398 = vunpack.c.h.b16 %v4032
    %v4399 = vunpack.c.l.b16 %v4033
    %v4400 = vunpack.c.h.b16 %v4033
    %v4401 = vunpack.c.l.b16 %v4034
    %v4402 = vunpack.c.h.b16 %v4034
    %v4403 = vunpack.c.l.b16 %v4035
    %v4404 = vunpack.c.h.b16 %v4035
    %v4405 = vunpack.c.l.b16 %v4036
    %v4406 = vunpack.c.h.b16 %v4036
    %v4407 = vunpack.c.l.b16 %v4037
    %v4408 = vunpack.c.h.b16 %v4037
    %v4409 = vunpack.c.l.b16 %v4038
    %v4410 = vunpack.c.h.b16 %v4038
    %v4411 = vunpack.c.l.b16 %v4039
    %v4412 = vunpack.c.h.b16 %v4039
    %v4413 = vunpack.c.l.b16 %v4040
    %v4414 = vunpack.c.h.b16 %v4040
    %v4415 = vunpack.c.l.b16 %v4041
    %v4416 = vunpack.c.h.b16 %v4041
    %v4417 = vunpack.c.l.b16 %v4042
    %v4418 = vunpack.c.h.b16 %v4042
    %v4419 = vunpack.c.l.b16 %v4043
    %v4420 = vunpack.c.h.b16 %v4043
    %v4421 = vunpack.c.l.b16 %v4044
    %v4422 = vunpack.c.h.b16 %v4044
    %v4423 = vunpack.c.l.b16 %v4045
    %v4424 = vunpack.c.h.b16 %v4045
    %v4425 = vunpack.c.l.b16 %v4046
    %v4426 = vunpack.c.h.b16 %v4046
    %v4427 = vunpack.c.l.b16 %v4047
    %v4428 = vunpack.c.h.b16 %v4047
    %v4429 = vunpack.c.l.b16 %v4048
    %v4430 = vunpack.c.h.b16 %v4048
    %v4431 = vunpack.c.l.b16 %v4049
    %v4432 = vunpack.c.h.b16 %v4049
    %v4433 = vunpack.c.l.b16 %v4050
    %v4434 = vunpack.c.h.b16 %v4050
    %v4435 = vunpack.c.l.b16 %v4051
    %v4436 = vunpack.c.h.b16 %v4051
    %v4437 = vpack.c.b16 %v4185, %v4181
    %v4438 = vpack.c.b16 %v4186, %v4182
    %v4439 = vpack.c.b16 %v4187, %v4183
    %v4440 = vpack.c.b16 %v4188, %v4184
    %v4441 = vpack.c.b16 %v4193, %v4189
    %v4442 = vpack.c.b16 %v4194, %v4190
    %v4443 = vpack.c.b16 %v4195, %v4191
    %v4444 = vpack.c.b16 %v4196, %v4192
    %v4445 = vpack.c.b16 %v4201, %v4197
    %v4446 = vpack.c.b16 %v4202, %v4198
    %v4447 = vpack.c.b16 %v4203, %v4199
    %v4448 = vpack.c.b16 %v4204, %v4200
    %v4449 = vpack.c.b16 %v4209, %v4205
    %v4450 = vpack.c.b16 %v4210, %v4206
    %v4451 = vpack.c.b16 %v4211, %v4207
    %v4452 = vpack.c.b16 %v4212, %v4208
    %v4453 = vpack.c.b16 %v4217, %v4213
    %v4454 = vpack.c.b16 %v4218, %v4214
    %v4455 = vpack.c.b16 %v4219, %v4215
    %v4456 = vpack.c.b16 %v4220, %v4216
    %v4457 = vpack.c.b16 %v4225, %v4221
    %v4458 = vpack.c.b16 %v4226, %v4222
    %v4459 = vpack.c.b16 %v4227, %v4223
    %v4460 = vpack.c.b16 %v4228, %v4224
    %v4461 = vpack.c.b16 %v4233, %v4229
    %v4462 = vpack.c.b16 %v4234, %v4230
    %v4463 = vpack.c.b16 %v4235, %v4231
    %v4464 = vpack.c.b16 %v4236, %v4232
    %v4465 = vpack.c.b16 %v4241, %v4237
    %v4466 = vpack.c.b16 %v4242, %v4238
    %v4467 = vpack.c.b16 %v4243, %v4239
    %v4468 = vpack.c.b16 %v4244, %v4240
    %v4469 = vpack.c.b16 %v4249, %v4245
    %v4470 = vpack.c.b16 %v4250, %v4246
    %v4471 = vpack.c.b16 %v4251, %v4247
    %v4472 = vpack.c.b16 %v4252, %v4248
    %v4473 = vpack.c.b16 %v4257, %v4253
    %v4474 = vpack.c.b16 %v4258, %v4254
    %v4475 = vpack.c.b16 %v4259, %v4255
    %v4476 = vpack.c.b16 %v4260, %v4256
    %v4477 = vpack.c.b16 %v4265, %v4261
    %v4478 = vpack.c.b16 %v4266, %v4262
    %v4479 = vpack.c.b16 %v4267, %v4263
    %v4480 = vpack.c.b16 %v4268, %v4264
    %v4481 = vpack.c.b16 %v4273, %v4269
    %v4482 = vpack.c.b16 %v4274, %v4270
    %v4483 = vpack.c.b16 %v4275, %v4271
    %v4484 = vpack.c.b16 %v4276, %v4272
    %v4485 = vpack.c.b16 %v4281, %v4277
    %v4486 = vpack.c.b16 %v4282, %v4278
    %v4487 = vpack.c.b16 %v4283, %v4279
    %v4488 = vpack.c.b16 %v4284, %v4280
    %v4489 = vpack.c.b16 %v4289, %v4285
    %v4490 = vpack.c.b16 %v4290, %v4286
    %v4491 = vpack.c.b16 %v4291, %v4287
    %v4492 = vpack.c.b16 %v4292, %v4288
    %v4493 = vpack.c.b16 %v4297, %v4293
    %v4494 = vpack.c.b16 %v4298, %v4294
    %v4495 = vpack.c.b16 %v4299, %v4295
    %v4496 = vpack.c.b16 %v4300, %v4296
    %v4497 = vpack.c.b16 %v4305, %v4301
    %v4498 = vpack.c.b16 %v4306, %v4302
    %v4499 = vpack.c.b16 %v4307, %v4303
    %v4500 = vpack.c.b16 %v4308, %v4304
    %v4501 = vpack.c.b16 %v4313, %v4309
    %v4502 = vpack.c.b16 %v4314, %v4310
    %v4503 = vpack.c.b16 %v4315, %v4311
    %v4504 = vpack.c.b16 %v4316, %v4312
    %v4505 = vpack.c.b16 %v4321, %v4317
    %v4506 = vpack.c.b16 %v4322, %v4318
    %v4507 = vpack.c.b16 %v4323, %v4319
    %v4508 = vpack.c.b16 %v4324, %v4320
    %v4509 = vpack.c.b16 %v4329, %v4325
    %v4510 = vpack.c.b16 %v4330, %v4326
    %v4511 = vpack.c.b16 %v4331, %v4327
    %v4512 = vpack.c.b16 %v4332, %v4328
    %v4513 = vpack.c.b16 %v4337, %v4333
    %v4514 = vpack.c.b16 %v4338, %v4334
    %v4515 = vpack.c.b16 %v4339, %v4335
    %v4516 = vpack.c.b16 %v4340, %v4336
    %v4517 = vpack.c.b16 %v4345, %v4341
    %v4518 = vpack.c.b16 %v4346, %v4342
    %v4519 = vpack.c.b16 %v4347, %v4343
    %v4520 = vpack.c.b16 %v4348, %v4344
    %v4521 = vpack.c.b16 %v4353, %v4349
    %v4522 = vpack.c.b16 %v4354, %v4350
    %v4523 = vpack.c.b16 %v4355, %v4351
    %v4524 = vpack.c.b16 %v4356, %v4352
    %v4525 = vpack.c.b16 %v4361, %v4357
    %v4526 = vpack.c.b16 %v4362, %v4358
    %v4527 = vpack.c.b16 %v4363, %v4359
    %v4528 = vpack.c.b16 %v4364, %v4360
    %v4529 = vpack.c.b16 %v4369, %v4365
    %v4530 = vpack.c.b16 %v4370, %v4366
    %v4531 = vpack.c.b16 %v4371, %v4367
    %v4532 = vpack.c.b16 %v4372, %v4368
    %v4533 = vpack.c.b16 %v4377, %v4373
    %v4534 = vpack.c.b16 %v4378, %v4374
    %v4535 = vpack.c.b16 %v4379, %v4375
    %v4536 = vpack.c.b16 %v4380, %v4376
    %v4537 = vpack.c.b16 %v4385, %v4381
    %v4538 = vpack.c.b16 %v4386, %v4382
    %v4539 = vpack.c.b16 %v4387, %v4383
    %v4540 = vpack.c.b16 %v4388, %v4384
    %v4541 = vpack.c.b16 %v4393, %v4389
    %v4542 = vpack.c.b16 %v4394, %v4390
    %v4543 = vpack.c.b16 %v4395, %v4391
    %v4544 = vpack.c.b16 %v4396, %v4392
    %v4545 = vpack.c.b16 %v4401, %v4397
    %v4546 = vpack.c.b16 %v4402, %v4398
    %v4547 = vpack.c.b16 %v4403, %v4399
    %v4548 = vpack.c.b16 %v4404, %v4400
    %v4549 = vpack.c.b16 %v4409, %v4405
    %v4550 = vpack.c.b16 %v4410, %v4406
    %v4551 = vpack.c.b16 %v4411, %v4407
    %v4552 = vpack.c.b16 %v4412, %v4408
    %v4553 = vpack.c.b16 %v4417, %v4413
    %v4554 = vpack.c.b16 %v4418, %v4414
    %v4555 = vpack.c.b16 %v4419, %v4415
    %v4556 = vpack.c.b16 %v4420, %v4416
    %v4557 = vpack.c.b16 %v4425, %v4421
    %v4558 = vpack.c.b16 %v4426, %v4422
    %v4559 = vpack.c.b16 %v4427, %v4423
    %v4560 = vpack.c.b16 %v4428, %v4424
    %v4561 = vpack.c.b16 %v4433, %v4429
    %v4562 = vpack.c.b16 %v4434, %v4430
    %v4563 = vpack.c.b16 %v4435, %v4431
    %v4564 = vpack.c.b16 %v4436, %v4432
    %v4694 = vlaneseq
    %v4695 = vshrl.u32 %v4694, 7
    %v4696 = vsub.s32 0, %v4695
    %v4697 = vrot.slane %v4052, %v4696
    %v4698 = vlaneseq
    %v4699 = vshrl.u32 %v4698, 7
    %v4700 = vsub.s32 1, %v4699
    %v4701 = vrot.slane %v4052, %v4700
    %v4702 = vlaneseq
    %v4703 = vshrl.u32 %v4702, 7
    %v4704 = vsub.s32 2, %v4703
    %v4705 = vrot.slane %v4052, %v4704
    %v4706 = vlaneseq
    %v4707 = vshrl.u32 %v4706, 7
    %v4708 = vsub.s32 3, %v4707
    %v4709 = vrot.slane %v4052, %v4708
    %4714 = vmatprep.subr.bf16.mxu0 %v4438
    %4715 = vmatpush1.bf16.msra.mxu0 %v4437
    %4716 = vmatprep.subr.bf16.mxu0 %v4442
    %4717 = vmatpush1.bf16.msra.mxu0 %v4441
    %4718 = vmatprep.subr.bf16.mxu0 %v4446
    %4719 = vmatpush1.bf16.msra.mxu0 %v4445
    %4720 = vmatprep.subr.bf16.mxu0 %v4450
    %4721 = vmatpush1.bf16.msra.mxu0 %v4449
    %4722 = vmatprep.subr.bf16.mxu0 %v4454
    %4723 = vmatpush1.bf16.msra.mxu0 %v4453
    %4724 = vmatprep.subr.bf16.mxu0 %v4458
    %4725 = vmatpush1.bf16.msra.mxu0 %v4457
    %4726 = vmatprep.subr.bf16.mxu0 %v4462
    %4727 = vmatpush1.bf16.msra.mxu0 %v4461
    %4728 = vmatprep.subr.bf16.mxu0 %v4466
    %4729 = vmatpush1.bf16.msra.mxu0 %v4465
    %4730 = vmatprep.subr.bf16.mxu0 %v4470
    %4731 = vmatpush1.bf16.msra.mxu0 %v4469
    %4732 = vmatprep.subr.bf16.mxu0 %v4474
    %4733 = vmatpush1.bf16.msra.mxu0 %v4473
    %4734 = vmatprep.subr.bf16.mxu0 %v4478
    %4735 = vmatpush1.bf16.msra.mxu0 %v4477
    %4736 = vmatprep.subr.bf16.mxu0 %v4482
    %4737 = vmatpush1.bf16.msra.mxu0 %v4481
    %4738 = vmatprep.subr.bf16.mxu0 %v4486
    %4739 = vmatpush1.bf16.msra.mxu0 %v4485
    %4740 = vmatprep.subr.bf16.mxu0 %v4490
    %4741 = vmatpush1.bf16.msra.mxu0 %v4489
    %4742 = vmatprep.subr.bf16.mxu0 %v4494
    %4743 = vmatpush1.bf16.msra.mxu0 %v4493
    %4744 = vmatprep.subr.bf16.mxu0 %v4498
    %4745 = vmatpush1.bf16.msra.mxu0 %v4497
    %4746 = vmatprep.mubr.bf16.mxu0 %v3921
    %4747 = vmatmul.mubr.bf16.gmra.mrb[0].mxu0 %v3920
    %v4748 = vpop.f32.mrb[0].mxu0
    %v4749 = vadd.f32 %v4697, %v4748
    %v4750 = vpop.f32.mrb[0].mxu0
    %v4751 = vadd.f32 %v4701, %v4750
    %v4752 = vpop.f32.mrb[0].mxu0
    %v4753 = vpop.f32.mrb[0].mxu0
    %4754 = vdwg.mxu0
    %4755 = vmatprep.subr.bf16.mxu0 %v4502
    %4756 = vmatpush1.bf16.msra.mxu0 %v4501
    %4757 = vmatprep.subr.bf16.mxu0 %v4506
    %4758 = vmatpush1.bf16.msra.mxu0 %v4505
    %4759 = vmatprep.subr.bf16.mxu0 %v4510
    %4760 = vmatpush1.bf16.msra.mxu0 %v4509
    %4761 = vmatprep.subr.bf16.mxu0 %v4514
    %4762 = vmatpush1.bf16.msra.mxu0 %v4513
    %4763 = vmatprep.subr.bf16.mxu0 %v4518
    %4764 = vmatpush1.bf16.msra.mxu0 %v4517
    %4765 = vmatprep.subr.bf16.mxu0 %v4522
    %4766 = vmatpush1.bf16.msra.mxu0 %v4521
    %4767 = vmatprep.subr.bf16.mxu0 %v4526
    %4768 = vmatpush1.bf16.msra.mxu0 %v4525
    %4769 = vmatprep.subr.bf16.mxu0 %v4530
    %4770 = vmatpush1.bf16.msra.mxu0 %v4529
    %4771 = vmatprep.subr.bf16.mxu0 %v4534
    %4772 = vmatpush1.bf16.msra.mxu0 %v4533
    %4773 = vmatprep.subr.bf16.mxu0 %v4538
    %4774 = vmatpush1.bf16.msra.mxu0 %v4537
    %4775 = vmatprep.subr.bf16.mxu0 %v4542
    %4776 = vmatpush1.bf16.msra.mxu0 %v4541
    %4777 = vmatprep.subr.bf16.mxu0 %v4546
    %4778 = vmatpush1.bf16.msra.mxu0 %v4545
    %4779 = vmatprep.subr.bf16.mxu0 %v4550
    %4780 = vmatpush1.bf16.msra.mxu0 %v4549
    %4781 = vmatprep.subr.bf16.mxu0 %v4554
    %4782 = vmatpush1.bf16.msra.mxu0 %v4553
    %4783 = vmatprep.subr.bf16.mxu0 %v4558
    %4784 = vmatpush1.bf16.msra.mxu0 %v4557
    %4785 = vmatprep.subr.bf16.mxu0 %v4562
    %4786 = vmatpush1.bf16.msra.mxu0 %v4561
    %4787 = vmatprep.mubr.bf16.mxu0 %v3923
    %4788 = vmatmul.mubr.bf16.gmra.mrb[0].mxu0 %v3922
    %v4789 = vpop.f32.mrb[0].mxu0
    %v4790 = vadd.f32 %v4749, %v4789
    %v4791 = vpop.f32.mrb[0].mxu0
    %v4792 = vadd.f32 %v4751, %v4791
    %v4793 = vpop.f32.mrb[0].mxu0
    %v4794 = vpop.f32.mrb[0].mxu0
    %4795 = vdwg.mxu0
    %4796 = vmatprep.subr.bf16.mxu0 %v4440
    %4797 = vmatpush1.bf16.msra.mxu0 %v4439
    %4798 = vmatprep.subr.bf16.mxu0 %v4444
    %4799 = vmatpush1.bf16.msra.mxu0 %v4443
    %4800 = vmatprep.subr.bf16.mxu0 %v4448
    %4801 = vmatpush1.bf16.msra.mxu0 %v4447
    %4802 = vmatprep.subr.bf16.mxu0 %v4452
    %4803 = vmatpush1.bf16.msra.mxu0 %v4451
    %4804 = vmatprep.subr.bf16.mxu0 %v4456
    %4805 = vmatpush1.bf16.msra.mxu0 %v4455
    %4806 = vmatprep.subr.bf16.mxu0 %v4460
    %4807 = vmatpush1.bf16.msra.mxu0 %v4459
    %4808 = vmatprep.subr.bf16.mxu0 %v4464
    %4809 = vmatpush1.bf16.msra.mxu0 %v4463
    %4810 = vmatprep.subr.bf16.mxu0 %v4468
    %4811 = vmatpush1.bf16.msra.mxu0 %v4467
    %4812 = vmatprep.subr.bf16.mxu0 %v4472
    %4813 = vmatpush1.bf16.msra.mxu0 %v4471
    %4814 = vmatprep.subr.bf16.mxu0 %v4476
    %4815 = vmatpush1.bf16.msra.mxu0 %v4475
    %4816 = vmatprep.subr.bf16.mxu0 %v4480
    %4817 = vmatpush1.bf16.msra.mxu0 %v4479
    %4818 = vmatprep.subr.bf16.mxu0 %v4484
    %4819 = vmatpush1.bf16.msra.mxu0 %v4483
    %4820 = vmatprep.subr.bf16.mxu0 %v4488
    %4821 = vmatpush1.bf16.msra.mxu0 %v4487
    %4822 = vmatprep.subr.bf16.mxu0 %v4492
    %4823 = vmatpush1.bf16.msra.mxu0 %v4491
    %4824 = vmatprep.subr.bf16.mxu0 %v4496
    %4825 = vmatpush1.bf16.msra.mxu0 %v4495
    %4826 = vmatprep.subr.bf16.mxu0 %v4500
    %4827 = vmatpush1.bf16.msra.mxu0 %v4499
    %4828 = vmatprep.mubr.bf16.mxu0 %v3921
    %4829 = vmatmul.mubr.bf16.gmra.mrb[0].mxu0 %v3920
    %v4830 = vpop.f32.mrb[0].mxu0
    %v4831 = vadd.f32 %v4705, %v4830
    %v4832 = vpop.f32.mrb[0].mxu0
    %v4833 = vadd.f32 %v4709, %v4832
    %v4834 = vpop.f32.mrb[0].mxu0
    %v4835 = vpop.f32.mrb[0].mxu0
    %4836 = vdwg.mxu0
    %4837 = vmatprep.subr.bf16.mxu0 %v4504
    %4838 = vmatpush1.bf16.msra.mxu0 %v4503
    %4839 = vmatprep.subr.bf16.mxu0 %v4508
    %4840 = vmatpush1.bf16.msra.mxu0 %v4507
    %4841 = vmatprep.subr.bf16.mxu0 %v4512
    %4842 = vmatpush1.bf16.msra.mxu0 %v4511
    %4843 = vmatprep.subr.bf16.mxu0 %v4516
    %4844 = vmatpush1.bf16.msra.mxu0 %v4515
    %4845 = vmatprep.subr.bf16.mxu0 %v4520
    %4846 = vmatpush1.bf16.msra.mxu0 %v4519
    %4847 = vmatprep.subr.bf16.mxu0 %v4524
    %4848 = vmatpush1.bf16.msra.mxu0 %v4523
    %4849 = vmatprep.subr.bf16.mxu0 %v4528
    %4850 = vmatpush1.bf16.msra.mxu0 %v4527
    %4851 = vmatprep.subr.bf16.mxu0 %v4532
    %4852 = vmatpush1.bf16.msra.mxu0 %v4531
    %4853 = vmatprep.subr.bf16.mxu0 %v4536
    %4854 = vmatpush1.bf16.msra.mxu0 %v4535
    %4855 = vmatprep.subr.bf16.mxu0 %v4540
    %4856 = vmatpush1.bf16.msra.mxu0 %v4539
    %4857 = vmatprep.subr.bf16.mxu0 %v4544
    %4858 = vmatpush1.bf16.msra.mxu0 %v4543
    %4859 = vmatprep.subr.bf16.mxu0 %v4548
    %4860 = vmatpush1.bf16.msra.mxu0 %v4547
    %4861 = vmatprep.subr.bf16.mxu0 %v4552
    %4862 = vmatpush1.bf16.msra.mxu0 %v4551
    %4863 = vmatprep.subr.bf16.mxu0 %v4556
    %4864 = vmatpush1.bf16.msra.mxu0 %v4555
    %4865 = vmatprep.subr.bf16.mxu0 %v4560
    %4866 = vmatpush1.bf16.msra.mxu0 %v4559
    %4867 = vmatprep.subr.bf16.mxu0 %v4564
    %4868 = vmatpush1.bf16.msra.mxu0 %v4563
    %4869 = vmatprep.mubr.bf16.mxu0 %v3923
    %4870 = vmatmul.mubr.bf16.gmra.mrb[0].mxu0 %v3922
    %v4871 = vpop.f32.mrb[0].mxu0
    %v4872 = vadd.f32 %v4831, %v4871
    %v4873 = vpop.f32.mrb[0].mxu0
    %v4874 = vadd.f32 %v4833, %v4873
    %v4875 = vpop.f32.mrb[0].mxu0
    %v4876 = vpop.f32.mrb[0].mxu0
    %4877 = vdwg.mxu0
    %v4878 = vmax.f32 %v4790, 0.0
    %v4879 = vmax.f32 %v4792, 0.0
    %v4880 = vmax.f32 %v4872, 0.0
    %v4881 = vmax.f32 %v4874, 0.0
    %v4882 = vpack.c.bf16 %v3916, %v3916
    %v4883 = vpack.c.bf16 %v3917, %v3917
    %v4884 = vpack.c.bf16 %v3918, %v3918
    %v4885 = vpack.c.bf16 %v3919, %v3919
    %v4886 = vld [vmem:[%s13] sm:$0xf]
    %v4887 = vld [vmem:[%s13 + $0x4] sm:$0xf]
    %v4888 = vld [vmem:[%s13 + $0x8] sm:$0xf]
    %v4889 = vld [vmem:[%s13 + $0xc] sm:$0xf]
    %v4890 = vld [vmem:[%s13 + $0x10] sm:$0xf]
    %v4891 = vld [vmem:[%s13 + $0x14] sm:$0xf]
    %v4892 = vld [vmem:[%s13 + $0x18] sm:$0xf]
    %v4893 = vld [vmem:[%s13 + $0x1c] sm:$0xf]
    %v4894 = vld [vmem:[%s13 + $0x20] sm:$0xf]
    %v4895 = vld [vmem:[%s13 + $0x24] sm:$0xf]
    %v4896 = vld [vmem:[%s13 + $0x28] sm:$0xf]
    %v4897 = vld [vmem:[%s13 + $0x2c] sm:$0xf]
    %v4898 = vld [vmem:[%s13 + $0x30] sm:$0xf]
    %v4899 = vld [vmem:[%s13 + $0x34] sm:$0xf]
    %v4900 = vld [vmem:[%s13 + $0x38] sm:$0xf]
    %v4901 = vld [vmem:[%s13 + $0x3c] sm:$0xf]
    %v4902 = vld [vmem:[%s13 + $0x40] sm:$0xf]
    %v4903 = vld [vmem:[%s13 + $0x44] sm:$0xf]
    %v4904 = vld [vmem:[%s13 + $0x48] sm:$0xf]
    %v4905 = vld [vmem:[%s13 + $0x4c] sm:$0xf]
    %v4906 = vld [vmem:[%s13 + $0x50] sm:$0xf]
    %v4907 = vld [vmem:[%s13 + $0x54] sm:$0xf]
    %v4908 = vld [vmem:[%s13 + $0x58] sm:$0xf]
    %v4909 = vld [vmem:[%s13 + $0x5c] sm:$0xf]
    %v4910 = vld [vmem:[%s13 + $0x60] sm:$0xf]
    %v4911 = vld [vmem:[%s13 + $0x64] sm:$0xf]
    %v4912 = vld [vmem:[%s13 + $0x68] sm:$0xf]
    %v4913 = vld [vmem:[%s13 + $0x6c] sm:$0xf]
    %v4914 = vld [vmem:[%s13 + $0x70] sm:$0xf]
    %v4915 = vld [vmem:[%s13 + $0x74] sm:$0xf]
    %v4916 = vld [vmem:[%s13 + $0x78] sm:$0xf]
    %v4917 = vld [vmem:[%s13 + $0x7c] sm:$0xf]
    %v4918 = vld [vmem:[%s13 + $0x80] sm:$0xf]
    %v4919 = vld [vmem:[%s13 + $0x84] sm:$0xf]
    %v4920 = vld [vmem:[%s13 + $0x88] sm:$0xf]
    %v4921 = vld [vmem:[%s13 + $0x8c] sm:$0xf]
    %v4922 = vld [vmem:[%s13 + $0x90] sm:$0xf]
    %v4923 = vld [vmem:[%s13 + $0x94] sm:$0xf]
    %v4924 = vld [vmem:[%s13 + $0x98] sm:$0xf]
    %v4925 = vld [vmem:[%s13 + $0x9c] sm:$0xf]
    %v4926 = vld [vmem:[%s13 + $0xa0] sm:$0xf]
    %v4927 = vld [vmem:[%s13 + $0xa4] sm:$0xf]
    %v4928 = vld [vmem:[%s13 + $0xa8] sm:$0xf]
    %v4929 = vld [vmem:[%s13 + $0xac] sm:$0xf]
    %v4930 = vld [vmem:[%s13 + $0xb0] sm:$0xf]
    %v4931 = vld [vmem:[%s13 + $0xb4] sm:$0xf]
    %v4932 = vld [vmem:[%s13 + $0xb8] sm:$0xf]
    %v4933 = vld [vmem:[%s13 + $0xbc] sm:$0xf]
    %v4934 = vld [vmem:[%s13 + $0xc0] sm:$0xf]
    %v4935 = vld [vmem:[%s13 + $0xc4] sm:$0xf]
    %v4936 = vld [vmem:[%s13 + $0xc8] sm:$0xf]
    %v4937 = vld [vmem:[%s13 + $0xcc] sm:$0xf]
    %v4938 = vld [vmem:[%s13 + $0xd0] sm:$0xf]
    %v4939 = vld [vmem:[%s13 + $0xd4] sm:$0xf]
    %v4940 = vld [vmem:[%s13 + $0xd8] sm:$0xf]
    %v4941 = vld [vmem:[%s13 + $0xdc] sm:$0xf]
    %v4942 = vld [vmem:[%s13 + $0xe0] sm:$0xf]
    %v4943 = vld [vmem:[%s13 + $0xe4] sm:$0xf]
    %v4944 = vld [vmem:[%s13 + $0xe8] sm:$0xf]
    %v4945 = vld [vmem:[%s13 + $0xec] sm:$0xf]
    %v4946 = vld [vmem:[%s13 + $0xf0] sm:$0xf]
    %v4947 = vld [vmem:[%s13 + $0xf4] sm:$0xf]
    %v4948 = vld [vmem:[%s13 + $0xf8] sm:$0xf]
    %v4949 = vld [vmem:[%s13 + $0xfc] sm:$0xf]
    %v4950 = vld [vmem:[%s14] sm:$0x1]
    %v5015 = vunpack.c.l.b16 %v4886
    %v5016 = vunpack.c.l.b16 %v4887
    %v5017 = vunpack.c.l.b16 %v4888
    %v5018 = vunpack.c.l.b16 %v4889
    %v5019 = vunpack.c.l.b16 %v4890
    %v5020 = vunpack.c.l.b16 %v4891
    %v5021 = vunpack.c.l.b16 %v4892
    %v5022 = vunpack.c.l.b16 %v4893
    %v5023 = vunpack.c.l.b16 %v4894
    %v5024 = vunpack.c.l.b16 %v4895
    %v5025 = vunpack.c.l.b16 %v4896
    %v5026 = vunpack.c.l.b16 %v4897
    %v5027 = vunpack.c.l.b16 %v4898
    %v5028 = vunpack.c.l.b16 %v4899
    %v5029 = vunpack.c.l.b16 %v4900
    %v5030 = vunpack.c.l.b16 %v4901
    %v5031 = vunpack.c.l.b16 %v4902
    %v5032 = vunpack.c.l.b16 %v4903
    %v5033 = vunpack.c.l.b16 %v4904
    %v5034 = vunpack.c.l.b16 %v4905
    %v5035 = vunpack.c.l.b16 %v4906
    %v5036 = vunpack.c.l.b16 %v4907
    %v5037 = vunpack.c.l.b16 %v4908
    %v5038 = vunpack.c.l.b16 %v4909
    %v5039 = vunpack.c.l.b16 %v4910
    %v5040 = vunpack.c.l.b16 %v4911
    %v5041 = vunpack.c.l.b16 %v4912
    %v5042 = vunpack.c.l.b16 %v4913
    %v5043 = vunpack.c.l.b16 %v4914
    %v5044 = vunpack.c.l.b16 %v4915
    %v5045 = vunpack.c.l.b16 %v4916
    %v5046 = vunpack.c.l.b16 %v4917
    %v5047 = vunpack.c.l.b16 %v4918
    %v5048 = vunpack.c.l.b16 %v4919
    %v5049 = vunpack.c.l.b16 %v4920
    %v5050 = vunpack.c.l.b16 %v4921
    %v5051 = vunpack.c.l.b16 %v4922
    %v5052 = vunpack.c.l.b16 %v4923
    %v5053 = vunpack.c.l.b16 %v4924
    %v5054 = vunpack.c.l.b16 %v4925
    %v5055 = vunpack.c.l.b16 %v4926
    %v5056 = vunpack.c.l.b16 %v4927
    %v5057 = vunpack.c.l.b16 %v4928
    %v5058 = vunpack.c.l.b16 %v4929
    %v5059 = vunpack.c.l.b16 %v4930
    %v5060 = vunpack.c.l.b16 %v4931
    %v5061 = vunpack.c.l.b16 %v4932
    %v5062 = vunpack.c.l.b16 %v4933
    %v5063 = vunpack.c.l.b16 %v4934
    %v5064 = vunpack.c.l.b16 %v4935
    %v5065 = vunpack.c.l.b16 %v4936
    %v5066 = vunpack.c.l.b16 %v4937
    %v5067 = vunpack.c.l.b16 %v4938
    %v5068 = vunpack.c.l.b16 %v4939
    %v5069 = vunpack.c.l.b16 %v4940
    %v5070 = vunpack.c.l.b16 %v4941
    %v5071 = vunpack.c.l.b16 %v4942
    %v5072 = vunpack.c.l.b16 %v4943
    %v5073 = vunpack.c.l.b16 %v4944
    %v5074 = vunpack.c.l.b16 %v4945
    %v5075 = vunpack.c.l.b16 %v4946
    %v5076 = vunpack.c.l.b16 %v4947
    %v5077 = vunpack.c.l.b16 %v4948
    %v5078 = vunpack.c.l.b16 %v4949
    %v5079 = vpack.c.b16 %v5016, %v5015
    %v5080 = vpack.c.b16 %v5018, %v5017
    %v5081 = vpack.c.b16 %v5020, %v5019
    %v5082 = vpack.c.b16 %v5022, %v5021
    %v5083 = vpack.c.b16 %v5024, %v5023
    %v5084 = vpack.c.b16 %v5026, %v5025
    %v5085 = vpack.c.b16 %v5028, %v5027
    %v5086 = vpack.c.b16 %v5030, %v5029
    %v5087 = vpack.c.b16 %v5032, %v5031
    %v5088 = vpack.c.b16 %v5034, %v5033
    %v5089 = vpack.c.b16 %v5036, %v5035
    %v5090 = vpack.c.b16 %v5038, %v5037
    %v5091 = vpack.c.b16 %v5040, %v5039
    %v5092 = vpack.c.b16 %v5042, %v5041
    %v5093 = vpack.c.b16 %v5044, %v5043
    %v5094 = vpack.c.b16 %v5046, %v5045
    %v5095 = vpack.c.b16 %v5048, %v5047
    %v5096 = vpack.c.b16 %v5050, %v5049
    %v5097 = vpack.c.b16 %v5052, %v5051
    %v5098 = vpack.c.b16 %v5054, %v5053
    %v5099 = vpack.c.b16 %v5056, %v5055
    %v5100 = vpack.c.b16 %v5058, %v5057
    %v5101 = vpack.c.b16 %v5060, %v5059
    %v5102 = vpack.c.b16 %v5062, %v5061
    %v5103 = vpack.c.b16 %v5064, %v5063
    %v5104 = vpack.c.b16 %v5066, %v5065
    %v5105 = vpack.c.b16 %v5068, %v5067
    %v5106 = vpack.c.b16 %v5070, %v5069
    %v5107 = vpack.c.b16 %v5072, %v5071
    %v5108 = vpack.c.b16 %v5074, %v5073
    %v5109 = vpack.c.b16 %v5076, %v5075
    %v5110 = vpack.c.b16 %v5078, %v5077
    %5143 = vmatprep.subr.bf16.mxu0 0
    %5144 = vmatpush1.bf16.msra.mxu0 %v5079
    %5145 = vmatprep.subr.bf16.mxu0 0
    %5146 = vmatpush1.bf16.msra.mxu0 %v5080
    %5147 = vmatprep.subr.bf16.mxu0 0
    %5148 = vmatpush1.bf16.msra.mxu0 %v5081
    %5149 = vmatprep.subr.bf16.mxu0 0
    %5150 = vmatpush1.bf16.msra.mxu0 %v5082
    %5151 = vmatprep.subr.bf16.mxu0 0
    %5152 = vmatpush1.bf16.msra.mxu0 %v5083
    %5153 = vmatprep.subr.bf16.mxu0 0
    %5154 = vmatpush1.bf16.msra.mxu0 %v5084
    %5155 = vmatprep.subr.bf16.mxu0 0
    %5156 = vmatpush1.bf16.msra.mxu0 %v5085
    %5157 = vmatprep.subr.bf16.mxu0 0
    %5158 = vmatpush1.bf16.msra.mxu0 %v5086
    %5159 = vmatprep.subr.bf16.mxu0 0
    %5160 = vmatpush1.bf16.msra.mxu0 %v5087
    %5161 = vmatprep.subr.bf16.mxu0 0
    %5162 = vmatpush1.bf16.msra.mxu0 %v5088
    %5163 = vmatprep.subr.bf16.mxu0 0
    %5164 = vmatpush1.bf16.msra.mxu0 %v5089
    %5165 = vmatprep.subr.bf16.mxu0 0
    %5166 = vmatpush1.bf16.msra.mxu0 %v5090
    %5167 = vmatprep.subr.bf16.mxu0 0
    %5168 = vmatpush1.bf16.msra.mxu0 %v5091
    %5169 = vmatprep.subr.bf16.mxu0 0
    %5170 = vmatpush1.bf16.msra.mxu0 %v5092
    %5171 = vmatprep.subr.bf16.mxu0 0
    %5172 = vmatpush1.bf16.msra.mxu0 %v5093
    %5173 = vmatprep.subr.bf16.mxu0 0
    %5174 = vmatpush1.bf16.msra.mxu0 %v5094
    %5175 = vmatprep.mubr.bf16.mxu0 %v4883
    %5176 = vmatmul.mubr.bf16.gmra.mrb[0].mxu0 %v4882
    %v5177 = vpop.f32.mrb[0].mxu0
    %v5178 = vadd.f32 %v4950, %v5177
    %v5179 = vpop.f32.mrb[0].mxu0
    %v5180 = vpop.f32.mrb[0].mxu0
    %v5181 = vpop.f32.mrb[0].mxu0
    %5182 = vdwg.mxu0
    %5183 = vmatprep.subr.bf16.mxu0 0
    %5184 = vmatpush1.bf16.msra.mxu0 %v5095
    %5185 = vmatprep.subr.bf16.mxu0 0
    %5186 = vmatpush1.bf16.msra.mxu0 %v5096
    %5187 = vmatprep.subr.bf16.mxu0 0
    %5188 = vmatpush1.bf16.msra.mxu0 %v5097
    %5189 = vmatprep.subr.bf16.mxu0 0
    %5190 = vmatpush1.bf16.msra.mxu0 %v5098
    %5191 = vmatprep.subr.bf16.mxu0 0
    %5192 = vmatpush1.bf16.msra.mxu0 %v5099
    %5193 = vmatprep.subr.bf16.mxu0 0
    %5194 = vmatpush1.bf16.msra.mxu0 %v5100
    %5195 = vmatprep.subr.bf16.mxu0 0
    %5196 = vmatpush1.bf16.msra.mxu0 %v5101
    %5197 = vmatprep.subr.bf16.mxu0 0
    %5198 = vmatpush1.bf16.msra.mxu0 %v5102
    %5199 = vmatprep.subr.bf16.mxu0 0
    %5200 = vmatpush1.bf16.msra.mxu0 %v5103
    %5201 = vmatprep.subr.bf16.mxu0 0
    %5202 = vmatpush1.bf16.msra.mxu0 %v5104
    %5203 = vmatprep.subr.bf16.mxu0 0
    %5204 = vmatpush1.bf16.msra.mxu0 %v5105
    %5205 = vmatprep.subr.bf16.mxu0 0
    %5206 = vmatpush1.bf16.msra.mxu0 %v5106
    %5207 = vmatprep.subr.bf16.mxu0 0
    %5208 = vmatpush1.bf16.msra.mxu0 %v5107
    %5209 = vmatprep.subr.bf16.mxu0 0
    %5210 = vmatpush1.bf16.msra.mxu0 %v5108
    %5211 = vmatprep.subr.bf16.mxu0 0
    %5212 = vmatpush1.bf16.msra.mxu0 %v5109
    %5213 = vmatprep.subr.bf16.mxu0 0
    %5214 = vmatpush1.bf16.msra.mxu0 %v5110
    %5215 = vmatprep.mubr.bf16.mxu0 %v4885
    %5216 = vmatmul.mubr.bf16.gmra.mrb[0].mxu0 %v4884
    %v5217 = vpop.f32.mrb[0].mxu0
    %v5218 = vadd.f32 %v5178, %v5217
    %v5219 = vpop.f32.mrb[0].mxu0
    %v5220 = vpop.f32.mrb[0].mxu0
    %v5221 = vpop.f32.mrb[0].mxu0
    %5222 = vdwg.mxu0
    %v5223 = vpack.c.bf16 %v4878, %v4878
    %v5224 = vpack.c.bf16 %v4879, %v4879
    %v5225 = vpack.c.bf16 %v4880, %v4880
    %v5226 = vpack.c.bf16 %v4881, %v4881
    %v5227 = vld [vmem:[%s15] sm:$0xf]
    %v5228 = vld [vmem:[%s15 + $0x4] sm:$0xf]
    %v5229 = vld [vmem:[%s15 + $0x8] sm:$0xf]
    %v5230 = vld [vmem:[%s15 + $0xc] sm:$0xf]
    %v5231 = vld [vmem:[%s15 + $0x10] sm:$0xf]
    %v5232 = vld [vmem:[%s15 + $0x14] sm:$0xf]
    %v5233 = vld [vmem:[%s15 + $0x18] sm:$0xf]
    %v5234 = vld [vmem:[%s15 + $0x1c] sm:$0xf]
    %v5235 = vld [vmem:[%s15 + $0x20] sm:$0xf]
    %v5236 = vld [vmem:[%s15 + $0x24] sm:$0xf]
    %v5237 = vld [vmem:[%s15 + $0x28] sm:$0xf]
    %v5238 = vld [vmem:[%s15 + $0x2c] sm:$0xf]
    %v5239 = vld [vmem:[%s15 + $0x30] sm:$0xf]
    %v5240 = vld [vmem:[%s15 + $0x34] sm:$0xf]
    %v5241 = vld [vmem:[%s15 + $0x38] sm:$0xf]
    %v5242 = vld [vmem:[%s15 + $0x3c] sm:$0xf]
    %v5243 = vld [vmem:[%s15 + $0x40] sm:$0xf]
    %v5244 = vld [vmem:[%s15 + $0x44] sm:$0xf]
    %v5245 = vld [vmem:[%s15 + $0x48] sm:$0xf]
    %v5246 = vld [vmem:[%s15 + $0x4c] sm:$0xf]
    %v5247 = vld [vmem:[%s15 + $0x50] sm:$0xf]
    %v5248 = vld [vmem:[%s15 + $0x54] sm:$0xf]
    %v5249 = vld [vmem:[%s15 + $0x58] sm:$0xf]
    %v5250 = vld [vmem:[%s15 + $0x5c] sm:$0xf]
    %v5251 = vld [vmem:[%s15 + $0x60] sm:$0xf]
    %v5252 = vld [vmem:[%s15 + $0x64] sm:$0xf]
    %v5253 = vld [vmem:[%s15 + $0x68] sm:$0xf]
    %v5254 = vld [vmem:[%s15 + $0x6c] sm:$0xf]
    %v5255 = vld [vmem:[%s15 + $0x70] sm:$0xf]
    %v5256 = vld [vmem:[%s15 + $0x74] sm:$0xf]
    %v5257 = vld [vmem:[%s15 + $0x78] sm:$0xf]
    %v5258 = vld [vmem:[%s15 + $0x7c] sm:$0xf]
    %v5259 = vld [vmem:[%s15 + $0x80] sm:$0xf]
    %v5260 = vld [vmem:[%s15 + $0x84] sm:$0xf]
    %v5261 = vld [vmem:[%s15 + $0x88] sm:$0xf]
    %v5262 = vld [vmem:[%s15 + $0x8c] sm:$0xf]
    %v5263 = vld [vmem:[%s15 + $0x90] sm:$0xf]
    %v5264 = vld [vmem:[%s15 + $0x94] sm:$0xf]
    %v5265 = vld [vmem:[%s15 + $0x98] sm:$0xf]
    %v5266 = vld [vmem:[%s15 + $0x9c] sm:$0xf]
    %v5267 = vld [vmem:[%s15 + $0xa0] sm:$0xf]
    %v5268 = vld [vmem:[%s15 + $0xa4] sm:$0xf]
    %v5269 = vld [vmem:[%s15 + $0xa8] sm:$0xf]
    %v5270 = vld [vmem:[%s15 + $0xac] sm:$0xf]
    %v5271 = vld [vmem:[%s15 + $0xb0] sm:$0xf]
    %v5272 = vld [vmem:[%s15 + $0xb4] sm:$0xf]
    %v5273 = vld [vmem:[%s15 + $0xb8] sm:$0xf]
    %v5274 = vld [vmem:[%s15 + $0xbc] sm:$0xf]
    %v5275 = vld [vmem:[%s15 + $0xc0] sm:$0xf]
    %v5276 = vld [vmem:[%s15 + $0xc4] sm:$0xf]
    %v5277 = vld [vmem:[%s15 + $0xc8] sm:$0xf]
    %v5278 = vld [vmem:[%s15 + $0xcc] sm:$0xf]
    %v5279 = vld [vmem:[%s15 + $0xd0] sm:$0xf]
    %v5280 = vld [vmem:[%s15 + $0xd4] sm:$0xf]
    %v5281 = vld [vmem:[%s15 + $0xd8] sm:$0xf]
    %v5282 = vld [vmem:[%s15 + $0xdc] sm:$0xf]
    %v5283 = vld [vmem:[%s15 + $0xe0] sm:$0xf]
    %v5284 = vld [vmem:[%s15 + $0xe4] sm:$0xf]
    %v5285 = vld [vmem:[%s15 + $0xe8] sm:$0xf]
    %v5286 = vld [vmem:[%s15 + $0xec] sm:$0xf]
    %v5287 = vld [vmem:[%s15 + $0xf0] sm:$0xf]
    %v5288 = vld [vmem:[%s15 + $0xf4] sm:$0xf]
    %v5289 = vld [vmem:[%s15 + $0xf8] sm:$0xf]
    %v5290 = vld [vmem:[%s15 + $0xfc] sm:$0xf]
    %v5355 = vunpack.c.l.b16 %v5227
    %v5356 = vunpack.c.l.b16 %v5228
    %v5357 = vunpack.c.l.b16 %v5229
    %v5358 = vunpack.c.l.b16 %v5230
    %v5359 = vunpack.c.l.b16 %v5231
    %v5360 = vunpack.c.l.b16 %v5232
    %v5361 = vunpack.c.l.b16 %v5233
    %v5362 = vunpack.c.l.b16 %v5234
    %v5363 = vunpack.c.l.b16 %v5235
    %v5364 = vunpack.c.l.b16 %v5236
    %v5365 = vunpack.c.l.b16 %v5237
    %v5366 = vunpack.c.l.b16 %v5238
    %v5367 = vunpack.c.l.b16 %v5239
    %v5368 = vunpack.c.l.b16 %v5240
    %v5369 = vunpack.c.l.b16 %v5241
    %v5370 = vunpack.c.l.b16 %v5242
    %v5371 = vunpack.c.l.b16 %v5243
    %v5372 = vunpack.c.l.b16 %v5244
    %v5373 = vunpack.c.l.b16 %v5245
    %v5374 = vunpack.c.l.b16 %v5246
    %v5375 = vunpack.c.l.b16 %v5247
    %v5376 = vunpack.c.l.b16 %v5248
    %v5377 = vunpack.c.l.b16 %v5249
    %v5378 = vunpack.c.l.b16 %v5250
    %v5379 = vunpack.c.l.b16 %v5251
    %v5380 = vunpack.c.l.b16 %v5252
    %v5381 = vunpack.c.l.b16 %v5253
    %v5382 = vunpack.c.l.b16 %v5254
    %v5383 = vunpack.c.l.b16 %v5255
    %v5384 = vunpack.c.l.b16 %v5256
    %v5385 = vunpack.c.l.b16 %v5257
    %v5386 = vunpack.c.l.b16 %v5258
    %v5387 = vunpack.c.l.b16 %v5259
    %v5388 = vunpack.c.l.b16 %v5260
    %v5389 = vunpack.c.l.b16 %v5261
    %v5390 = vunpack.c.l.b16 %v5262
    %v5391 = vunpack.c.l.b16 %v5263
    %v5392 = vunpack.c.l.b16 %v5264
    %v5393 = vunpack.c.l.b16 %v5265
    %v5394 = vunpack.c.l.b16 %v5266
    %v5395 = vunpack.c.l.b16 %v5267
    %v5396 = vunpack.c.l.b16 %v5268
    %v5397 = vunpack.c.l.b16 %v5269
    %v5398 = vunpack.c.l.b16 %v5270
    %v5399 = vunpack.c.l.b16 %v5271
    %v5400 = vunpack.c.l.b16 %v5272
    %v5401 = vunpack.c.l.b16 %v5273
    %v5402 = vunpack.c.l.b16 %v5274
    %v5403 = vunpack.c.l.b16 %v5275
    %v5404 = vunpack.c.l.b16 %v5276
    %v5405 = vunpack.c.l.b16 %v5277
    %v5406 = vunpack.c.l.b16 %v5278
    %v5407 = vunpack.c.l.b16 %v5279
    %v5408 = vunpack.c.l.b16 %v5280
    %v5409 = vunpack.c.l.b16 %v5281
    %v5410 = vunpack.c.l.b16 %v5282
    %v5411 = vunpack.c.l.b16 %v5283
    %v5412 = vunpack.c.l.b16 %v5284
    %v5413 = vunpack.c.l.b16 %v5285
    %v5414 = vunpack.c.l.b16 %v5286
    %v5415 = vunpack.c.l.b16 %v5287
    %v5416 = vunpack.c.l.b16 %v5288
    %v5417 = vunpack.c.l.b16 %v5289
    %v5418 = vunpack.c.l.b16 %v5290
    %v5419 = vpack.c.b16 %v5356, %v5355
    %v5420 = vpack.c.b16 %v5358, %v5357
    %v5421 = vpack.c.b16 %v5360, %v5359
    %v5422 = vpack.c.b16 %v5362, %v5361
    %v5423 = vpack.c.b16 %v5364, %v5363
    %v5424 = vpack.c.b16 %v5366, %v5365
    %v5425 = vpack.c.b16 %v5368, %v5367
    %v5426 = vpack.c.b16 %v5370, %v5369
    %v5427 = vpack.c.b16 %v5372, %v5371
    %v5428 = vpack.c.b16 %v5374, %v5373
    %v5429 = vpack.c.b16 %v5376, %v5375
    %v5430 = vpack.c.b16 %v5378, %v5377
    %v5431 = vpack.c.b16 %v5380, %v5379
    %v5432 = vpack.c.b16 %v5382, %v5381
    %v5433 = vpack.c.b16 %v5384, %v5383
    %v5434 = vpack.c.b16 %v5386, %v5385
    %v5435 = vpack.c.b16 %v5388, %v5387
    %v5436 = vpack.c.b16 %v5390, %v5389
    %v5437 = vpack.c.b16 %v5392, %v5391
    %v5438 = vpack.c.b16 %v5394, %v5393
    %v5439 = vpack.c.b16 %v5396, %v5395
    %v5440 = vpack.c.b16 %v5398, %v5397
    %v5441 = vpack.c.b16 %v5400, %v5399
    %v5442 = vpack.c.b16 %v5402, %v5401
    %v5443 = vpack.c.b16 %v5404, %v5403
    %v5444 = vpack.c.b16 %v5406, %v5405
    %v5445 = vpack.c.b16 %v5408, %v5407
    %v5446 = vpack.c.b16 %v5410, %v5409
    %v5447 = vpack.c.b16 %v5412, %v5411
    %v5448 = vpack.c.b16 %v5414, %v5413
    %v5449 = vpack.c.b16 %v5416, %v5415
    %v5450 = vpack.c.b16 %v5418, %v5417
    %5483 = vmatprep.subr.bf16.mxu0 0
    %5484 = vmatpush1.bf16.msra.mxu0 %v5419
    %5485 = vmatprep.subr.bf16.mxu0 0
    %5486 = vmatpush1.bf16.msra.mxu0 %v5420
    %5487 = vmatprep.subr.bf16.mxu0 0
    %5488 = vmatpush1.bf16.msra.mxu0 %v5421
    %5489 = vmatprep.subr.bf16.mxu0 0
    %5490 = vmatpush1.bf16.msra.mxu0 %v5422
    %5491 = vmatprep.subr.bf16.mxu0 0
    %5492 = vmatpush1.bf16.msra.mxu0 %v5423
    %5493 = vmatprep.subr.bf16.mxu0 0
    %5494 = vmatpush1.bf16.msra.mxu0 %v5424
    %5495 = vmatprep.subr.bf16.mxu0 0
    %5496 = vmatpush1.bf16.msra.mxu0 %v5425
    %5497 = vmatprep.subr.bf16.mxu0 0
    %5498 = vmatpush1.bf16.msra.mxu0 %v5426
    %5499 = vmatprep.subr.bf16.mxu0 0
    %5500 = vmatpush1.bf16.msra.mxu0 %v5427
    %5501 = vmatprep.subr.bf16.mxu0 0
    %5502 = vmatpush1.bf16.msra.mxu0 %v5428
    %5503 = vmatprep.subr.bf16.mxu0 0
    %5504 = vmatpush1.bf16.msra.mxu0 %v5429
    %5505 = vmatprep.subr.bf16.mxu0 0
    %5506 = vmatpush1.bf16.msra.mxu0 %v5430
    %5507 = vmatprep.subr.bf16.mxu0 0
    %5508 = vmatpush1.bf16.msra.mxu0 %v5431
    %5509 = vmatprep.subr.bf16.mxu0 0
    %5510 = vmatpush1.bf16.msra.mxu0 %v5432
    %5511 = vmatprep.subr.bf16.mxu0 0
    %5512 = vmatpush1.bf16.msra.mxu0 %v5433
    %5513 = vmatprep.subr.bf16.mxu0 0
    %5514 = vmatpush1.bf16.msra.mxu0 %v5434
    %5515 = vmatprep.mubr.bf16.mxu0 %v5224
    %5516 = vmatmul.mubr.bf16.gmra.mrb[0].mxu0 %v5223
    %v5517 = vpop.f32.mrb[0].mxu0
    %v5518 = vadd.f32 0.0, %v5517
    %v5519 = vpop.f32.mrb[0].mxu0
    %v5520 = vpop.f32.mrb[0].mxu0
    %v5521 = vpop.f32.mrb[0].mxu0
    %5522 = vdwg.mxu0
    %5523 = vmatprep.subr.bf16.mxu0 0
    %5524 = vmatpush1.bf16.msra.mxu0 %v5435
    %5525 = vmatprep.subr.bf16.mxu0 0
    %5526 = vmatpush1.bf16.msra.mxu0 %v5436
    %5527 = vmatprep.subr.bf16.mxu0 0
    %5528 = vmatpush1.bf16.msra.mxu0 %v5437
    %5529 = vmatprep.subr.bf16.mxu0 0
    %5530 = vmatpush1.bf16.msra.mxu0 %v5438
    %5531 = vmatprep.subr.bf16.mxu0 0
    %5532 = vmatpush1.bf16.msra.mxu0 %v5439
    %5533 = vmatprep.subr.bf16.mxu0 0
    %5534 = vmatpush1.bf16.msra.mxu0 %v5440
    %5535 = vmatprep.subr.bf16.mxu0 0
    %5536 = vmatpush1.bf16.msra.mxu0 %v5441
    %5537 = vmatprep.subr.bf16.mxu0 0
    %5538 = vmatpush1.bf16.msra.mxu0 %v5442
    %5539 = vmatprep.subr.bf16.mxu0 0
    %5540 = vmatpush1.bf16.msra.mxu0 %v5443
    %5541 = vmatprep.subr.bf16.mxu0 0
    %5542 = vmatpush1.bf16.msra.mxu0 %v5444
    %5543 = vmatprep.subr.bf16.mxu0 0
    %5544 = vmatpush1.bf16.msra.mxu0 %v5445
    %5545 = vmatprep.subr.bf16.mxu0 0
    %5546 = vmatpush1.bf16.msra.mxu0 %v5446
    %5547 = vmatprep.subr.bf16.mxu0 0
    %5548 = vmatpush1.bf16.msra.mxu0 %v5447
    %5549 = vmatprep.subr.bf16.mxu0 0
    %5550 = vmatpush1.bf16.msra.mxu0 %v5448
    %5551 = vmatprep.subr.bf16.mxu0 0
    %5552 = vmatpush1.bf16.msra.mxu0 %v5449
    %5553 = vmatprep.subr.bf16.mxu0 0
    %5554 = vmatpush1.bf16.msra.mxu0 %v5450
    %5555 = vmatprep.mubr.bf16.mxu0 %v5226
    %5556 = vmatmul.mubr.bf16.gmra.mrb[0].mxu0 %v5225
    %v5557 = vpop.f32.mrb[0].mxu0
    %v5558 = vadd.f32 %v5518, %v5557
    %v5559 = vpop.f32.mrb[0].mxu0
    %v5560 = vpop.f32.mrb[0].mxu0
    %v5561 = vpop.f32.mrb[0].mxu0
    %5562 = vdwg.mxu0
    %v5563 = vadd.f32 %v5218, %v5558
    %v5564 = vld [vmem:[%s16] sm:$0x1]
    %v5565 = vadd.f32 %v5563, %v5564
    %vm5566 = vcmask 90112
    %5567 = vst.msk [vmem:[#allocation2] sm:$0x1] %vm5566, %v5565
    // Predicated region
    $region70: #{_lambda_.2} parent=1 // pred_check
      _
    $region71: #{_lambda_.2} parent=1 // pred_check_branch
      %5569 = sbr.rel (0) target = $region73
    $region72: #{_lambda_.2} parent=1 // pred_region
      %s5571 = ssub.s32 16, 16
      %5572 = vsyncadd [#allocation3], %s5571
      %s5574 = sshll.u32 [#allocation2], 4
      %s5575 = int_to_ptr.vmem [resolvable:$true] %s5574
      %5577 = dma.vmem_to_hbm [thread:$0]  %s5575, 16, %s17, [#allocation3]
    $region73: #{_lambda_.2} parent=1 // pred_fallthru
      _
    // Predicated region
    $region74: #{_lambda_.2} parent=1 // pred_check
      _
    $region75: #{_lambda_.2} parent=1 // pred_check_branch
      %5579 = sbr.rel (0) target = $region77
    $region76: #{_lambda_.2} parent=1 // pred_region
      %5580 = dma.done [#allocation3], 16
    $region77: #{_lambda_.2} parent=1 // pred_fallthru
      _
    %5581 = vsyncpa [#allocation3], 1

// kernel: _lambda_.3
$region0: #{_lambda_.3}
  #allocation0 [shape = 'u32[]', space=smem, size = 0x4, offset = 0x4, fixed_abs, tag = 'smem constant byte address 0x4 - core index']
  #allocation1 [shape = 'u32[144,128]{1,0:T(1,128)}', space=vmem, size = 0x12000, scoped, tag = 'internal scratch']
  %s0 = inlined_call_operand.vmem [shape: f32[16,128], index: 0, kind: input, shape index: {}]
  %s1 = inlined_call_operand.vmem [shape: bf16[4,32,16], index: 1, kind: input, shape index: {}]
  %s2 = inlined_call_operand.vmem [shape: bf16[4,128,256], index: 2, kind: input, shape index: {}]
  %s3 = inlined_call_operand.vmem [shape: f32[1,256], index: 3, kind: input, shape index: {}]
  %s4 = inlined_call_operand.vmem [shape: f32[1,256], index: 4, kind: input, shape index: {}]
  %s5 = inlined_call_operand.vmem [shape: bf16[4,64,32], index: 5, kind: input, shape index: {}]
  %s6 = inlined_call_operand.vmem [shape: bf16[4,256,512], index: 6, kind: input, shape index: {}]
  %s7 = inlined_call_operand.vmem [shape: f32[1,512], index: 7, kind: input, shape index: {}]
  %s8 = inlined_call_operand.vmem [shape: f32[1,512], index: 8, kind: input, shape index: {}]
  %s9 = inlined_call_operand.vmem [shape: bf16[3,64,64], index: 9, kind: input, shape index: {}]
  %s10 = inlined_call_operand.vmem [shape: bf16[3,512,256], index: 10, kind: input, shape index: {}]
  %s11 = inlined_call_operand.vmem [shape: f32[1,256], index: 11, kind: input, shape index: {}]
  %s12 = inlined_call_operand.vmem [shape: f32[1,256], index: 12, kind: input, shape index: {}]
  %s13 = inlined_call_operand.vmem [shape: bf16[128,64], index: 13, kind: input, shape index: {}]
  %s14 = inlined_call_operand.vmem [shape: bf16[256,512], index: 14, kind: input, shape index: {}]
  %s15 = inlined_call_operand.vmem [shape: f32[128,512], index: 15, kind: output, shape index: {}]
  %s16 = sld [smem:[#allocation0]]
  $region70: #{_lambda_.3} parent=0
    _
  %s18 = ssub.s32 1, %s16
  %s19 = scalar_select 0, %s18, %s16
  // Predicated region
  $region2: #{_lambda_.3} parent=0 // pred_check
    _
  $region3: #{_lambda_.3} parent=0 // pred_check_branch
    %21 = sbr.rel (0) target = $region5
  $region4: #{_lambda_.3} parent=0 // pred_region
    _
  $region5: #{_lambda_.3} parent=0 // pred_fallthru
    _
  // Predicated region
  $region6: #{_lambda_.3} parent=0 // pred_check
    _
  $region7: #{_lambda_.3} parent=0 // pred_check_branch
    %23 = sbr.rel (0) target = $region9
  $region8: #{_lambda_.3} parent=0 // pred_region
    _
  $region9: #{_lambda_.3} parent=0 // pred_fallthru
    _
  // Predicated region
  $region10: #{_lambda_.3} parent=0 // pred_check
    _
  $region11: #{_lambda_.3} parent=0 // pred_check_branch
    %25 = sbr.rel (0) target = $region13
  $region12: #{_lambda_.3} parent=0 // pred_region
    _
  $region13: #{_lambda_.3} parent=0 // pred_fallthru
    _
  // Predicated region
  $region14: #{_lambda_.3} parent=0 // pred_check
    _
  $region15: #{_lambda_.3} parent=0 // pred_check_branch
    %27 = sbr.rel (0) target = $region17
  $region16: #{_lambda_.3} parent=0 // pred_region
    _
  $region17: #{_lambda_.3} parent=0 // pred_fallthru
    _
  // Predicated region
  $region18: #{_lambda_.3} parent=0 // pred_check
    _
  $region19: #{_lambda_.3} parent=0 // pred_check_branch
    %29 = sbr.rel (0) target = $region21
  $region20: #{_lambda_.3} parent=0 // pred_region
    _
  $region21: #{_lambda_.3} parent=0 // pred_fallthru
    _
  // Predicated region
  $region22: #{_lambda_.3} parent=0 // pred_check
    _
  $region23: #{_lambda_.3} parent=0 // pred_check_branch
    %31 = sbr.rel (0) target = $region25
  $region24: #{_lambda_.3} parent=0 // pred_region
    _
  $region25: #{_lambda_.3} parent=0 // pred_fallthru
    _
  // Predicated region
  $region26: #{_lambda_.3} parent=0 // pred_check
    _
  $region27: #{_lambda_.3} parent=0 // pred_check_branch
    %33 = sbr.rel (0) target = $region29
  $region28: #{_lambda_.3} parent=0 // pred_region
    _
  $region29: #{_lambda_.3} parent=0 // pred_fallthru
    _
  // Predicated region
  $region30: #{_lambda_.3} parent=0 // pred_check
    _
  $region31: #{_lambda_.3} parent=0 // pred_check_branch
    %35 = sbr.rel (0) target = $region33
  $region32: #{_lambda_.3} parent=0 // pred_region
    _
  $region33: #{_lambda_.3} parent=0 // pred_fallthru
    _
  // Predicated region
  $region34: #{_lambda_.3} parent=0 // pred_check
    _
  $region35: #{_lambda_.3} parent=0 // pred_check_branch
    %37 = sbr.rel (0) target = $region37
  $region36: #{_lambda_.3} parent=0 // pred_region
    _
  $region37: #{_lambda_.3} parent=0 // pred_fallthru
    _
  // Predicated region
  $region38: #{_lambda_.3} parent=0 // pred_check
    _
  $region39: #{_lambda_.3} parent=0 // pred_check_branch
    %39 = sbr.rel (0) target = $region41
  $region40: #{_lambda_.3} parent=0 // pred_region
    _
  $region41: #{_lambda_.3} parent=0 // pred_fallthru
    _
  // Predicated region
  $region42: #{_lambda_.3} parent=0 // pred_check
    _
  $region43: #{_lambda_.3} parent=0 // pred_check_branch
    %41 = sbr.rel (0) target = $region45
  $region44: #{_lambda_.3} parent=0 // pred_region
    _
  $region45: #{_lambda_.3} parent=0 // pred_fallthru
    _
  // Predicated region
  $region46: #{_lambda_.3} parent=0 // pred_check
    _
  $region47: #{_lambda_.3} parent=0 // pred_check_branch
    %43 = sbr.rel (0) target = $region49
  $region48: #{_lambda_.3} parent=0 // pred_region
    _
  $region49: #{_lambda_.3} parent=0 // pred_fallthru
    _
  // Predicated region
  $region50: #{_lambda_.3} parent=0 // pred_check
    _
  $region51: #{_lambda_.3} parent=0 // pred_check_branch
    %45 = sbr.rel (0) target = $region53
  $region52: #{_lambda_.3} parent=0 // pred_region
    _
  $region53: #{_lambda_.3} parent=0 // pred_fallthru
    _
  // Predicated region
  $region54: #{_lambda_.3} parent=0 // pred_check
    _
  $region55: #{_lambda_.3} parent=0 // pred_check_branch
    %47 = sbr.rel (0) target = $region57
  $region56: #{_lambda_.3} parent=0 // pred_region
    _
  $region57: #{_lambda_.3} parent=0 // pred_fallthru
    _
  // Predicated region
  $region58: #{_lambda_.3} parent=0 // pred_check
    _
  $region59: #{_lambda_.3} parent=0 // pred_check_branch
    %49 = sbr.rel (0) target = $region61
  $region60: #{_lambda_.3} parent=0 // pred_region
    _
  $region61: #{_lambda_.3} parent=0 // pred_fallthru
    _
  %v51 = vld [vmem:[%s0] sm:$0xff]
  %v52 = vld [vmem:[%s0 + $0x8] sm:$0xff]
  %v53 = vpack.c.bf16 %v52, %v51
  %v54 = vld [vmem:[%s1] sm:$0xf]
  %v55 = vld [vmem:[%s1 + $0x4] sm:$0xf]
  %v56 = vld [vmem:[%s1 + $0x8] sm:$0xf]
  %v57 = vld [vmem:[%s1 + $0xc] sm:$0xf]
  %v62 = vunpack.c.l.b16 %v54
  %v63 = vunpack.c.l.b16 %v55
  %v64 = vunpack.c.l.b16 %v56
  %v65 = vunpack.c.l.b16 %v57
  %v66 = vpack.c.b16 %v63, %v62
  %v67 = vpack.c.b16 %v65, %v64
  %vm68 = vcmask 130048
  %v70 = vsel %vm68, %v66, 0
  %v73 = vsel %vm68, %v67, 0
  %75 = vmatprep.subr.bf16.mxu0 0
  %76 = vmatpush1.bf16.msra.mxu0 %v53
  %77 = vmatprep.subr.bf16.mxu0 0
  %78 = vmatpush1.bf16.msra.mxu0 0
  %79 = vmatprep.subr.bf16.mxu0 0
  %80 = vmatpush1.bf16.msra.mxu0 0
  %81 = vmatprep.subr.bf16.mxu0 0
  %82 = vmatpush1.bf16.msra.mxu0 0
  %83 = vmatprep.subr.bf16.mxu0 0
  %84 = vmatpush1.bf16.msra.mxu0 0
  %85 = vmatprep.subr.bf16.mxu0 0
  %86 = vmatpush1.bf16.msra.mxu0 0
  %87 = vmatprep.subr.bf16.mxu0 0
  %88 = vmatpush1.bf16.msra.mxu0 0
  %89 = vmatprep.subr.bf16.mxu0 0
  %90 = vmatpush1.bf16.msra.mxu0 0
  %91 = vmatprep.subr.bf16.mxu0 0
  %92 = vmatpush1.bf16.msra.mxu0 0
  %93 = vmatprep.subr.bf16.mxu0 0
  %94 = vmatpush1.bf16.msra.mxu0 0
  %95 = vmatprep.subr.bf16.mxu0 0
  %96 = vmatpush1.bf16.msra.mxu0 0
  %97 = vmatprep.subr.bf16.mxu0 0
  %98 = vmatpush1.bf16.msra.mxu0 0
  %99 = vmatprep.subr.bf16.mxu0 0
  %100 = vmatpush1.bf16.msra.mxu0 0
  %101 = vmatprep.subr.bf16.mxu0 0
  %102 = vmatpush1.bf16.msra.mxu0 0
  %103 = vmatprep.subr.bf16.mxu0 0
  %104 = vmatpush1.bf16.msra.mxu0 0
  %105 = vmatprep.subr.bf16.mxu0 0
  %106 = vmatpush1.bf16.msra.mxu0 0
  %107 = vmatprep.mubr.bf16.mxu0 0
  %108 = vmatmul.mubr.bf16.gmra.mrb[0].mxu0 %v70
  %v109 = vpop.f32.mrb[0].mxu0
  %v110 = vadd.f32 0.0, %v109
  %v111 = vpop.f32.mrb[0].mxu0
  %v112 = vpop.f32.mrb[0].mxu0
  %v113 = vadd.f32 0.0, %v112
  %v114 = vpop.f32.mrb[0].mxu0
  %115 = vmatprep.mubr.bf16.mxu0 0
  %116 = vmatmul.mubr.bf16.gmra.mrb[0].mxu0 %v73
  %v117 = vpop.f32.mrb[0].mxu0
  %v118 = vadd.f32 0.0, %v117
  %v119 = vpop.f32.mrb[0].mxu0
  %v120 = vpop.f32.mrb[0].mxu0
  %v121 = vadd.f32 0.0, %v120
  %v122 = vpop.f32.mrb[0].mxu0
  %123 = vdwg.mxu0
  %v124 = vpack.c.bf16 %v113, %v110
  %v125 = vpack.c.bf16 %v121, %v118
  %v126 = vld [vmem:[%s2] sm:$0xff]
  %v127 = vld [vmem:[%s2 + $0x8] sm:$0xff]
  %v128 = vld [vmem:[%s2 + $0x10] sm:$0xff]
  %v129 = vld [vmem:[%s2 + $0x18] sm:$0xff]
  %v130 = vld [vmem:[%s2 + $0x20] sm:$0xff]
  %v131 = vld [vmem:[%s2 + $0x28] sm:$0xff]
  %v132 = vld [vmem:[%s2 + $0x30] sm:$0xff]
  %v133 = vld [vmem:[%s2 + $0x38] sm:$0xff]
  %v134 = vld [vmem:[%s2 + $0x40] sm:$0xff]
  %v135 = vld [vmem:[%s2 + $0x48] sm:$0xff]
  %v136 = vld [vmem:[%s2 + $0x50] sm:$0xff]
  %v137 = vld [vmem:[%s2 + $0x58] sm:$0xff]
  %v138 = vld [vmem:[%s2 + $0x60] sm:$0xff]
  %v139 = vld [vmem:[%s2 + $0x68] sm:$0xff]
  %v140 = vld [vmem:[%s2 + $0x70] sm:$0xff]
  %v141 = vld [vmem:[%s2 + $0x78] sm:$0xff]
  %s142 = scalar_lea.vmem %s1, 16
  %v143 = vld [vmem:[%s142] sm:$0xf]
  %v144 = vld [vmem:[%s142 + $0x4] sm:$0xf]
  %v145 = vld [vmem:[%s142 + $0x8] sm:$0xf]
  %v146 = vld [vmem:[%s142 + $0xc] sm:$0xf]
  %v151 = vunpack.c.l.b16 %v143
  %v152 = vunpack.c.l.b16 %v144
  %v153 = vunpack.c.l.b16 %v145
  %v154 = vunpack.c.l.b16 %v146
  %v155 = vpack.c.b16 %v152, %v151
  %v156 = vpack.c.b16 %v154, %v153
  %v158 = vsel %vm68, %v155, 0
  %v161 = vsel %vm68, %v156, 0
  %163 = vmatprep.subr.bf16.mxu0 0
  %164 = vmatpush1.bf16.msra.mxu0 %v53
  %165 = vmatprep.subr.bf16.mxu0 0
  %166 = vmatpush1.bf16.msra.mxu0 0
  %167 = vmatprep.subr.bf16.mxu0 0
  %168 = vmatpush1.bf16.msra.mxu0 0
  %169 = vmatprep.subr.bf16.mxu0 0
  %170 = vmatpush1.bf16.msra.mxu0 0
  %171 = vmatprep.subr.bf16.mxu0 0
  %172 = vmatpush1.bf16.msra.mxu0 0
  %173 = vmatprep.subr.bf16.mxu0 0
  %174 = vmatpush1.bf16.msra.mxu0 0
  %175 = vmatprep.subr.bf16.mxu0 0
  %176 = vmatpush1.bf16.msra.mxu0 0
  %177 = vmatprep.subr.bf16.mxu0 0
  %178 = vmatpush1.bf16.msra.mxu0 0
  %179 = vmatprep.subr.bf16.mxu0 0
  %180 = vmatpush1.bf16.msra.mxu0 0
  %181 = vmatprep.subr.bf16.mxu0 0
  %182 = vmatpush1.bf16.msra.mxu0 0
  %183 = vmatprep.subr.bf16.mxu0 0
  %184 = vmatpush1.bf16.msra.mxu0 0
  %185 = vmatprep.subr.bf16.mxu0 0
  %186 = vmatpush1.bf16.msra.mxu0 0
  %187 = vmatprep.subr.bf16.mxu0 0
  %188 = vmatpush1.bf16.msra.mxu0 0
  %189 = vmatprep.subr.bf16.mxu0 0
  %190 = vmatpush1.bf16.msra.mxu0 0
  %191 = vmatprep.subr.bf16.mxu0 0
  %192 = vmatpush1.bf16.msra.mxu0 0
  %193 = vmatprep.subr.bf16.mxu0 0
  %194 = vmatpush1.bf16.msra.mxu0 0
  %195 = vmatprep.mubr.bf16.mxu0 0
  %196 = vmatmul.mubr.bf16.gmra.mrb[0].mxu0 %v158
  %v197 = vpop.f32.mrb[0].mxu0
  %v198 = vadd.f32 0.0, %v197
  %v199 = vpop.f32.mrb[0].mxu0
  %v200 = vpop.f32.mrb[0].mxu0
  %v201 = vadd.f32 0.0, %v200
  %v202 = vpop.f32.mrb[0].mxu0
  %203 = vmatprep.mubr.bf16.mxu0 0
  %204 = vmatmul.mubr.bf16.gmra.mrb[0].mxu0 %v161
  %v205 = vpop.f32.mrb[0].mxu0
  %v206 = vadd.f32 0.0, %v205
  %v207 = vpop.f32.mrb[0].mxu0
  %v208 = vpop.f32.mrb[0].mxu0
  %v209 = vadd.f32 0.0, %v208
  %v210 = vpop.f32.mrb[0].mxu0
  %211 = vdwg.mxu0
  %v212 = vpack.c.bf16 %v201, %v198
  %v213 = vpack.c.bf16 %v209, %v206
  %s214 = scalar_lea.vmem %s2, 128
  %v215 = vld [vmem:[%s214] sm:$0xff]
  %v216 = vld [vmem:[%s214 + $0x8] sm:$0xff]
  %v217 = vld [vmem:[%s214 + $0x10] sm:$0xff]
  %v218 = vld [vmem:[%s214 + $0x18] sm:$0xff]
  %v219 = vld [vmem:[%s214 + $0x20] sm:$0xff]
  %v220 = vld [vmem:[%s214 + $0x28] sm:$0xff]
  %v221 = vld [vmem:[%s214 + $0x30] sm:$0xff]
  %v222 = vld [vmem:[%s214 + $0x38] sm:$0xff]
  %v223 = vld [vmem:[%s214 + $0x40] sm:$0xff]
  %v224 = vld [vmem:[%s214 + $0x48] sm:$0xff]
  %v225 = vld [vmem:[%s214 + $0x50] sm:$0xff]
  %v226 = vld [vmem:[%s214 + $0x58] sm:$0xff]
  %v227 = vld [vmem:[%s214 + $0x60] sm:$0xff]
  %v228 = vld [vmem:[%s214 + $0x68] sm:$0xff]
  %v229 = vld [vmem:[%s214 + $0x70] sm:$0xff]
  %v230 = vld [vmem:[%s214 + $0x78] sm:$0xff]
  %v247 = vunpack.c.l.b16 %v215
  %v248 = vunpack.c.h.b16 %v215
  %v249 = vunpack.c.l.b16 %v216
  %v250 = vunpack.c.h.b16 %v216
  %v251 = vunpack.c.l.b16 %v217
  %v252 = vunpack.c.h.b16 %v217
  %v253 = vunpack.c.l.b16 %v218
  %v254 = vunpack.c.h.b16 %v218
  %v255 = vunpack.c.l.b16 %v219
  %v256 = vunpack.c.h.b16 %v219
  %v257 = vunpack.c.l.b16 %v220
  %v258 = vunpack.c.h.b16 %v220
  %v259 = vunpack.c.l.b16 %v221
  %v260 = vunpack.c.h.b16 %v221
  %v261 = vunpack.c.l.b16 %v222
  %v262 = vunpack.c.h.b16 %v222
  %v263 = vunpack.c.l.b16 %v223
  %v264 = vunpack.c.h.b16 %v223
  %v265 = vunpack.c.l.b16 %v224
  %v266 = vunpack.c.h.b16 %v224
  %v267 = vunpack.c.l.b16 %v225
  %v268 = vunpack.c.h.b16 %v225
  %v269 = vunpack.c.l.b16 %v226
  %v270 = vunpack.c.h.b16 %v226
  %v271 = vunpack.c.l.b16 %v227
  %v272 = vunpack.c.h.b16 %v227
  %v273 = vunpack.c.l.b16 %v228
  %v274 = vunpack.c.h.b16 %v228
  %v275 = vunpack.c.l.b16 %v229
  %v276 = vunpack.c.h.b16 %v229
  %v277 = vunpack.c.l.b16 %v230
  %v278 = vunpack.c.h.b16 %v230
  %v279 = vpack.c.b16 %v249, %v247
  %v280 = vpack.c.b16 %v250, %v248
  %v281 = vpack.c.b16 %v253, %v251
  %v282 = vpack.c.b16 %v254, %v252
  %v283 = vpack.c.b16 %v257, %v255
  %v284 = vpack.c.b16 %v258, %v256
  %v285 = vpack.c.b16 %v261, %v259
  %v286 = vpack.c.b16 %v262, %v260
  %v287 = vpack.c.b16 %v265, %v263
  %v288 = vpack.c.b16 %v266, %v264
  %v289 = vpack.c.b16 %v269, %v267
  %v290 = vpack.c.b16 %v270, %v268
  %v291 = vpack.c.b16 %v273, %v271
  %v292 = vpack.c.b16 %v274, %v272
  %v293 = vpack.c.b16 %v277, %v275
  %v294 = vpack.c.b16 %v278, %v276
  %311 = vmatprep.subr.bf16.mxu0 %v280
  %312 = vmatpush1.bf16.msra.mxu0 %v279
  %313 = vmatprep.subr.bf16.mxu0 %v282
  %314 = vmatpush1.bf16.msra.mxu0 %v281
  %315 = vmatprep.subr.bf16.mxu0 %v284
  %316 = vmatpush1.bf16.msra.mxu0 %v283
  %317 = vmatprep.subr.bf16.mxu0 %v286
  %318 = vmatpush1.bf16.msra.mxu0 %v285
  %319 = vmatprep.subr.bf16.mxu0 %v288
  %320 = vmatpush1.bf16.msra.mxu0 %v287
  %321 = vmatprep.subr.bf16.mxu0 %v290
  %322 = vmatpush1.bf16.msra.mxu0 %v289
  %323 = vmatprep.subr.bf16.mxu0 %v292
  %324 = vmatpush1.bf16.msra.mxu0 %v291
  %325 = vmatprep.subr.bf16.mxu0 %v294
  %326 = vmatpush1.bf16.msra.mxu0 %v293
  %327 = vmatprep.subr.bf16.mxu0 0
  %328 = vmatpush1.bf16.msra.mxu0 0
  %329 = vmatprep.subr.bf16.mxu0 0
  %330 = vmatpush1.bf16.msra.mxu0 0
  %331 = vmatprep.subr.bf16.mxu0 0
  %332 = vmatpush1.bf16.msra.mxu0 0
  %333 = vmatprep.subr.bf16.mxu0 0
  %334 = vmatpush1.bf16.msra.mxu0 0
  %335 = vmatprep.subr.bf16.mxu0 0
  %336 = vmatpush1.bf16.msra.mxu0 0
  %337 = vmatprep.subr.bf16.mxu0 0
  %338 = vmatpush1.bf16.msra.mxu0 0
  %339 = vmatprep.subr.bf16.mxu0 0
  %340 = vmatpush1.bf16.msra.mxu0 0
  %341 = vmatprep.subr.bf16.mxu0 0
  %342 = vmatpush1.bf16.msra.mxu0 0
  %343 = vmatprep.mubr.bf16.mxu0 0
  %344 = vmatmul.mubr.bf16.gmra.mrb[0].mxu0 %v212
  %v345 = vpop.f32.mrb[0].mxu0
  %v346 = vadd.f32 0.0, %v345
  %v347 = vpop.f32.mrb[0].mxu0
  %v348 = vadd.f32 0.0, %v347
  %v349 = vpop.f32.mrb[0].mxu0
  %v350 = vadd.f32 0.0, %v349
  %v351 = vpop.f32.mrb[0].mxu0
  %v352 = vadd.f32 0.0, %v351
  %353 = vmatprep.mubr.bf16.mxu0 0
  %354 = vmatmul.mubr.bf16.gmra.mrb[0].mxu0 %v213
  %v355 = vpop.f32.mrb[0].mxu0
  %v356 = vadd.f32 0.0, %v355
  %v357 = vpop.f32.mrb[0].mxu0
  %v358 = vadd.f32 0.0, %v357
  %v359 = vpop.f32.mrb[0].mxu0
  %v360 = vadd.f32 0.0, %v359
  %v361 = vpop.f32.mrb[0].mxu0
  %v362 = vadd.f32 0.0, %v361
  %363 = vdwg.mxu0
  %v380 = vunpack.c.l.b16 %v126
  %v381 = vunpack.c.h.b16 %v126
  %v382 = vunpack.c.l.b16 %v127
  %v383 = vunpack.c.h.b16 %v127
  %v384 = vunpack.c.l.b16 %v128
  %v385 = vunpack.c.h.b16 %v128
  %v386 = vunpack.c.l.b16 %v129
  %v387 = vunpack.c.h.b16 %v129
  %v388 = vunpack.c.l.b16 %v130
  %v389 = vunpack.c.h.b16 %v130
  %v390 = vunpack.c.l.b16 %v131
  %v391 = vunpack.c.h.b16 %v131
  %v392 = vunpack.c.l.b16 %v132
  %v393 = vunpack.c.h.b16 %v132
  %v394 = vunpack.c.l.b16 %v133
  %v395 = vunpack.c.h.b16 %v133
  %v396 = vunpack.c.l.b16 %v134
  %v397 = vunpack.c.h.b16 %v134
  %v398 = vunpack.c.l.b16 %v135
  %v399 = vunpack.c.h.b16 %v135
  %v400 = vunpack.c.l.b16 %v136
  %v401 = vunpack.c.h.b16 %v136
  %v402 = vunpack.c.l.b16 %v137
  %v403 = vunpack.c.h.b16 %v137
  %v404 = vunpack.c.l.b16 %v138
  %v405 = vunpack.c.h.b16 %v138
  %v406 = vunpack.c.l.b16 %v139
  %v407 = vunpack.c.h.b16 %v139
  %v408 = vunpack.c.l.b16 %v140
  %v409 = vunpack.c.h.b16 %v140
  %v410 = vunpack.c.l.b16 %v141
  %v411 = vunpack.c.h.b16 %v141
  %v412 = vpack.c.b16 %v382, %v380
  %v413 = vpack.c.b16 %v383, %v381
  %v414 = vpack.c.b16 %v386, %v384
  %v415 = vpack.c.b16 %v387, %v385
  %v416 = vpack.c.b16 %v390, %v388
  %v417 = vpack.c.b16 %v391, %v389
  %v418 = vpack.c.b16 %v394, %v392
  %v419 = vpack.c.b16 %v395, %v393
  %v420 = vpack.c.b16 %v398, %v396
  %v421 = vpack.c.b16 %v399, %v397
  %v422 = vpack.c.b16 %v402, %v400
  %v423 = vpack.c.b16 %v403, %v401
  %v424 = vpack.c.b16 %v406, %v404
  %v425 = vpack.c.b16 %v407, %v405
  %v426 = vpack.c.b16 %v410, %v408
  %v427 = vpack.c.b16 %v411, %v409
  %444 = vmatprep.subr.bf16.mxu0 %v413
  %445 = vmatpush1.bf16.msra.mxu0 %v412
  %446 = vmatprep.subr.bf16.mxu0 %v415
  %447 = vmatpush1.bf16.msra.mxu0 %v414
  %448 = vmatprep.subr.bf16.mxu0 %v417
  %449 = vmatpush1.bf16.msra.mxu0 %v416
  %450 = vmatprep.subr.bf16.mxu0 %v419
  %451 = vmatpush1.bf16.msra.mxu0 %v418
  %452 = vmatprep.subr.bf16.mxu0 %v421
  %453 = vmatpush1.bf16.msra.mxu0 %v420
  %454 = vmatprep.subr.bf16.mxu0 %v423
  %455 = vmatpush1.bf16.msra.mxu0 %v422
  %456 = vmatprep.subr.bf16.mxu0 %v425
  %457 = vmatpush1.bf16.msra.mxu0 %v424
  %458 = vmatprep.subr.bf16.mxu0 %v427
  %459 = vmatpush1.bf16.msra.mxu0 %v426
  %460 = vmatprep.subr.bf16.mxu0 0
  %461 = vmatpush1.bf16.msra.mxu0 0
  %462 = vmatprep.subr.bf16.mxu0 0
  %463 = vmatpush1.bf16.msra.mxu0 0
  %464 = vmatprep.subr.bf16.mxu0 0
  %465 = vmatpush1.bf16.msra.mxu0 0
  %466 = vmatprep.subr.bf16.mxu0 0
  %467 = vmatpush1.bf16.msra.mxu0 0
  %468 = vmatprep.subr.bf16.mxu0 0
  %469 = vmatpush1.bf16.msra.mxu0 0
  %470 = vmatprep.subr.bf16.mxu0 0
  %471 = vmatpush1.bf16.msra.mxu0 0
  %472 = vmatprep.subr.bf16.mxu0 0
  %473 = vmatpush1.bf16.msra.mxu0 0
  %474 = vmatprep.subr.bf16.mxu0 0
  %475 = vmatpush1.bf16.msra.mxu0 0
  %476 = vmatprep.mubr.bf16.mxu0 0
  %477 = vmatmul.mubr.bf16.gmra.mrb[0].mxu0 %v124
  %v478 = vpop.f32.mrb[0].mxu0
  %v479 = vadd.f32 %v346, %v478
  %v480 = vpop.f32.mrb[0].mxu0
  %v481 = vadd.f32 %v348, %v480
  %v482 = vpop.f32.mrb[0].mxu0
  %v483 = vadd.f32 %v350, %v482
  %v484 = vpop.f32.mrb[0].mxu0
  %v485 = vadd.f32 %v352, %v484
  %486 = vmatprep.mubr.bf16.mxu0 0
  %487 = vmatmul.mubr.bf16.gmra.mrb[0].mxu0 %v125
  %v488 = vpop.f32.mrb[0].mxu0
  %v489 = vadd.f32 %v356, %v488
  %v490 = vpop.f32.mrb[0].mxu0
  %v491 = vadd.f32 %v358, %v490
  %v492 = vpop.f32.mrb[0].mxu0
  %v493 = vadd.f32 %v360, %v492
  %v494 = vpop.f32.mrb[0].mxu0
  %v495 = vadd.f32 %v362, %v494
  %496 = vdwg.mxu0
  %s497 = scalar_lea.vmem %s1, 32
  %v498 = vld [vmem:[%s497] sm:$0xf]
  %v499 = vld [vmem:[%s497 + $0x4] sm:$0xf]
  %v500 = vld [vmem:[%s497 + $0x8] sm:$0xf]
  %v501 = vld [vmem:[%s497 + $0xc] sm:$0xf]
  %v506 = vunpack.c.l.b16 %v498
  %v507 = vunpack.c.l.b16 %v499
  %v508 = vunpack.c.l.b16 %v500
  %v509 = vunpack.c.l.b16 %v501
  %v510 = vpack.c.b16 %v507, %v506
  %v511 = vpack.c.b16 %v509, %v508
  %v513 = vsel %vm68, %v510, 0
  %v516 = vsel %vm68, %v511, 0
  %518 = vmatprep.subr.bf16.mxu0 0
  %519 = vmatpush1.bf16.msra.mxu0 %v53
  %520 = vmatprep.subr.bf16.mxu0 0
  %521 = vmatpush1.bf16.msra.mxu0 0
  %522 = vmatprep.subr.bf16.mxu0 0
  %523 = vmatpush1.bf16.msra.mxu0 0
  %524 = vmatprep.subr.bf16.mxu0 0
  %525 = vmatpush1.bf16.msra.mxu0 0
  %526 = vmatprep.subr.bf16.mxu0 0
  %527 = vmatpush1.bf16.msra.mxu0 0
  %528 = vmatprep.subr.bf16.mxu0 0
  %529 = vmatpush1.bf16.msra.mxu0 0
  %530 = vmatprep.subr.bf16.mxu0 0
  %531 = vmatpush1.bf16.msra.mxu0 0
  %532 = vmatprep.subr.bf16.mxu0 0
  %533 = vmatpush1.bf16.msra.mxu0 0
  %534 = vmatprep.subr.bf16.mxu0 0
  %535 = vmatpush1.bf16.msra.mxu0 0
  %536 = vmatprep.subr.bf16.mxu0 0
  %537 = vmatpush1.bf16.msra.mxu0 0
  %538 = vmatprep.subr.bf16.mxu0 0
  %539 = vmatpush1.bf16.msra.mxu0 0
  %540 = vmatprep.subr.bf16.mxu0 0
  %541 = vmatpush1.bf16.msra.mxu0 0
  %542 = vmatprep.subr.bf16.mxu0 0
  %543 = vmatpush1.bf16.msra.mxu0 0
  %544 = vmatprep.subr.bf16.mxu0 0
  %545 = vmatpush1.bf16.msra.mxu0 0
  %546 = vmatprep.subr.bf16.mxu0 0
  %547 = vmatpush1.bf16.msra.mxu0 0
  %548 = vmatprep.subr.bf16.mxu0 0
  %549 = vmatpush1.bf16.msra.mxu0 0
  %550 = vmatprep.mubr.bf16.mxu0 0
  %551 = vmatmul.mubr.bf16.gmra.mrb[0].mxu0 %v513
  %v552 = vpop.f32.mrb[0].mxu0
  %v553 = vadd.f32 0.0, %v552
  %v554 = vpop.f32.mrb[0].mxu0
  %v555 = vpop.f32.mrb[0].mxu0
  %v556 = vadd.f32 0.0, %v555
  %v557 = vpop.f32.mrb[0].mxu0
  %558 = vmatprep.mubr.bf16.mxu0 0
  %559 = vmatmul.mubr.bf16.gmra.mrb[0].mxu0 %v516
  %v560 = vpop.f32.mrb[0].mxu0
  %v561 = vadd.f32 0.0, %v560
  %v562 = vpop.f32.mrb[0].mxu0
  %v563 = vpop.f32.mrb[0].mxu0
  %v564 = vadd.f32 0.0, %v563
  %v565 = vpop.f32.mrb[0].mxu0
  %566 = vdwg.mxu0
  %v567 = vpack.c.bf16 %v556, %v553
  %v568 = vpack.c.bf16 %v564, %v561
  %s569 = scalar_lea.vmem %s2, 256
  %v570 = vld [vmem:[%s569] sm:$0xff]
  %v571 = vld [vmem:[%s569 + $0x8] sm:$0xff]
  %v572 = vld [vmem:[%s569 + $0x10] sm:$0xff]
  %v573 = vld [vmem:[%s569 + $0x18] sm:$0xff]
  %v574 = vld [vmem:[%s569 + $0x20] sm:$0xff]
  %v575 = vld [vmem:[%s569 + $0x28] sm:$0xff]
  %v576 = vld [vmem:[%s569 + $0x30] sm:$0xff]
  %v577 = vld [vmem:[%s569 + $0x38] sm:$0xff]
  %v578 = vld [vmem:[%s569 + $0x40] sm:$0xff]
  %v579 = vld [vmem:[%s569 + $0x48] sm:$0xff]
  %v580 = vld [vmem:[%s569 + $0x50] sm:$0xff]
  %v581 = vld [vmem:[%s569 + $0x58] sm:$0xff]
  %v582 = vld [vmem:[%s569 + $0x60] sm:$0xff]
  %v583 = vld [vmem:[%s569 + $0x68] sm:$0xff]
  %v584 = vld [vmem:[%s569 + $0x70] sm:$0xff]
  %v585 = vld [vmem:[%s569 + $0x78] sm:$0xff]
  %v602 = vunpack.c.l.b16 %v570
  %v603 = vunpack.c.h.b16 %v570
  %v604 = vunpack.c.l.b16 %v571
  %v605 = vunpack.c.h.b16 %v571
  %v606 = vunpack.c.l.b16 %v572
  %v607 = vunpack.c.h.b16 %v572
  %v608 = vunpack.c.l.b16 %v573
  %v609 = vunpack.c.h.b16 %v573
  %v610 = vunpack.c.l.b16 %v574
  %v611 = vunpack.c.h.b16 %v574
  %v612 = vunpack.c.l.b16 %v575
  %v613 = vunpack.c.h.b16 %v575
  %v614 = vunpack.c.l.b16 %v576
  %v615 = vunpack.c.h.b16 %v576
  %v616 = vunpack.c.l.b16 %v577
  %v617 = vunpack.c.h.b16 %v577
  %v618 = vunpack.c.l.b16 %v578
  %v619 = vunpack.c.h.b16 %v578
  %v620 = vunpack.c.l.b16 %v579
  %v621 = vunpack.c.h.b16 %v579
  %v622 = vunpack.c.l.b16 %v580
  %v623 = vunpack.c.h.b16 %v580
  %v624 = vunpack.c.l.b16 %v581
  %v625 = vunpack.c.h.b16 %v581
  %v626 = vunpack.c.l.b16 %v582
  %v627 = vunpack.c.h.b16 %v582
  %v628 = vunpack.c.l.b16 %v583
  %v629 = vunpack.c.h.b16 %v583
  %v630 = vunpack.c.l.b16 %v584
  %v631 = vunpack.c.h.b16 %v584
  %v632 = vunpack.c.l.b16 %v585
  %v633 = vunpack.c.h.b16 %v585
  %v634 = vpack.c.b16 %v604, %v602
  %v635 = vpack.c.b16 %v605, %v603
  %v636 = vpack.c.b16 %v608, %v606
  %v637 = vpack.c.b16 %v609, %v607
  %v638 = vpack.c.b16 %v612, %v610
  %v639 = vpack.c.b16 %v613, %v611
  %v640 = vpack.c.b16 %v616, %v614
  %v641 = vpack.c.b16 %v617, %v615
  %v642 = vpack.c.b16 %v620, %v618
  %v643 = vpack.c.b16 %v621, %v619
  %v644 = vpack.c.b16 %v624, %v622
  %v645 = vpack.c.b16 %v625, %v623
  %v646 = vpack.c.b16 %v628, %v626
  %v647 = vpack.c.b16 %v629, %v627
  %v648 = vpack.c.b16 %v632, %v630
  %v649 = vpack.c.b16 %v633, %v631
  %666 = vmatprep.subr.bf16.mxu0 %v635
  %667 = vmatpush1.bf16.msra.mxu0 %v634
  %668 = vmatprep.subr.bf16.mxu0 %v637
  %669 = vmatpush1.bf16.msra.mxu0 %v636
  %670 = vmatprep.subr.bf16.mxu0 %v639
  %671 = vmatpush1.bf16.msra.mxu0 %v638
  %672 = vmatprep.subr.bf16.mxu0 %v641
  %673 = vmatpush1.bf16.msra.mxu0 %v640
  %674 = vmatprep.subr.bf16.mxu0 %v643
  %675 = vmatpush1.bf16.msra.mxu0 %v642
  %676 = vmatprep.subr.bf16.mxu0 %v645
  %677 = vmatpush1.bf16.msra.mxu0 %v644
  %678 = vmatprep.subr.bf16.mxu0 %v647
  %679 = vmatpush1.bf16.msra.mxu0 %v646
  %680 = vmatprep.subr.bf16.mxu0 %v649
  %681 = vmatpush1.bf16.msra.mxu0 %v648
  %682 = vmatprep.subr.bf16.mxu0 0
  %683 = vmatpush1.bf16.msra.mxu0 0
  %684 = vmatprep.subr.bf16.mxu0 0
  %685 = vmatpush1.bf16.msra.mxu0 0
  %686 = vmatprep.subr.bf16.mxu0 0
  %687 = vmatpush1.bf16.msra.mxu0 0
  %688 = vmatprep.subr.bf16.mxu0 0
  %689 = vmatpush1.bf16.msra.mxu0 0
  %690 = vmatprep.subr.bf16.mxu0 0
  %691 = vmatpush1.bf16.msra.mxu0 0
  %692 = vmatprep.subr.bf16.mxu0 0
  %693 = vmatpush1.bf16.msra.mxu0 0
  %694 = vmatprep.subr.bf16.mxu0 0
  %695 = vmatpush1.bf16.msra.mxu0 0
  %696 = vmatprep.subr.bf16.mxu0 0
  %697 = vmatpush1.bf16.msra.mxu0 0
  %698 = vmatprep.mubr.bf16.mxu0 0
  %699 = vmatmul.mubr.bf16.gmra.mrb[0].mxu0 %v567
  %v700 = vpop.f32.mrb[0].mxu0
  %v701 = vadd.f32 0.0, %v700
  %v702 = vpop.f32.mrb[0].mxu0
  %v703 = vadd.f32 0.0, %v702
  %v704 = vpop.f32.mrb[0].mxu0
  %v705 = vadd.f32 0.0, %v704
  %v706 = vpop.f32.mrb[0].mxu0
  %v707 = vadd.f32 0.0, %v706
  %708 = vmatprep.mubr.bf16.mxu0 0
  %709 = vmatmul.mubr.bf16.gmra.mrb[0].mxu0 %v568
  %v710 = vpop.f32.mrb[0].mxu0
  %v711 = vadd.f32 0.0, %v710
  %v712 = vpop.f32.mrb[0].mxu0
  %v713 = vadd.f32 0.0, %v712
  %v714 = vpop.f32.mrb[0].mxu0
  %v715 = vadd.f32 0.0, %v714
  %v716 = vpop.f32.mrb[0].mxu0
  %v717 = vadd.f32 0.0, %v716
  %718 = vdwg.mxu0
  %v719 = vadd.f32 %v479, %v701
  %v720 = vadd.f32 %v481, %v703
  %v721 = vadd.f32 %v483, %v705
  %v722 = vadd.f32 %v485, %v707
  %v723 = vadd.f32 %v489, %v711
  %v724 = vadd.f32 %v491, %v713
  %v725 = vadd.f32 %v493, %v715
  %v726 = vadd.f32 %v495, %v717
  %s727 = scalar_lea.vmem %s1, 48
  %v728 = vld [vmem:[%s727] sm:$0xf]
  %v729 = vld [vmem:[%s727 + $0x4] sm:$0xf]
  %v730 = vld [vmem:[%s727 + $0x8] sm:$0xf]
  %v731 = vld [vmem:[%s727 + $0xc] sm:$0xf]
  %v736 = vunpack.c.l.b16 %v728
  %v737 = vunpack.c.l.b16 %v729
  %v738 = vunpack.c.l.b16 %v730
  %v739 = vunpack.c.l.b16 %v731
  %v740 = vpack.c.b16 %v737, %v736
  %v741 = vpack.c.b16 %v739, %v738
  %v743 = vsel %vm68, %v740, 0
  %v746 = vsel %vm68, %v741, 0
  %748 = vmatprep.subr.bf16.mxu0 0
  %749 = vmatpush1.bf16.msra.mxu0 %v53
  %750 = vmatprep.subr.bf16.mxu0 0
  %751 = vmatpush1.bf16.msra.mxu0 0
  %752 = vmatprep.subr.bf16.mxu0 0
  %753 = vmatpush1.bf16.msra.mxu0 0
  %754 = vmatprep.subr.bf16.mxu0 0
  %755 = vmatpush1.bf16.msra.mxu0 0
  %756 = vmatprep.subr.bf16.mxu0 0
  %757 = vmatpush1.bf16.msra.mxu0 0
  %758 = vmatprep.subr.bf16.mxu0 0
  %759 = vmatpush1.bf16.msra.mxu0 0
  %760 = vmatprep.subr.bf16.mxu0 0
  %761 = vmatpush1.bf16.msra.mxu0 0
  %762 = vmatprep.subr.bf16.mxu0 0
  %763 = vmatpush1.bf16.msra.mxu0 0
  %764 = vmatprep.subr.bf16.mxu0 0
  %765 = vmatpush1.bf16.msra.mxu0 0
  %766 = vmatprep.subr.bf16.mxu0 0
  %767 = vmatpush1.bf16.msra.mxu0 0
  %768 = vmatprep.subr.bf16.mxu0 0
  %769 = vmatpush1.bf16.msra.mxu0 0
  %770 = vmatprep.subr.bf16.mxu0 0
  %771 = vmatpush1.bf16.msra.mxu0 0
  %772 = vmatprep.subr.bf16.mxu0 0
  %773 = vmatpush1.bf16.msra.mxu0 0
  %774 = vmatprep.subr.bf16.mxu0 0
  %775 = vmatpush1.bf16.msra.mxu0 0
  %776 = vmatprep.subr.bf16.mxu0 0
  %777 = vmatpush1.bf16.msra.mxu0 0
  %778 = vmatprep.subr.bf16.mxu0 0
  %779 = vmatpush1.bf16.msra.mxu0 0
  %780 = vmatprep.mubr.bf16.mxu0 0
  %781 = vmatmul.mubr.bf16.gmra.mrb[0].mxu0 %v743
  %v782 = vpop.f32.mrb[0].mxu0
  %v783 = vadd.f32 0.0, %v782
  %v784 = vpop.f32.mrb[0].mxu0
  %v785 = vpop.f32.mrb[0].mxu0
  %v786 = vadd.f32 0.0, %v785
  %v787 = vpop.f32.mrb[0].mxu0
  %788 = vmatprep.mubr.bf16.mxu0 0
  %789 = vmatmul.mubr.bf16.gmra.mrb[0].mxu0 %v746
  %v790 = vpop.f32.mrb[0].mxu0
  %v791 = vadd.f32 0.0, %v790
  %v792 = vpop.f32.mrb[0].mxu0
  %v793 = vpop.f32.mrb[0].mxu0
  %v794 = vadd.f32 0.0, %v793
  %v795 = vpop.f32.mrb[0].mxu0
  %796 = vdwg.mxu0
  %v797 = vpack.c.bf16 %v786, %v783
  %v798 = vpack.c.bf16 %v794, %v791
  %s799 = scalar_lea.vmem %s2, 384
  %v800 = vld [vmem:[%s799] sm:$0xff]
  %v801 = vld [vmem:[%s799 + $0x8] sm:$0xff]
  %v802 = vld [vmem:[%s799 + $0x10] sm:$0xff]
  %v803 = vld [vmem:[%s799 + $0x18] sm:$0xff]
  %v804 = vld [vmem:[%s799 + $0x20] sm:$0xff]
  %v805 = vld [vmem:[%s799 + $0x28] sm:$0xff]
  %v806 = vld [vmem:[%s799 + $0x30] sm:$0xff]
  %v807 = vld [vmem:[%s799 + $0x38] sm:$0xff]
  %v808 = vld [vmem:[%s799 + $0x40] sm:$0xff]
  %v809 = vld [vmem:[%s799 + $0x48] sm:$0xff]
  %v810 = vld [vmem:[%s799 + $0x50] sm:$0xff]
  %v811 = vld [vmem:[%s799 + $0x58] sm:$0xff]
  %v812 = vld [vmem:[%s799 + $0x60] sm:$0xff]
  %v813 = vld [vmem:[%s799 + $0x68] sm:$0xff]
  %v814 = vld [vmem:[%s799 + $0x70] sm:$0xff]
  %v815 = vld [vmem:[%s799 + $0x78] sm:$0xff]
  %v832 = vunpack.c.l.b16 %v800
  %v833 = vunpack.c.h.b16 %v800
  %v834 = vunpack.c.l.b16 %v801
  %v835 = vunpack.c.h.b16 %v801
  %v836 = vunpack.c.l.b16 %v802
  %v837 = vunpack.c.h.b16 %v802
  %v838 = vunpack.c.l.b16 %v803
  %v839 = vunpack.c.h.b16 %v803
  %v840 = vunpack.c.l.b16 %v804
  %v841 = vunpack.c.h.b16 %v804
  %v842 = vunpack.c.l.b16 %v805
  %v843 = vunpack.c.h.b16 %v805
  %v844 = vunpack.c.l.b16 %v806
  %v845 = vunpack.c.h.b16 %v806
  %v846 = vunpack.c.l.b16 %v807
  %v847 = vunpack.c.h.b16 %v807
  %v848 = vunpack.c.l.b16 %v808
  %v849 = vunpack.c.h.b16 %v808
  %v850 = vunpack.c.l.b16 %v809
  %v851 = vunpack.c.h.b16 %v809
  %v852 = vunpack.c.l.b16 %v810
  %v853 = vunpack.c.h.b16 %v810
  %v854 = vunpack.c.l.b16 %v811
  %v855 = vunpack.c.h.b16 %v811
  %v856 = vunpack.c.l.b16 %v812
  %v857 = vunpack.c.h.b16 %v812
  %v858 = vunpack.c.l.b16 %v813
  %v859 = vunpack.c.h.b16 %v813
  %v860 = vunpack.c.l.b16 %v814
  %v861 = vunpack.c.h.b16 %v814
  %v862 = vunpack.c.l.b16 %v815
  %v863 = vunpack.c.h.b16 %v815
  %v864 = vpack.c.b16 %v834, %v832
  %v865 = vpack.c.b16 %v835, %v833
  %v866 = vpack.c.b16 %v838, %v836
  %v867 = vpack.c.b16 %v839, %v837
  %v868 = vpack.c.b16 %v842, %v840
  %v869 = vpack.c.b16 %v843, %v841
  %v870 = vpack.c.b16 %v846, %v844
  %v871 = vpack.c.b16 %v847, %v845
  %v872 = vpack.c.b16 %v850, %v848
  %v873 = vpack.c.b16 %v851, %v849
  %v874 = vpack.c.b16 %v854, %v852
  %v875 = vpack.c.b16 %v855, %v853
  %v876 = vpack.c.b16 %v858, %v856
  %v877 = vpack.c.b16 %v859, %v857
  %v878 = vpack.c.b16 %v862, %v860
  %v879 = vpack.c.b16 %v863, %v861
  %896 = vmatprep.subr.bf16.mxu0 %v865
  %897 = vmatpush1.bf16.msra.mxu0 %v864
  %898 = vmatprep.subr.bf16.mxu0 %v867
  %899 = vmatpush1.bf16.msra.mxu0 %v866
  %900 = vmatprep.subr.bf16.mxu0 %v869
  %901 = vmatpush1.bf16.msra.mxu0 %v868
  %902 = vmatprep.subr.bf16.mxu0 %v871
  %903 = vmatpush1.bf16.msra.mxu0 %v870
  %904 = vmatprep.subr.bf16.mxu0 %v873
  %905 = vmatpush1.bf16.msra.mxu0 %v872
  %906 = vmatprep.subr.bf16.mxu0 %v875
  %907 = vmatpush1.bf16.msra.mxu0 %v874
  %908 = vmatprep.subr.bf16.mxu0 %v877
  %909 = vmatpush1.bf16.msra.mxu0 %v876
  %910 = vmatprep.subr.bf16.mxu0 %v879
  %911 = vmatpush1.bf16.msra.mxu0 %v878
  %912 = vmatprep.subr.bf16.mxu0 0
  %913 = vmatpush1.bf16.msra.mxu0 0
  %914 = vmatprep.subr.bf16.mxu0 0
  %915 = vmatpush1.bf16.msra.mxu0 0
  %916 = vmatprep.subr.bf16.mxu0 0
  %917 = vmatpush1.bf16.msra.mxu0 0
  %918 = vmatprep.subr.bf16.mxu0 0
  %919 = vmatpush1.bf16.msra.mxu0 0
  %920 = vmatprep.subr.bf16.mxu0 0
  %921 = vmatpush1.bf16.msra.mxu0 0
  %922 = vmatprep.subr.bf16.mxu0 0
  %923 = vmatpush1.bf16.msra.mxu0 0
  %924 = vmatprep.subr.bf16.mxu0 0
  %925 = vmatpush1.bf16.msra.mxu0 0
  %926 = vmatprep.subr.bf16.mxu0 0
  %927 = vmatpush1.bf16.msra.mxu0 0
  %928 = vmatprep.mubr.bf16.mxu0 0
  %929 = vmatmul.mubr.bf16.gmra.mrb[0].mxu0 %v797
  %v930 = vpop.f32.mrb[0].mxu0
  %v931 = vadd.f32 0.0, %v930
  %v932 = vpop.f32.mrb[0].mxu0
  %v933 = vadd.f32 0.0, %v932
  %v934 = vpop.f32.mrb[0].mxu0
  %v935 = vadd.f32 0.0, %v934
  %v936 = vpop.f32.mrb[0].mxu0
  %v937 = vadd.f32 0.0, %v936
  %938 = vmatprep.mubr.bf16.mxu0 0
  %939 = vmatmul.mubr.bf16.gmra.mrb[0].mxu0 %v798
  %v940 = vpop.f32.mrb[0].mxu0
  %v941 = vadd.f32 0.0, %v940
  %v942 = vpop.f32.mrb[0].mxu0
  %v943 = vadd.f32 0.0, %v942
  %v944 = vpop.f32.mrb[0].mxu0
  %v945 = vadd.f32 0.0, %v944
  %v946 = vpop.f32.mrb[0].mxu0
  %v947 = vadd.f32 0.0, %v946
  %948 = vdwg.mxu0
  %v949 = vadd.f32 %v719, %v931
  %v950 = vadd.f32 %v720, %v933
  %v951 = vadd.f32 %v721, %v935
  %v952 = vadd.f32 %v722, %v937
  %v953 = vadd.f32 %v723, %v941
  %v954 = vadd.f32 %v724, %v943
  %v955 = vadd.f32 %v725, %v945
  %v956 = vadd.f32 %v726, %v947
  %v957 = vld [vmem:[%s3] sm:$0x3]
  %v959 = vlaneseq
  %v960 = vshrl.u32 %v959, 7
  %v961 = vsub.s32 0, %v960
  %v962 = vrot.slane %v957, %v961
  %v963 = vlaneseq
  %v964 = vshrl.u32 %v963, 7
  %v965 = vsub.s32 1, %v964
  %v966 = vrot.slane %v957, %v965
  %v969 = vmul.f32 %v949, %v962
  %v970 = vmul.f32 %v950, %v966
  %v971 = vmul.f32 %v951, %v962
  %v972 = vmul.f32 %v952, %v966
  %v973 = vmul.f32 %v953, %v962
  %v974 = vmul.f32 %v954, %v966
  %v975 = vmul.f32 %v955, %v962
  %v976 = vmul.f32 %v956, %v966
  %v977 = vld [vmem:[%s4] sm:$0x3]
  %v979 = vlaneseq
  %v980 = vshrl.u32 %v979, 7
  %v981 = vsub.s32 0, %v980
  %v982 = vrot.slane %v977, %v981
  %v983 = vlaneseq
  %v984 = vshrl.u32 %v983, 7
  %v985 = vsub.s32 1, %v984
  %v986 = vrot.slane %v977, %v985
  %v989 = vadd.f32 %v969, %v982
  %v990 = vadd.f32 %v970, %v986
  %v991 = vadd.f32 %v971, %v982
  %v992 = vadd.f32 %v972, %v986
  %v993 = vadd.f32 %v973, %v982
  %v994 = vadd.f32 %v974, %v986
  %v995 = vadd.f32 %v975, %v982
  %v996 = vadd.f32 %v976, %v986
  %v997 = vmax.f32 %v989, 0.0
  %v998 = vmax.f32 %v990, 0.0
  %v999 = vmax.f32 %v991, 0.0
  %v1000 = vmax.f32 %v992, 0.0
  %v1001 = vmax.f32 %v993, 0.0
  %v1002 = vmax.f32 %v994, 0.0
  %v1003 = vmax.f32 %v995, 0.0
  %v1004 = vmax.f32 %v996, 0.0
  %v1005 = vpack.c.bf16 %v999, %v997
  %v1006 = vpack.c.bf16 %v1000, %v998
  %v1007 = vpack.c.bf16 %v1003, %v1001
  %v1008 = vpack.c.bf16 %v1004, %v1002
  %v1009 = vld [vmem:[%s5] sm:$0xf]
  %v1010 = vld [vmem:[%s5 + $0x4] sm:$0xf]
  %v1011 = vld [vmem:[%s5 + $0x8] sm:$0xf]
  %v1012 = vld [vmem:[%s5 + $0xc] sm:$0xf]
  %v1013 = vld [vmem:[%s5 + $0x10] sm:$0xf]
  %v1014 = vld [vmem:[%s5 + $0x14] sm:$0xf]
  %v1015 = vld [vmem:[%s5 + $0x18] sm:$0xf]
  %v1016 = vld [vmem:[%s5 + $0x1c] sm:$0xf]
  %v1025 = vunpack.c.l.b16 %v1009
  %v1026 = vunpack.c.l.b16 %v1010
  %v1027 = vunpack.c.l.b16 %v1011
  %v1028 = vunpack.c.l.b16 %v1012
  %v1029 = vunpack.c.l.b16 %v1013
  %v1030 = vunpack.c.l.b16 %v1014
  %v1031 = vunpack.c.l.b16 %v1015
  %v1032 = vunpack.c.l.b16 %v1016
  %v1033 = vpack.c.b16 %v1026, %v1025
  %v1034 = vpack.c.b16 %v1028, %v1027
  %v1035 = vpack.c.b16 %v1030, %v1029
  %v1036 = vpack.c.b16 %v1032, %v1031
  %vm1037 = vcmask 261120
  %v1039 = vsel %vm1037, %v1033, 0
  %v1042 = vsel %vm1037, %v1034, 0
  %v1045 = vsel %vm1037, %v1035, 0
  %v1048 = vsel %vm1037, %v1036, 0
  %1050 = vmatprep.subr.bf16.mxu0 %v1006
  %1051 = vmatpush1.bf16.msra.mxu0 %v1005
  %1052 = vmatprep.subr.bf16.mxu0 %v1008
  %1053 = vmatpush1.bf16.msra.mxu0 %v1007
  %1054 = vmatprep.subr.bf16.mxu0 0
  %1055 = vmatpush1.bf16.msra.mxu0 0
  %1056 = vmatprep.subr.bf16.mxu0 0
  %1057 = vmatpush1.bf16.msra.mxu0 0
  %1058 = vmatprep.subr.bf16.mxu0 0
  %1059 = vmatpush1.bf16.msra.mxu0 0
  %1060 = vmatprep.subr.bf16.mxu0 0
  %1061 = vmatpush1.bf16.msra.mxu0 0
  %1062 = vmatprep.subr.bf16.mxu0 0
  %1063 = vmatpush1.bf16.msra.mxu0 0
  %1064 = vmatprep.subr.bf16.mxu0 0
  %1065 = vmatpush1.bf16.msra.mxu0 0
  %1066 = vmatprep.subr.bf16.mxu0 0
  %1067 = vmatpush1.bf16.msra.mxu0 0
  %1068 = vmatprep.subr.bf16.mxu0 0
  %1069 = vmatpush1.bf16.msra.mxu0 0
  %1070 = vmatprep.subr.bf16.mxu0 0
  %1071 = vmatpush1.bf16.msra.mxu0 0
  %1072 = vmatprep.subr.bf16.mxu0 0
  %1073 = vmatpush1.bf16.msra.mxu0 0
  %1074 = vmatprep.subr.bf16.mxu0 0
  %1075 = vmatpush1.bf16.msra.mxu0 0
  %1076 = vmatprep.subr.bf16.mxu0 0
  %1077 = vmatpush1.bf16.msra.mxu0 0
  %1078 = vmatprep.subr.bf16.mxu0 0
  %1079 = vmatpush1.bf16.msra.mxu0 0
  %1080 = vmatprep.subr.bf16.mxu0 0
  %1081 = vmatpush1.bf16.msra.mxu0 0
  %1082 = vmatprep.mubr.bf16.mxu0 0
  %1083 = vmatmul.mubr.bf16.gmra.mrb[0].mxu0 %v1039
  %v1084 = vpop.f32.mrb[0].mxu0
  %v1085 = vadd.f32 0.0, %v1084
  %v1086 = vpop.f32.mrb[0].mxu0
  %v1087 = vadd.f32 0.0, %v1086
  %v1088 = vpop.f32.mrb[0].mxu0
  %v1089 = vadd.f32 0.0, %v1088
  %v1090 = vpop.f32.mrb[0].mxu0
  %v1091 = vadd.f32 0.0, %v1090
  %1092 = vmatprep.mubr.bf16.mxu0 0
  %1093 = vmatmul.mubr.bf16.gmra.mrb[0].mxu0 %v1042
  %v1094 = vpop.f32.mrb[0].mxu0
  %v1095 = vadd.f32 0.0, %v1094
  %v1096 = vpop.f32.mrb[0].mxu0
  %v1097 = vadd.f32 0.0, %v1096
  %v1098 = vpop.f32.mrb[0].mxu0
  %v1099 = vadd.f32 0.0, %v1098
  %v1100 = vpop.f32.mrb[0].mxu0
  %v1101 = vadd.f32 0.0, %v1100
  %1102 = vmatprep.mubr.bf16.mxu0 0
  %1103 = vmatmul.mubr.bf16.gmra.mrb[0].mxu0 %v1045
  %v1104 = vpop.f32.mrb[0].mxu0
  %v1105 = vadd.f32 0.0, %v1104
  %v1106 = vpop.f32.mrb[0].mxu0
  %v1107 = vadd.f32 0.0, %v1106
  %v1108 = vpop.f32.mrb[0].mxu0
  %v1109 = vadd.f32 0.0, %v1108
  %v1110 = vpop.f32.mrb[0].mxu0
  %v1111 = vadd.f32 0.0, %v1110
  %1112 = vmatprep.mubr.bf16.mxu0 0
  %1113 = vmatmul.mubr.bf16.gmra.mrb[0].mxu0 %v1048
  %v1114 = vpop.f32.mrb[0].mxu0
  %v1115 = vadd.f32 0.0, %v1114
  %v1116 = vpop.f32.mrb[0].mxu0
  %v1117 = vadd.f32 0.0, %v1116
  %v1118 = vpop.f32.mrb[0].mxu0
  %v1119 = vadd.f32 0.0, %v1118
  %v1120 = vpop.f32.mrb[0].mxu0
  %v1121 = vadd.f32 0.0, %v1120
  %1122 = vdwg.mxu0
  %v1123 = vpack.c.bf16 %v1089, %v1085
  %v1124 = vpack.c.bf16 %v1091, %v1087
  %v1125 = vpack.c.bf16 %v1099, %v1095
  %v1126 = vpack.c.bf16 %v1101, %v1097
  %v1127 = vpack.c.bf16 %v1109, %v1105
  %v1128 = vpack.c.bf16 %v1111, %v1107
  %v1129 = vpack.c.bf16 %v1119, %v1115
  %v1130 = vpack.c.bf16 %v1121, %v1117
  %v1131 = vld [vmem:[%s6] sm:$0xff]
  %v1132 = vld [vmem:[%s6 + $0x8] sm:$0xff]
  %v1133 = vld [vmem:[%s6 + $0x10] sm:$0xff]
  %v1134 = vld [vmem:[%s6 + $0x18] sm:$0xff]
  %v1135 = vld [vmem:[%s6 + $0x20] sm:$0xff]
  %v1136 = vld [vmem:[%s6 + $0x28] sm:$0xff]
  %v1137 = vld [vmem:[%s6 + $0x30] sm:$0xff]
  %v1138 = vld [vmem:[%s6 + $0x38] sm:$0xff]
  %v1139 = vld [vmem:[%s6 + $0x40] sm:$0xff]
  %v1140 = vld [vmem:[%s6 + $0x48] sm:$0xff]
  %v1141 = vld [vmem:[%s6 + $0x50] sm:$0xff]
  %v1142 = vld [vmem:[%s6 + $0x58] sm:$0xff]
  %v1143 = vld [vmem:[%s6 + $0x60] sm:$0xff]
  %v1144 = vld [vmem:[%s6 + $0x68] sm:$0xff]
  %v1145 = vld [vmem:[%s6 + $0x70] sm:$0xff]
  %v1146 = vld [vmem:[%s6 + $0x78] sm:$0xff]
  %v1147 = vld [vmem:[%s6 + $0x80] sm:$0xff]
  %v1148 = vld [vmem:[%s6 + $0x88] sm:$0xff]
  %v1149 = vld [vmem:[%s6 + $0x90] sm:$0xff]
  %v1150 = vld [vmem:[%s6 + $0x98] sm:$0xff]
  %v1151 = vld [vmem:[%s6 + $0xa0] sm:$0xff]
  %v1152 = vld [vmem:[%s6 + $0xa8] sm:$0xff]
  %v1153 = vld [vmem:[%s6 + $0xb0] sm:$0xff]
  %v1154 = vld [vmem:[%s6 + $0xb8] sm:$0xff]
  %v1155 = vld [vmem:[%s6 + $0xc0] sm:$0xff]
  %v1156 = vld [vmem:[%s6 + $0xc8] sm:$0xff]
  %v1157 = vld [vmem:[%s6 + $0xd0] sm:$0xff]
  %v1158 = vld [vmem:[%s6 + $0xd8] sm:$0xff]
  %v1159 = vld [vmem:[%s6 + $0xe0] sm:$0xff]
  %v1160 = vld [vmem:[%s6 + $0xe8] sm:$0xff]
  %v1161 = vld [vmem:[%s6 + $0xf0] sm:$0xff]
  %v1162 = vld [vmem:[%s6 + $0xf8] sm:$0xff]
  %v1163 = vld [vmem:[%s6 + $0x100] sm:$0xff]
  %v1164 = vld [vmem:[%s6 + $0x108] sm:$0xff]
  %v1165 = vld [vmem:[%s6 + $0x110] sm:$0xff]
  %v1166 = vld [vmem:[%s6 + $0x118] sm:$0xff]
  %v1167 = vld [vmem:[%s6 + $0x120] sm:$0xff]
  %v1168 = vld [vmem:[%s6 + $0x128] sm:$0xff]
  %v1169 = vld [vmem:[%s6 + $0x130] sm:$0xff]
  %v1170 = vld [vmem:[%s6 + $0x138] sm:$0xff]
  %v1171 = vld [vmem:[%s6 + $0x140] sm:$0xff]
  %v1172 = vld [vmem:[%s6 + $0x148] sm:$0xff]
  %v1173 = vld [vmem:[%s6 + $0x150] sm:$0xff]
  %v1174 = vld [vmem:[%s6 + $0x158] sm:$0xff]
  %v1175 = vld [vmem:[%s6 + $0x160] sm:$0xff]
  %v1176 = vld [vmem:[%s6 + $0x168] sm:$0xff]
  %v1177 = vld [vmem:[%s6 + $0x170] sm:$0xff]
  %v1178 = vld [vmem:[%s6 + $0x178] sm:$0xff]
  %v1179 = vld [vmem:[%s6 + $0x180] sm:$0xff]
  %v1180 = vld [vmem:[%s6 + $0x188] sm:$0xff]
  %v1181 = vld [vmem:[%s6 + $0x190] sm:$0xff]
  %v1182 = vld [vmem:[%s6 + $0x198] sm:$0xff]
  %v1183 = vld [vmem:[%s6 + $0x1a0] sm:$0xff]
  %v1184 = vld [vmem:[%s6 + $0x1a8] sm:$0xff]
  %v1185 = vld [vmem:[%s6 + $0x1b0] sm:$0xff]
  %v1186 = vld [vmem:[%s6 + $0x1b8] sm:$0xff]
  %v1187 = vld [vmem:[%s6 + $0x1c0] sm:$0xff]
  %v1188 = vld [vmem:[%s6 + $0x1c8] sm:$0xff]
  %v1189 = vld [vmem:[%s6 + $0x1d0] sm:$0xff]
  %v1190 = vld [vmem:[%s6 + $0x1d8] sm:$0xff]
  %v1191 = vld [vmem:[%s6 + $0x1e0] sm:$0xff]
  %v1192 = vld [vmem:[%s6 + $0x1e8] sm:$0xff]
  %v1193 = vld [vmem:[%s6 + $0x1f0] sm:$0xff]
  %v1194 = vld [vmem:[%s6 + $0x1f8] sm:$0xff]
  %s1195 = scalar_lea.vmem %s5, 32
  %v1196 = vld [vmem:[%s1195] sm:$0xf]
  %v1197 = vld [vmem:[%s1195 + $0x4] sm:$0xf]
  %v1198 = vld [vmem:[%s1195 + $0x8] sm:$0xf]
  %v1199 = vld [vmem:[%s1195 + $0xc] sm:$0xf]
  %v1200 = vld [vmem:[%s1195 + $0x10] sm:$0xf]
  %v1201 = vld [vmem:[%s1195 + $0x14] sm:$0xf]
  %v1202 = vld [vmem:[%s1195 + $0x18] sm:$0xf]
  %v1203 = vld [vmem:[%s1195 + $0x1c] sm:$0xf]
  %v1212 = vunpack.c.l.b16 %v1196
  %v1213 = vunpack.c.l.b16 %v1197
  %v1214 = vunpack.c.l.b16 %v1198
  %v1215 = vunpack.c.l.b16 %v1199
  %v1216 = vunpack.c.l.b16 %v1200
  %v1217 = vunpack.c.l.b16 %v1201
  %v1218 = vunpack.c.l.b16 %v1202
  %v1219 = vunpack.c.l.b16 %v1203
  %v1220 = vpack.c.b16 %v1213, %v1212
  %v1221 = vpack.c.b16 %v1215, %v1214
  %v1222 = vpack.c.b16 %v1217, %v1216
  %v1223 = vpack.c.b16 %v1219, %v1218
  %v1225 = vsel %vm1037, %v1220, 0
  %v1228 = vsel %vm1037, %v1221, 0
  %v1231 = vsel %vm1037, %v1222, 0
  %v1234 = vsel %vm1037, %v1223, 0
  %1236 = vmatprep.subr.bf16.mxu0 %v1006
  %1237 = vmatpush1.bf16.msra.mxu0 %v1005
  %1238 = vmatprep.subr.bf16.mxu0 %v1008
  %1239 = vmatpush1.bf16.msra.mxu0 %v1007
  %1240 = vmatprep.subr.bf16.mxu0 0
  %1241 = vmatpush1.bf16.msra.mxu0 0
  %1242 = vmatprep.subr.bf16.mxu0 0
  %1243 = vmatpush1.bf16.msra.mxu0 0
  %1244 = vmatprep.subr.bf16.mxu0 0
  %1245 = vmatpush1.bf16.msra.mxu0 0
  %1246 = vmatprep.subr.bf16.mxu0 0
  %1247 = vmatpush1.bf16.msra.mxu0 0
  %1248 = vmatprep.subr.bf16.mxu0 0
  %1249 = vmatpush1.bf16.msra.mxu0 0
  %1250 = vmatprep.subr.bf16.mxu0 0
  %1251 = vmatpush1.bf16.msra.mxu0 0
  %1252 = vmatprep.subr.bf16.mxu0 0
  %1253 = vmatpush1.bf16.msra.mxu0 0
  %1254 = vmatprep.subr.bf16.mxu0 0
  %1255 = vmatpush1.bf16.msra.mxu0 0
  %1256 = vmatprep.subr.bf16.mxu0 0
  %1257 = vmatpush1.bf16.msra.mxu0 0
  %1258 = vmatprep.subr.bf16.mxu0 0
  %1259 = vmatpush1.bf16.msra.mxu0 0
  %1260 = vmatprep.subr.bf16.mxu0 0
  %1261 = vmatpush1.bf16.msra.mxu0 0
  %1262 = vmatprep.subr.bf16.mxu0 0
  %1263 = vmatpush1.bf16.msra.mxu0 0
  %1264 = vmatprep.subr.bf16.mxu0 0
  %1265 = vmatpush1.bf16.msra.mxu0 0
  %1266 = vmatprep.subr.bf16.mxu0 0
  %1267 = vmatpush1.bf16.msra.mxu0 0
  %1268 = vmatprep.mubr.bf16.mxu0 0
  %1269 = vmatmul.mubr.bf16.gmra.mrb[0].mxu0 %v1225
  %v1270 = vpop.f32.mrb[0].mxu0
  %v1271 = vadd.f32 0.0, %v1270
  %v1272 = vpop.f32.mrb[0].mxu0
  %v1273 = vadd.f32 0.0, %v1272
  %v1274 = vpop.f32.mrb[0].mxu0
  %v1275 = vadd.f32 0.0, %v1274
  %v1276 = vpop.f32.mrb[0].mxu0
  %v1277 = vadd.f32 0.0, %v1276
  %1278 = vmatprep.mubr.bf16.mxu0 0
  %1279 = vmatmul.mubr.bf16.gmra.mrb[0].mxu0 %v1228
  %v1280 = vpop.f32.mrb[0].mxu0
  %v1281 = vadd.f32 0.0, %v1280
  %v1282 = vpop.f32.mrb[0].mxu0
  %v1283 = vadd.f32 0.0, %v1282
  %v1284 = vpop.f32.mrb[0].mxu0
  %v1285 = vadd.f32 0.0, %v1284
  %v1286 = vpop.f32.mrb[0].mxu0
  %v1287 = vadd.f32 0.0, %v1286
  %1288 = vmatprep.mubr.bf16.mxu0 0
  %1289 = vmatmul.mubr.bf16.gmra.mrb[0].mxu0 %v1231
  %v1290 = vpop.f32.mrb[0].mxu0
  %v1291 = vadd.f32 0.0, %v1290
  %v1292 = vpop.f32.mrb[0].mxu0
  %v1293 = vadd.f32 0.0, %v1292
  %v1294 = vpop.f32.mrb[0].mxu0
  %v1295 = vadd.f32 0.0, %v1294
  %v1296 = vpop.f32.mrb[0].mxu0
  %v1297 = vadd.f32 0.0, %v1296
  %1298 = vmatprep.mubr.bf16.mxu0 0
  %1299 = vmatmul.mubr.bf16.gmra.mrb[0].mxu0 %v1234
  %v1300 = vpop.f32.mrb[0].mxu0
  %v1301 = vadd.f32 0.0, %v1300
  %v1302 = vpop.f32.mrb[0].mxu0
  %v1303 = vadd.f32 0.0, %v1302
  %v1304 = vpop.f32.mrb[0].mxu0
  %v1305 = vadd.f32 0.0, %v1304
  %v1306 = vpop.f32.mrb[0].mxu0
  %v1307 = vadd.f32 0.0, %v1306
  %1308 = vdwg.mxu0
  %v1309 = vpack.c.bf16 %v1275, %v1271
  %v1310 = vpack.c.bf16 %v1277, %v1273
  %v1311 = vpack.c.bf16 %v1285, %v1281
  %v1312 = vpack.c.bf16 %v1287, %v1283
  %v1313 = vpack.c.bf16 %v1295, %v1291
  %v1314 = vpack.c.bf16 %v1297, %v1293
  %v1315 = vpack.c.bf16 %v1305, %v1301
  %v1316 = vpack.c.bf16 %v1307, %v1303
  %s1317 = scalar_lea.vmem %s6, 512
  %v1318 = vld [vmem:[%s1317] sm:$0xff]
  %v1319 = vld [vmem:[%s1317 + $0x8] sm:$0xff]
  %v1320 = vld [vmem:[%s1317 + $0x10] sm:$0xff]
  %v1321 = vld [vmem:[%s1317 + $0x18] sm:$0xff]
  %v1322 = vld [vmem:[%s1317 + $0x20] sm:$0xff]
  %v1323 = vld [vmem:[%s1317 + $0x28] sm:$0xff]
  %v1324 = vld [vmem:[%s1317 + $0x30] sm:$0xff]
  %v1325 = vld [vmem:[%s1317 + $0x38] sm:$0xff]
  %v1326 = vld [vmem:[%s1317 + $0x40] sm:$0xff]
  %v1327 = vld [vmem:[%s1317 + $0x48] sm:$0xff]
  %v1328 = vld [vmem:[%s1317 + $0x50] sm:$0xff]
  %v1329 = vld [vmem:[%s1317 + $0x58] sm:$0xff]
  %v1330 = vld [vmem:[%s1317 + $0x60] sm:$0xff]
  %v1331 = vld [vmem:[%s1317 + $0x68] sm:$0xff]
  %v1332 = vld [vmem:[%s1317 + $0x70] sm:$0xff]
  %v1333 = vld [vmem:[%s1317 + $0x78] sm:$0xff]
  %v1334 = vld [vmem:[%s1317 + $0x80] sm:$0xff]
  %v1335 = vld [vmem:[%s1317 + $0x88] sm:$0xff]
  %v1336 = vld [vmem:[%s1317 + $0x90] sm:$0xff]
  %v1337 = vld [vmem:[%s1317 + $0x98] sm:$0xff]
  %v1338 = vld [vmem:[%s1317 + $0xa0] sm:$0xff]
  %v1339 = vld [vmem:[%s1317 + $0xa8] sm:$0xff]
  %v1340 = vld [vmem:[%s1317 + $0xb0] sm:$0xff]
  %v1341 = vld [vmem:[%s1317 + $0xb8] sm:$0xff]
  %v1342 = vld [vmem:[%s1317 + $0xc0] sm:$0xff]
  %v1343 = vld [vmem:[%s1317 + $0xc8] sm:$0xff]
  %v1344 = vld [vmem:[%s1317 + $0xd0] sm:$0xff]
  %v1345 = vld [vmem:[%s1317 + $0xd8] sm:$0xff]
  %v1346 = vld [vmem:[%s1317 + $0xe0] sm:$0xff]
  %v1347 = vld [vmem:[%s1317 + $0xe8] sm:$0xff]
  %v1348 = vld [vmem:[%s1317 + $0xf0] sm:$0xff]
  %v1349 = vld [vmem:[%s1317 + $0xf8] sm:$0xff]
  %v1350 = vld [vmem:[%s1317 + $0x100] sm:$0xff]
  %v1351 = vld [vmem:[%s1317 + $0x108] sm:$0xff]
  %v1352 = vld [vmem:[%s1317 + $0x110] sm:$0xff]
  %v1353 = vld [vmem:[%s1317 + $0x118] sm:$0xff]
  %v1354 = vld [vmem:[%s1317 + $0x120] sm:$0xff]
  %v1355 = vld [vmem:[%s1317 + $0x128] sm:$0xff]
  %v1356 = vld [vmem:[%s1317 + $0x130] sm:$0xff]
  %v1357 = vld [vmem:[%s1317 + $0x138] sm:$0xff]
  %v1358 = vld [vmem:[%s1317 + $0x140] sm:$0xff]
  %v1359 = vld [vmem:[%s1317 + $0x148] sm:$0xff]
  %v1360 = vld [vmem:[%s1317 + $0x150] sm:$0xff]
  %v1361 = vld [vmem:[%s1317 + $0x158] sm:$0xff]
  %v1362 = vld [vmem:[%s1317 + $0x160] sm:$0xff]
  %v1363 = vld [vmem:[%s1317 + $0x168] sm:$0xff]
  %v1364 = vld [vmem:[%s1317 + $0x170] sm:$0xff]
  %v1365 = vld [vmem:[%s1317 + $0x178] sm:$0xff]
  %v1366 = vld [vmem:[%s1317 + $0x180] sm:$0xff]
  %v1367 = vld [vmem:[%s1317 + $0x188] sm:$0xff]
  %v1368 = vld [vmem:[%s1317 + $0x190] sm:$0xff]
  %v1369 = vld [vmem:[%s1317 + $0x198] sm:$0xff]
  %v1370 = vld [vmem:[%s1317 + $0x1a0] sm:$0xff]
  %v1371 = vld [vmem:[%s1317 + $0x1a8] sm:$0xff]
  %v1372 = vld [vmem:[%s1317 + $0x1b0] sm:$0xff]
  %v1373 = vld [vmem:[%s1317 + $0x1b8] sm:$0xff]
  %v1374 = vld [vmem:[%s1317 + $0x1c0] sm:$0xff]
  %v1375 = vld [vmem:[%s1317 + $0x1c8] sm:$0xff]
  %v1376 = vld [vmem:[%s1317 + $0x1d0] sm:$0xff]
  %v1377 = vld [vmem:[%s1317 + $0x1d8] sm:$0xff]
  %v1378 = vld [vmem:[%s1317 + $0x1e0] sm:$0xff]
  %v1379 = vld [vmem:[%s1317 + $0x1e8] sm:$0xff]
  %v1380 = vld [vmem:[%s1317 + $0x1f0] sm:$0xff]
  %v1381 = vld [vmem:[%s1317 + $0x1f8] sm:$0xff]
  %v1446 = vunpack.c.l.b16 %v1318
  %v1447 = vunpack.c.h.b16 %v1318
  %v1448 = vunpack.c.l.b16 %v1319
  %v1449 = vunpack.c.h.b16 %v1319
  %v1450 = vunpack.c.l.b16 %v1320
  %v1451 = vunpack.c.h.b16 %v1320
  %v1452 = vunpack.c.l.b16 %v1321
  %v1453 = vunpack.c.h.b16 %v1321
  %v1454 = vunpack.c.l.b16 %v1322
  %v1455 = vunpack.c.h.b16 %v1322
  %v1456 = vunpack.c.l.b16 %v1323
  %v1457 = vunpack.c.h.b16 %v1323
  %v1458 = vunpack.c.l.b16 %v1324
  %v1459 = vunpack.c.h.b16 %v1324
  %v1460 = vunpack.c.l.b16 %v1325
  %v1461 = vunpack.c.h.b16 %v1325
  %v1462 = vunpack.c.l.b16 %v1326
  %v1463 = vunpack.c.h.b16 %v1326
  %v1464 = vunpack.c.l.b16 %v1327
  %v1465 = vunpack.c.h.b16 %v1327
  %v1466 = vunpack.c.l.b16 %v1328
  %v1467 = vunpack.c.h.b16 %v1328
  %v1468 = vunpack.c.l.b16 %v1329
  %v1469 = vunpack.c.h.b16 %v1329
  %v1470 = vunpack.c.l.b16 %v1330
  %v1471 = vunpack.c.h.b16 %v1330
  %v1472 = vunpack.c.l.b16 %v1331
  %v1473 = vunpack.c.h.b16 %v1331
  %v1474 = vunpack.c.l.b16 %v1332
  %v1475 = vunpack.c.h.b16 %v1332
  %v1476 = vunpack.c.l.b16 %v1333
  %v1477 = vunpack.c.h.b16 %v1333
  %v1478 = vunpack.c.l.b16 %v1334
  %v1479 = vunpack.c.h.b16 %v1334
  %v1480 = vunpack.c.l.b16 %v1335
  %v1481 = vunpack.c.h.b16 %v1335
  %v1482 = vunpack.c.l.b16 %v1336
  %v1483 = vunpack.c.h.b16 %v1336
  %v1484 = vunpack.c.l.b16 %v1337
  %v1485 = vunpack.c.h.b16 %v1337
  %v1486 = vunpack.c.l.b16 %v1338
  %v1487 = vunpack.c.h.b16 %v1338
  %v1488 = vunpack.c.l.b16 %v1339
  %v1489 = vunpack.c.h.b16 %v1339
  %v1490 = vunpack.c.l.b16 %v1340
  %v1491 = vunpack.c.h.b16 %v1340
  %v1492 = vunpack.c.l.b16 %v1341
  %v1493 = vunpack.c.h.b16 %v1341
  %v1494 = vunpack.c.l.b16 %v1342
  %v1495 = vunpack.c.h.b16 %v1342
  %v1496 = vunpack.c.l.b16 %v1343
  %v1497 = vunpack.c.h.b16 %v1343
  %v1498 = vunpack.c.l.b16 %v1344
  %v1499 = vunpack.c.h.b16 %v1344
  %v1500 = vunpack.c.l.b16 %v1345
  %v1501 = vunpack.c.h.b16 %v1345
  %v1502 = vunpack.c.l.b16 %v1346
  %v1503 = vunpack.c.h.b16 %v1346
  %v1504 = vunpack.c.l.b16 %v1347
  %v1505 = vunpack.c.h.b16 %v1347
  %v1506 = vunpack.c.l.b16 %v1348
  %v1507 = vunpack.c.h.b16 %v1348
  %v1508 = vunpack.c.l.b16 %v1349
  %v1509 = vunpack.c.h.b16 %v1349
  %v1510 = vunpack.c.l.b16 %v1350
  %v1511 = vunpack.c.h.b16 %v1350
  %v1512 = vunpack.c.l.b16 %v1351
  %v1513 = vunpack.c.h.b16 %v1351
  %v1514 = vunpack.c.l.b16 %v1352
  %v1515 = vunpack.c.h.b16 %v1352
  %v1516 = vunpack.c.l.b16 %v1353
  %v1517 = vunpack.c.h.b16 %v1353
  %v1518 = vunpack.c.l.b16 %v1354
  %v1519 = vunpack.c.h.b16 %v1354
  %v1520 = vunpack.c.l.b16 %v1355
  %v1521 = vunpack.c.h.b16 %v1355
  %v1522 = vunpack.c.l.b16 %v1356
  %v1523 = vunpack.c.h.b16 %v1356
  %v1524 = vunpack.c.l.b16 %v1357
  %v1525 = vunpack.c.h.b16 %v1357
  %v1526 = vunpack.c.l.b16 %v1358
  %v1527 = vunpack.c.h.b16 %v1358
  %v1528 = vunpack.c.l.b16 %v1359
  %v1529 = vunpack.c.h.b16 %v1359
  %v1530 = vunpack.c.l.b16 %v1360
  %v1531 = vunpack.c.h.b16 %v1360
  %v1532 = vunpack.c.l.b16 %v1361
  %v1533 = vunpack.c.h.b16 %v1361
  %v1534 = vunpack.c.l.b16 %v1362
  %v1535 = vunpack.c.h.b16 %v1362
  %v1536 = vunpack.c.l.b16 %v1363
  %v1537 = vunpack.c.h.b16 %v1363
  %v1538 = vunpack.c.l.b16 %v1364
  %v1539 = vunpack.c.h.b16 %v1364
  %v1540 = vunpack.c.l.b16 %v1365
  %v1541 = vunpack.c.h.b16 %v1365
  %v1542 = vunpack.c.l.b16 %v1366
  %v1543 = vunpack.c.h.b16 %v1366
  %v1544 = vunpack.c.l.b16 %v1367
  %v1545 = vunpack.c.h.b16 %v1367
  %v1546 = vunpack.c.l.b16 %v1368
  %v1547 = vunpack.c.h.b16 %v1368
  %v1548 = vunpack.c.l.b16 %v1369
  %v1549 = vunpack.c.h.b16 %v1369
  %v1550 = vunpack.c.l.b16 %v1370
  %v1551 = vunpack.c.h.b16 %v1370
  %v1552 = vunpack.c.l.b16 %v1371
  %v1553 = vunpack.c.h.b16 %v1371
  %v1554 = vunpack.c.l.b16 %v1372
  %v1555 = vunpack.c.h.b16 %v1372
  %v1556 = vunpack.c.l.b16 %v1373
  %v1557 = vunpack.c.h.b16 %v1373
  %v1558 = vunpack.c.l.b16 %v1374
  %v1559 = vunpack.c.h.b16 %v1374
  %v1560 = vunpack.c.l.b16 %v1375
  %v1561 = vunpack.c.h.b16 %v1375
  %v1562 = vunpack.c.l.b16 %v1376
  %v1563 = vunpack.c.h.b16 %v1376
  %v1564 = vunpack.c.l.b16 %v1377
  %v1565 = vunpack.c.h.b16 %v1377
  %v1566 = vunpack.c.l.b16 %v1378
  %v1567 = vunpack.c.h.b16 %v1378
  %v1568 = vunpack.c.l.b16 %v1379
  %v1569 = vunpack.c.h.b16 %v1379
  %v1570 = vunpack.c.l.b16 %v1380
  %v1571 = vunpack.c.h.b16 %v1380
  %v1572 = vunpack.c.l.b16 %v1381
  %v1573 = vunpack.c.h.b16 %v1381
  %v1574 = vpack.c.b16 %v1450, %v1446
  %v1575 = vpack.c.b16 %v1451, %v1447
  %v1576 = vpack.c.b16 %v1452, %v1448
  %v1577 = vpack.c.b16 %v1453, %v1449
  %v1578 = vpack.c.b16 %v1458, %v1454
  %v1579 = vpack.c.b16 %v1459, %v1455
  %v1580 = vpack.c.b16 %v1460, %v1456
  %v1581 = vpack.c.b16 %v1461, %v1457
  %v1582 = vpack.c.b16 %v1466, %v1462
  %v1583 = vpack.c.b16 %v1467, %v1463
  %v1584 = vpack.c.b16 %v1468, %v1464
  %v1585 = vpack.c.b16 %v1469, %v1465
  %v1586 = vpack.c.b16 %v1474, %v1470
  %v1587 = vpack.c.b16 %v1475, %v1471
  %v1588 = vpack.c.b16 %v1476, %v1472
  %v1589 = vpack.c.b16 %v1477, %v1473
  %v1590 = vpack.c.b16 %v1482, %v1478
  %v1591 = vpack.c.b16 %v1483, %v1479
  %v1592 = vpack.c.b16 %v1484, %v1480
  %v1593 = vpack.c.b16 %v1485, %v1481
  %v1594 = vpack.c.b16 %v1490, %v1486
  %v1595 = vpack.c.b16 %v1491, %v1487
  %v1596 = vpack.c.b16 %v1492, %v1488
  %v1597 = vpack.c.b16 %v1493, %v1489
  %v1598 = vpack.c.b16 %v1498, %v1494
  %v1599 = vpack.c.b16 %v1499, %v1495
  %v1600 = vpack.c.b16 %v1500, %v1496
  %v1601 = vpack.c.b16 %v1501, %v1497
  %v1602 = vpack.c.b16 %v1506, %v1502
  %v1603 = vpack.c.b16 %v1507, %v1503
  %v1604 = vpack.c.b16 %v1508, %v1504
  %v1605 = vpack.c.b16 %v1509, %v1505
  %v1606 = vpack.c.b16 %v1514, %v1510
  %v1607 = vpack.c.b16 %v1515, %v1511
  %v1608 = vpack.c.b16 %v1516, %v1512
  %v1609 = vpack.c.b16 %v1517, %v1513
  %v1610 = vpack.c.b16 %v1522, %v1518
  %v1611 = vpack.c.b16 %v1523, %v1519
  %v1612 = vpack.c.b16 %v1524, %v1520
  %v1613 = vpack.c.b16 %v1525, %v1521
  %v1614 = vpack.c.b16 %v1530, %v1526
  %v1615 = vpack.c.b16 %v1531, %v1527
  %v1616 = vpack.c.b16 %v1532, %v1528
  %v1617 = vpack.c.b16 %v1533, %v1529
  %v1618 = vpack.c.b16 %v1538, %v1534
  %v1619 = vpack.c.b16 %v1539, %v1535
  %v1620 = vpack.c.b16 %v1540, %v1536
  %v1621 = vpack.c.b16 %v1541, %v1537
  %v1622 = vpack.c.b16 %v1546, %v1542
  %v1623 = vpack.c.b16 %v1547, %v1543
  %v1624 = vpack.c.b16 %v1548, %v1544
  %v1625 = vpack.c.b16 %v1549, %v1545
  %v1626 = vpack.c.b16 %v1554, %v1550
  %v1627 = vpack.c.b16 %v1555, %v1551
  %v1628 = vpack.c.b16 %v1556, %v1552
  %v1629 = vpack.c.b16 %v1557, %v1553
  %v1630 = vpack.c.b16 %v1562, %v1558
  %v1631 = vpack.c.b16 %v1563, %v1559
  %v1632 = vpack.c.b16 %v1564, %v1560
  %v1633 = vpack.c.b16 %v1565, %v1561
  %v1634 = vpack.c.b16 %v1570, %v1566
  %v1635 = vpack.c.b16 %v1571, %v1567
  %v1636 = vpack.c.b16 %v1572, %v1568
  %v1637 = vpack.c.b16 %v1573, %v1569
  %1702 = vmatprep.subr.bf16.mxu0 %v1575
  %1703 = vmatpush1.bf16.msra.mxu0 %v1574
  %1704 = vmatprep.subr.bf16.mxu0 %v1579
  %1705 = vmatpush1.bf16.msra.mxu0 %v1578
  %1706 = vmatprep.subr.bf16.mxu0 %v1583
  %1707 = vmatpush1.bf16.msra.mxu0 %v1582
  %1708 = vmatprep.subr.bf16.mxu0 %v1587
  %1709 = vmatpush1.bf16.msra.mxu0 %v1586
  %1710 = vmatprep.subr.bf16.mxu0 %v1591
  %1711 = vmatpush1.bf16.msra.mxu0 %v1590
  %1712 = vmatprep.subr.bf16.mxu0 %v1595
  %1713 = vmatpush1.bf16.msra.mxu0 %v1594
  %1714 = vmatprep.subr.bf16.mxu0 %v1599
  %1715 = vmatpush1.bf16.msra.mxu0 %v1598
  %1716 = vmatprep.subr.bf16.mxu0 %v1603
  %1717 = vmatpush1.bf16.msra.mxu0 %v1602
  %1718 = vmatprep.subr.bf16.mxu0 %v1607
  %1719 = vmatpush1.bf16.msra.mxu0 %v1606
  %1720 = vmatprep.subr.bf16.mxu0 %v1611
  %1721 = vmatpush1.bf16.msra.mxu0 %v1610
  %1722 = vmatprep.subr.bf16.mxu0 %v1615
  %1723 = vmatpush1.bf16.msra.mxu0 %v1614
  %1724 = vmatprep.subr.bf16.mxu0 %v1619
  %1725 = vmatpush1.bf16.msra.mxu0 %v1618
  %1726 = vmatprep.subr.bf16.mxu0 %v1623
  %1727 = vmatpush1.bf16.msra.mxu0 %v1622
  %1728 = vmatprep.subr.bf16.mxu0 %v1627
  %1729 = vmatpush1.bf16.msra.mxu0 %v1626
  %1730 = vmatprep.subr.bf16.mxu0 %v1631
  %1731 = vmatpush1.bf16.msra.mxu0 %v1630
  %1732 = vmatprep.subr.bf16.mxu0 %v1635
  %1733 = vmatpush1.bf16.msra.mxu0 %v1634
  %1734 = vmatprep.mubr.bf16.mxu0 %v1310
  %1735 = vmatmul.mubr.bf16.gmra.mrb[0].mxu0 %v1309
  %v1736 = vpop.f32.mrb[0].mxu0
  %v1737 = vadd.f32 0.0, %v1736
  %v1738 = vpop.f32.mrb[0].mxu0
  %v1739 = vadd.f32 0.0, %v1738
  %v1740 = vpop.f32.mrb[0].mxu0
  %v1741 = vadd.f32 0.0, %v1740
  %v1742 = vpop.f32.mrb[0].mxu0
  %v1743 = vadd.f32 0.0, %v1742
  %1744 = vmatprep.mubr.bf16.mxu0 %v1312
  %1745 = vmatmul.mubr.bf16.gmra.mrb[0].mxu0 %v1311
  %v1746 = vpop.f32.mrb[0].mxu0
  %v1747 = vadd.f32 0.0, %v1746
  %v1748 = vpop.f32.mrb[0].mxu0
  %v1749 = vadd.f32 0.0, %v1748
  %v1750 = vpop.f32.mrb[0].mxu0
  %v1751 = vadd.f32 0.0, %v1750
  %v1752 = vpop.f32.mrb[0].mxu0
  %v1753 = vadd.f32 0.0, %v1752
  %1754 = vmatprep.mubr.bf16.mxu0 %v1314
  %1755 = vmatmul.mubr.bf16.gmra.mrb[0].mxu0 %v1313
  %v1756 = vpop.f32.mrb[0].mxu0
  %v1757 = vadd.f32 0.0, %v1756
  %v1758 = vpop.f32.mrb[0].mxu0
  %v1759 = vadd.f32 0.0, %v1758
  %v1760 = vpop.f32.mrb[0].mxu0
  %v1761 = vadd.f32 0.0, %v1760
  %v1762 = vpop.f32.mrb[0].mxu0
  %v1763 = vadd.f32 0.0, %v1762
  %1764 = vmatprep.mubr.bf16.mxu0 %v1316
  %1765 = vmatmul.mubr.bf16.gmra.mrb[0].mxu0 %v1315
  %v1766 = vpop.f32.mrb[0].mxu0
  %v1767 = vadd.f32 0.0, %v1766
  %v1768 = vpop.f32.mrb[0].mxu0
  %v1769 = vadd.f32 0.0, %v1768
  %v1770 = vpop.f32.mrb[0].mxu0
  %v1771 = vadd.f32 0.0, %v1770
  %v1772 = vpop.f32.mrb[0].mxu0
  %v1773 = vadd.f32 0.0, %v1772
  %1774 = vdwg.mxu0
  %1775 = vmatprep.subr.bf16.mxu0 %v1577
  %1776 = vmatpush1.bf16.msra.mxu0 %v1576
  %1777 = vmatprep.subr.bf16.mxu0 %v1581
  %1778 = vmatpush1.bf16.msra.mxu0 %v1580
  %1779 = vmatprep.subr.bf16.mxu0 %v1585
  %1780 = vmatpush1.bf16.msra.mxu0 %v1584
  %1781 = vmatprep.subr.bf16.mxu0 %v1589
  %1782 = vmatpush1.bf16.msra.mxu0 %v1588
  %1783 = vmatprep.subr.bf16.mxu0 %v1593
  %1784 = vmatpush1.bf16.msra.mxu0 %v1592
  %1785 = vmatprep.subr.bf16.mxu0 %v1597
  %1786 = vmatpush1.bf16.msra.mxu0 %v1596
  %1787 = vmatprep.subr.bf16.mxu0 %v1601
  %1788 = vmatpush1.bf16.msra.mxu0 %v1600
  %1789 = vmatprep.subr.bf16.mxu0 %v1605
  %1790 = vmatpush1.bf16.msra.mxu0 %v1604
  %1791 = vmatprep.subr.bf16.mxu0 %v1609
  %1792 = vmatpush1.bf16.msra.mxu0 %v1608
  %1793 = vmatprep.subr.bf16.mxu0 %v1613
  %1794 = vmatpush1.bf16.msra.mxu0 %v1612
  %1795 = vmatprep.subr.bf16.mxu0 %v1617
  %1796 = vmatpush1.bf16.msra.mxu0 %v1616
  %1797 = vmatprep.subr.bf16.mxu0 %v1621
  %1798 = vmatpush1.bf16.msra.mxu0 %v1620
  %1799 = vmatprep.subr.bf16.mxu0 %v1625
  %1800 = vmatpush1.bf16.msra.mxu0 %v1624
  %1801 = vmatprep.subr.bf16.mxu0 %v1629
  %1802 = vmatpush1.bf16.msra.mxu0 %v1628
  %1803 = vmatprep.subr.bf16.mxu0 %v1633
  %1804 = vmatpush1.bf16.msra.mxu0 %v1632
  %1805 = vmatprep.subr.bf16.mxu0 %v1637
  %1806 = vmatpush1.bf16.msra.mxu0 %v1636
  %1807 = vmatprep.mubr.bf16.mxu0 %v1310
  %1808 = vmatmul.mubr.bf16.gmra.mrb[0].mxu0 %v1309
  %v1809 = vpop.f32.mrb[0].mxu0
  %v1810 = vadd.f32 0.0, %v1809
  %v1811 = vpop.f32.mrb[0].mxu0
  %v1812 = vadd.f32 0.0, %v1811
  %v1813 = vpop.f32.mrb[0].mxu0
  %v1814 = vadd.f32 0.0, %v1813
  %v1815 = vpop.f32.mrb[0].mxu0
  %v1816 = vadd.f32 0.0, %v1815
  %1817 = vmatprep.mubr.bf16.mxu0 %v1312
  %1818 = vmatmul.mubr.bf16.gmra.mrb[0].mxu0 %v1311
  %v1819 = vpop.f32.mrb[0].mxu0
  %v1820 = vadd.f32 0.0, %v1819
  %v1821 = vpop.f32.mrb[0].mxu0
  %v1822 = vadd.f32 0.0, %v1821
  %v1823 = vpop.f32.mrb[0].mxu0
  %v1824 = vadd.f32 0.0, %v1823
  %v1825 = vpop.f32.mrb[0].mxu0
  %v1826 = vadd.f32 0.0, %v1825
  %1827 = vmatprep.mubr.bf16.mxu0 %v1314
  %1828 = vmatmul.mubr.bf16.gmra.mrb[0].mxu0 %v1313
  %v1829 = vpop.f32.mrb[0].mxu0
  %v1830 = vadd.f32 0.0, %v1829
  %v1831 = vpop.f32.mrb[0].mxu0
  %v1832 = vadd.f32 0.0, %v1831
  %v1833 = vpop.f32.mrb[0].mxu0
  %v1834 = vadd.f32 0.0, %v1833
  %v1835 = vpop.f32.mrb[0].mxu0
  %v1836 = vadd.f32 0.0, %v1835
  %1837 = vmatprep.mubr.bf16.mxu0 %v1316
  %1838 = vmatmul.mubr.bf16.gmra.mrb[0].mxu0 %v1315
  %v1839 = vpop.f32.mrb[0].mxu0
  %v1840 = vadd.f32 0.0, %v1839
  %v1841 = vpop.f32.mrb[0].mxu0
  %v1842 = vadd.f32 0.0, %v1841
  %v1843 = vpop.f32.mrb[0].mxu0
  %v1844 = vadd.f32 0.0, %v1843
  %v1845 = vpop.f32.mrb[0].mxu0
  %v1846 = vadd.f32 0.0, %v1845
  %1847 = vdwg.mxu0
  %v1912 = vunpack.c.l.b16 %v1131
  %v1913 = vunpack.c.h.b16 %v1131
  %v1914 = vunpack.c.l.b16 %v1132
  %v1915 = vunpack.c.h.b16 %v1132
  %v1916 = vunpack.c.l.b16 %v1133
  %v1917 = vunpack.c.h.b16 %v1133
  %v1918 = vunpack.c.l.b16 %v1134
  %v1919 = vunpack.c.h.b16 %v1134
  %v1920 = vunpack.c.l.b16 %v1135
  %v1921 = vunpack.c.h.b16 %v1135
  %v1922 = vunpack.c.l.b16 %v1136
  %v1923 = vunpack.c.h.b16 %v1136
  %v1924 = vunpack.c.l.b16 %v1137
  %v1925 = vunpack.c.h.b16 %v1137
  %v1926 = vunpack.c.l.b16 %v1138
  %v1927 = vunpack.c.h.b16 %v1138
  %v1928 = vunpack.c.l.b16 %v1139
  %v1929 = vunpack.c.h.b16 %v1139
  %v1930 = vunpack.c.l.b16 %v1140
  %v1931 = vunpack.c.h.b16 %v1140
  %v1932 = vunpack.c.l.b16 %v1141
  %v1933 = vunpack.c.h.b16 %v1141
  %v1934 = vunpack.c.l.b16 %v1142
  %v1935 = vunpack.c.h.b16 %v1142
  %v1936 = vunpack.c.l.b16 %v1143
  %v1937 = vunpack.c.h.b16 %v1143
  %v1938 = vunpack.c.l.b16 %v1144
  %v1939 = vunpack.c.h.b16 %v1144
  %v1940 = vunpack.c.l.b16 %v1145
  %v1941 = vunpack.c.h.b16 %v1145
  %v1942 = vunpack.c.l.b16 %v1146
  %v1943 = vunpack.c.h.b16 %v1146
  %v1944 = vunpack.c.l.b16 %v1147
  %v1945 = vunpack.c.h.b16 %v1147
  %v1946 = vunpack.c.l.b16 %v1148
  %v1947 = vunpack.c.h.b16 %v1148
  %v1948 = vunpack.c.l.b16 %v1149
  %v1949 = vunpack.c.h.b16 %v1149
  %v1950 = vunpack.c.l.b16 %v1150
  %v1951 = vunpack.c.h.b16 %v1150
  %v1952 = vunpack.c.l.b16 %v1151
  %v1953 = vunpack.c.h.b16 %v1151
  %v1954 = vunpack.c.l.b16 %v1152
  %v1955 = vunpack.c.h.b16 %v1152
  %v1956 = vunpack.c.l.b16 %v1153
  %v1957 = vunpack.c.h.b16 %v1153
  %v1958 = vunpack.c.l.b16 %v1154
  %v1959 = vunpack.c.h.b16 %v1154
  %v1960 = vunpack.c.l.b16 %v1155
  %v1961 = vunpack.c.h.b16 %v1155
  %v1962 = vunpack.c.l.b16 %v1156
  %v1963 = vunpack.c.h.b16 %v1156
  %v1964 = vunpack.c.l.b16 %v1157
  %v1965 = vunpack.c.h.b16 %v1157
  %v1966 = vunpack.c.l.b16 %v1158
  %v1967 = vunpack.c.h.b16 %v1158
  %v1968 = vunpack.c.l.b16 %v1159
  %v1969 = vunpack.c.h.b16 %v1159
  %v1970 = vunpack.c.l.b16 %v1160
  %v1971 = vunpack.c.h.b16 %v1160
  %v1972 = vunpack.c.l.b16 %v1161
  %v1973 = vunpack.c.h.b16 %v1161
  %v1974 = vunpack.c.l.b16 %v1162
  %v1975 = vunpack.c.h.b16 %v1162
  %v1976 = vunpack.c.l.b16 %v1163
  %v1977 = vunpack.c.h.b16 %v1163
  %v1978 = vunpack.c.l.b16 %v1164
  %v1979 = vunpack.c.h.b16 %v1164
  %v1980 = vunpack.c.l.b16 %v1165
  %v1981 = vunpack.c.h.b16 %v1165
  %v1982 = vunpack.c.l.b16 %v1166
  %v1983 = vunpack.c.h.b16 %v1166
  %v1984 = vunpack.c.l.b16 %v1167
  %v1985 = vunpack.c.h.b16 %v1167
  %v1986 = vunpack.c.l.b16 %v1168
  %v1987 = vunpack.c.h.b16 %v1168
  %v1988 = vunpack.c.l.b16 %v1169
  %v1989 = vunpack.c.h.b16 %v1169
  %v1990 = vunpack.c.l.b16 %v1170
  %v1991 = vunpack.c.h.b16 %v1170
  %v1992 = vunpack.c.l.b16 %v1171
  %v1993 = vunpack.c.h.b16 %v1171
  %v1994 = vunpack.c.l.b16 %v1172
  %v1995 = vunpack.c.h.b16 %v1172
  %v1996 = vunpack.c.l.b16 %v1173
  %v1997 = vunpack.c.h.b16 %v1173
  %v1998 = vunpack.c.l.b16 %v1174
  %v1999 = vunpack.c.h.b16 %v1174
  %v2000 = vunpack.c.l.b16 %v1175
  %v2001 = vunpack.c.h.b16 %v1175
  %v2002 = vunpack.c.l.b16 %v1176
  %v2003 = vunpack.c.h.b16 %v1176
  %v2004 = vunpack.c.l.b16 %v1177
  %v2005 = vunpack.c.h.b16 %v1177
  %v2006 = vunpack.c.l.b16 %v1178
  %v2007 = vunpack.c.h.b16 %v1178
  %v2008 = vunpack.c.l.b16 %v1179
  %v2009 = vunpack.c.h.b16 %v1179
  %v2010 = vunpack.c.l.b16 %v1180
  %v2011 = vunpack.c.h.b16 %v1180
  %v2012 = vunpack.c.l.b16 %v1181
  %v2013 = vunpack.c.h.b16 %v1181
  %v2014 = vunpack.c.l.b16 %v1182
  %v2015 = vunpack.c.h.b16 %v1182
  %v2016 = vunpack.c.l.b16 %v1183
  %v2017 = vunpack.c.h.b16 %v1183
  %v2018 = vunpack.c.l.b16 %v1184
  %v2019 = vunpack.c.h.b16 %v1184
  %v2020 = vunpack.c.l.b16 %v1185
  %v2021 = vunpack.c.h.b16 %v1185
  %v2022 = vunpack.c.l.b16 %v1186
  %v2023 = vunpack.c.h.b16 %v1186
  %v2024 = vunpack.c.l.b16 %v1187
  %v2025 = vunpack.c.h.b16 %v1187
  %v2026 = vunpack.c.l.b16 %v1188
  %v2027 = vunpack.c.h.b16 %v1188
  %v2028 = vunpack.c.l.b16 %v1189
  %v2029 = vunpack.c.h.b16 %v1189
  %v2030 = vunpack.c.l.b16 %v1190
  %v2031 = vunpack.c.h.b16 %v1190
  %v2032 = vunpack.c.l.b16 %v1191
  %v2033 = vunpack.c.h.b16 %v1191
  %v2034 = vunpack.c.l.b16 %v1192
  %v2035 = vunpack.c.h.b16 %v1192
  %v2036 = vunpack.c.l.b16 %v1193
  %v2037 = vunpack.c.h.b16 %v1193
  %v2038 = vunpack.c.l.b16 %v1194
  %v2039 = vunpack.c.h.b16 %v1194
  %v2040 = vpack.c.b16 %v1916, %v1912
  %v2041 = vpack.c.b16 %v1917, %v1913
  %v2042 = vpack.c.b16 %v1918, %v1914
  %v2043 = vpack.c.b16 %v1919, %v1915
  %v2044 = vpack.c.b16 %v1924, %v1920
  %v2045 = vpack.c.b16 %v1925, %v1921
  %v2046 = vpack.c.b16 %v1926, %v1922
  %v2047 = vpack.c.b16 %v1927, %v1923
  %v2048 = vpack.c.b16 %v1932, %v1928
  %v2049 = vpack.c.b16 %v1933, %v1929
  %v2050 = vpack.c.b16 %v1934, %v1930
  %v2051 = vpack.c.b16 %v1935, %v1931
  %v2052 = vpack.c.b16 %v1940, %v1936
  %v2053 = vpack.c.b16 %v1941, %v1937
  %v2054 = vpack.c.b16 %v1942, %v1938
  %v2055 = vpack.c.b16 %v1943, %v1939
  %v2056 = vpack.c.b16 %v1948, %v1944
  %v2057 = vpack.c.b16 %v1949, %v1945
  %v2058 = vpack.c.b16 %v1950, %v1946
  %v2059 = vpack.c.b16 %v1951, %v1947
  %v2060 = vpack.c.b16 %v1956, %v1952
  %v2061 = vpack.c.b16 %v1957, %v1953
  %v2062 = vpack.c.b16 %v1958, %v1954
  %v2063 = vpack.c.b16 %v1959, %v1955
  %v2064 = vpack.c.b16 %v1964, %v1960
  %v2065 = vpack.c.b16 %v1965, %v1961
  %v2066 = vpack.c.b16 %v1966, %v1962
  %v2067 = vpack.c.b16 %v1967, %v1963
  %v2068 = vpack.c.b16 %v1972, %v1968
  %v2069 = vpack.c.b16 %v1973, %v1969
  %v2070 = vpack.c.b16 %v1974, %v1970
  %v2071 = vpack.c.b16 %v1975, %v1971
  %v2072 = vpack.c.b16 %v1980, %v1976
  %v2073 = vpack.c.b16 %v1981, %v1977
  %v2074 = vpack.c.b16 %v1982, %v1978
  %v2075 = vpack.c.b16 %v1983, %v1979
  %v2076 = vpack.c.b16 %v1988, %v1984
  %v2077 = vpack.c.b16 %v1989, %v1985
  %v2078 = vpack.c.b16 %v1990, %v1986
  %v2079 = vpack.c.b16 %v1991, %v1987
  %v2080 = vpack.c.b16 %v1996, %v1992
  %v2081 = vpack.c.b16 %v1997, %v1993
  %v2082 = vpack.c.b16 %v1998, %v1994
  %v2083 = vpack.c.b16 %v1999, %v1995
  %v2084 = vpack.c.b16 %v2004, %v2000
  %v2085 = vpack.c.b16 %v2005, %v2001
  %v2086 = vpack.c.b16 %v2006, %v2002
  %v2087 = vpack.c.b16 %v2007, %v2003
  %v2088 = vpack.c.b16 %v2012, %v2008
  %v2089 = vpack.c.b16 %v2013, %v2009
  %v2090 = vpack.c.b16 %v2014, %v2010
  %v2091 = vpack.c.b16 %v2015, %v2011
  %v2092 = vpack.c.b16 %v2020, %v2016
  %v2093 = vpack.c.b16 %v2021, %v2017
  %v2094 = vpack.c.b16 %v2022, %v2018
  %v2095 = vpack.c.b16 %v2023, %v2019
  %v2096 = vpack.c.b16 %v2028, %v2024
  %v2097 = vpack.c.b16 %v2029, %v2025
  %v2098 = vpack.c.b16 %v2030, %v2026
  %v2099 = vpack.c.b16 %v2031, %v2027
  %v2100 = vpack.c.b16 %v2036, %v2032
  %v2101 = vpack.c.b16 %v2037, %v2033
  %v2102 = vpack.c.b16 %v2038, %v2034
  %v2103 = vpack.c.b16 %v2039, %v2035
  %2168 = vmatprep.subr.bf16.mxu0 %v2041
  %2169 = vmatpush1.bf16.msra.mxu0 %v2040
  %2170 = vmatprep.subr.bf16.mxu0 %v2045
  %2171 = vmatpush1.bf16.msra.mxu0 %v2044
  %2172 = vmatprep.subr.bf16.mxu0 %v2049
  %2173 = vmatpush1.bf16.msra.mxu0 %v2048
  %2174 = vmatprep.subr.bf16.mxu0 %v2053
  %2175 = vmatpush1.bf16.msra.mxu0 %v2052
  %2176 = vmatprep.subr.bf16.mxu0 %v2057
  %2177 = vmatpush1.bf16.msra.mxu0 %v2056
  %2178 = vmatprep.subr.bf16.mxu0 %v2061
  %2179 = vmatpush1.bf16.msra.mxu0 %v2060
  %2180 = vmatprep.subr.bf16.mxu0 %v2065
  %2181 = vmatpush1.bf16.msra.mxu0 %v2064
  %2182 = vmatprep.subr.bf16.mxu0 %v2069
  %2183 = vmatpush1.bf16.msra.mxu0 %v2068
  %2184 = vmatprep.subr.bf16.mxu0 %v2073
  %2185 = vmatpush1.bf16.msra.mxu0 %v2072
  %2186 = vmatprep.subr.bf16.mxu0 %v2077
  %2187 = vmatpush1.bf16.msra.mxu0 %v2076
  %2188 = vmatprep.subr.bf16.mxu0 %v2081
  %2189 = vmatpush1.bf16.msra.mxu0 %v2080
  %2190 = vmatprep.subr.bf16.mxu0 %v2085
  %2191 = vmatpush1.bf16.msra.mxu0 %v2084
  %2192 = vmatprep.subr.bf16.mxu0 %v2089
  %2193 = vmatpush1.bf16.msra.mxu0 %v2088
  %2194 = vmatprep.subr.bf16.mxu0 %v2093
  %2195 = vmatpush1.bf16.msra.mxu0 %v2092
  %2196 = vmatprep.subr.bf16.mxu0 %v2097
  %2197 = vmatpush1.bf16.msra.mxu0 %v2096
  %2198 = vmatprep.subr.bf16.mxu0 %v2101
  %2199 = vmatpush1.bf16.msra.mxu0 %v2100
  %2200 = vmatprep.mubr.bf16.mxu0 %v1124
  %2201 = vmatmul.mubr.bf16.gmra.mrb[0].mxu0 %v1123
  %v2202 = vpop.f32.mrb[0].mxu0
  %v2203 = vadd.f32 %v1737, %v2202
  %v2204 = vpop.f32.mrb[0].mxu0
  %v2205 = vadd.f32 %v1739, %v2204
  %v2206 = vpop.f32.mrb[0].mxu0
  %v2207 = vadd.f32 %v1741, %v2206
  %v2208 = vpop.f32.mrb[0].mxu0
  %v2209 = vadd.f32 %v1743, %v2208
  %2210 = vmatprep.mubr.bf16.mxu0 %v1126
  %2211 = vmatmul.mubr.bf16.gmra.mrb[0].mxu0 %v1125
  %v2212 = vpop.f32.mrb[0].mxu0
  %v2213 = vadd.f32 %v1747, %v2212
  %v2214 = vpop.f32.mrb[0].mxu0
  %v2215 = vadd.f32 %v1749, %v2214
  %v2216 = vpop.f32.mrb[0].mxu0
  %v2217 = vadd.f32 %v1751, %v2216
  %v2218 = vpop.f32.mrb[0].mxu0
  %v2219 = vadd.f32 %v1753, %v2218
  %2220 = vmatprep.mubr.bf16.mxu0 %v1128
  %2221 = vmatmul.mubr.bf16.gmra.mrb[0].mxu0 %v1127
  %v2222 = vpop.f32.mrb[0].mxu0
  %v2223 = vadd.f32 %v1757, %v2222
  %v2224 = vpop.f32.mrb[0].mxu0
  %v2225 = vadd.f32 %v1759, %v2224
  %v2226 = vpop.f32.mrb[0].mxu0
  %v2227 = vadd.f32 %v1761, %v2226
  %v2228 = vpop.f32.mrb[0].mxu0
  %v2229 = vadd.f32 %v1763, %v2228
  %2230 = vmatprep.mubr.bf16.mxu0 %v1130
  %2231 = vmatmul.mubr.bf16.gmra.mrb[0].mxu0 %v1129
  %v2232 = vpop.f32.mrb[0].mxu0
  %v2233 = vadd.f32 %v1767, %v2232
  %v2234 = vpop.f32.mrb[0].mxu0
  %v2235 = vadd.f32 %v1769, %v2234
  %v2236 = vpop.f32.mrb[0].mxu0
  %v2237 = vadd.f32 %v1771, %v2236
  %v2238 = vpop.f32.mrb[0].mxu0
  %v2239 = vadd.f32 %v1773, %v2238
  %2240 = vdwg.mxu0
  %2241 = vmatprep.subr.bf16.mxu0 %v2043
  %2242 = vmatpush1.bf16.msra.mxu0 %v2042
  %2243 = vmatprep.subr.bf16.mxu0 %v2047
  %2244 = vmatpush1.bf16.msra.mxu0 %v2046
  %2245 = vmatprep.subr.bf16.mxu0 %v2051
  %2246 = vmatpush1.bf16.msra.mxu0 %v2050
  %2247 = vmatprep.subr.bf16.mxu0 %v2055
  %2248 = vmatpush1.bf16.msra.mxu0 %v2054
  %2249 = vmatprep.subr.bf16.mxu0 %v2059
  %2250 = vmatpush1.bf16.msra.mxu0 %v2058
  %2251 = vmatprep.subr.bf16.mxu0 %v2063
  %2252 = vmatpush1.bf16.msra.mxu0 %v2062
  %2253 = vmatprep.subr.bf16.mxu0 %v2067
  %2254 = vmatpush1.bf16.msra.mxu0 %v2066
  %2255 = vmatprep.subr.bf16.mxu0 %v2071
  %2256 = vmatpush1.bf16.msra.mxu0 %v2070
  %2257 = vmatprep.subr.bf16.mxu0 %v2075
  %2258 = vmatpush1.bf16.msra.mxu0 %v2074
  %2259 = vmatprep.subr.bf16.mxu0 %v2079
  %2260 = vmatpush1.bf16.msra.mxu0 %v2078
  %2261 = vmatprep.subr.bf16.mxu0 %v2083
  %2262 = vmatpush1.bf16.msra.mxu0 %v2082
  %2263 = vmatprep.subr.bf16.mxu0 %v2087
  %2264 = vmatpush1.bf16.msra.mxu0 %v2086
  %2265 = vmatprep.subr.bf16.mxu0 %v2091
  %2266 = vmatpush1.bf16.msra.mxu0 %v2090
  %2267 = vmatprep.subr.bf16.mxu0 %v2095
  %2268 = vmatpush1.bf16.msra.mxu0 %v2094
  %2269 = vmatprep.subr.bf16.mxu0 %v2099
  %2270 = vmatpush1.bf16.msra.mxu0 %v2098
  %2271 = vmatprep.subr.bf16.mxu0 %v2103
  %2272 = vmatpush1.bf16.msra.mxu0 %v2102
  %2273 = vmatprep.mubr.bf16.mxu0 %v1124
  %2274 = vmatmul.mubr.bf16.gmra.mrb[0].mxu0 %v1123
  %v2275 = vpop.f32.mrb[0].mxu0
  %v2276 = vadd.f32 %v1810, %v2275
  %v2277 = vpop.f32.mrb[0].mxu0
  %v2278 = vadd.f32 %v1812, %v2277
  %v2279 = vpop.f32.mrb[0].mxu0
  %v2280 = vadd.f32 %v1814, %v2279
  %v2281 = vpop.f32.mrb[0].mxu0
  %v2282 = vadd.f32 %v1816, %v2281
  %2283 = vmatprep.mubr.bf16.mxu0 %v1126
  %2284 = vmatmul.mubr.bf16.gmra.mrb[0].mxu0 %v1125
  %v2285 = vpop.f32.mrb[0].mxu0
  %v2286 = vadd.f32 %v1820, %v2285
  %v2287 = vpop.f32.mrb[0].mxu0
  %v2288 = vadd.f32 %v1822, %v2287
  %v2289 = vpop.f32.mrb[0].mxu0
  %v2290 = vadd.f32 %v1824, %v2289
  %v2291 = vpop.f32.mrb[0].mxu0
  %v2292 = vadd.f32 %v1826, %v2291
  %2293 = vmatprep.mubr.bf16.mxu0 %v1128
  %2294 = vmatmul.mubr.bf16.gmra.mrb[0].mxu0 %v1127
  %v2295 = vpop.f32.mrb[0].mxu0
  %v2296 = vadd.f32 %v1830, %v2295
  %v2297 = vpop.f32.mrb[0].mxu0
  %v2298 = vadd.f32 %v1832, %v2297
  %v2299 = vpop.f32.mrb[0].mxu0
  %v2300 = vadd.f32 %v1834, %v2299
  %v2301 = vpop.f32.mrb[0].mxu0
  %v2302 = vadd.f32 %v1836, %v2301
  %2303 = vmatprep.mubr.bf16.mxu0 %v1130
  %2304 = vmatmul.mubr.bf16.gmra.mrb[0].mxu0 %v1129
  %v2305 = vpop.f32.mrb[0].mxu0
  %v2306 = vadd.f32 %v1840, %v2305
  %v2307 = vpop.f32.mrb[0].mxu0
  %v2308 = vadd.f32 %v1842, %v2307
  %v2309 = vpop.f32.mrb[0].mxu0
  %v2310 = vadd.f32 %v1844, %v2309
  %v2311 = vpop.f32.mrb[0].mxu0
  %v2312 = vadd.f32 %v1846, %v2311
  %2313 = vdwg.mxu0
  %s2314 = scalar_lea.vmem %s5, 64
  %v2315 = vld [vmem:[%s2314] sm:$0xf]
  %v2316 = vld [vmem:[%s2314 + $0x4] sm:$0xf]
  %v2317 = vld [vmem:[%s2314 + $0x8] sm:$0xf]
  %v2318 = vld [vmem:[%s2314 + $0xc] sm:$0xf]
  %v2319 = vld [vmem:[%s2314 + $0x10] sm:$0xf]
  %v2320 = vld [vmem:[%s2314 + $0x14] sm:$0xf]
  %v2321 = vld [vmem:[%s2314 + $0x18] sm:$0xf]
  %v2322 = vld [vmem:[%s2314 + $0x1c] sm:$0xf]
  %v2331 = vunpack.c.l.b16 %v2315
  %v2332 = vunpack.c.l.b16 %v2316
  %v2333 = vunpack.c.l.b16 %v2317
  %v2334 = vunpack.c.l.b16 %v2318
  %v2335 = vunpack.c.l.b16 %v2319
  %v2336 = vunpack.c.l.b16 %v2320
  %v2337 = vunpack.c.l.b16 %v2321
  %v2338 = vunpack.c.l.b16 %v2322
  %v2339 = vpack.c.b16 %v2332, %v2331
  %v2340 = vpack.c.b16 %v2334, %v2333
  %v2341 = vpack.c.b16 %v2336, %v2335
  %v2342 = vpack.c.b16 %v2338, %v2337
  %v2344 = vsel %vm1037, %v2339, 0
  %v2347 = vsel %vm1037, %v2340, 0
  %v2350 = vsel %vm1037, %v2341, 0
  %v2353 = vsel %vm1037, %v2342, 0
  %2355 = vmatprep.subr.bf16.mxu0 %v1006
  %2356 = vmatpush1.bf16.msra.mxu0 %v1005
  %2357 = vmatprep.subr.bf16.mxu0 %v1008
  %2358 = vmatpush1.bf16.msra.mxu0 %v1007
  %2359 = vmatprep.subr.bf16.mxu0 0
  %2360 = vmatpush1.bf16.msra.mxu0 0
  %2361 = vmatprep.subr.bf16.mxu0 0
  %2362 = vmatpush1.bf16.msra.mxu0 0
  %2363 = vmatprep.subr.bf16.mxu0 0
  %2364 = vmatpush1.bf16.msra.mxu0 0
  %2365 = vmatprep.subr.bf16.mxu0 0
  %2366 = vmatpush1.bf16.msra.mxu0 0
  %2367 = vmatprep.subr.bf16.mxu0 0
  %2368 = vmatpush1.bf16.msra.mxu0 0
  %2369 = vmatprep.subr.bf16.mxu0 0
  %2370 = vmatpush1.bf16.msra.mxu0 0
  %2371 = vmatprep.subr.bf16.mxu0 0
  %2372 = vmatpush1.bf16.msra.mxu0 0
  %2373 = vmatprep.subr.bf16.mxu0 0
  %2374 = vmatpush1.bf16.msra.mxu0 0
  %2375 = vmatprep.subr.bf16.mxu0 0
  %2376 = vmatpush1.bf16.msra.mxu0 0
  %2377 = vmatprep.subr.bf16.mxu0 0
  %2378 = vmatpush1.bf16.msra.mxu0 0
  %2379 = vmatprep.subr.bf16.mxu0 0
  %2380 = vmatpush1.bf16.msra.mxu0 0
  %2381 = vmatprep.subr.bf16.mxu0 0
  %2382 = vmatpush1.bf16.msra.mxu0 0
  %2383 = vmatprep.subr.bf16.mxu0 0
  %2384 = vmatpush1.bf16.msra.mxu0 0
  %2385 = vmatprep.subr.bf16.mxu0 0
  %2386 = vmatpush1.bf16.msra.mxu0 0
  %2387 = vmatprep.mubr.bf16.mxu0 0
  %2388 = vmatmul.mubr.bf16.gmra.mrb[0].mxu0 %v2344
  %v2389 = vpop.f32.mrb[0].mxu0
  %v2390 = vadd.f32 0.0, %v2389
  %v2391 = vpop.f32.mrb[0].mxu0
  %v2392 = vadd.f32 0.0, %v2391
  %v2393 = vpop.f32.mrb[0].mxu0
  %v2394 = vadd.f32 0.0, %v2393
  %v2395 = vpop.f32.mrb[0].mxu0
  %v2396 = vadd.f32 0.0, %v2395
  %2397 = vmatprep.mubr.bf16.mxu0 0
  %2398 = vmatmul.mubr.bf16.gmra.mrb[0].mxu0 %v2347
  %v2399 = vpop.f32.mrb[0].mxu0
  %v2400 = vadd.f32 0.0, %v2399
  %v2401 = vpop.f32.mrb[0].mxu0
  %v2402 = vadd.f32 0.0, %v2401
  %v2403 = vpop.f32.mrb[0].mxu0
  %v2404 = vadd.f32 0.0, %v2403
  %v2405 = vpop.f32.mrb[0].mxu0
  %v2406 = vadd.f32 0.0, %v2405
  %2407 = vmatprep.mubr.bf16.mxu0 0
  %2408 = vmatmul.mubr.bf16.gmra.mrb[0].mxu0 %v2350
  %v2409 = vpop.f32.mrb[0].mxu0
  %v2410 = vadd.f32 0.0, %v2409
  %v2411 = vpop.f32.mrb[0].mxu0
  %v2412 = vadd.f32 0.0, %v2411
  %v2413 = vpop.f32.mrb[0].mxu0
  %v2414 = vadd.f32 0.0, %v2413
  %v2415 = vpop.f32.mrb[0].mxu0
  %v2416 = vadd.f32 0.0, %v2415
  %2417 = vmatprep.mubr.bf16.mxu0 0
  %2418 = vmatmul.mubr.bf16.gmra.mrb[0].mxu0 %v2353
  %v2419 = vpop.f32.mrb[0].mxu0
  %v2420 = vadd.f32 0.0, %v2419
  %v2421 = vpop.f32.mrb[0].mxu0
  %v2422 = vadd.f32 0.0, %v2421
  %v2423 = vpop.f32.mrb[0].mxu0
  %v2424 = vadd.f32 0.0, %v2423
  %v2425 = vpop.f32.mrb[0].mxu0
  %v2426 = vadd.f32 0.0, %v2425
  %2427 = vdwg.mxu0
  %v2428 = vpack.c.bf16 %v2394, %v2390
  %v2429 = vpack.c.bf16 %v2396, %v2392
  %v2430 = vpack.c.bf16 %v2404, %v2400
  %v2431 = vpack.c.bf16 %v2406, %v2402
  %v2432 = vpack.c.bf16 %v2414, %v2410
  %v2433 = vpack.c.bf16 %v2416, %v2412
  %v2434 = vpack.c.bf16 %v2424, %v2420
  %v2435 = vpack.c.bf16 %v2426, %v2422
  %s2436 = scalar_lea.vmem %s6, 1024
  %v2437 = vld [vmem:[%s2436] sm:$0xff]
  %v2438 = vld [vmem:[%s2436 + $0x8] sm:$0xff]
  %v2439 = vld [vmem:[%s2436 + $0x10] sm:$0xff]
  %v2440 = vld [vmem:[%s2436 + $0x18] sm:$0xff]
  %v2441 = vld [vmem:[%s2436 + $0x20] sm:$0xff]
  %v2442 = vld [vmem:[%s2436 + $0x28] sm:$0xff]
  %v2443 = vld [vmem:[%s2436 + $0x30] sm:$0xff]
  %v2444 = vld [vmem:[%s2436 + $0x38] sm:$0xff]
  %v2445 = vld [vmem:[%s2436 + $0x40] sm:$0xff]
  %v2446 = vld [vmem:[%s2436 + $0x48] sm:$0xff]
  %v2447 = vld [vmem:[%s2436 + $0x50] sm:$0xff]
  %v2448 = vld [vmem:[%s2436 + $0x58] sm:$0xff]
  %v2449 = vld [vmem:[%s2436 + $0x60] sm:$0xff]
  %v2450 = vld [vmem:[%s2436 + $0x68] sm:$0xff]
  %v2451 = vld [vmem:[%s2436 + $0x70] sm:$0xff]
  %v2452 = vld [vmem:[%s2436 + $0x78] sm:$0xff]
  %v2453 = vld [vmem:[%s2436 + $0x80] sm:$0xff]
  %v2454 = vld [vmem:[%s2436 + $0x88] sm:$0xff]
  %v2455 = vld [vmem:[%s2436 + $0x90] sm:$0xff]
  %v2456 = vld [vmem:[%s2436 + $0x98] sm:$0xff]
  %v2457 = vld [vmem:[%s2436 + $0xa0] sm:$0xff]
  %v2458 = vld [vmem:[%s2436 + $0xa8] sm:$0xff]
  %v2459 = vld [vmem:[%s2436 + $0xb0] sm:$0xff]
  %v2460 = vld [vmem:[%s2436 + $0xb8] sm:$0xff]
  %v2461 = vld [vmem:[%s2436 + $0xc0] sm:$0xff]
  %v2462 = vld [vmem:[%s2436 + $0xc8] sm:$0xff]
  %v2463 = vld [vmem:[%s2436 + $0xd0] sm:$0xff]
  %v2464 = vld [vmem:[%s2436 + $0xd8] sm:$0xff]
  %v2465 = vld [vmem:[%s2436 + $0xe0] sm:$0xff]
  %v2466 = vld [vmem:[%s2436 + $0xe8] sm:$0xff]
  %v2467 = vld [vmem:[%s2436 + $0xf0] sm:$0xff]
  %v2468 = vld [vmem:[%s2436 + $0xf8] sm:$0xff]
  %v2469 = vld [vmem:[%s2436 + $0x100] sm:$0xff]
  %v2470 = vld [vmem:[%s2436 + $0x108] sm:$0xff]
  %v2471 = vld [vmem:[%s2436 + $0x110] sm:$0xff]
  %v2472 = vld [vmem:[%s2436 + $0x118] sm:$0xff]
  %v2473 = vld [vmem:[%s2436 + $0x120] sm:$0xff]
  %v2474 = vld [vmem:[%s2436 + $0x128] sm:$0xff]
  %v2475 = vld [vmem:[%s2436 + $0x130] sm:$0xff]
  %v2476 = vld [vmem:[%s2436 + $0x138] sm:$0xff]
  %v2477 = vld [vmem:[%s2436 + $0x140] sm:$0xff]
  %v2478 = vld [vmem:[%s2436 + $0x148] sm:$0xff]
  %v2479 = vld [vmem:[%s2436 + $0x150] sm:$0xff]
  %v2480 = vld [vmem:[%s2436 + $0x158] sm:$0xff]
  %v2481 = vld [vmem:[%s2436 + $0x160] sm:$0xff]
  %v2482 = vld [vmem:[%s2436 + $0x168] sm:$0xff]
  %v2483 = vld [vmem:[%s2436 + $0x170] sm:$0xff]
  %v2484 = vld [vmem:[%s2436 + $0x178] sm:$0xff]
  %v2485 = vld [vmem:[%s2436 + $0x180] sm:$0xff]
  %v2486 = vld [vmem:[%s2436 + $0x188] sm:$0xff]
  %v2487 = vld [vmem:[%s2436 + $0x190] sm:$0xff]
  %v2488 = vld [vmem:[%s2436 + $0x198] sm:$0xff]
  %v2489 = vld [vmem:[%s2436 + $0x1a0] sm:$0xff]
  %v2490 = vld [vmem:[%s2436 + $0x1a8] sm:$0xff]
  %v2491 = vld [vmem:[%s2436 + $0x1b0] sm:$0xff]
  %v2492 = vld [vmem:[%s2436 + $0x1b8] sm:$0xff]
  %v2493 = vld [vmem:[%s2436 + $0x1c0] sm:$0xff]
  %v2494 = vld [vmem:[%s2436 + $0x1c8] sm:$0xff]
  %v2495 = vld [vmem:[%s2436 + $0x1d0] sm:$0xff]
  %v2496 = vld [vmem:[%s2436 + $0x1d8] sm:$0xff]
  %v2497 = vld [vmem:[%s2436 + $0x1e0] sm:$0xff]
  %v2498 = vld [vmem:[%s2436 + $0x1e8] sm:$0xff]
  %v2499 = vld [vmem:[%s2436 + $0x1f0] sm:$0xff]
  %v2500 = vld [vmem:[%s2436 + $0x1f8] sm:$0xff]
  %v2565 = vunpack.c.l.b16 %v2437
  %v2566 = vunpack.c.h.b16 %v2437
  %v2567 = vunpack.c.l.b16 %v2438
  %v2568 = vunpack.c.h.b16 %v2438
  %v2569 = vunpack.c.l.b16 %v2439
  %v2570 = vunpack.c.h.b16 %v2439
  %v2571 = vunpack.c.l.b16 %v2440
  %v2572 = vunpack.c.h.b16 %v2440
  %v2573 = vunpack.c.l.b16 %v2441
  %v2574 = vunpack.c.h.b16 %v2441
  %v2575 = vunpack.c.l.b16 %v2442
  %v2576 = vunpack.c.h.b16 %v2442
  %v2577 = vunpack.c.l.b16 %v2443
  %v2578 = vunpack.c.h.b16 %v2443
  %v2579 = vunpack.c.l.b16 %v2444
  %v2580 = vunpack.c.h.b16 %v2444
  %v2581 = vunpack.c.l.b16 %v2445
  %v2582 = vunpack.c.h.b16 %v2445
  %v2583 = vunpack.c.l.b16 %v2446
  %v2584 = vunpack.c.h.b16 %v2446
  %v2585 = vunpack.c.l.b16 %v2447
  %v2586 = vunpack.c.h.b16 %v2447
  %v2587 = vunpack.c.l.b16 %v2448
  %v2588 = vunpack.c.h.b16 %v2448
  %v2589 = vunpack.c.l.b16 %v2449
  %v2590 = vunpack.c.h.b16 %v2449
  %v2591 = vunpack.c.l.b16 %v2450
  %v2592 = vunpack.c.h.b16 %v2450
  %v2593 = vunpack.c.l.b16 %v2451
  %v2594 = vunpack.c.h.b16 %v2451
  %v2595 = vunpack.c.l.b16 %v2452
  %v2596 = vunpack.c.h.b16 %v2452
  %v2597 = vunpack.c.l.b16 %v2453
  %v2598 = vunpack.c.h.b16 %v2453
  %v2599 = vunpack.c.l.b16 %v2454
  %v2600 = vunpack.c.h.b16 %v2454
  %v2601 = vunpack.c.l.b16 %v2455
  %v2602 = vunpack.c.h.b16 %v2455
  %v2603 = vunpack.c.l.b16 %v2456
  %v2604 = vunpack.c.h.b16 %v2456
  %v2605 = vunpack.c.l.b16 %v2457
  %v2606 = vunpack.c.h.b16 %v2457
  %v2607 = vunpack.c.l.b16 %v2458
  %v2608 = vunpack.c.h.b16 %v2458
  %v2609 = vunpack.c.l.b16 %v2459
  %v2610 = vunpack.c.h.b16 %v2459
  %v2611 = vunpack.c.l.b16 %v2460
  %v2612 = vunpack.c.h.b16 %v2460
  %v2613 = vunpack.c.l.b16 %v2461
  %v2614 = vunpack.c.h.b16 %v2461
  %v2615 = vunpack.c.l.b16 %v2462
  %v2616 = vunpack.c.h.b16 %v2462
  %v2617 = vunpack.c.l.b16 %v2463
  %v2618 = vunpack.c.h.b16 %v2463
  %v2619 = vunpack.c.l.b16 %v2464
  %v2620 = vunpack.c.h.b16 %v2464
  %v2621 = vunpack.c.l.b16 %v2465
  %v2622 = vunpack.c.h.b16 %v2465
  %v2623 = vunpack.c.l.b16 %v2466
  %v2624 = vunpack.c.h.b16 %v2466
  %v2625 = vunpack.c.l.b16 %v2467
  %v2626 = vunpack.c.h.b16 %v2467
  %v2627 = vunpack.c.l.b16 %v2468
  %v2628 = vunpack.c.h.b16 %v2468
  %v2629 = vunpack.c.l.b16 %v2469
  %v2630 = vunpack.c.h.b16 %v2469
  %v2631 = vunpack.c.l.b16 %v2470
  %v2632 = vunpack.c.h.b16 %v2470
  %v2633 = vunpack.c.l.b16 %v2471
  %v2634 = vunpack.c.h.b16 %v2471
  %v2635 = vunpack.c.l.b16 %v2472
  %v2636 = vunpack.c.h.b16 %v2472
  %v2637 = vunpack.c.l.b16 %v2473
  %v2638 = vunpack.c.h.b16 %v2473
  %v2639 = vunpack.c.l.b16 %v2474
  %v2640 = vunpack.c.h.b16 %v2474
  %v2641 = vunpack.c.l.b16 %v2475
  %v2642 = vunpack.c.h.b16 %v2475
  %v2643 = vunpack.c.l.b16 %v2476
  %v2644 = vunpack.c.h.b16 %v2476
  %v2645 = vunpack.c.l.b16 %v2477
  %v2646 = vunpack.c.h.b16 %v2477
  %v2647 = vunpack.c.l.b16 %v2478
  %v2648 = vunpack.c.h.b16 %v2478
  %v2649 = vunpack.c.l.b16 %v2479
  %v2650 = vunpack.c.h.b16 %v2479
  %v2651 = vunpack.c.l.b16 %v2480
  %v2652 = vunpack.c.h.b16 %v2480
  %v2653 = vunpack.c.l.b16 %v2481
  %v2654 = vunpack.c.h.b16 %v2481
  %v2655 = vunpack.c.l.b16 %v2482
  %v2656 = vunpack.c.h.b16 %v2482
  %v2657 = vunpack.c.l.b16 %v2483
  %v2658 = vunpack.c.h.b16 %v2483
  %v2659 = vunpack.c.l.b16 %v2484
  %v2660 = vunpack.c.h.b16 %v2484
  %v2661 = vunpack.c.l.b16 %v2485
  %v2662 = vunpack.c.h.b16 %v2485
  %v2663 = vunpack.c.l.b16 %v2486
  %v2664 = vunpack.c.h.b16 %v2486
  %v2665 = vunpack.c.l.b16 %v2487
  %v2666 = vunpack.c.h.b16 %v2487
  %v2667 = vunpack.c.l.b16 %v2488
  %v2668 = vunpack.c.h.b16 %v2488
  %v2669 = vunpack.c.l.b16 %v2489
  %v2670 = vunpack.c.h.b16 %v2489
  %v2671 = vunpack.c.l.b16 %v2490
  %v2672 = vunpack.c.h.b16 %v2490
  %v2673 = vunpack.c.l.b16 %v2491
  %v2674 = vunpack.c.h.b16 %v2491
  %v2675 = vunpack.c.l.b16 %v2492
  %v2676 = vunpack.c.h.b16 %v2492
  %v2677 = vunpack.c.l.b16 %v2493
  %v2678 = vunpack.c.h.b16 %v2493
  %v2679 = vunpack.c.l.b16 %v2494
  %v2680 = vunpack.c.h.b16 %v2494
  %v2681 = vunpack.c.l.b16 %v2495
  %v2682 = vunpack.c.h.b16 %v2495
  %v2683 = vunpack.c.l.b16 %v2496
  %v2684 = vunpack.c.h.b16 %v2496
  %v2685 = vunpack.c.l.b16 %v2497
  %v2686 = vunpack.c.h.b16 %v2497
  %v2687 = vunpack.c.l.b16 %v2498
  %v2688 = vunpack.c.h.b16 %v2498
  %v2689 = vunpack.c.l.b16 %v2499
  %v2690 = vunpack.c.h.b16 %v2499
  %v2691 = vunpack.c.l.b16 %v2500
  %v2692 = vunpack.c.h.b16 %v2500
  %v2693 = vpack.c.b16 %v2569, %v2565
  %v2694 = vpack.c.b16 %v2570, %v2566
  %v2695 = vpack.c.b16 %v2571, %v2567
  %v2696 = vpack.c.b16 %v2572, %v2568
  %v2697 = vpack.c.b16 %v2577, %v2573
  %v2698 = vpack.c.b16 %v2578, %v2574
  %v2699 = vpack.c.b16 %v2579, %v2575
  %v2700 = vpack.c.b16 %v2580, %v2576
  %v2701 = vpack.c.b16 %v2585, %v2581
  %v2702 = vpack.c.b16 %v2586, %v2582
  %v2703 = vpack.c.b16 %v2587, %v2583
  %v2704 = vpack.c.b16 %v2588, %v2584
  %v2705 = vpack.c.b16 %v2593, %v2589
  %v2706 = vpack.c.b16 %v2594, %v2590
  %v2707 = vpack.c.b16 %v2595, %v2591
  %v2708 = vpack.c.b16 %v2596, %v2592
  %v2709 = vpack.c.b16 %v2601, %v2597
  %v2710 = vpack.c.b16 %v2602, %v2598
  %v2711 = vpack.c.b16 %v2603, %v2599
  %v2712 = vpack.c.b16 %v2604, %v2600
  %v2713 = vpack.c.b16 %v2609, %v2605
  %v2714 = vpack.c.b16 %v2610, %v2606
  %v2715 = vpack.c.b16 %v2611, %v2607
  %v2716 = vpack.c.b16 %v2612, %v2608
  %v2717 = vpack.c.b16 %v2617, %v2613
  %v2718 = vpack.c.b16 %v2618, %v2614
  %v2719 = vpack.c.b16 %v2619, %v2615
  %v2720 = vpack.c.b16 %v2620, %v2616
  %v2721 = vpack.c.b16 %v2625, %v2621
  %v2722 = vpack.c.b16 %v2626, %v2622
  %v2723 = vpack.c.b16 %v2627, %v2623
  %v2724 = vpack.c.b16 %v2628, %v2624
  %v2725 = vpack.c.b16 %v2633, %v2629
  %v2726 = vpack.c.b16 %v2634, %v2630
  %v2727 = vpack.c.b16 %v2635, %v2631
  %v2728 = vpack.c.b16 %v2636, %v2632
  %v2729 = vpack.c.b16 %v2641, %v2637
  %v2730 = vpack.c.b16 %v2642, %v2638
  %v2731 = vpack.c.b16 %v2643, %v2639
  %v2732 = vpack.c.b16 %v2644, %v2640
  %v2733 = vpack.c.b16 %v2649, %v2645
  %v2734 = vpack.c.b16 %v2650, %v2646
  %v2735 = vpack.c.b16 %v2651, %v2647
  %v2736 = vpack.c.b16 %v2652, %v2648
  %v2737 = vpack.c.b16 %v2657, %v2653
  %v2738 = vpack.c.b16 %v2658, %v2654
  %v2739 = vpack.c.b16 %v2659, %v2655
  %v2740 = vpack.c.b16 %v2660, %v2656
  %v2741 = vpack.c.b16 %v2665, %v2661
  %v2742 = vpack.c.b16 %v2666, %v2662
  %v2743 = vpack.c.b16 %v2667, %v2663
  %v2744 = vpack.c.b16 %v2668, %v2664
  %v2745 = vpack.c.b16 %v2673, %v2669
  %v2746 = vpack.c.b16 %v2674, %v2670
  %v2747 = vpack.c.b16 %v2675, %v2671
  %v2748 = vpack.c.b16 %v2676, %v2672
  %v2749 = vpack.c.b16 %v2681, %v2677
  %v2750 = vpack.c.b16 %v2682, %v2678
  %v2751 = vpack.c.b16 %v2683, %v2679
  %v2752 = vpack.c.b16 %v2684, %v2680
  %v2753 = vpack.c.b16 %v2689, %v2685
  %v2754 = vpack.c.b16 %v2690, %v2686
  %v2755 = vpack.c.b16 %v2691, %v2687
  %v2756 = vpack.c.b16 %v2692, %v2688
  %2821 = vmatprep.subr.bf16.mxu0 %v2694
  %2822 = vmatpush1.bf16.msra.mxu0 %v2693
  %2823 = vmatprep.subr.bf16.mxu0 %v2698
  %2824 = vmatpush1.bf16.msra.mxu0 %v2697
  %2825 = vmatprep.subr.bf16.mxu0 %v2702
  %2826 = vmatpush1.bf16.msra.mxu0 %v2701
  %2827 = vmatprep.subr.bf16.mxu0 %v2706
  %2828 = vmatpush1.bf16.msra.mxu0 %v2705
  %2829 = vmatprep.subr.bf16.mxu0 %v2710
  %2830 = vmatpush1.bf16.msra.mxu0 %v2709
  %2831 = vmatprep.subr.bf16.mxu0 %v2714
  %2832 = vmatpush1.bf16.msra.mxu0 %v2713
  %2833 = vmatprep.subr.bf16.mxu0 %v2718
  %2834 = vmatpush1.bf16.msra.mxu0 %v2717
  %2835 = vmatprep.subr.bf16.mxu0 %v2722
  %2836 = vmatpush1.bf16.msra.mxu0 %v2721
  %2837 = vmatprep.subr.bf16.mxu0 %v2726
  %2838 = vmatpush1.bf16.msra.mxu0 %v2725
  %2839 = vmatprep.subr.bf16.mxu0 %v2730
  %2840 = vmatpush1.bf16.msra.mxu0 %v2729
  %2841 = vmatprep.subr.bf16.mxu0 %v2734
  %2842 = vmatpush1.bf16.msra.mxu0 %v2733
  %2843 = vmatprep.subr.bf16.mxu0 %v2738
  %2844 = vmatpush1.bf16.msra.mxu0 %v2737
  %2845 = vmatprep.subr.bf16.mxu0 %v2742
  %2846 = vmatpush1.bf16.msra.mxu0 %v2741
  %2847 = vmatprep.subr.bf16.mxu0 %v2746
  %2848 = vmatpush1.bf16.msra.mxu0 %v2745
  %2849 = vmatprep.subr.bf16.mxu0 %v2750
  %2850 = vmatpush1.bf16.msra.mxu0 %v2749
  %2851 = vmatprep.subr.bf16.mxu0 %v2754
  %2852 = vmatpush1.bf16.msra.mxu0 %v2753
  %2853 = vmatprep.mubr.bf16.mxu0 %v2429
  %2854 = vmatmul.mubr.bf16.gmra.mrb[0].mxu0 %v2428
  %v2855 = vpop.f32.mrb[0].mxu0
  %v2856 = vadd.f32 0.0, %v2855
  %v2857 = vpop.f32.mrb[0].mxu0
  %v2858 = vadd.f32 0.0, %v2857
  %v2859 = vpop.f32.mrb[0].mxu0
  %v2860 = vadd.f32 0.0, %v2859
  %v2861 = vpop.f32.mrb[0].mxu0
  %v2862 = vadd.f32 0.0, %v2861
  %2863 = vmatprep.mubr.bf16.mxu0 %v2431
  %2864 = vmatmul.mubr.bf16.gmra.mrb[0].mxu0 %v2430
  %v2865 = vpop.f32.mrb[0].mxu0
  %v2866 = vadd.f32 0.0, %v2865
  %v2867 = vpop.f32.mrb[0].mxu0
  %v2868 = vadd.f32 0.0, %v2867
  %v2869 = vpop.f32.mrb[0].mxu0
  %v2870 = vadd.f32 0.0, %v2869
  %v2871 = vpop.f32.mrb[0].mxu0
  %v2872 = vadd.f32 0.0, %v2871
  %2873 = vmatprep.mubr.bf16.mxu0 %v2433
  %2874 = vmatmul.mubr.bf16.gmra.mrb[0].mxu0 %v2432
  %v2875 = vpop.f32.mrb[0].mxu0
  %v2876 = vadd.f32 0.0, %v2875
  %v2877 = vpop.f32.mrb[0].mxu0
  %v2878 = vadd.f32 0.0, %v2877
  %v2879 = vpop.f32.mrb[0].mxu0
  %v2880 = vadd.f32 0.0, %v2879
  %v2881 = vpop.f32.mrb[0].mxu0
  %v2882 = vadd.f32 0.0, %v2881
  %2883 = vmatprep.mubr.bf16.mxu0 %v2435
  %2884 = vmatmul.mubr.bf16.gmra.mrb[0].mxu0 %v2434
  %v2885 = vpop.f32.mrb[0].mxu0
  %v2886 = vadd.f32 0.0, %v2885
  %v2887 = vpop.f32.mrb[0].mxu0
  %v2888 = vadd.f32 0.0, %v2887
  %v2889 = vpop.f32.mrb[0].mxu0
  %v2890 = vadd.f32 0.0, %v2889
  %v2891 = vpop.f32.mrb[0].mxu0
  %v2892 = vadd.f32 0.0, %v2891
  %2893 = vdwg.mxu0
  %2894 = vmatprep.subr.bf16.mxu0 %v2696
  %2895 = vmatpush1.bf16.msra.mxu0 %v2695
  %2896 = vmatprep.subr.bf16.mxu0 %v2700
  %2897 = vmatpush1.bf16.msra.mxu0 %v2699
  %2898 = vmatprep.subr.bf16.mxu0 %v2704
  %2899 = vmatpush1.bf16.msra.mxu0 %v2703
  %2900 = vmatprep.subr.bf16.mxu0 %v2708
  %2901 = vmatpush1.bf16.msra.mxu0 %v2707
  %2902 = vmatprep.subr.bf16.mxu0 %v2712
  %2903 = vmatpush1.bf16.msra.mxu0 %v2711
  %2904 = vmatprep.subr.bf16.mxu0 %v2716
  %2905 = vmatpush1.bf16.msra.mxu0 %v2715
  %2906 = vmatprep.subr.bf16.mxu0 %v2720
  %2907 = vmatpush1.bf16.msra.mxu0 %v2719
  %2908 = vmatprep.subr.bf16.mxu0 %v2724
  %2909 = vmatpush1.bf16.msra.mxu0 %v2723
  %2910 = vmatprep.subr.bf16.mxu0 %v2728
  %2911 = vmatpush1.bf16.msra.mxu0 %v2727
  %2912 = vmatprep.subr.bf16.mxu0 %v2732
  %2913 = vmatpush1.bf16.msra.mxu0 %v2731
  %2914 = vmatprep.subr.bf16.mxu0 %v2736
  %2915 = vmatpush1.bf16.msra.mxu0 %v2735
  %2916 = vmatprep.subr.bf16.mxu0 %v2740
  %2917 = vmatpush1.bf16.msra.mxu0 %v2739
  %2918 = vmatprep.subr.bf16.mxu0 %v2744
  %2919 = vmatpush1.bf16.msra.mxu0 %v2743
  %2920 = vmatprep.subr.bf16.mxu0 %v2748
  %2921 = vmatpush1.bf16.msra.mxu0 %v2747
  %2922 = vmatprep.subr.bf16.mxu0 %v2752
  %2923 = vmatpush1.bf16.msra.mxu0 %v2751
  %2924 = vmatprep.subr.bf16.mxu0 %v2756
  %2925 = vmatpush1.bf16.msra.mxu0 %v2755
  %2926 = vmatprep.mubr.bf16.mxu0 %v2429
  %2927 = vmatmul.mubr.bf16.gmra.mrb[0].mxu0 %v2428
  %v2928 = vpop.f32.mrb[0].mxu0
  %v2929 = vadd.f32 0.0, %v2928
  %v2930 = vpop.f32.mrb[0].mxu0
  %v2931 = vadd.f32 0.0, %v2930
  %v2932 = vpop.f32.mrb[0].mxu0
  %v2933 = vadd.f32 0.0, %v2932
  %v2934 = vpop.f32.mrb[0].mxu0
  %v2935 = vadd.f32 0.0, %v2934
  %2936 = vmatprep.mubr.bf16.mxu0 %v2431
  %2937 = vmatmul.mubr.bf16.gmra.mrb[0].mxu0 %v2430
  %v2938 = vpop.f32.mrb[0].mxu0
  %v2939 = vadd.f32 0.0, %v2938
  %v2940 = vpop.f32.mrb[0].mxu0
  %v2941 = vadd.f32 0.0, %v2940
  %v2942 = vpop.f32.mrb[0].mxu0
  %v2943 = vadd.f32 0.0, %v2942
  %v2944 = vpop.f32.mrb[0].mxu0
  %v2945 = vadd.f32 0.0, %v2944
  %2946 = vmatprep.mubr.bf16.mxu0 %v2433
  %2947 = vmatmul.mubr.bf16.gmra.mrb[0].mxu0 %v2432
  %v2948 = vpop.f32.mrb[0].mxu0
  %v2949 = vadd.f32 0.0, %v2948
  %v2950 = vpop.f32.mrb[0].mxu0
  %v2951 = vadd.f32 0.0, %v2950
  %v2952 = vpop.f32.mrb[0].mxu0
  %v2953 = vadd.f32 0.0, %v2952
  %v2954 = vpop.f32.mrb[0].mxu0
  %v2955 = vadd.f32 0.0, %v2954
  %2956 = vmatprep.mubr.bf16.mxu0 %v2435
  %2957 = vmatmul.mubr.bf16.gmra.mrb[0].mxu0 %v2434
  %v2958 = vpop.f32.mrb[0].mxu0
  %v2959 = vadd.f32 0.0, %v2958
  %v2960 = vpop.f32.mrb[0].mxu0
  %v2961 = vadd.f32 0.0, %v2960
  %v2962 = vpop.f32.mrb[0].mxu0
  %v2963 = vadd.f32 0.0, %v2962
  %v2964 = vpop.f32.mrb[0].mxu0
  %v2965 = vadd.f32 0.0, %v2964
  %2966 = vdwg.mxu0
  %v2967 = vadd.f32 %v2203, %v2856
  %v2968 = vadd.f32 %v2205, %v2858
  %v2969 = vadd.f32 %v2276, %v2929
  %v2970 = vadd.f32 %v2278, %v2931
  %v2971 = vadd.f32 %v2207, %v2860
  %v2972 = vadd.f32 %v2209, %v2862
  %v2973 = vadd.f32 %v2280, %v2933
  %v2974 = vadd.f32 %v2282, %v2935
  %v2975 = vadd.f32 %v2213, %v2866
  %v2976 = vadd.f32 %v2215, %v2868
  %v2977 = vadd.f32 %v2286, %v2939
  %v2978 = vadd.f32 %v2288, %v2941
  %v2979 = vadd.f32 %v2217, %v2870
  %v2980 = vadd.f32 %v2219, %v2872
  %v2981 = vadd.f32 %v2290, %v2943
  %v2982 = vadd.f32 %v2292, %v2945
  %v2983 = vadd.f32 %v2223, %v2876
  %v2984 = vadd.f32 %v2225, %v2878
  %v2985 = vadd.f32 %v2296, %v2949
  %v2986 = vadd.f32 %v2298, %v2951
  %v2987 = vadd.f32 %v2227, %v2880
  %v2988 = vadd.f32 %v2229, %v2882
  %v2989 = vadd.f32 %v2300, %v2953
  %v2990 = vadd.f32 %v2302, %v2955
  %v2991 = vadd.f32 %v2233, %v2886
  %v2992 = vadd.f32 %v2235, %v2888
  %v2993 = vadd.f32 %v2306, %v2959
  %v2994 = vadd.f32 %v2308, %v2961
  %v2995 = vadd.f32 %v2237, %v2890
  %v2996 = vadd.f32 %v2239, %v2892
  %v2997 = vadd.f32 %v2310, %v2963
  %v2998 = vadd.f32 %v2312, %v2965
  %s2999 = scalar_lea.vmem %s5, 96
  %v3000 = vld [vmem:[%s2999] sm:$0xf]
  %v3001 = vld [vmem:[%s2999 + $0x4] sm:$0xf]
  %v3002 = vld [vmem:[%s2999 + $0x8] sm:$0xf]
  %v3003 = vld [vmem:[%s2999 + $0xc] sm:$0xf]
  %v3004 = vld [vmem:[%s2999 + $0x10] sm:$0xf]
  %v3005 = vld [vmem:[%s2999 + $0x14] sm:$0xf]
  %v3006 = vld [vmem:[%s2999 + $0x18] sm:$0xf]
  %v3007 = vld [vmem:[%s2999 + $0x1c] sm:$0xf]
  %v3016 = vunpack.c.l.b16 %v3000
  %v3017 = vunpack.c.l.b16 %v3001
  %v3018 = vunpack.c.l.b16 %v3002
  %v3019 = vunpack.c.l.b16 %v3003
  %v3020 = vunpack.c.l.b16 %v3004
  %v3021 = vunpack.c.l.b16 %v3005
  %v3022 = vunpack.c.l.b16 %v3006
  %v3023 = vunpack.c.l.b16 %v3007
  %v3024 = vpack.c.b16 %v3017, %v3016
  %v3025 = vpack.c.b16 %v3019, %v3018
  %v3026 = vpack.c.b16 %v3021, %v3020
  %v3027 = vpack.c.b16 %v3023, %v3022
  %v3029 = vsel %vm1037, %v3024, 0
  %v3032 = vsel %vm1037, %v3025, 0
  %v3035 = vsel %vm1037, %v3026, 0
  %v3038 = vsel %vm1037, %v3027, 0
  %3040 = vmatprep.subr.bf16.mxu0 %v1006
  %3041 = vmatpush1.bf16.msra.mxu0 %v1005
  %3042 = vmatprep.subr.bf16.mxu0 %v1008
  %3043 = vmatpush1.bf16.msra.mxu0 %v1007
  %3044 = vmatprep.subr.bf16.mxu0 0
  %3045 = vmatpush1.bf16.msra.mxu0 0
  %3046 = vmatprep.subr.bf16.mxu0 0
  %3047 = vmatpush1.bf16.msra.mxu0 0
  %3048 = vmatprep.subr.bf16.mxu0 0
  %3049 = vmatpush1.bf16.msra.mxu0 0
  %3050 = vmatprep.subr.bf16.mxu0 0
  %3051 = vmatpush1.bf16.msra.mxu0 0
  %3052 = vmatprep.subr.bf16.mxu0 0
  %3053 = vmatpush1.bf16.msra.mxu0 0
  %3054 = vmatprep.subr.bf16.mxu0 0
  %3055 = vmatpush1.bf16.msra.mxu0 0
  %3056 = vmatprep.subr.bf16.mxu0 0
  %3057 = vmatpush1.bf16.msra.mxu0 0
  %3058 = vmatprep.subr.bf16.mxu0 0
  %3059 = vmatpush1.bf16.msra.mxu0 0
  %3060 = vmatprep.subr.bf16.mxu0 0
  %3061 = vmatpush1.bf16.msra.mxu0 0
  %3062 = vmatprep.subr.bf16.mxu0 0
  %3063 = vmatpush1.bf16.msra.mxu0 0
  %3064 = vmatprep.subr.bf16.mxu0 0
  %3065 = vmatpush1.bf16.msra.mxu0 0
  %3066 = vmatprep.subr.bf16.mxu0 0
  %3067 = vmatpush1.bf16.msra.mxu0 0
  %3068 = vmatprep.subr.bf16.mxu0 0
  %3069 = vmatpush1.bf16.msra.mxu0 0
  %3070 = vmatprep.subr.bf16.mxu0 0
  %3071 = vmatpush1.bf16.msra.mxu0 0
  %3072 = vmatprep.mubr.bf16.mxu0 0
  %3073 = vmatmul.mubr.bf16.gmra.mrb[0].mxu0 %v3029
  %v3074 = vpop.f32.mrb[0].mxu0
  %v3075 = vadd.f32 0.0, %v3074
  %v3076 = vpop.f32.mrb[0].mxu0
  %v3077 = vadd.f32 0.0, %v3076
  %v3078 = vpop.f32.mrb[0].mxu0
  %v3079 = vadd.f32 0.0, %v3078
  %v3080 = vpop.f32.mrb[0].mxu0
  %v3081 = vadd.f32 0.0, %v3080
  %3082 = vmatprep.mubr.bf16.mxu0 0
  %3083 = vmatmul.mubr.bf16.gmra.mrb[0].mxu0 %v3032
  %v3084 = vpop.f32.mrb[0].mxu0
  %v3085 = vadd.f32 0.0, %v3084
  %v3086 = vpop.f32.mrb[0].mxu0
  %v3087 = vadd.f32 0.0, %v3086
  %v3088 = vpop.f32.mrb[0].mxu0
  %v3089 = vadd.f32 0.0, %v3088
  %v3090 = vpop.f32.mrb[0].mxu0
  %v3091 = vadd.f32 0.0, %v3090
  %3092 = vmatprep.mubr.bf16.mxu0 0
  %3093 = vmatmul.mubr.bf16.gmra.mrb[0].mxu0 %v3035
  %v3094 = vpop.f32.mrb[0].mxu0
  %v3095 = vadd.f32 0.0, %v3094
  %v3096 = vpop.f32.mrb[0].mxu0
  %v3097 = vadd.f32 0.0, %v3096
  %v3098 = vpop.f32.mrb[0].mxu0
  %v3099 = vadd.f32 0.0, %v3098
  %v3100 = vpop.f32.mrb[0].mxu0
  %v3101 = vadd.f32 0.0, %v3100
  %3102 = vmatprep.mubr.bf16.mxu0 0
  %3103 = vmatmul.mubr.bf16.gmra.mrb[0].mxu0 %v3038
  %v3104 = vpop.f32.mrb[0].mxu0
  %v3105 = vadd.f32 0.0, %v3104
  %v3106 = vpop.f32.mrb[0].mxu0
  %v3107 = vadd.f32 0.0, %v3106
  %v3108 = vpop.f32.mrb[0].mxu0
  %v3109 = vadd.f32 0.0, %v3108
  %v3110 = vpop.f32.mrb[0].mxu0
  %v3111 = vadd.f32 0.0, %v3110
  %3112 = vdwg.mxu0
  %v3113 = vpack.c.bf16 %v3079, %v3075
  %v3114 = vpack.c.bf16 %v3081, %v3077
  %v3115 = vpack.c.bf16 %v3089, %v3085
  %v3116 = vpack.c.bf16 %v3091, %v3087
  %v3117 = vpack.c.bf16 %v3099, %v3095
  %v3118 = vpack.c.bf16 %v3101, %v3097
  %v3119 = vpack.c.bf16 %v3109, %v3105
  %v3120 = vpack.c.bf16 %v3111, %v3107
  %s3121 = scalar_lea.vmem %s6, 1536
  %v3122 = vld [vmem:[%s3121] sm:$0xff]
  %v3123 = vld [vmem:[%s3121 + $0x8] sm:$0xff]
  %v3124 = vld [vmem:[%s3121 + $0x10] sm:$0xff]
  %v3125 = vld [vmem:[%s3121 + $0x18] sm:$0xff]
  %v3126 = vld [vmem:[%s3121 + $0x20] sm:$0xff]
  %v3127 = vld [vmem:[%s3121 + $0x28] sm:$0xff]
  %v3128 = vld [vmem:[%s3121 + $0x30] sm:$0xff]
  %v3129 = vld [vmem:[%s3121 + $0x38] sm:$0xff]
  %v3130 = vld [vmem:[%s3121 + $0x40] sm:$0xff]
  %v3131 = vld [vmem:[%s3121 + $0x48] sm:$0xff]
  %v3132 = vld [vmem:[%s3121 + $0x50] sm:$0xff]
  %v3133 = vld [vmem:[%s3121 + $0x58] sm:$0xff]
  %v3134 = vld [vmem:[%s3121 + $0x60] sm:$0xff]
  %v3135 = vld [vmem:[%s3121 + $0x68] sm:$0xff]
  %v3136 = vld [vmem:[%s3121 + $0x70] sm:$0xff]
  %v3137 = vld [vmem:[%s3121 + $0x78] sm:$0xff]
  %v3138 = vld [vmem:[%s3121 + $0x80] sm:$0xff]
  %v3139 = vld [vmem:[%s3121 + $0x88] sm:$0xff]
  %v3140 = vld [vmem:[%s3121 + $0x90] sm:$0xff]
  %v3141 = vld [vmem:[%s3121 + $0x98] sm:$0xff]
  %v3142 = vld [vmem:[%s3121 + $0xa0] sm:$0xff]
  %v3143 = vld [vmem:[%s3121 + $0xa8] sm:$0xff]
  %v3144 = vld [vmem:[%s3121 + $0xb0] sm:$0xff]
  %v3145 = vld [vmem:[%s3121 + $0xb8] sm:$0xff]
  %v3146 = vld [vmem:[%s3121 + $0xc0] sm:$0xff]
  %v3147 = vld [vmem:[%s3121 + $0xc8] sm:$0xff]
  %v3148 = vld [vmem:[%s3121 + $0xd0] sm:$0xff]
  %v3149 = vld [vmem:[%s3121 + $0xd8] sm:$0xff]
  %v3150 = vld [vmem:[%s3121 + $0xe0] sm:$0xff]
  %v3151 = vld [vmem:[%s3121 + $0xe8] sm:$0xff]
  %v3152 = vld [vmem:[%s3121 + $0xf0] sm:$0xff]
  %v3153 = vld [vmem:[%s3121 + $0xf8] sm:$0xff]
  %v3154 = vld [vmem:[%s3121 + $0x100] sm:$0xff]
  %v3155 = vld [vmem:[%s3121 + $0x108] sm:$0xff]
  %v3156 = vld [vmem:[%s3121 + $0x110] sm:$0xff]
  %v3157 = vld [vmem:[%s3121 + $0x118] sm:$0xff]
  %v3158 = vld [vmem:[%s3121 + $0x120] sm:$0xff]
  %v3159 = vld [vmem:[%s3121 + $0x128] sm:$0xff]
  %v3160 = vld [vmem:[%s3121 + $0x130] sm:$0xff]
  %v3161 = vld [vmem:[%s3121 + $0x138] sm:$0xff]
  %v3162 = vld [vmem:[%s3121 + $0x140] sm:$0xff]
  %v3163 = vld [vmem:[%s3121 + $0x148] sm:$0xff]
  %v3164 = vld [vmem:[%s3121 + $0x150] sm:$0xff]
  %v3165 = vld [vmem:[%s3121 + $0x158] sm:$0xff]
  %v3166 = vld [vmem:[%s3121 + $0x160] sm:$0xff]
  %v3167 = vld [vmem:[%s3121 + $0x168] sm:$0xff]
  %v3168 = vld [vmem:[%s3121 + $0x170] sm:$0xff]
  %v3169 = vld [vmem:[%s3121 + $0x178] sm:$0xff]
  %v3170 = vld [vmem:[%s3121 + $0x180] sm:$0xff]
  %v3171 = vld [vmem:[%s3121 + $0x188] sm:$0xff]
  %v3172 = vld [vmem:[%s3121 + $0x190] sm:$0xff]
  %v3173 = vld [vmem:[%s3121 + $0x198] sm:$0xff]
  %v3174 = vld [vmem:[%s3121 + $0x1a0] sm:$0xff]
  %v3175 = vld [vmem:[%s3121 + $0x1a8] sm:$0xff]
  %v3176 = vld [vmem:[%s3121 + $0x1b0] sm:$0xff]
  %v3177 = vld [vmem:[%s3121 + $0x1b8] sm:$0xff]
  %v3178 = vld [vmem:[%s3121 + $0x1c0] sm:$0xff]
  %v3179 = vld [vmem:[%s3121 + $0x1c8] sm:$0xff]
  %v3180 = vld [vmem:[%s3121 + $0x1d0] sm:$0xff]
  %v3181 = vld [vmem:[%s3121 + $0x1d8] sm:$0xff]
  %v3182 = vld [vmem:[%s3121 + $0x1e0] sm:$0xff]
  %v3183 = vld [vmem:[%s3121 + $0x1e8] sm:$0xff]
  %v3184 = vld [vmem:[%s3121 + $0x1f0] sm:$0xff]
  %v3185 = vld [vmem:[%s3121 + $0x1f8] sm:$0xff]
  %v3250 = vunpack.c.l.b16 %v3122
  %v3251 = vunpack.c.h.b16 %v3122
  %v3252 = vunpack.c.l.b16 %v3123
  %v3253 = vunpack.c.h.b16 %v3123
  %v3254 = vunpack.c.l.b16 %v3124
  %v3255 = vunpack.c.h.b16 %v3124
  %v3256 = vunpack.c.l.b16 %v3125
  %v3257 = vunpack.c.h.b16 %v3125
  %v3258 = vunpack.c.l.b16 %v3126
  %v3259 = vunpack.c.h.b16 %v3126
  %v3260 = vunpack.c.l.b16 %v3127
  %v3261 = vunpack.c.h.b16 %v3127
  %v3262 = vunpack.c.l.b16 %v3128
  %v3263 = vunpack.c.h.b16 %v3128
  %v3264 = vunpack.c.l.b16 %v3129
  %v3265 = vunpack.c.h.b16 %v3129
  %v3266 = vunpack.c.l.b16 %v3130
  %v3267 = vunpack.c.h.b16 %v3130
  %v3268 = vunpack.c.l.b16 %v3131
  %v3269 = vunpack.c.h.b16 %v3131
  %v3270 = vunpack.c.l.b16 %v3132
  %v3271 = vunpack.c.h.b16 %v3132
  %v3272 = vunpack.c.l.b16 %v3133
  %v3273 = vunpack.c.h.b16 %v3133
  %v3274 = vunpack.c.l.b16 %v3134
  %v3275 = vunpack.c.h.b16 %v3134
  %v3276 = vunpack.c.l.b16 %v3135
  %v3277 = vunpack.c.h.b16 %v3135
  %v3278 = vunpack.c.l.b16 %v3136
  %v3279 = vunpack.c.h.b16 %v3136
  %v3280 = vunpack.c.l.b16 %v3137
  %v3281 = vunpack.c.h.b16 %v3137
  %v3282 = vunpack.c.l.b16 %v3138
  %v3283 = vunpack.c.h.b16 %v3138
  %v3284 = vunpack.c.l.b16 %v3139
  %v3285 = vunpack.c.h.b16 %v3139
  %v3286 = vunpack.c.l.b16 %v3140
  %v3287 = vunpack.c.h.b16 %v3140
  %v3288 = vunpack.c.l.b16 %v3141
  %v3289 = vunpack.c.h.b16 %v3141
  %v3290 = vunpack.c.l.b16 %v3142
  %v3291 = vunpack.c.h.b16 %v3142
  %v3292 = vunpack.c.l.b16 %v3143
  %v3293 = vunpack.c.h.b16 %v3143
  %v3294 = vunpack.c.l.b16 %v3144
  %v3295 = vunpack.c.h.b16 %v3144
  %v3296 = vunpack.c.l.b16 %v3145
  %v3297 = vunpack.c.h.b16 %v3145
  %v3298 = vunpack.c.l.b16 %v3146
  %v3299 = vunpack.c.h.b16 %v3146
  %v3300 = vunpack.c.l.b16 %v3147
  %v3301 = vunpack.c.h.b16 %v3147
  %v3302 = vunpack.c.l.b16 %v3148
  %v3303 = vunpack.c.h.b16 %v3148
  %v3304 = vunpack.c.l.b16 %v3149
  %v3305 = vunpack.c.h.b16 %v3149
  %v3306 = vunpack.c.l.b16 %v3150
  %v3307 = vunpack.c.h.b16 %v3150
  %v3308 = vunpack.c.l.b16 %v3151
  %v3309 = vunpack.c.h.b16 %v3151
  %v3310 = vunpack.c.l.b16 %v3152
  %v3311 = vunpack.c.h.b16 %v3152
  %v3312 = vunpack.c.l.b16 %v3153
  %v3313 = vunpack.c.h.b16 %v3153
  %v3314 = vunpack.c.l.b16 %v3154
  %v3315 = vunpack.c.h.b16 %v3154
  %v3316 = vunpack.c.l.b16 %v3155
  %v3317 = vunpack.c.h.b16 %v3155
  %v3318 = vunpack.c.l.b16 %v3156
  %v3319 = vunpack.c.h.b16 %v3156
  %v3320 = vunpack.c.l.b16 %v3157
  %v3321 = vunpack.c.h.b16 %v3157
  %v3322 = vunpack.c.l.b16 %v3158
  %v3323 = vunpack.c.h.b16 %v3158
  %v3324 = vunpack.c.l.b16 %v3159
  %v3325 = vunpack.c.h.b16 %v3159
  %v3326 = vunpack.c.l.b16 %v3160
  %v3327 = vunpack.c.h.b16 %v3160
  %v3328 = vunpack.c.l.b16 %v3161
  %v3329 = vunpack.c.h.b16 %v3161
  %v3330 = vunpack.c.l.b16 %v3162
  %v3331 = vunpack.c.h.b16 %v3162
  %v3332 = vunpack.c.l.b16 %v3163
  %v3333 = vunpack.c.h.b16 %v3163
  %v3334 = vunpack.c.l.b16 %v3164
  %v3335 = vunpack.c.h.b16 %v3164
  %v3336 = vunpack.c.l.b16 %v3165
  %v3337 = vunpack.c.h.b16 %v3165
  %v3338 = vunpack.c.l.b16 %v3166
  %v3339 = vunpack.c.h.b16 %v3166
  %v3340 = vunpack.c.l.b16 %v3167
  %v3341 = vunpack.c.h.b16 %v3167
  %v3342 = vunpack.c.l.b16 %v3168
  %v3343 = vunpack.c.h.b16 %v3168
  %v3344 = vunpack.c.l.b16 %v3169
  %v3345 = vunpack.c.h.b16 %v3169
  %v3346 = vunpack.c.l.b16 %v3170
  %v3347 = vunpack.c.h.b16 %v3170
  %v3348 = vunpack.c.l.b16 %v3171
  %v3349 = vunpack.c.h.b16 %v3171
  %v3350 = vunpack.c.l.b16 %v3172
  %v3351 = vunpack.c.h.b16 %v3172
  %v3352 = vunpack.c.l.b16 %v3173
  %v3353 = vunpack.c.h.b16 %v3173
  %v3354 = vunpack.c.l.b16 %v3174
  %v3355 = vunpack.c.h.b16 %v3174
  %v3356 = vunpack.c.l.b16 %v3175
  %v3357 = vunpack.c.h.b16 %v3175
  %v3358 = vunpack.c.l.b16 %v3176
  %v3359 = vunpack.c.h.b16 %v3176
  %v3360 = vunpack.c.l.b16 %v3177
  %v3361 = vunpack.c.h.b16 %v3177
  %v3362 = vunpack.c.l.b16 %v3178
  %v3363 = vunpack.c.h.b16 %v3178
  %v3364 = vunpack.c.l.b16 %v3179
  %v3365 = vunpack.c.h.b16 %v3179
  %v3366 = vunpack.c.l.b16 %v3180
  %v3367 = vunpack.c.h.b16 %v3180
  %v3368 = vunpack.c.l.b16 %v3181
  %v3369 = vunpack.c.h.b16 %v3181
  %v3370 = vunpack.c.l.b16 %v3182
  %v3371 = vunpack.c.h.b16 %v3182
  %v3372 = vunpack.c.l.b16 %v3183
  %v3373 = vunpack.c.h.b16 %v3183
  %v3374 = vunpack.c.l.b16 %v3184
  %v3375 = vunpack.c.h.b16 %v3184
  %v3376 = vunpack.c.l.b16 %v3185
  %v3377 = vunpack.c.h.b16 %v3185
  %v3378 = vpack.c.b16 %v3254, %v3250
  %v3379 = vpack.c.b16 %v3255, %v3251
  %v3380 = vpack.c.b16 %v3256, %v3252
  %v3381 = vpack.c.b16 %v3257, %v3253
  %v3382 = vpack.c.b16 %v3262, %v3258
  %v3383 = vpack.c.b16 %v3263, %v3259
  %v3384 = vpack.c.b16 %v3264, %v3260
  %v3385 = vpack.c.b16 %v3265, %v3261
  %v3386 = vpack.c.b16 %v3270, %v3266
  %v3387 = vpack.c.b16 %v3271, %v3267
  %v3388 = vpack.c.b16 %v3272, %v3268
  %v3389 = vpack.c.b16 %v3273, %v3269
  %v3390 = vpack.c.b16 %v3278, %v3274
  %v3391 = vpack.c.b16 %v3279, %v3275
  %v3392 = vpack.c.b16 %v3280, %v3276
  %v3393 = vpack.c.b16 %v3281, %v3277
  %v3394 = vpack.c.b16 %v3286, %v3282
  %v3395 = vpack.c.b16 %v3287, %v3283
  %v3396 = vpack.c.b16 %v3288, %v3284
  %v3397 = vpack.c.b16 %v3289, %v3285
  %v3398 = vpack.c.b16 %v3294, %v3290
  %v3399 = vpack.c.b16 %v3295, %v3291
  %v3400 = vpack.c.b16 %v3296, %v3292
  %v3401 = vpack.c.b16 %v3297, %v3293
  %v3402 = vpack.c.b16 %v3302, %v3298
  %v3403 = vpack.c.b16 %v3303, %v3299
  %v3404 = vpack.c.b16 %v3304, %v3300
  %v3405 = vpack.c.b16 %v3305, %v3301
  %v3406 = vpack.c.b16 %v3310, %v3306
  %v3407 = vpack.c.b16 %v3311, %v3307
  %v3408 = vpack.c.b16 %v3312, %v3308
  %v3409 = vpack.c.b16 %v3313, %v3309
  %v3410 = vpack.c.b16 %v3318, %v3314
  %v3411 = vpack.c.b16 %v3319, %v3315
  %v3412 = vpack.c.b16 %v3320, %v3316
  %v3413 = vpack.c.b16 %v3321, %v3317
  %v3414 = vpack.c.b16 %v3326, %v3322
  %v3415 = vpack.c.b16 %v3327, %v3323
  %v3416 = vpack.c.b16 %v3328, %v3324
  %v3417 = vpack.c.b16 %v3329, %v3325
  %v3418 = vpack.c.b16 %v3334, %v3330
  %v3419 = vpack.c.b16 %v3335, %v3331
  %v3420 = vpack.c.b16 %v3336, %v3332
  %v3421 = vpack.c.b16 %v3337, %v3333
  %v3422 = vpack.c.b16 %v3342, %v3338
  %v3423 = vpack.c.b16 %v3343, %v3339
  %v3424 = vpack.c.b16 %v3344, %v3340
  %v3425 = vpack.c.b16 %v3345, %v3341
  %v3426 = vpack.c.b16 %v3350, %v3346
  %v3427 = vpack.c.b16 %v3351, %v3347
  %v3428 = vpack.c.b16 %v3352, %v3348
  %v3429 = vpack.c.b16 %v3353, %v3349
  %v3430 = vpack.c.b16 %v3358, %v3354
  %v3431 = vpack.c.b16 %v3359, %v3355
  %v3432 = vpack.c.b16 %v3360, %v3356
  %v3433 = vpack.c.b16 %v3361, %v3357
  %v3434 = vpack.c.b16 %v3366, %v3362
  %v3435 = vpack.c.b16 %v3367, %v3363
  %v3436 = vpack.c.b16 %v3368, %v3364
  %v3437 = vpack.c.b16 %v3369, %v3365
  %v3438 = vpack.c.b16 %v3374, %v3370
  %v3439 = vpack.c.b16 %v3375, %v3371
  %v3440 = vpack.c.b16 %v3376, %v3372
  %v3441 = vpack.c.b16 %v3377, %v3373
  %3506 = vmatprep.subr.bf16.mxu0 %v3379
  %3507 = vmatpush1.bf16.msra.mxu0 %v3378
  %3508 = vmatprep.subr.bf16.mxu0 %v3383
  %3509 = vmatpush1.bf16.msra.mxu0 %v3382
  %3510 = vmatprep.subr.bf16.mxu0 %v3387
  %3511 = vmatpush1.bf16.msra.mxu0 %v3386
  %3512 = vmatprep.subr.bf16.mxu0 %v3391
  %3513 = vmatpush1.bf16.msra.mxu0 %v3390
  %3514 = vmatprep.subr.bf16.mxu0 %v3395
  %3515 = vmatpush1.bf16.msra.mxu0 %v3394
  %3516 = vmatprep.subr.bf16.mxu0 %v3399
  %3517 = vmatpush1.bf16.msra.mxu0 %v3398
  %3518 = vmatprep.subr.bf16.mxu0 %v3403
  %3519 = vmatpush1.bf16.msra.mxu0 %v3402
  %3520 = vmatprep.subr.bf16.mxu0 %v3407
  %3521 = vmatpush1.bf16.msra.mxu0 %v3406
  %3522 = vmatprep.subr.bf16.mxu0 %v3411
  %3523 = vmatpush1.bf16.msra.mxu0 %v3410
  %3524 = vmatprep.subr.bf16.mxu0 %v3415
  %3525 = vmatpush1.bf16.msra.mxu0 %v3414
  %3526 = vmatprep.subr.bf16.mxu0 %v3419
  %3527 = vmatpush1.bf16.msra.mxu0 %v3418
  %3528 = vmatprep.subr.bf16.mxu0 %v3423
  %3529 = vmatpush1.bf16.msra.mxu0 %v3422
  %3530 = vmatprep.subr.bf16.mxu0 %v3427
  %3531 = vmatpush1.bf16.msra.mxu0 %v3426
  %3532 = vmatprep.subr.bf16.mxu0 %v3431
  %3533 = vmatpush1.bf16.msra.mxu0 %v3430
  %3534 = vmatprep.subr.bf16.mxu0 %v3435
  %3535 = vmatpush1.bf16.msra.mxu0 %v3434
  %3536 = vmatprep.subr.bf16.mxu0 %v3439
  %3537 = vmatpush1.bf16.msra.mxu0 %v3438
  %3538 = vmatprep.mubr.bf16.mxu0 %v3114
  %3539 = vmatmul.mubr.bf16.gmra.mrb[0].mxu0 %v3113
  %v3540 = vpop.f32.mrb[0].mxu0
  %v3541 = vadd.f32 0.0, %v3540
  %v3542 = vpop.f32.mrb[0].mxu0
  %v3543 = vadd.f32 0.0, %v3542
  %v3544 = vpop.f32.mrb[0].mxu0
  %v3545 = vadd.f32 0.0, %v3544
  %v3546 = vpop.f32.mrb[0].mxu0
  %v3547 = vadd.f32 0.0, %v3546
  %3548 = vmatprep.mubr.bf16.mxu0 %v3116
  %3549 = vmatmul.mubr.bf16.gmra.mrb[0].mxu0 %v3115
  %v3550 = vpop.f32.mrb[0].mxu0
  %v3551 = vadd.f32 0.0, %v3550
  %v3552 = vpop.f32.mrb[0].mxu0
  %v3553 = vadd.f32 0.0, %v3552
  %v3554 = vpop.f32.mrb[0].mxu0
  %v3555 = vadd.f32 0.0, %v3554
  %v3556 = vpop.f32.mrb[0].mxu0
  %v3557 = vadd.f32 0.0, %v3556
  %3558 = vmatprep.mubr.bf16.mxu0 %v3118
  %3559 = vmatmul.mubr.bf16.gmra.mrb[0].mxu0 %v3117
  %v3560 = vpop.f32.mrb[0].mxu0
  %v3561 = vadd.f32 0.0, %v3560
  %v3562 = vpop.f32.mrb[0].mxu0
  %v3563 = vadd.f32 0.0, %v3562
  %v3564 = vpop.f32.mrb[0].mxu0
  %v3565 = vadd.f32 0.0, %v3564
  %v3566 = vpop.f32.mrb[0].mxu0
  %v3567 = vadd.f32 0.0, %v3566
  %3568 = vmatprep.mubr.bf16.mxu0 %v3120
  %3569 = vmatmul.mubr.bf16.gmra.mrb[0].mxu0 %v3119
  %v3570 = vpop.f32.mrb[0].mxu0
  %v3571 = vadd.f32 0.0, %v3570
  %v3572 = vpop.f32.mrb[0].mxu0
  %v3573 = vadd.f32 0.0, %v3572
  %v3574 = vpop.f32.mrb[0].mxu0
  %v3575 = vadd.f32 0.0, %v3574
  %v3576 = vpop.f32.mrb[0].mxu0
  %v3577 = vadd.f32 0.0, %v3576
  %3578 = vdwg.mxu0
  %3579 = vmatprep.subr.bf16.mxu0 %v3381
  %3580 = vmatpush1.bf16.msra.mxu0 %v3380
  %3581 = vmatprep.subr.bf16.mxu0 %v3385
  %3582 = vmatpush1.bf16.msra.mxu0 %v3384
  %3583 = vmatprep.subr.bf16.mxu0 %v3389
  %3584 = vmatpush1.bf16.msra.mxu0 %v3388
  %3585 = vmatprep.subr.bf16.mxu0 %v3393
  %3586 = vmatpush1.bf16.msra.mxu0 %v3392
  %3587 = vmatprep.subr.bf16.mxu0 %v3397
  %3588 = vmatpush1.bf16.msra.mxu0 %v3396
  %3589 = vmatprep.subr.bf16.mxu0 %v3401
  %3590 = vmatpush1.bf16.msra.mxu0 %v3400
  %3591 = vmatprep.subr.bf16.mxu0 %v3405
  %3592 = vmatpush1.bf16.msra.mxu0 %v3404
  %3593 = vmatprep.subr.bf16.mxu0 %v3409
  %3594 = vmatpush1.bf16.msra.mxu0 %v3408
  %3595 = vmatprep.subr.bf16.mxu0 %v3413
  %3596 = vmatpush1.bf16.msra.mxu0 %v3412
  %3597 = vmatprep.subr.bf16.mxu0 %v3417
  %3598 = vmatpush1.bf16.msra.mxu0 %v3416
  %3599 = vmatprep.subr.bf16.mxu0 %v3421
  %3600 = vmatpush1.bf16.msra.mxu0 %v3420
  %3601 = vmatprep.subr.bf16.mxu0 %v3425
  %3602 = vmatpush1.bf16.msra.mxu0 %v3424
  %3603 = vmatprep.subr.bf16.mxu0 %v3429
  %3604 = vmatpush1.bf16.msra.mxu0 %v3428
  %3605 = vmatprep.subr.bf16.mxu0 %v3433
  %3606 = vmatpush1.bf16.msra.mxu0 %v3432
  %3607 = vmatprep.subr.bf16.mxu0 %v3437
  %3608 = vmatpush1.bf16.msra.mxu0 %v3436
  %3609 = vmatprep.subr.bf16.mxu0 %v3441
  %3610 = vmatpush1.bf16.msra.mxu0 %v3440
  %3611 = vmatprep.mubr.bf16.mxu0 %v3114
  %3612 = vmatmul.mubr.bf16.gmra.mrb[0].mxu0 %v3113
  %v3613 = vpop.f32.mrb[0].mxu0
  %v3614 = vadd.f32 0.0, %v3613
  %v3615 = vpop.f32.mrb[0].mxu0
  %v3616 = vadd.f32 0.0, %v3615
  %v3617 = vpop.f32.mrb[0].mxu0
  %v3618 = vadd.f32 0.0, %v3617
  %v3619 = vpop.f32.mrb[0].mxu0
  %v3620 = vadd.f32 0.0, %v3619
  %3621 = vmatprep.mubr.bf16.mxu0 %v3116
  %3622 = vmatmul.mubr.bf16.gmra.mrb[0].mxu0 %v3115
  %v3623 = vpop.f32.mrb[0].mxu0
  %v3624 = vadd.f32 0.0, %v3623
  %v3625 = vpop.f32.mrb[0].mxu0
  %v3626 = vadd.f32 0.0, %v3625
  %v3627 = vpop.f32.mrb[0].mxu0
  %v3628 = vadd.f32 0.0, %v3627
  %v3629 = vpop.f32.mrb[0].mxu0
  %v3630 = vadd.f32 0.0, %v3629
  %3631 = vmatprep.mubr.bf16.mxu0 %v3118
  %3632 = vmatmul.mubr.bf16.gmra.mrb[0].mxu0 %v3117
  %v3633 = vpop.f32.mrb[0].mxu0
  %v3634 = vadd.f32 0.0, %v3633
  %v3635 = vpop.f32.mrb[0].mxu0
  %v3636 = vadd.f32 0.0, %v3635
  %v3637 = vpop.f32.mrb[0].mxu0
  %v3638 = vadd.f32 0.0, %v3637
  %v3639 = vpop.f32.mrb[0].mxu0
  %v3640 = vadd.f32 0.0, %v3639
  %3641 = vmatprep.mubr.bf16.mxu0 %v3120
  %3642 = vmatmul.mubr.bf16.gmra.mrb[0].mxu0 %v3119
  %v3643 = vpop.f32.mrb[0].mxu0
  %v3644 = vadd.f32 0.0, %v3643
  %v3645 = vpop.f32.mrb[0].mxu0
  %v3646 = vadd.f32 0.0, %v3645
  %v3647 = vpop.f32.mrb[0].mxu0
  %v3648 = vadd.f32 0.0, %v3647
  %v3649 = vpop.f32.mrb[0].mxu0
  %v3650 = vadd.f32 0.0, %v3649
  %3651 = vdwg.mxu0
  %v3652 = vadd.f32 %v2967, %v3541
  %v3653 = vadd.f32 %v2968, %v3543
  %v3654 = vadd.f32 %v2969, %v3614
  %v3655 = vadd.f32 %v2970, %v3616
  %v3656 = vadd.f32 %v2971, %v3545
  %v3657 = vadd.f32 %v2972, %v3547
  %v3658 = vadd.f32 %v2973, %v3618
  %v3659 = vadd.f32 %v2974, %v3620
  %v3660 = vadd.f32 %v2975, %v3551
  %v3661 = vadd.f32 %v2976, %v3553
  %v3662 = vadd.f32 %v2977, %v3624
  %v3663 = vadd.f32 %v2978, %v3626
  %v3664 = vadd.f32 %v2979, %v3555
  %v3665 = vadd.f32 %v2980, %v3557
  %v3666 = vadd.f32 %v2981, %v3628
  %v3667 = vadd.f32 %v2982, %v3630
  %v3668 = vadd.f32 %v2983, %v3561
  %v3669 = vadd.f32 %v2984, %v3563
  %v3670 = vadd.f32 %v2985, %v3634
  %v3671 = vadd.f32 %v2986, %v3636
  %v3672 = vadd.f32 %v2987, %v3565
  %v3673 = vadd.f32 %v2988, %v3567
  %v3674 = vadd.f32 %v2989, %v3638
  %v3675 = vadd.f32 %v2990, %v3640
  %v3676 = vadd.f32 %v2991, %v3571
  %v3677 = vadd.f32 %v2992, %v3573
  %v3678 = vadd.f32 %v2993, %v3644
  %v3679 = vadd.f32 %v2994, %v3646
  %v3680 = vadd.f32 %v2995, %v3575
  %v3681 = vadd.f32 %v2996, %v3577
  %v3682 = vadd.f32 %v2997, %v3648
  %v3683 = vadd.f32 %v2998, %v3650
  %v3684 = vld [vmem:[%s7] sm:$0xf]
  %v3686 = vlaneseq
  %v3687 = vshrl.u32 %v3686, 7
  %v3688 = vsub.s32 0, %v3687
  %v3689 = vrot.slane %v3684, %v3688
  %v3690 = vlaneseq
  %v3691 = vshrl.u32 %v3690, 7
  %v3692 = vsub.s32 1, %v3691
  %v3693 = vrot.slane %v3684, %v3692
  %v3694 = vlaneseq
  %v3695 = vshrl.u32 %v3694, 7
  %v3696 = vsub.s32 2, %v3695
  %v3697 = vrot.slane %v3684, %v3696
  %v3698 = vlaneseq
  %v3699 = vshrl.u32 %v3698, 7
  %v3700 = vsub.s32 3, %v3699
  %v3701 = vrot.slane %v3684, %v3700
  %v3706 = vmul.f32 %v3652, %v3689
  %v3707 = vmul.f32 %v3653, %v3693
  %v3708 = vmul.f32 %v3654, %v3697
  %v3709 = vmul.f32 %v3655, %v3701
  %v3710 = vmul.f32 %v3656, %v3689
  %v3711 = vmul.f32 %v3657, %v3693
  %v3712 = vmul.f32 %v3658, %v3697
  %v3713 = vmul.f32 %v3659, %v3701
  %v3714 = vmul.f32 %v3660, %v3689
  %v3715 = vmul.f32 %v3661, %v3693
  %v3716 = vmul.f32 %v3662, %v3697
  %v3717 = vmul.f32 %v3663, %v3701
  %v3718 = vmul.f32 %v3664, %v3689
  %v3719 = vmul.f32 %v3665, %v3693
  %v3720 = vmul.f32 %v3666, %v3697
  %v3721 = vmul.f32 %v3667, %v3701
  %v3722 = vmul.f32 %v3668, %v3689
  %v3723 = vmul.f32 %v3669, %v3693
  %v3724 = vmul.f32 %v3670, %v3697
  %v3725 = vmul.f32 %v3671, %v3701
  %v3726 = vmul.f32 %v3672, %v3689
  %v3727 = vmul.f32 %v3673, %v3693
  %v3728 = vmul.f32 %v3674, %v3697
  %v3729 = vmul.f32 %v3675, %v3701
  %v3730 = vmul.f32 %v3676, %v3689
  %v3731 = vmul.f32 %v3677, %v3693
  %v3732 = vmul.f32 %v3678, %v3697
  %v3733 = vmul.f32 %v3679, %v3701
  %v3734 = vmul.f32 %v3680, %v3689
  %v3735 = vmul.f32 %v3681, %v3693
  %v3736 = vmul.f32 %v3682, %v3697
  %v3737 = vmul.f32 %v3683, %v3701
  %v3738 = vld [vmem:[%s8] sm:$0xf]
  %v3740 = vlaneseq
  %v3741 = vshrl.u32 %v3740, 7
  %v3742 = vsub.s32 0, %v3741
  %v3743 = vrot.slane %v3738, %v3742
  %v3744 = vlaneseq
  %v3745 = vshrl.u32 %v3744, 7
  %v3746 = vsub.s32 1, %v3745
  %v3747 = vrot.slane %v3738, %v3746
  %v3748 = vlaneseq
  %v3749 = vshrl.u32 %v3748, 7
  %v3750 = vsub.s32 2, %v3749
  %v3751 = vrot.slane %v3738, %v3750
  %v3752 = vlaneseq
  %v3753 = vshrl.u32 %v3752, 7
  %v3754 = vsub.s32 3, %v3753
  %v3755 = vrot.slane %v3738, %v3754
  %v3760 = vadd.f32 %v3706, %v3743
  %v3761 = vadd.f32 %v3707, %v3747
  %v3762 = vadd.f32 %v3708, %v3751
  %v3763 = vadd.f32 %v3709, %v3755
  %v3764 = vadd.f32 %v3710, %v3743
  %v3765 = vadd.f32 %v3711, %v3747
  %v3766 = vadd.f32 %v3712, %v3751
  %v3767 = vadd.f32 %v3713, %v3755
  %v3768 = vadd.f32 %v3714, %v3743
  %v3769 = vadd.f32 %v3715, %v3747
  %v3770 = vadd.f32 %v3716, %v3751
  %v3771 = vadd.f32 %v3717, %v3755
  %v3772 = vadd.f32 %v3718, %v3743
  %v3773 = vadd.f32 %v3719, %v3747
  %v3774 = vadd.f32 %v3720, %v3751
  %v3775 = vadd.f32 %v3721, %v3755
  %v3776 = vadd.f32 %v3722, %v3743
  %v3777 = vadd.f32 %v3723, %v3747
  %v3778 = vadd.f32 %v3724, %v3751
  %v3779 = vadd.f32 %v3725, %v3755
  %v3780 = vadd.f32 %v3726, %v3743
  %v3781 = vadd.f32 %v3727, %v3747
  %v3782 = vadd.f32 %v3728, %v3751
  %v3783 = vadd.f32 %v3729, %v3755
  %v3784 = vadd.f32 %v3730, %v3743
  %v3785 = vadd.f32 %v3731, %v3747
  %v3786 = vadd.f32 %v3732, %v3751
  %v3787 = vadd.f32 %v3733, %v3755
  %v3788 = vadd.f32 %v3734, %v3743
  %v3789 = vadd.f32 %v3735, %v3747
  %v3790 = vadd.f32 %v3736, %v3751
  %v3791 = vadd.f32 %v3737, %v3755
  %v3792 = vmax.f32 %v3760, 0.0
  %v3793 = vmax.f32 %v3761, 0.0
  %v3794 = vmax.f32 %v3762, 0.0
  %v3795 = vmax.f32 %v3763, 0.0
  %v3796 = vmax.f32 %v3764, 0.0
  %v3797 = vmax.f32 %v3765, 0.0
  %v3798 = vmax.f32 %v3766, 0.0
  %v3799 = vmax.f32 %v3767, 0.0
  %v3800 = vmax.f32 %v3768, 0.0
  %v3801 = vmax.f32 %v3769, 0.0
  %v3802 = vmax.f32 %v3770, 0.0
  %v3803 = vmax.f32 %v3771, 0.0
  %v3804 = vmax.f32 %v3772, 0.0
  %v3805 = vmax.f32 %v3773, 0.0
  %v3806 = vmax.f32 %v3774, 0.0
  %v3807 = vmax.f32 %v3775, 0.0
  %v3808 = vmax.f32 %v3776, 0.0
  %v3809 = vmax.f32 %v3777, 0.0
  %v3810 = vmax.f32 %v3778, 0.0
  %v3811 = vmax.f32 %v3779, 0.0
  %v3812 = vmax.f32 %v3780, 0.0
  %v3813 = vmax.f32 %v3781, 0.0
  %v3814 = vmax.f32 %v3782, 0.0
  %v3815 = vmax.f32 %v3783, 0.0
  %v3816 = vmax.f32 %v3784, 0.0
  %v3817 = vmax.f32 %v3785, 0.0
  %v3818 = vmax.f32 %v3786, 0.0
  %v3819 = vmax.f32 %v3787, 0.0
  %v3820 = vmax.f32 %v3788, 0.0
  %v3821 = vmax.f32 %v3789, 0.0
  %v3822 = vmax.f32 %v3790, 0.0
  %v3823 = vmax.f32 %v3791, 0.0
  %v3824 = vpack.c.bf16 %v3796, %v3792
  %v3825 = vpack.c.bf16 %v3797, %v3793
  %v3826 = vpack.c.bf16 %v3798, %v3794
  %v3827 = vpack.c.bf16 %v3799, %v3795
  %v3828 = vpack.c.bf16 %v3804, %v3800
  %v3829 = vpack.c.bf16 %v3805, %v3801
  %v3830 = vpack.c.bf16 %v3806, %v3802
  %v3831 = vpack.c.bf16 %v3807, %v3803
  %v3832 = vpack.c.bf16 %v3812, %v3808
  %v3833 = vpack.c.bf16 %v3813, %v3809
  %v3834 = vpack.c.bf16 %v3814, %v3810
  %v3835 = vpack.c.bf16 %v3815, %v3811
  %v3836 = vpack.c.bf16 %v3820, %v3816
  %v3837 = vpack.c.bf16 %v3821, %v3817
  %v3838 = vpack.c.bf16 %v3822, %v3818
  %v3839 = vpack.c.bf16 %v3823, %v3819
  %v3840 = vld [vmem:[%s9] sm:$0xf]
  %v3841 = vld [vmem:[%s9 + $0x4] sm:$0xf]
  %v3842 = vld [vmem:[%s9 + $0x8] sm:$0xf]
  %v3843 = vld [vmem:[%s9 + $0xc] sm:$0xf]
  %v3844 = vld [vmem:[%s9 + $0x10] sm:$0xf]
  %v3845 = vld [vmem:[%s9 + $0x14] sm:$0xf]
  %v3846 = vld [vmem:[%s9 + $0x18] sm:$0xf]
  %v3847 = vld [vmem:[%s9 + $0x1c] sm:$0xf]
  %v3856 = vunpack.c.l.b16 %v3840
  %v3857 = vunpack.c.l.b16 %v3841
  %v3858 = vunpack.c.l.b16 %v3842
  %v3859 = vunpack.c.l.b16 %v3843
  %v3860 = vunpack.c.l.b16 %v3844
  %v3861 = vunpack.c.l.b16 %v3845
  %v3862 = vunpack.c.l.b16 %v3846
  %v3863 = vunpack.c.l.b16 %v3847
  %v3864 = vpack.c.b16 %v3857, %v3856
  %v3865 = vpack.c.b16 %v3859, %v3858
  %v3866 = vpack.c.b16 %v3861, %v3860
  %v3867 = vpack.c.b16 %v3863, %v3862
  %vm3868 = vcmask 523264
  %v3870 = vsel %vm3868, %v3864, 0
  %v3873 = vsel %vm3868, %v3865, 0
  %v3876 = vsel %vm3868, %v3866, 0
  %v3879 = vsel %vm3868, %v3867, 0
  %3881 = vmatprep.subr.bf16.mxu0 %v3825
  %3882 = vmatpush1.bf16.msra.mxu0 %v3824
  %3883 = vmatprep.subr.bf16.mxu0 %v3829
  %3884 = vmatpush1.bf16.msra.mxu0 %v3828
  %3885 = vmatprep.subr.bf16.mxu0 %v3833
  %3886 = vmatpush1.bf16.msra.mxu0 %v3832
  %3887 = vmatprep.subr.bf16.mxu0 %v3837
  %3888 = vmatpush1.bf16.msra.mxu0 %v3836
  %3889 = vmatprep.subr.bf16.mxu0 0
  %3890 = vmatpush1.bf16.msra.mxu0 0
  %3891 = vmatprep.subr.bf16.mxu0 0
  %3892 = vmatpush1.bf16.msra.mxu0 0
  %3893 = vmatprep.subr.bf16.mxu0 0
  %3894 = vmatpush1.bf16.msra.mxu0 0
  %3895 = vmatprep.subr.bf16.mxu0 0
  %3896 = vmatpush1.bf16.msra.mxu0 0
  %3897 = vmatprep.subr.bf16.mxu0 0
  %3898 = vmatpush1.bf16.msra.mxu0 0
  %3899 = vmatprep.subr.bf16.mxu0 0
  %3900 = vmatpush1.bf16.msra.mxu0 0
  %3901 = vmatprep.subr.bf16.mxu0 0
  %3902 = vmatpush1.bf16.msra.mxu0 0
  %3903 = vmatprep.subr.bf16.mxu0 0
  %3904 = vmatpush1.bf16.msra.mxu0 0
  %3905 = vmatprep.subr.bf16.mxu0 0
  %3906 = vmatpush1.bf16.msra.mxu0 0
  %3907 = vmatprep.subr.bf16.mxu0 0
  %3908 = vmatpush1.bf16.msra.mxu0 0
  %3909 = vmatprep.subr.bf16.mxu0 0
  %3910 = vmatpush1.bf16.msra.mxu0 0
  %3911 = vmatprep.subr.bf16.mxu0 0
  %3912 = vmatpush1.bf16.msra.mxu0 0
  %3913 = vmatprep.mubr.bf16.mxu0 0
  %3914 = vmatmul.mubr.bf16.gmra.mrb[0].mxu0 %v3870
  %v3915 = vpop.f32.mrb[0].mxu0
  %v3916 = vadd.f32 0.0, %v3915
  %v3917 = vpop.f32.mrb[0].mxu0
  %v3918 = vadd.f32 0.0, %v3917
  %v3919 = vpop.f32.mrb[0].mxu0
  %v3920 = vadd.f32 0.0, %v3919
  %v3921 = vpop.f32.mrb[0].mxu0
  %v3922 = vadd.f32 0.0, %v3921
  %3923 = vmatprep.mubr.bf16.mxu0 0
  %3924 = vmatmul.mubr.bf16.gmra.mrb[0].mxu0 %v3873
  %v3925 = vpop.f32.mrb[0].mxu0
  %v3926 = vadd.f32 0.0, %v3925
  %v3927 = vpop.f32.mrb[0].mxu0
  %v3928 = vadd.f32 0.0, %v3927
  %v3929 = vpop.f32.mrb[0].mxu0
  %v3930 = vadd.f32 0.0, %v3929
  %v3931 = vpop.f32.mrb[0].mxu0
  %v3932 = vadd.f32 0.0, %v3931
  %3933 = vmatprep.mubr.bf16.mxu0 0
  %3934 = vmatmul.mubr.bf16.gmra.mrb[0].mxu0 %v3876
  %v3935 = vpop.f32.mrb[0].mxu0
  %v3936 = vadd.f32 0.0, %v3935
  %v3937 = vpop.f32.mrb[0].mxu0
  %v3938 = vadd.f32 0.0, %v3937
  %v3939 = vpop.f32.mrb[0].mxu0
  %v3940 = vadd.f32 0.0, %v3939
  %v3941 = vpop.f32.mrb[0].mxu0
  %v3942 = vadd.f32 0.0, %v3941
  %3943 = vmatprep.mubr.bf16.mxu0 0
  %3944 = vmatmul.mubr.bf16.gmra.mrb[0].mxu0 %v3879
  %v3945 = vpop.f32.mrb[0].mxu0
  %v3946 = vadd.f32 0.0, %v3945
  %v3947 = vpop.f32.mrb[0].mxu0
  %v3948 = vadd.f32 0.0, %v3947
  %v3949 = vpop.f32.mrb[0].mxu0
  %v3950 = vadd.f32 0.0, %v3949
  %v3951 = vpop.f32.mrb[0].mxu0
  %v3952 = vadd.f32 0.0, %v3951
  %3953 = vdwg.mxu0
  %3954 = vmatprep.subr.bf16.mxu0 %v3827
  %3955 = vmatpush1.bf16.msra.mxu0 %v3826
  %3956 = vmatprep.subr.bf16.mxu0 %v3831
  %3957 = vmatpush1.bf16.msra.mxu0 %v3830
  %3958 = vmatprep.subr.bf16.mxu0 %v3835
  %3959 = vmatpush1.bf16.msra.mxu0 %v3834
  %3960 = vmatprep.subr.bf16.mxu0 %v3839
  %3961 = vmatpush1.bf16.msra.mxu0 %v3838
  %3962 = vmatprep.subr.bf16.mxu0 0
  %3963 = vmatpush1.bf16.msra.mxu0 0
  %3964 = vmatprep.subr.bf16.mxu0 0
  %3965 = vmatpush1.bf16.msra.mxu0 0
  %3966 = vmatprep.subr.bf16.mxu0 0
  %3967 = vmatpush1.bf16.msra.mxu0 0
  %3968 = vmatprep.subr.bf16.mxu0 0
  %3969 = vmatpush1.bf16.msra.mxu0 0
  %3970 = vmatprep.subr.bf16.mxu0 0
  %3971 = vmatpush1.bf16.msra.mxu0 0
  %3972 = vmatprep.subr.bf16.mxu0 0
  %3973 = vmatpush1.bf16.msra.mxu0 0
  %3974 = vmatprep.subr.bf16.mxu0 0
  %3975 = vmatpush1.bf16.msra.mxu0 0
  %3976 = vmatprep.subr.bf16.mxu0 0
  %3977 = vmatpush1.bf16.msra.mxu0 0
  %3978 = vmatprep.subr.bf16.mxu0 0
  %3979 = vmatpush1.bf16.msra.mxu0 0
  %3980 = vmatprep.subr.bf16.mxu0 0
  %3981 = vmatpush1.bf16.msra.mxu0 0
  %3982 = vmatprep.subr.bf16.mxu0 0
  %3983 = vmatpush1.bf16.msra.mxu0 0
  %3984 = vmatprep.subr.bf16.mxu0 0
  %3985 = vmatpush1.bf16.msra.mxu0 0
  %3986 = vmatprep.mubr.bf16.mxu0 0
  %3987 = vmatmul.mubr.bf16.gmra.mrb[0].mxu0 %v3870
  %v3988 = vpop.f32.mrb[0].mxu0
  %v3989 = vadd.f32 0.0, %v3988
  %v3990 = vpop.f32.mrb[0].mxu0
  %v3991 = vadd.f32 0.0, %v3990
  %v3992 = vpop.f32.mrb[0].mxu0
  %v3993 = vadd.f32 0.0, %v3992
  %v3994 = vpop.f32.mrb[0].mxu0
  %v3995 = vadd.f32 0.0, %v3994
  %3996 = vmatprep.mubr.bf16.mxu0 0
  %3997 = vmatmul.mubr.bf16.gmra.mrb[0].mxu0 %v3873
  %v3998 = vpop.f32.mrb[0].mxu0
  %v3999 = vadd.f32 0.0, %v3998
  %v4000 = vpop.f32.mrb[0].mxu0
  %v4001 = vadd.f32 0.0, %v4000
  %v4002 = vpop.f32.mrb[0].mxu0
  %v4003 = vadd.f32 0.0, %v4002
  %v4004 = vpop.f32.mrb[0].mxu0
  %v4005 = vadd.f32 0.0, %v4004
  %4006 = vmatprep.mubr.bf16.mxu0 0
  %4007 = vmatmul.mubr.bf16.gmra.mrb[0].mxu0 %v3876
  %v4008 = vpop.f32.mrb[0].mxu0
  %v4009 = vadd.f32 0.0, %v4008
  %v4010 = vpop.f32.mrb[0].mxu0
  %v4011 = vadd.f32 0.0, %v4010
  %v4012 = vpop.f32.mrb[0].mxu0
  %v4013 = vadd.f32 0.0, %v4012
  %v4014 = vpop.f32.mrb[0].mxu0
  %v4015 = vadd.f32 0.0, %v4014
  %4016 = vmatprep.mubr.bf16.mxu0 0
  %4017 = vmatmul.mubr.bf16.gmra.mrb[0].mxu0 %v3879
  %v4018 = vpop.f32.mrb[0].mxu0
  %v4019 = vadd.f32 0.0, %v4018
  %v4020 = vpop.f32.mrb[0].mxu0
  %v4021 = vadd.f32 0.0, %v4020
  %v4022 = vpop.f32.mrb[0].mxu0
  %v4023 = vadd.f32 0.0, %v4022
  %v4024 = vpop.f32.mrb[0].mxu0
  %v4025 = vadd.f32 0.0, %v4024
  %4026 = vdwg.mxu0
  %v4027 = vpack.c.bf16 %v3920, %v3916
  %v4028 = vpack.c.bf16 %v3922, %v3918
  %v4029 = vpack.c.bf16 %v3993, %v3989
  %v4030 = vpack.c.bf16 %v3995, %v3991
  %v4031 = vpack.c.bf16 %v3930, %v3926
  %v4032 = vpack.c.bf16 %v3932, %v3928
  %v4033 = vpack.c.bf16 %v4003, %v3999
  %v4034 = vpack.c.bf16 %v4005, %v4001
  %v4035 = vpack.c.bf16 %v3940, %v3936
  %v4036 = vpack.c.bf16 %v3942, %v3938
  %v4037 = vpack.c.bf16 %v4013, %v4009
  %v4038 = vpack.c.bf16 %v4015, %v4011
  %v4039 = vpack.c.bf16 %v3950, %v3946
  %v4040 = vpack.c.bf16 %v3952, %v3948
  %v4041 = vpack.c.bf16 %v4023, %v4019
  %v4042 = vpack.c.bf16 %v4025, %v4021
  %v4043 = vld [vmem:[%s10] sm:$0xff]
  %v4044 = vld [vmem:[%s10 + $0x8] sm:$0xff]
  %v4045 = vld [vmem:[%s10 + $0x10] sm:$0xff]
  %v4046 = vld [vmem:[%s10 + $0x18] sm:$0xff]
  %v4047 = vld [vmem:[%s10 + $0x20] sm:$0xff]
  %v4048 = vld [vmem:[%s10 + $0x28] sm:$0xff]
  %v4049 = vld [vmem:[%s10 + $0x30] sm:$0xff]
  %v4050 = vld [vmem:[%s10 + $0x38] sm:$0xff]
  %v4051 = vld [vmem:[%s10 + $0x40] sm:$0xff]
  %v4052 = vld [vmem:[%s10 + $0x48] sm:$0xff]
  %v4053 = vld [vmem:[%s10 + $0x50] sm:$0xff]
  %v4054 = vld [vmem:[%s10 + $0x58] sm:$0xff]
  %v4055 = vld [vmem:[%s10 + $0x60] sm:$0xff]
  %v4056 = vld [vmem:[%s10 + $0x68] sm:$0xff]
  %v4057 = vld [vmem:[%s10 + $0x70] sm:$0xff]
  %v4058 = vld [vmem:[%s10 + $0x78] sm:$0xff]
  %v4059 = vld [vmem:[%s10 + $0x80] sm:$0xff]
  %v4060 = vld [vmem:[%s10 + $0x88] sm:$0xff]
  %v4061 = vld [vmem:[%s10 + $0x90] sm:$0xff]
  %v4062 = vld [vmem:[%s10 + $0x98] sm:$0xff]
  %v4063 = vld [vmem:[%s10 + $0xa0] sm:$0xff]
  %v4064 = vld [vmem:[%s10 + $0xa8] sm:$0xff]
  %v4065 = vld [vmem:[%s10 + $0xb0] sm:$0xff]
  %v4066 = vld [vmem:[%s10 + $0xb8] sm:$0xff]
  %v4067 = vld [vmem:[%s10 + $0xc0] sm:$0xff]
  %v4068 = vld [vmem:[%s10 + $0xc8] sm:$0xff]
  %v4069 = vld [vmem:[%s10 + $0xd0] sm:$0xff]
  %v4070 = vld [vmem:[%s10 + $0xd8] sm:$0xff]
  %v4071 = vld [vmem:[%s10 + $0xe0] sm:$0xff]
  %v4072 = vld [vmem:[%s10 + $0xe8] sm:$0xff]
  %v4073 = vld [vmem:[%s10 + $0xf0] sm:$0xff]
  %v4074 = vld [vmem:[%s10 + $0xf8] sm:$0xff]
  %v4075 = vld [vmem:[%s10 + $0x100] sm:$0xff]
  %v4076 = vld [vmem:[%s10 + $0x108] sm:$0xff]
  %v4077 = vld [vmem:[%s10 + $0x110] sm:$0xff]
  %v4078 = vld [vmem:[%s10 + $0x118] sm:$0xff]
  %v4079 = vld [vmem:[%s10 + $0x120] sm:$0xff]
  %v4080 = vld [vmem:[%s10 + $0x128] sm:$0xff]
  %v4081 = vld [vmem:[%s10 + $0x130] sm:$0xff]
  %v4082 = vld [vmem:[%s10 + $0x138] sm:$0xff]
  %v4083 = vld [vmem:[%s10 + $0x140] sm:$0xff]
  %v4084 = vld [vmem:[%s10 + $0x148] sm:$0xff]
  %v4085 = vld [vmem:[%s10 + $0x150] sm:$0xff]
  %v4086 = vld [vmem:[%s10 + $0x158] sm:$0xff]
  %v4087 = vld [vmem:[%s10 + $0x160] sm:$0xff]
  %v4088 = vld [vmem:[%s10 + $0x168] sm:$0xff]
  %v4089 = vld [vmem:[%s10 + $0x170] sm:$0xff]
  %v4090 = vld [vmem:[%s10 + $0x178] sm:$0xff]
  %v4091 = vld [vmem:[%s10 + $0x180] sm:$0xff]
  %v4092 = vld [vmem:[%s10 + $0x188] sm:$0xff]
  %v4093 = vld [vmem:[%s10 + $0x190] sm:$0xff]
  %v4094 = vld [vmem:[%s10 + $0x198] sm:$0xff]
  %v4095 = vld [vmem:[%s10 + $0x1a0] sm:$0xff]
  %v4096 = vld [vmem:[%s10 + $0x1a8] sm:$0xff]
  %v4097 = vld [vmem:[%s10 + $0x1b0] sm:$0xff]
  %v4098 = vld [vmem:[%s10 + $0x1b8] sm:$0xff]
  %v4099 = vld [vmem:[%s10 + $0x1c0] sm:$0xff]
  %v4100 = vld [vmem:[%s10 + $0x1c8] sm:$0xff]
  %v4101 = vld [vmem:[%s10 + $0x1d0] sm:$0xff]
  %v4102 = vld [vmem:[%s10 + $0x1d8] sm:$0xff]
  %v4103 = vld [vmem:[%s10 + $0x1e0] sm:$0xff]
  %v4104 = vld [vmem:[%s10 + $0x1e8] sm:$0xff]
  %v4105 = vld [vmem:[%s10 + $0x1f0] sm:$0xff]
  %v4106 = vld [vmem:[%s10 + $0x1f8] sm:$0xff]
  %s4107 = scalar_lea.vmem %s9, 32
  %v4108 = vld [vmem:[%s4107] sm:$0xf]
  %v4109 = vld [vmem:[%s4107 + $0x4] sm:$0xf]
  %v4110 = vld [vmem:[%s4107 + $0x8] sm:$0xf]
  %v4111 = vld [vmem:[%s4107 + $0xc] sm:$0xf]
  %v4112 = vld [vmem:[%s4107 + $0x10] sm:$0xf]
  %v4113 = vld [vmem:[%s4107 + $0x14] sm:$0xf]
  %v4114 = vld [vmem:[%s4107 + $0x18] sm:$0xf]
  %v4115 = vld [vmem:[%s4107 + $0x1c] sm:$0xf]
  %v4124 = vunpack.c.l.b16 %v4108
  %v4125 = vunpack.c.l.b16 %v4109
  %v4126 = vunpack.c.l.b16 %v4110
  %v4127 = vunpack.c.l.b16 %v4111
  %v4128 = vunpack.c.l.b16 %v4112
  %v4129 = vunpack.c.l.b16 %v4113
  %v4130 = vunpack.c.l.b16 %v4114
  %v4131 = vunpack.c.l.b16 %v4115
  %v4132 = vpack.c.b16 %v4125, %v4124
  %v4133 = vpack.c.b16 %v4127, %v4126
  %v4134 = vpack.c.b16 %v4129, %v4128
  %v4135 = vpack.c.b16 %v4131, %v4130
  %v4137 = vsel %vm3868, %v4132, 0
  %v4140 = vsel %vm3868, %v4133, 0
  %v4143 = vsel %vm3868, %v4134, 0
  %v4146 = vsel %vm3868, %v4135, 0
  %4148 = vmatprep.subr.bf16.mxu0 %v3825
  %4149 = vmatpush1.bf16.msra.mxu0 %v3824
  %4150 = vmatprep.subr.bf16.mxu0 %v3829
  %4151 = vmatpush1.bf16.msra.mxu0 %v3828
  %4152 = vmatprep.subr.bf16.mxu0 %v3833
  %4153 = vmatpush1.bf16.msra.mxu0 %v3832
  %4154 = vmatprep.subr.bf16.mxu0 %v3837
  %4155 = vmatpush1.bf16.msra.mxu0 %v3836
  %4156 = vmatprep.subr.bf16.mxu0 0
  %4157 = vmatpush1.bf16.msra.mxu0 0
  %4158 = vmatprep.subr.bf16.mxu0 0
  %4159 = vmatpush1.bf16.msra.mxu0 0
  %4160 = vmatprep.subr.bf16.mxu0 0
  %4161 = vmatpush1.bf16.msra.mxu0 0
  %4162 = vmatprep.subr.bf16.mxu0 0
  %4163 = vmatpush1.bf16.msra.mxu0 0
  %4164 = vmatprep.subr.bf16.mxu0 0
  %4165 = vmatpush1.bf16.msra.mxu0 0
  %4166 = vmatprep.subr.bf16.mxu0 0
  %4167 = vmatpush1.bf16.msra.mxu0 0
  %4168 = vmatprep.subr.bf16.mxu0 0
  %4169 = vmatpush1.bf16.msra.mxu0 0
  %4170 = vmatprep.subr.bf16.mxu0 0
  %4171 = vmatpush1.bf16.msra.mxu0 0
  %4172 = vmatprep.subr.bf16.mxu0 0
  %4173 = vmatpush1.bf16.msra.mxu0 0
  %4174 = vmatprep.subr.bf16.mxu0 0
  %4175 = vmatpush1.bf16.msra.mxu0 0
  %4176 = vmatprep.subr.bf16.mxu0 0
  %4177 = vmatpush1.bf16.msra.mxu0 0
  %4178 = vmatprep.subr.bf16.mxu0 0
  %4179 = vmatpush1.bf16.msra.mxu0 0
  %4180 = vmatprep.mubr.bf16.mxu0 0
  %4181 = vmatmul.mubr.bf16.gmra.mrb[0].mxu0 %v4137
  %v4182 = vpop.f32.mrb[0].mxu0
  %v4183 = vadd.f32 0.0, %v4182
  %v4184 = vpop.f32.mrb[0].mxu0
  %v4185 = vadd.f32 0.0, %v4184
  %v4186 = vpop.f32.mrb[0].mxu0
  %v4187 = vadd.f32 0.0, %v4186
  %v4188 = vpop.f32.mrb[0].mxu0
  %v4189 = vadd.f32 0.0, %v4188
  %4190 = vmatprep.mubr.bf16.mxu0 0
  %4191 = vmatmul.mubr.bf16.gmra.mrb[0].mxu0 %v4140
  %v4192 = vpop.f32.mrb[0].mxu0
  %v4193 = vadd.f32 0.0, %v4192
  %v4194 = vpop.f32.mrb[0].mxu0
  %v4195 = vadd.f32 0.0, %v4194
  %v4196 = vpop.f32.mrb[0].mxu0
  %v4197 = vadd.f32 0.0, %v4196
  %v4198 = vpop.f32.mrb[0].mxu0
  %v4199 = vadd.f32 0.0, %v4198
  %4200 = vmatprep.mubr.bf16.mxu0 0
  %4201 = vmatmul.mubr.bf16.gmra.mrb[0].mxu0 %v4143
  %v4202 = vpop.f32.mrb[0].mxu0
  %v4203 = vadd.f32 0.0, %v4202
  %v4204 = vpop.f32.mrb[0].mxu0
  %v4205 = vadd.f32 0.0, %v4204
  %v4206 = vpop.f32.mrb[0].mxu0
  %v4207 = vadd.f32 0.0, %v4206
  %v4208 = vpop.f32.mrb[0].mxu0
  %v4209 = vadd.f32 0.0, %v4208
  %4210 = vmatprep.mubr.bf16.mxu0 0
  %4211 = vmatmul.mubr.bf16.gmra.mrb[0].mxu0 %v4146
  %v4212 = vpop.f32.mrb[0].mxu0
  %v4213 = vadd.f32 0.0, %v4212
  %v4214 = vpop.f32.mrb[0].mxu0
  %v4215 = vadd.f32 0.0, %v4214
  %v4216 = vpop.f32.mrb[0].mxu0
  %v4217 = vadd.f32 0.0, %v4216
  %v4218 = vpop.f32.mrb[0].mxu0
  %v4219 = vadd.f32 0.0, %v4218
  %4220 = vdwg.mxu0
  %4221 = vmatprep.subr.bf16.mxu0 %v3827
  %4222 = vmatpush1.bf16.msra.mxu0 %v3826
  %4223 = vmatprep.subr.bf16.mxu0 %v3831
  %4224 = vmatpush1.bf16.msra.mxu0 %v3830
  %4225 = vmatprep.subr.bf16.mxu0 %v3835
  %4226 = vmatpush1.bf16.msra.mxu0 %v3834
  %4227 = vmatprep.subr.bf16.mxu0 %v3839
  %4228 = vmatpush1.bf16.msra.mxu0 %v3838
  %4229 = vmatprep.subr.bf16.mxu0 0
  %4230 = vmatpush1.bf16.msra.mxu0 0
  %4231 = vmatprep.subr.bf16.mxu0 0
  %4232 = vmatpush1.bf16.msra.mxu0 0
  %4233 = vmatprep.subr.bf16.mxu0 0
  %4234 = vmatpush1.bf16.msra.mxu0 0
  %4235 = vmatprep.subr.bf16.mxu0 0
  %4236 = vmatpush1.bf16.msra.mxu0 0
  %4237 = vmatprep.subr.bf16.mxu0 0
  %4238 = vmatpush1.bf16.msra.mxu0 0
  %4239 = vmatprep.subr.bf16.mxu0 0
  %4240 = vmatpush1.bf16.msra.mxu0 0
  %4241 = vmatprep.subr.bf16.mxu0 0
  %4242 = vmatpush1.bf16.msra.mxu0 0
  %4243 = vmatprep.subr.bf16.mxu0 0
  %4244 = vmatpush1.bf16.msra.mxu0 0
  %4245 = vmatprep.subr.bf16.mxu0 0
  %4246 = vmatpush1.bf16.msra.mxu0 0
  %4247 = vmatprep.subr.bf16.mxu0 0
  %4248 = vmatpush1.bf16.msra.mxu0 0
  %4249 = vmatprep.subr.bf16.mxu0 0
  %4250 = vmatpush1.bf16.msra.mxu0 0
  %4251 = vmatprep.subr.bf16.mxu0 0
  %4252 = vmatpush1.bf16.msra.mxu0 0
  %4253 = vmatprep.mubr.bf16.mxu0 0
  %4254 = vmatmul.mubr.bf16.gmra.mrb[0].mxu0 %v4137
  %v4255 = vpop.f32.mrb[0].mxu0
  %v4256 = vadd.f32 0.0, %v4255
  %v4257 = vpop.f32.mrb[0].mxu0
  %v4258 = vadd.f32 0.0, %v4257
  %v4259 = vpop.f32.mrb[0].mxu0
  %v4260 = vadd.f32 0.0, %v4259
  %v4261 = vpop.f32.mrb[0].mxu0
  %v4262 = vadd.f32 0.0, %v4261
  %4263 = vmatprep.mubr.bf16.mxu0 0
  %4264 = vmatmul.mubr.bf16.gmra.mrb[0].mxu0 %v4140
  %v4265 = vpop.f32.mrb[0].mxu0
  %v4266 = vadd.f32 0.0, %v4265
  %v4267 = vpop.f32.mrb[0].mxu0
  %v4268 = vadd.f32 0.0, %v4267
  %v4269 = vpop.f32.mrb[0].mxu0
  %v4270 = vadd.f32 0.0, %v4269
  %v4271 = vpop.f32.mrb[0].mxu0
  %v4272 = vadd.f32 0.0, %v4271
  %4273 = vmatprep.mubr.bf16.mxu0 0
  %4274 = vmatmul.mubr.bf16.gmra.mrb[0].mxu0 %v4143
  %v4275 = vpop.f32.mrb[0].mxu0
  %v4276 = vadd.f32 0.0, %v4275
  %v4277 = vpop.f32.mrb[0].mxu0
  %v4278 = vadd.f32 0.0, %v4277
  %v4279 = vpop.f32.mrb[0].mxu0
  %v4280 = vadd.f32 0.0, %v4279
  %v4281 = vpop.f32.mrb[0].mxu0
  %v4282 = vadd.f32 0.0, %v4281
  %4283 = vmatprep.mubr.bf16.mxu0 0
  %4284 = vmatmul.mubr.bf16.gmra.mrb[0].mxu0 %v4146
  %v4285 = vpop.f32.mrb[0].mxu0
  %v4286 = vadd.f32 0.0, %v4285
  %v4287 = vpop.f32.mrb[0].mxu0
  %v4288 = vadd.f32 0.0, %v4287
  %v4289 = vpop.f32.mrb[0].mxu0
  %v4290 = vadd.f32 0.0, %v4289
  %v4291 = vpop.f32.mrb[0].mxu0
  %v4292 = vadd.f32 0.0, %v4291
  %4293 = vdwg.mxu0
  %v4294 = vpack.c.bf16 %v4187, %v4183
  %v4295 = vpack.c.bf16 %v4189, %v4185
  %v4296 = vpack.c.bf16 %v4260, %v4256
  %v4297 = vpack.c.bf16 %v4262, %v4258
  %v4298 = vpack.c.bf16 %v4197, %v4193
  %v4299 = vpack.c.bf16 %v4199, %v4195
  %v4300 = vpack.c.bf16 %v4270, %v4266
  %v4301 = vpack.c.bf16 %v4272, %v4268
  %v4302 = vpack.c.bf16 %v4207, %v4203
  %v4303 = vpack.c.bf16 %v4209, %v4205
  %v4304 = vpack.c.bf16 %v4280, %v4276
  %v4305 = vpack.c.bf16 %v4282, %v4278
  %v4306 = vpack.c.bf16 %v4217, %v4213
  %v4307 = vpack.c.bf16 %v4219, %v4215
  %v4308 = vpack.c.bf16 %v4290, %v4286
  %v4309 = vpack.c.bf16 %v4292, %v4288
  %s4310 = scalar_lea.vmem %s10, 512
  %v4311 = vld [vmem:[%s4310] sm:$0xff]
  %v4312 = vld [vmem:[%s4310 + $0x8] sm:$0xff]
  %v4313 = vld [vmem:[%s4310 + $0x10] sm:$0xff]
  %v4314 = vld [vmem:[%s4310 + $0x18] sm:$0xff]
  %v4315 = vld [vmem:[%s4310 + $0x20] sm:$0xff]
  %v4316 = vld [vmem:[%s4310 + $0x28] sm:$0xff]
  %v4317 = vld [vmem:[%s4310 + $0x30] sm:$0xff]
  %v4318 = vld [vmem:[%s4310 + $0x38] sm:$0xff]
  %v4319 = vld [vmem:[%s4310 + $0x40] sm:$0xff]
  %v4320 = vld [vmem:[%s4310 + $0x48] sm:$0xff]
  %v4321 = vld [vmem:[%s4310 + $0x50] sm:$0xff]
  %v4322 = vld [vmem:[%s4310 + $0x58] sm:$0xff]
  %v4323 = vld [vmem:[%s4310 + $0x60] sm:$0xff]
  %v4324 = vld [vmem:[%s4310 + $0x68] sm:$0xff]
  %v4325 = vld [vmem:[%s4310 + $0x70] sm:$0xff]
  %v4326 = vld [vmem:[%s4310 + $0x78] sm:$0xff]
  %v4327 = vld [vmem:[%s4310 + $0x80] sm:$0xff]
  %v4328 = vld [vmem:[%s4310 + $0x88] sm:$0xff]
  %v4329 = vld [vmem:[%s4310 + $0x90] sm:$0xff]
  %v4330 = vld [vmem:[%s4310 + $0x98] sm:$0xff]
  %v4331 = vld [vmem:[%s4310 + $0xa0] sm:$0xff]
  %v4332 = vld [vmem:[%s4310 + $0xa8] sm:$0xff]
  %v4333 = vld [vmem:[%s4310 + $0xb0] sm:$0xff]
  %v4334 = vld [vmem:[%s4310 + $0xb8] sm:$0xff]
  %v4335 = vld [vmem:[%s4310 + $0xc0] sm:$0xff]
  %v4336 = vld [vmem:[%s4310 + $0xc8] sm:$0xff]
  %v4337 = vld [vmem:[%s4310 + $0xd0] sm:$0xff]
  %v4338 = vld [vmem:[%s4310 + $0xd8] sm:$0xff]
  %v4339 = vld [vmem:[%s4310 + $0xe0] sm:$0xff]
  %v4340 = vld [vmem:[%s4310 + $0xe8] sm:$0xff]
  %v4341 = vld [vmem:[%s4310 + $0xf0] sm:$0xff]
  %v4342 = vld [vmem:[%s4310 + $0xf8] sm:$0xff]
  %v4343 = vld [vmem:[%s4310 + $0x100] sm:$0xff]
  %v4344 = vld [vmem:[%s4310 + $0x108] sm:$0xff]
  %v4345 = vld [vmem:[%s4310 + $0x110] sm:$0xff]
  %v4346 = vld [vmem:[%s4310 + $0x118] sm:$0xff]
  %v4347 = vld [vmem:[%s4310 + $0x120] sm:$0xff]
  %v4348 = vld [vmem:[%s4310 + $0x128] sm:$0xff]
  %v4349 = vld [vmem:[%s4310 + $0x130] sm:$0xff]
  %v4350 = vld [vmem:[%s4310 + $0x138] sm:$0xff]
  %v4351 = vld [vmem:[%s4310 + $0x140] sm:$0xff]
  %v4352 = vld [vmem:[%s4310 + $0x148] sm:$0xff]
  %v4353 = vld [vmem:[%s4310 + $0x150] sm:$0xff]
  %v4354 = vld [vmem:[%s4310 + $0x158] sm:$0xff]
  %v4355 = vld [vmem:[%s4310 + $0x160] sm:$0xff]
  %v4356 = vld [vmem:[%s4310 + $0x168] sm:$0xff]
  %v4357 = vld [vmem:[%s4310 + $0x170] sm:$0xff]
  %v4358 = vld [vmem:[%s4310 + $0x178] sm:$0xff]
  %v4359 = vld [vmem:[%s4310 + $0x180] sm:$0xff]
  %v4360 = vld [vmem:[%s4310 + $0x188] sm:$0xff]
  %v4361 = vld [vmem:[%s4310 + $0x190] sm:$0xff]
  %v4362 = vld [vmem:[%s4310 + $0x198] sm:$0xff]
  %v4363 = vld [vmem:[%s4310 + $0x1a0] sm:$0xff]
  %v4364 = vld [vmem:[%s4310 + $0x1a8] sm:$0xff]
  %v4365 = vld [vmem:[%s4310 + $0x1b0] sm:$0xff]
  %v4366 = vld [vmem:[%s4310 + $0x1b8] sm:$0xff]
  %v4367 = vld [vmem:[%s4310 + $0x1c0] sm:$0xff]
  %v4368 = vld [vmem:[%s4310 + $0x1c8] sm:$0xff]
  %v4369 = vld [vmem:[%s4310 + $0x1d0] sm:$0xff]
  %v4370 = vld [vmem:[%s4310 + $0x1d8] sm:$0xff]
  %v4371 = vld [vmem:[%s4310 + $0x1e0] sm:$0xff]
  %v4372 = vld [vmem:[%s4310 + $0x1e8] sm:$0xff]
  %v4373 = vld [vmem:[%s4310 + $0x1f0] sm:$0xff]
  %v4374 = vld [vmem:[%s4310 + $0x1f8] sm:$0xff]
  %v4439 = vunpack.c.l.b16 %v4311
  %v4440 = vunpack.c.h.b16 %v4311
  %v4441 = vunpack.c.l.b16 %v4312
  %v4442 = vunpack.c.h.b16 %v4312
  %v4443 = vunpack.c.l.b16 %v4313
  %v4444 = vunpack.c.h.b16 %v4313
  %v4445 = vunpack.c.l.b16 %v4314
  %v4446 = vunpack.c.h.b16 %v4314
  %v4447 = vunpack.c.l.b16 %v4315
  %v4448 = vunpack.c.h.b16 %v4315
  %v4449 = vunpack.c.l.b16 %v4316
  %v4450 = vunpack.c.h.b16 %v4316
  %v4451 = vunpack.c.l.b16 %v4317
  %v4452 = vunpack.c.h.b16 %v4317
  %v4453 = vunpack.c.l.b16 %v4318
  %v4454 = vunpack.c.h.b16 %v4318
  %v4455 = vunpack.c.l.b16 %v4319
  %v4456 = vunpack.c.h.b16 %v4319
  %v4457 = vunpack.c.l.b16 %v4320
  %v4458 = vunpack.c.h.b16 %v4320
  %v4459 = vunpack.c.l.b16 %v4321
  %v4460 = vunpack.c.h.b16 %v4321
  %v4461 = vunpack.c.l.b16 %v4322
  %v4462 = vunpack.c.h.b16 %v4322
  %v4463 = vunpack.c.l.b16 %v4323
  %v4464 = vunpack.c.h.b16 %v4323
  %v4465 = vunpack.c.l.b16 %v4324
  %v4466 = vunpack.c.h.b16 %v4324
  %v4467 = vunpack.c.l.b16 %v4325
  %v4468 = vunpack.c.h.b16 %v4325
  %v4469 = vunpack.c.l.b16 %v4326
  %v4470 = vunpack.c.h.b16 %v4326
  %v4471 = vunpack.c.l.b16 %v4327
  %v4472 = vunpack.c.h.b16 %v4327
  %v4473 = vunpack.c.l.b16 %v4328
  %v4474 = vunpack.c.h.b16 %v4328
  %v4475 = vunpack.c.l.b16 %v4329
  %v4476 = vunpack.c.h.b16 %v4329
  %v4477 = vunpack.c.l.b16 %v4330
  %v4478 = vunpack.c.h.b16 %v4330
  %v4479 = vunpack.c.l.b16 %v4331
  %v4480 = vunpack.c.h.b16 %v4331
  %v4481 = vunpack.c.l.b16 %v4332
  %v4482 = vunpack.c.h.b16 %v4332
  %v4483 = vunpack.c.l.b16 %v4333
  %v4484 = vunpack.c.h.b16 %v4333
  %v4485 = vunpack.c.l.b16 %v4334
  %v4486 = vunpack.c.h.b16 %v4334
  %v4487 = vunpack.c.l.b16 %v4335
  %v4488 = vunpack.c.h.b16 %v4335
  %v4489 = vunpack.c.l.b16 %v4336
  %v4490 = vunpack.c.h.b16 %v4336
  %v4491 = vunpack.c.l.b16 %v4337
  %v4492 = vunpack.c.h.b16 %v4337
  %v4493 = vunpack.c.l.b16 %v4338
  %v4494 = vunpack.c.h.b16 %v4338
  %v4495 = vunpack.c.l.b16 %v4339
  %v4496 = vunpack.c.h.b16 %v4339
  %v4497 = vunpack.c.l.b16 %v4340
  %v4498 = vunpack.c.h.b16 %v4340
  %v4499 = vunpack.c.l.b16 %v4341
  %v4500 = vunpack.c.h.b16 %v4341
  %v4501 = vunpack.c.l.b16 %v4342
  %v4502 = vunpack.c.h.b16 %v4342
  %v4503 = vunpack.c.l.b16 %v4343
  %v4504 = vunpack.c.h.b16 %v4343
  %v4505 = vunpack.c.l.b16 %v4344
  %v4506 = vunpack.c.h.b16 %v4344
  %v4507 = vunpack.c.l.b16 %v4345
  %v4508 = vunpack.c.h.b16 %v4345
  %v4509 = vunpack.c.l.b16 %v4346
  %v4510 = vunpack.c.h.b16 %v4346
  %v4511 = vunpack.c.l.b16 %v4347
  %v4512 = vunpack.c.h.b16 %v4347
  %v4513 = vunpack.c.l.b16 %v4348
  %v4514 = vunpack.c.h.b16 %v4348
  %v4515 = vunpack.c.l.b16 %v4349
  %v4516 = vunpack.c.h.b16 %v4349
  %v4517 = vunpack.c.l.b16 %v4350
  %v4518 = vunpack.c.h.b16 %v4350
  %v4519 = vunpack.c.l.b16 %v4351
  %v4520 = vunpack.c.h.b16 %v4351
  %v4521 = vunpack.c.l.b16 %v4352
  %v4522 = vunpack.c.h.b16 %v4352
  %v4523 = vunpack.c.l.b16 %v4353
  %v4524 = vunpack.c.h.b16 %v4353
  %v4525 = vunpack.c.l.b16 %v4354
  %v4526 = vunpack.c.h.b16 %v4354
  %v4527 = vunpack.c.l.b16 %v4355
  %v4528 = vunpack.c.h.b16 %v4355
  %v4529 = vunpack.c.l.b16 %v4356
  %v4530 = vunpack.c.h.b16 %v4356
  %v4531 = vunpack.c.l.b16 %v4357
  %v4532 = vunpack.c.h.b16 %v4357
  %v4533 = vunpack.c.l.b16 %v4358
  %v4534 = vunpack.c.h.b16 %v4358
  %v4535 = vunpack.c.l.b16 %v4359
  %v4536 = vunpack.c.h.b16 %v4359
  %v4537 = vunpack.c.l.b16 %v4360
  %v4538 = vunpack.c.h.b16 %v4360
  %v4539 = vunpack.c.l.b16 %v4361
  %v4540 = vunpack.c.h.b16 %v4361
  %v4541 = vunpack.c.l.b16 %v4362
  %v4542 = vunpack.c.h.b16 %v4362
  %v4543 = vunpack.c.l.b16 %v4363
  %v4544 = vunpack.c.h.b16 %v4363
  %v4545 = vunpack.c.l.b16 %v4364
  %v4546 = vunpack.c.h.b16 %v4364
  %v4547 = vunpack.c.l.b16 %v4365
  %v4548 = vunpack.c.h.b16 %v4365
  %v4549 = vunpack.c.l.b16 %v4366
  %v4550 = vunpack.c.h.b16 %v4366
  %v4551 = vunpack.c.l.b16 %v4367
  %v4552 = vunpack.c.h.b16 %v4367
  %v4553 = vunpack.c.l.b16 %v4368
  %v4554 = vunpack.c.h.b16 %v4368
  %v4555 = vunpack.c.l.b16 %v4369
  %v4556 = vunpack.c.h.b16 %v4369
  %v4557 = vunpack.c.l.b16 %v4370
  %v4558 = vunpack.c.h.b16 %v4370
  %v4559 = vunpack.c.l.b16 %v4371
  %v4560 = vunpack.c.h.b16 %v4371
  %v4561 = vunpack.c.l.b16 %v4372
  %v4562 = vunpack.c.h.b16 %v4372
  %v4563 = vunpack.c.l.b16 %v4373
  %v4564 = vunpack.c.h.b16 %v4373
  %v4565 = vunpack.c.l.b16 %v4374
  %v4566 = vunpack.c.h.b16 %v4374
  %v4567 = vpack.c.b16 %v4441, %v4439
  %v4568 = vpack.c.b16 %v4442, %v4440
  %v4569 = vpack.c.b16 %v4445, %v4443
  %v4570 = vpack.c.b16 %v4446, %v4444
  %v4571 = vpack.c.b16 %v4449, %v4447
  %v4572 = vpack.c.b16 %v4450, %v4448
  %v4573 = vpack.c.b16 %v4453, %v4451
  %v4574 = vpack.c.b16 %v4454, %v4452
  %v4575 = vpack.c.b16 %v4457, %v4455
  %v4576 = vpack.c.b16 %v4458, %v4456
  %v4577 = vpack.c.b16 %v4461, %v4459
  %v4578 = vpack.c.b16 %v4462, %v4460
  %v4579 = vpack.c.b16 %v4465, %v4463
  %v4580 = vpack.c.b16 %v4466, %v4464
  %v4581 = vpack.c.b16 %v4469, %v4467
  %v4582 = vpack.c.b16 %v4470, %v4468
  %v4583 = vpack.c.b16 %v4473, %v4471
  %v4584 = vpack.c.b16 %v4474, %v4472
  %v4585 = vpack.c.b16 %v4477, %v4475
  %v4586 = vpack.c.b16 %v4478, %v4476
  %v4587 = vpack.c.b16 %v4481, %v4479
  %v4588 = vpack.c.b16 %v4482, %v4480
  %v4589 = vpack.c.b16 %v4485, %v4483
  %v4590 = vpack.c.b16 %v4486, %v4484
  %v4591 = vpack.c.b16 %v4489, %v4487
  %v4592 = vpack.c.b16 %v4490, %v4488
  %v4593 = vpack.c.b16 %v4493, %v4491
  %v4594 = vpack.c.b16 %v4494, %v4492
  %v4595 = vpack.c.b16 %v4497, %v4495
  %v4596 = vpack.c.b16 %v4498, %v4496
  %v4597 = vpack.c.b16 %v4501, %v4499
  %v4598 = vpack.c.b16 %v4502, %v4500
  %v4599 = vpack.c.b16 %v4505, %v4503
  %v4600 = vpack.c.b16 %v4506, %v4504
  %v4601 = vpack.c.b16 %v4509, %v4507
  %v4602 = vpack.c.b16 %v4510, %v4508
  %v4603 = vpack.c.b16 %v4513, %v4511
  %v4604 = vpack.c.b16 %v4514, %v4512
  %v4605 = vpack.c.b16 %v4517, %v4515
  %v4606 = vpack.c.b16 %v4518, %v4516
  %v4607 = vpack.c.b16 %v4521, %v4519
  %v4608 = vpack.c.b16 %v4522, %v4520
  %v4609 = vpack.c.b16 %v4525, %v4523
  %v4610 = vpack.c.b16 %v4526, %v4524
  %v4611 = vpack.c.b16 %v4529, %v4527
  %v4612 = vpack.c.b16 %v4530, %v4528
  %v4613 = vpack.c.b16 %v4533, %v4531
  %v4614 = vpack.c.b16 %v4534, %v4532
  %v4615 = vpack.c.b16 %v4537, %v4535
  %v4616 = vpack.c.b16 %v4538, %v4536
  %v4617 = vpack.c.b16 %v4541, %v4539
  %v4618 = vpack.c.b16 %v4542, %v4540
  %v4619 = vpack.c.b16 %v4545, %v4543
  %v4620 = vpack.c.b16 %v4546, %v4544
  %v4621 = vpack.c.b16 %v4549, %v4547
  %v4622 = vpack.c.b16 %v4550, %v4548
  %v4623 = vpack.c.b16 %v4553, %v4551
  %v4624 = vpack.c.b16 %v4554, %v4552
  %v4625 = vpack.c.b16 %v4557, %v4555
  %v4626 = vpack.c.b16 %v4558, %v4556
  %v4627 = vpack.c.b16 %v4561, %v4559
  %v4628 = vpack.c.b16 %v4562, %v4560
  %v4629 = vpack.c.b16 %v4565, %v4563
  %v4630 = vpack.c.b16 %v4566, %v4564
  %4695 = vmatprep.subr.bf16.mxu0 %v4568
  %4696 = vmatpush1.bf16.msra.mxu0 %v4567
  %4697 = vmatprep.subr.bf16.mxu0 %v4570
  %4698 = vmatpush1.bf16.msra.mxu0 %v4569
  %4699 = vmatprep.subr.bf16.mxu0 %v4572
  %4700 = vmatpush1.bf16.msra.mxu0 %v4571
  %4701 = vmatprep.subr.bf16.mxu0 %v4574
  %4702 = vmatpush1.bf16.msra.mxu0 %v4573
  %4703 = vmatprep.subr.bf16.mxu0 %v4576
  %4704 = vmatpush1.bf16.msra.mxu0 %v4575
  %4705 = vmatprep.subr.bf16.mxu0 %v4578
  %4706 = vmatpush1.bf16.msra.mxu0 %v4577
  %4707 = vmatprep.subr.bf16.mxu0 %v4580
  %4708 = vmatpush1.bf16.msra.mxu0 %v4579
  %4709 = vmatprep.subr.bf16.mxu0 %v4582
  %4710 = vmatpush1.bf16.msra.mxu0 %v4581
  %4711 = vmatprep.subr.bf16.mxu0 %v4584
  %4712 = vmatpush1.bf16.msra.mxu0 %v4583
  %4713 = vmatprep.subr.bf16.mxu0 %v4586
  %4714 = vmatpush1.bf16.msra.mxu0 %v4585
  %4715 = vmatprep.subr.bf16.mxu0 %v4588
  %4716 = vmatpush1.bf16.msra.mxu0 %v4587
  %4717 = vmatprep.subr.bf16.mxu0 %v4590
  %4718 = vmatpush1.bf16.msra.mxu0 %v4589
  %4719 = vmatprep.subr.bf16.mxu0 %v4592
  %4720 = vmatpush1.bf16.msra.mxu0 %v4591
  %4721 = vmatprep.subr.bf16.mxu0 %v4594
  %4722 = vmatpush1.bf16.msra.mxu0 %v4593
  %4723 = vmatprep.subr.bf16.mxu0 %v4596
  %4724 = vmatpush1.bf16.msra.mxu0 %v4595
  %4725 = vmatprep.subr.bf16.mxu0 %v4598
  %4726 = vmatpush1.bf16.msra.mxu0 %v4597
  %4727 = vmatprep.mubr.bf16.mxu0 %v4295
  %4728 = vmatmul.mubr.bf16.gmra.mrb[0].mxu0 %v4294
  %v4729 = vpop.f32.mrb[0].mxu0
  %v4730 = vadd.f32 0.0, %v4729
  %v4731 = vpop.f32.mrb[0].mxu0
  %v4732 = vadd.f32 0.0, %v4731
  %v4733 = vpop.f32.mrb[0].mxu0
  %v4734 = vadd.f32 0.0, %v4733
  %v4735 = vpop.f32.mrb[0].mxu0
  %v4736 = vadd.f32 0.0, %v4735
  %4737 = vmatprep.mubr.bf16.mxu0 %v4299
  %4738 = vmatmul.mubr.bf16.gmra.mrb[0].mxu0 %v4298
  %v4739 = vpop.f32.mrb[0].mxu0
  %v4740 = vadd.f32 0.0, %v4739
  %v4741 = vpop.f32.mrb[0].mxu0
  %v4742 = vadd.f32 0.0, %v4741
  %v4743 = vpop.f32.mrb[0].mxu0
  %v4744 = vadd.f32 0.0, %v4743
  %v4745 = vpop.f32.mrb[0].mxu0
  %v4746 = vadd.f32 0.0, %v4745
  %4747 = vmatprep.mubr.bf16.mxu0 %v4303
  %4748 = vmatmul.mubr.bf16.gmra.mrb[0].mxu0 %v4302
  %v4749 = vpop.f32.mrb[0].mxu0
  %v4750 = vadd.f32 0.0, %v4749
  %v4751 = vpop.f32.mrb[0].mxu0
  %v4752 = vadd.f32 0.0, %v4751
  %v4753 = vpop.f32.mrb[0].mxu0
  %v4754 = vadd.f32 0.0, %v4753
  %v4755 = vpop.f32.mrb[0].mxu0
  %v4756 = vadd.f32 0.0, %v4755
  %4757 = vmatprep.mubr.bf16.mxu0 %v4307
  %4758 = vmatmul.mubr.bf16.gmra.mrb[0].mxu0 %v4306
  %v4759 = vpop.f32.mrb[0].mxu0
  %v4760 = vadd.f32 0.0, %v4759
  %v4761 = vpop.f32.mrb[0].mxu0
  %v4762 = vadd.f32 0.0, %v4761
  %v4763 = vpop.f32.mrb[0].mxu0
  %v4764 = vadd.f32 0.0, %v4763
  %v4765 = vpop.f32.mrb[0].mxu0
  %v4766 = vadd.f32 0.0, %v4765
  %4767 = vdwg.mxu0
  %4768 = vmatprep.subr.bf16.mxu0 %v4600
  %4769 = vmatpush1.bf16.msra.mxu0 %v4599
  %4770 = vmatprep.subr.bf16.mxu0 %v4602
  %4771 = vmatpush1.bf16.msra.mxu0 %v4601
  %4772 = vmatprep.subr.bf16.mxu0 %v4604
  %4773 = vmatpush1.bf16.msra.mxu0 %v4603
  %4774 = vmatprep.subr.bf16.mxu0 %v4606
  %4775 = vmatpush1.bf16.msra.mxu0 %v4605
  %4776 = vmatprep.subr.bf16.mxu0 %v4608
  %4777 = vmatpush1.bf16.msra.mxu0 %v4607
  %4778 = vmatprep.subr.bf16.mxu0 %v4610
  %4779 = vmatpush1.bf16.msra.mxu0 %v4609
  %4780 = vmatprep.subr.bf16.mxu0 %v4612
  %4781 = vmatpush1.bf16.msra.mxu0 %v4611
  %4782 = vmatprep.subr.bf16.mxu0 %v4614
  %4783 = vmatpush1.bf16.msra.mxu0 %v4613
  %4784 = vmatprep.subr.bf16.mxu0 %v4616
  %4785 = vmatpush1.bf16.msra.mxu0 %v4615
  %4786 = vmatprep.subr.bf16.mxu0 %v4618
  %4787 = vmatpush1.bf16.msra.mxu0 %v4617
  %4788 = vmatprep.subr.bf16.mxu0 %v4620
  %4789 = vmatpush1.bf16.msra.mxu0 %v4619
  %4790 = vmatprep.subr.bf16.mxu0 %v4622
  %4791 = vmatpush1.bf16.msra.mxu0 %v4621
  %4792 = vmatprep.subr.bf16.mxu0 %v4624
  %4793 = vmatpush1.bf16.msra.mxu0 %v4623
  %4794 = vmatprep.subr.bf16.mxu0 %v4626
  %4795 = vmatpush1.bf16.msra.mxu0 %v4625
  %4796 = vmatprep.subr.bf16.mxu0 %v4628
  %4797 = vmatpush1.bf16.msra.mxu0 %v4627
  %4798 = vmatprep.subr.bf16.mxu0 %v4630
  %4799 = vmatpush1.bf16.msra.mxu0 %v4629
  %4800 = vmatprep.mubr.bf16.mxu0 %v4297
  %4801 = vmatmul.mubr.bf16.gmra.mrb[0].mxu0 %v4296
  %v4802 = vpop.f32.mrb[0].mxu0
  %v4803 = vadd.f32 %v4730, %v4802
  %v4804 = vpop.f32.mrb[0].mxu0
  %v4805 = vadd.f32 %v4732, %v4804
  %v4806 = vpop.f32.mrb[0].mxu0
  %v4807 = vadd.f32 %v4734, %v4806
  %v4808 = vpop.f32.mrb[0].mxu0
  %v4809 = vadd.f32 %v4736, %v4808
  %4810 = vmatprep.mubr.bf16.mxu0 %v4301
  %4811 = vmatmul.mubr.bf16.gmra.mrb[0].mxu0 %v4300
  %v4812 = vpop.f32.mrb[0].mxu0
  %v4813 = vadd.f32 %v4740, %v4812
  %v4814 = vpop.f32.mrb[0].mxu0
  %v4815 = vadd.f32 %v4742, %v4814
  %v4816 = vpop.f32.mrb[0].mxu0
  %v4817 = vadd.f32 %v4744, %v4816
  %v4818 = vpop.f32.mrb[0].mxu0
  %v4819 = vadd.f32 %v4746, %v4818
  %4820 = vmatprep.mubr.bf16.mxu0 %v4305
  %4821 = vmatmul.mubr.bf16.gmra.mrb[0].mxu0 %v4304
  %v4822 = vpop.f32.mrb[0].mxu0
  %v4823 = vadd.f32 %v4750, %v4822
  %v4824 = vpop.f32.mrb[0].mxu0
  %v4825 = vadd.f32 %v4752, %v4824
  %v4826 = vpop.f32.mrb[0].mxu0
  %v4827 = vadd.f32 %v4754, %v4826
  %v4828 = vpop.f32.mrb[0].mxu0
  %v4829 = vadd.f32 %v4756, %v4828
  %4830 = vmatprep.mubr.bf16.mxu0 %v4309
  %4831 = vmatmul.mubr.bf16.gmra.mrb[0].mxu0 %v4308
  %v4832 = vpop.f32.mrb[0].mxu0
  %v4833 = vadd.f32 %v4760, %v4832
  %v4834 = vpop.f32.mrb[0].mxu0
  %v4835 = vadd.f32 %v4762, %v4834
  %v4836 = vpop.f32.mrb[0].mxu0
  %v4837 = vadd.f32 %v4764, %v4836
  %v4838 = vpop.f32.mrb[0].mxu0
  %v4839 = vadd.f32 %v4766, %v4838
  %4840 = vdwg.mxu0
  %v4905 = vunpack.c.l.b16 %v4043
  %v4906 = vunpack.c.h.b16 %v4043
  %v4907 = vunpack.c.l.b16 %v4044
  %v4908 = vunpack.c.h.b16 %v4044
  %v4909 = vunpack.c.l.b16 %v4045
  %v4910 = vunpack.c.h.b16 %v4045
  %v4911 = vunpack.c.l.b16 %v4046
  %v4912 = vunpack.c.h.b16 %v4046
  %v4913 = vunpack.c.l.b16 %v4047
  %v4914 = vunpack.c.h.b16 %v4047
  %v4915 = vunpack.c.l.b16 %v4048
  %v4916 = vunpack.c.h.b16 %v4048
  %v4917 = vunpack.c.l.b16 %v4049
  %v4918 = vunpack.c.h.b16 %v4049
  %v4919 = vunpack.c.l.b16 %v4050
  %v4920 = vunpack.c.h.b16 %v4050
  %v4921 = vunpack.c.l.b16 %v4051
  %v4922 = vunpack.c.h.b16 %v4051
  %v4923 = vunpack.c.l.b16 %v4052
  %v4924 = vunpack.c.h.b16 %v4052
  %v4925 = vunpack.c.l.b16 %v4053
  %v4926 = vunpack.c.h.b16 %v4053
  %v4927 = vunpack.c.l.b16 %v4054
  %v4928 = vunpack.c.h.b16 %v4054
  %v4929 = vunpack.c.l.b16 %v4055
  %v4930 = vunpack.c.h.b16 %v4055
  %v4931 = vunpack.c.l.b16 %v4056
  %v4932 = vunpack.c.h.b16 %v4056
  %v4933 = vunpack.c.l.b16 %v4057
  %v4934 = vunpack.c.h.b16 %v4057
  %v4935 = vunpack.c.l.b16 %v4058
  %v4936 = vunpack.c.h.b16 %v4058
  %v4937 = vunpack.c.l.b16 %v4059
  %v4938 = vunpack.c.h.b16 %v4059
  %v4939 = vunpack.c.l.b16 %v4060
  %v4940 = vunpack.c.h.b16 %v4060
  %v4941 = vunpack.c.l.b16 %v4061
  %v4942 = vunpack.c.h.b16 %v4061
  %v4943 = vunpack.c.l.b16 %v4062
  %v4944 = vunpack.c.h.b16 %v4062
  %v4945 = vunpack.c.l.b16 %v4063
  %v4946 = vunpack.c.h.b16 %v4063
  %v4947 = vunpack.c.l.b16 %v4064
  %v4948 = vunpack.c.h.b16 %v4064
  %v4949 = vunpack.c.l.b16 %v4065
  %v4950 = vunpack.c.h.b16 %v4065
  %v4951 = vunpack.c.l.b16 %v4066
  %v4952 = vunpack.c.h.b16 %v4066
  %v4953 = vunpack.c.l.b16 %v4067
  %v4954 = vunpack.c.h.b16 %v4067
  %v4955 = vunpack.c.l.b16 %v4068
  %v4956 = vunpack.c.h.b16 %v4068
  %v4957 = vunpack.c.l.b16 %v4069
  %v4958 = vunpack.c.h.b16 %v4069
  %v4959 = vunpack.c.l.b16 %v4070
  %v4960 = vunpack.c.h.b16 %v4070
  %v4961 = vunpack.c.l.b16 %v4071
  %v4962 = vunpack.c.h.b16 %v4071
  %v4963 = vunpack.c.l.b16 %v4072
  %v4964 = vunpack.c.h.b16 %v4072
  %v4965 = vunpack.c.l.b16 %v4073
  %v4966 = vunpack.c.h.b16 %v4073
  %v4967 = vunpack.c.l.b16 %v4074
  %v4968 = vunpack.c.h.b16 %v4074
  %v4969 = vunpack.c.l.b16 %v4075
  %v4970 = vunpack.c.h.b16 %v4075
  %v4971 = vunpack.c.l.b16 %v4076
  %v4972 = vunpack.c.h.b16 %v4076
  %v4973 = vunpack.c.l.b16 %v4077
  %v4974 = vunpack.c.h.b16 %v4077
  %v4975 = vunpack.c.l.b16 %v4078
  %v4976 = vunpack.c.h.b16 %v4078
  %v4977 = vunpack.c.l.b16 %v4079
  %v4978 = vunpack.c.h.b16 %v4079
  %v4979 = vunpack.c.l.b16 %v4080
  %v4980 = vunpack.c.h.b16 %v4080
  %v4981 = vunpack.c.l.b16 %v4081
  %v4982 = vunpack.c.h.b16 %v4081
  %v4983 = vunpack.c.l.b16 %v4082
  %v4984 = vunpack.c.h.b16 %v4082
  %v4985 = vunpack.c.l.b16 %v4083
  %v4986 = vunpack.c.h.b16 %v4083
  %v4987 = vunpack.c.l.b16 %v4084
  %v4988 = vunpack.c.h.b16 %v4084
  %v4989 = vunpack.c.l.b16 %v4085
  %v4990 = vunpack.c.h.b16 %v4085
  %v4991 = vunpack.c.l.b16 %v4086
  %v4992 = vunpack.c.h.b16 %v4086
  %v4993 = vunpack.c.l.b16 %v4087
  %v4994 = vunpack.c.h.b16 %v4087
  %v4995 = vunpack.c.l.b16 %v4088
  %v4996 = vunpack.c.h.b16 %v4088
  %v4997 = vunpack.c.l.b16 %v4089
  %v4998 = vunpack.c.h.b16 %v4089
  %v4999 = vunpack.c.l.b16 %v4090
  %v5000 = vunpack.c.h.b16 %v4090
  %v5001 = vunpack.c.l.b16 %v4091
  %v5002 = vunpack.c.h.b16 %v4091
  %v5003 = vunpack.c.l.b16 %v4092
  %v5004 = vunpack.c.h.b16 %v4092
  %v5005 = vunpack.c.l.b16 %v4093
  %v5006 = vunpack.c.h.b16 %v4093
  %v5007 = vunpack.c.l.b16 %v4094
  %v5008 = vunpack.c.h.b16 %v4094
  %v5009 = vunpack.c.l.b16 %v4095
  %v5010 = vunpack.c.h.b16 %v4095
  %v5011 = vunpack.c.l.b16 %v4096
  %v5012 = vunpack.c.h.b16 %v4096
  %v5013 = vunpack.c.l.b16 %v4097
  %v5014 = vunpack.c.h.b16 %v4097
  %v5015 = vunpack.c.l.b16 %v4098
  %v5016 = vunpack.c.h.b16 %v4098
  %v5017 = vunpack.c.l.b16 %v4099
  %v5018 = vunpack.c.h.b16 %v4099
  %v5019 = vunpack.c.l.b16 %v4100
  %v5020 = vunpack.c.h.b16 %v4100
  %v5021 = vunpack.c.l.b16 %v4101
  %v5022 = vunpack.c.h.b16 %v4101
  %v5023 = vunpack.c.l.b16 %v4102
  %v5024 = vunpack.c.h.b16 %v4102
  %v5025 = vunpack.c.l.b16 %v4103
  %v5026 = vunpack.c.h.b16 %v4103
  %v5027 = vunpack.c.l.b16 %v4104
  %v5028 = vunpack.c.h.b16 %v4104
  %v5029 = vunpack.c.l.b16 %v4105
  %v5030 = vunpack.c.h.b16 %v4105
  %v5031 = vunpack.c.l.b16 %v4106
  %v5032 = vunpack.c.h.b16 %v4106
  %v5033 = vpack.c.b16 %v4907, %v4905
  %v5034 = vpack.c.b16 %v4908, %v4906
  %v5035 = vpack.c.b16 %v4911, %v4909
  %v5036 = vpack.c.b16 %v4912, %v4910
  %v5037 = vpack.c.b16 %v4915, %v4913
  %v5038 = vpack.c.b16 %v4916, %v4914
  %v5039 = vpack.c.b16 %v4919, %v4917
  %v5040 = vpack.c.b16 %v4920, %v4918
  %v5041 = vpack.c.b16 %v4923, %v4921
  %v5042 = vpack.c.b16 %v4924, %v4922
  %v5043 = vpack.c.b16 %v4927, %v4925
  %v5044 = vpack.c.b16 %v4928, %v4926
  %v5045 = vpack.c.b16 %v4931, %v4929
  %v5046 = vpack.c.b16 %v4932, %v4930
  %v5047 = vpack.c.b16 %v4935, %v4933
  %v5048 = vpack.c.b16 %v4936, %v4934
  %v5049 = vpack.c.b16 %v4939, %v4937
  %v5050 = vpack.c.b16 %v4940, %v4938
  %v5051 = vpack.c.b16 %v4943, %v4941
  %v5052 = vpack.c.b16 %v4944, %v4942
  %v5053 = vpack.c.b16 %v4947, %v4945
  %v5054 = vpack.c.b16 %v4948, %v4946
  %v5055 = vpack.c.b16 %v4951, %v4949
  %v5056 = vpack.c.b16 %v4952, %v4950
  %v5057 = vpack.c.b16 %v4955, %v4953
  %v5058 = vpack.c.b16 %v4956, %v4954
  %v5059 = vpack.c.b16 %v4959, %v4957
  %v5060 = vpack.c.b16 %v4960, %v4958
  %v5061 = vpack.c.b16 %v4963, %v4961
  %v5062 = vpack.c.b16 %v4964, %v4962
  %v5063 = vpack.c.b16 %v4967, %v4965
  %v5064 = vpack.c.b16 %v4968, %v4966
  %v5065 = vpack.c.b16 %v4971, %v4969
  %v5066 = vpack.c.b16 %v4972, %v4970
  %v5067 = vpack.c.b16 %v4975, %v4973
  %v5068 = vpack.c.b16 %v4976, %v4974
  %v5069 = vpack.c.b16 %v4979, %v4977
  %v5070 = vpack.c.b16 %v4980, %v4978
  %v5071 = vpack.c.b16 %v4983, %v4981
  %v5072 = vpack.c.b16 %v4984, %v4982
  %v5073 = vpack.c.b16 %v4987, %v4985
  %v5074 = vpack.c.b16 %v4988, %v4986
  %v5075 = vpack.c.b16 %v4991, %v4989
  %v5076 = vpack.c.b16 %v4992, %v4990
  %v5077 = vpack.c.b16 %v4995, %v4993
  %v5078 = vpack.c.b16 %v4996, %v4994
  %v5079 = vpack.c.b16 %v4999, %v4997
  %v5080 = vpack.c.b16 %v5000, %v4998
  %v5081 = vpack.c.b16 %v5003, %v5001
  %v5082 = vpack.c.b16 %v5004, %v5002
  %v5083 = vpack.c.b16 %v5007, %v5005
  %v5084 = vpack.c.b16 %v5008, %v5006
  %v5085 = vpack.c.b16 %v5011, %v5009
  %v5086 = vpack.c.b16 %v5012, %v5010
  %v5087 = vpack.c.b16 %v5015, %v5013
  %v5088 = vpack.c.b16 %v5016, %v5014
  %v5089 = vpack.c.b16 %v5019, %v5017
  %v5090 = vpack.c.b16 %v5020, %v5018
  %v5091 = vpack.c.b16 %v5023, %v5021
  %v5092 = vpack.c.b16 %v5024, %v5022
  %v5093 = vpack.c.b16 %v5027, %v5025
  %v5094 = vpack.c.b16 %v5028, %v5026
  %v5095 = vpack.c.b16 %v5031, %v5029
  %v5096 = vpack.c.b16 %v5032, %v5030
  %5161 = vmatprep.subr.bf16.mxu0 %v5034
  %5162 = vmatpush1.bf16.msra.mxu0 %v5033
  %5163 = vmatprep.subr.bf16.mxu0 %v5036
  %5164 = vmatpush1.bf16.msra.mxu0 %v5035
  %5165 = vmatprep.subr.bf16.mxu0 %v5038
  %5166 = vmatpush1.bf16.msra.mxu0 %v5037
  %5167 = vmatprep.subr.bf16.mxu0 %v5040
  %5168 = vmatpush1.bf16.msra.mxu0 %v5039
  %5169 = vmatprep.subr.bf16.mxu0 %v5042
  %5170 = vmatpush1.bf16.msra.mxu0 %v5041
  %5171 = vmatprep.subr.bf16.mxu0 %v5044
  %5172 = vmatpush1.bf16.msra.mxu0 %v5043
  %5173 = vmatprep.subr.bf16.mxu0 %v5046
  %5174 = vmatpush1.bf16.msra.mxu0 %v5045
  %5175 = vmatprep.subr.bf16.mxu0 %v5048
  %5176 = vmatpush1.bf16.msra.mxu0 %v5047
  %5177 = vmatprep.subr.bf16.mxu0 %v5050
  %5178 = vmatpush1.bf16.msra.mxu0 %v5049
  %5179 = vmatprep.subr.bf16.mxu0 %v5052
  %5180 = vmatpush1.bf16.msra.mxu0 %v5051
  %5181 = vmatprep.subr.bf16.mxu0 %v5054
  %5182 = vmatpush1.bf16.msra.mxu0 %v5053
  %5183 = vmatprep.subr.bf16.mxu0 %v5056
  %5184 = vmatpush1.bf16.msra.mxu0 %v5055
  %5185 = vmatprep.subr.bf16.mxu0 %v5058
  %5186 = vmatpush1.bf16.msra.mxu0 %v5057
  %5187 = vmatprep.subr.bf16.mxu0 %v5060
  %5188 = vmatpush1.bf16.msra.mxu0 %v5059
  %5189 = vmatprep.subr.bf16.mxu0 %v5062
  %5190 = vmatpush1.bf16.msra.mxu0 %v5061
  %5191 = vmatprep.subr.bf16.mxu0 %v5064
  %5192 = vmatpush1.bf16.msra.mxu0 %v5063
  %5193 = vmatprep.mubr.bf16.mxu0 %v4028
  %5194 = vmatmul.mubr.bf16.gmra.mrb[0].mxu0 %v4027
  %v5195 = vpop.f32.mrb[0].mxu0
  %v5196 = vadd.f32 %v4803, %v5195
  %v5197 = vpop.f32.mrb[0].mxu0
  %v5198 = vadd.f32 %v4805, %v5197
  %v5199 = vpop.f32.mrb[0].mxu0
  %v5200 = vadd.f32 %v4807, %v5199
  %v5201 = vpop.f32.mrb[0].mxu0
  %v5202 = vadd.f32 %v4809, %v5201
  %5203 = vmatprep.mubr.bf16.mxu0 %v4032
  %5204 = vmatmul.mubr.bf16.gmra.mrb[0].mxu0 %v4031
  %v5205 = vpop.f32.mrb[0].mxu0
  %v5206 = vadd.f32 %v4813, %v5205
  %v5207 = vpop.f32.mrb[0].mxu0
  %v5208 = vadd.f32 %v4815, %v5207
  %v5209 = vpop.f32.mrb[0].mxu0
  %v5210 = vadd.f32 %v4817, %v5209
  %v5211 = vpop.f32.mrb[0].mxu0
  %v5212 = vadd.f32 %v4819, %v5211
  %5213 = vmatprep.mubr.bf16.mxu0 %v4036
  %5214 = vmatmul.mubr.bf16.gmra.mrb[0].mxu0 %v4035
  %v5215 = vpop.f32.mrb[0].mxu0
  %v5216 = vadd.f32 %v4823, %v5215
  %v5217 = vpop.f32.mrb[0].mxu0
  %v5218 = vadd.f32 %v4825, %v5217
  %v5219 = vpop.f32.mrb[0].mxu0
  %v5220 = vadd.f32 %v4827, %v5219
  %v5221 = vpop.f32.mrb[0].mxu0
  %v5222 = vadd.f32 %v4829, %v5221
  %5223 = vmatprep.mubr.bf16.mxu0 %v4040
  %5224 = vmatmul.mubr.bf16.gmra.mrb[0].mxu0 %v4039
  %v5225 = vpop.f32.mrb[0].mxu0
  %v5226 = vadd.f32 %v4833, %v5225
  %v5227 = vpop.f32.mrb[0].mxu0
  %v5228 = vadd.f32 %v4835, %v5227
  %v5229 = vpop.f32.mrb[0].mxu0
  %v5230 = vadd.f32 %v4837, %v5229
  %v5231 = vpop.f32.mrb[0].mxu0
  %v5232 = vadd.f32 %v4839, %v5231
  %5233 = vdwg.mxu0
  %5234 = vmatprep.subr.bf16.mxu0 %v5066
  %5235 = vmatpush1.bf16.msra.mxu0 %v5065
  %5236 = vmatprep.subr.bf16.mxu0 %v5068
  %5237 = vmatpush1.bf16.msra.mxu0 %v5067
  %5238 = vmatprep.subr.bf16.mxu0 %v5070
  %5239 = vmatpush1.bf16.msra.mxu0 %v5069
  %5240 = vmatprep.subr.bf16.mxu0 %v5072
  %5241 = vmatpush1.bf16.msra.mxu0 %v5071
  %5242 = vmatprep.subr.bf16.mxu0 %v5074
  %5243 = vmatpush1.bf16.msra.mxu0 %v5073
  %5244 = vmatprep.subr.bf16.mxu0 %v5076
  %5245 = vmatpush1.bf16.msra.mxu0 %v5075
  %5246 = vmatprep.subr.bf16.mxu0 %v5078
  %5247 = vmatpush1.bf16.msra.mxu0 %v5077
  %5248 = vmatprep.subr.bf16.mxu0 %v5080
  %5249 = vmatpush1.bf16.msra.mxu0 %v5079
  %5250 = vmatprep.subr.bf16.mxu0 %v5082
  %5251 = vmatpush1.bf16.msra.mxu0 %v5081
  %5252 = vmatprep.subr.bf16.mxu0 %v5084
  %5253 = vmatpush1.bf16.msra.mxu0 %v5083
  %5254 = vmatprep.subr.bf16.mxu0 %v5086
  %5255 = vmatpush1.bf16.msra.mxu0 %v5085
  %5256 = vmatprep.subr.bf16.mxu0 %v5088
  %5257 = vmatpush1.bf16.msra.mxu0 %v5087
  %5258 = vmatprep.subr.bf16.mxu0 %v5090
  %5259 = vmatpush1.bf16.msra.mxu0 %v5089
  %5260 = vmatprep.subr.bf16.mxu0 %v5092
  %5261 = vmatpush1.bf16.msra.mxu0 %v5091
  %5262 = vmatprep.subr.bf16.mxu0 %v5094
  %5263 = vmatpush1.bf16.msra.mxu0 %v5093
  %5264 = vmatprep.subr.bf16.mxu0 %v5096
  %5265 = vmatpush1.bf16.msra.mxu0 %v5095
  %5266 = vmatprep.mubr.bf16.mxu0 %v4030
  %5267 = vmatmul.mubr.bf16.gmra.mrb[0].mxu0 %v4029
  %v5268 = vpop.f32.mrb[0].mxu0
  %v5269 = vadd.f32 %v5196, %v5268
  %v5270 = vpop.f32.mrb[0].mxu0
  %v5271 = vadd.f32 %v5198, %v5270
  %v5272 = vpop.f32.mrb[0].mxu0
  %v5273 = vadd.f32 %v5200, %v5272
  %v5274 = vpop.f32.mrb[0].mxu0
  %v5275 = vadd.f32 %v5202, %v5274
  %5276 = vmatprep.mubr.bf16.mxu0 %v4034
  %5277 = vmatmul.mubr.bf16.gmra.mrb[0].mxu0 %v4033
  %v5278 = vpop.f32.mrb[0].mxu0
  %v5279 = vadd.f32 %v5206, %v5278
  %v5280 = vpop.f32.mrb[0].mxu0
  %v5281 = vadd.f32 %v5208, %v5280
  %v5282 = vpop.f32.mrb[0].mxu0
  %v5283 = vadd.f32 %v5210, %v5282
  %v5284 = vpop.f32.mrb[0].mxu0
  %v5285 = vadd.f32 %v5212, %v5284
  %5286 = vmatprep.mubr.bf16.mxu0 %v4038
  %5287 = vmatmul.mubr.bf16.gmra.mrb[0].mxu0 %v4037
  %v5288 = vpop.f32.mrb[0].mxu0
  %v5289 = vadd.f32 %v5216, %v5288
  %v5290 = vpop.f32.mrb[0].mxu0
  %v5291 = vadd.f32 %v5218, %v5290
  %v5292 = vpop.f32.mrb[0].mxu0
  %v5293 = vadd.f32 %v5220, %v5292
  %v5294 = vpop.f32.mrb[0].mxu0
  %v5295 = vadd.f32 %v5222, %v5294
  %5296 = vmatprep.mubr.bf16.mxu0 %v4042
  %5297 = vmatmul.mubr.bf16.gmra.mrb[0].mxu0 %v4041
  %v5298 = vpop.f32.mrb[0].mxu0
  %v5299 = vadd.f32 %v5226, %v5298
  %v5300 = vpop.f32.mrb[0].mxu0
  %v5301 = vadd.f32 %v5228, %v5300
  %v5302 = vpop.f32.mrb[0].mxu0
  %v5303 = vadd.f32 %v5230, %v5302
  %v5304 = vpop.f32.mrb[0].mxu0
  %v5305 = vadd.f32 %v5232, %v5304
  %5306 = vdwg.mxu0
  %s5307 = scalar_lea.vmem %s9, 64
  %v5308 = vld [vmem:[%s5307] sm:$0xf]
  %v5309 = vld [vmem:[%s5307 + $0x4] sm:$0xf]
  %v5310 = vld [vmem:[%s5307 + $0x8] sm:$0xf]
  %v5311 = vld [vmem:[%s5307 + $0xc] sm:$0xf]
  %v5312 = vld [vmem:[%s5307 + $0x10] sm:$0xf]
  %v5313 = vld [vmem:[%s5307 + $0x14] sm:$0xf]
  %v5314 = vld [vmem:[%s5307 + $0x18] sm:$0xf]
  %v5315 = vld [vmem:[%s5307 + $0x1c] sm:$0xf]
  %v5324 = vunpack.c.l.b16 %v5308
  %v5325 = vunpack.c.l.b16 %v5309
  %v5326 = vunpack.c.l.b16 %v5310
  %v5327 = vunpack.c.l.b16 %v5311
  %v5328 = vunpack.c.l.b16 %v5312
  %v5329 = vunpack.c.l.b16 %v5313
  %v5330 = vunpack.c.l.b16 %v5314
  %v5331 = vunpack.c.l.b16 %v5315
  %v5332 = vpack.c.b16 %v5325, %v5324
  %v5333 = vpack.c.b16 %v5327, %v5326
  %v5334 = vpack.c.b16 %v5329, %v5328
  %v5335 = vpack.c.b16 %v5331, %v5330
  %v5337 = vsel %vm3868, %v5332, 0
  %v5340 = vsel %vm3868, %v5333, 0
  %v5343 = vsel %vm3868, %v5334, 0
  %v5346 = vsel %vm3868, %v5335, 0
  %5348 = vmatprep.subr.bf16.mxu0 %v3825
  %5349 = vmatpush1.bf16.msra.mxu0 %v3824
  %5350 = vmatprep.subr.bf16.mxu0 %v3829
  %5351 = vmatpush1.bf16.msra.mxu0 %v3828
  %5352 = vmatprep.subr.bf16.mxu0 %v3833
  %5353 = vmatpush1.bf16.msra.mxu0 %v3832
  %5354 = vmatprep.subr.bf16.mxu0 %v3837
  %5355 = vmatpush1.bf16.msra.mxu0 %v3836
  %5356 = vmatprep.subr.bf16.mxu0 0
  %5357 = vmatpush1.bf16.msra.mxu0 0
  %5358 = vmatprep.subr.bf16.mxu0 0
  %5359 = vmatpush1.bf16.msra.mxu0 0
  %5360 = vmatprep.subr.bf16.mxu0 0
  %5361 = vmatpush1.bf16.msra.mxu0 0
  %5362 = vmatprep.subr.bf16.mxu0 0
  %5363 = vmatpush1.bf16.msra.mxu0 0
  %5364 = vmatprep.subr.bf16.mxu0 0
  %5365 = vmatpush1.bf16.msra.mxu0 0
  %5366 = vmatprep.subr.bf16.mxu0 0
  %5367 = vmatpush1.bf16.msra.mxu0 0
  %5368 = vmatprep.subr.bf16.mxu0 0
  %5369 = vmatpush1.bf16.msra.mxu0 0
  %5370 = vmatprep.subr.bf16.mxu0 0
  %5371 = vmatpush1.bf16.msra.mxu0 0
  %5372 = vmatprep.subr.bf16.mxu0 0
  %5373 = vmatpush1.bf16.msra.mxu0 0
  %5374 = vmatprep.subr.bf16.mxu0 0
  %5375 = vmatpush1.bf16.msra.mxu0 0
  %5376 = vmatprep.subr.bf16.mxu0 0
  %5377 = vmatpush1.bf16.msra.mxu0 0
  %5378 = vmatprep.subr.bf16.mxu0 0
  %5379 = vmatpush1.bf16.msra.mxu0 0
  %5380 = vmatprep.mubr.bf16.mxu0 0
  %5381 = vmatmul.mubr.bf16.gmra.mrb[0].mxu0 %v5337
  %v5382 = vpop.f32.mrb[0].mxu0
  %v5383 = vadd.f32 0.0, %v5382
  %v5384 = vpop.f32.mrb[0].mxu0
  %v5385 = vadd.f32 0.0, %v5384
  %v5386 = vpop.f32.mrb[0].mxu0
  %v5387 = vadd.f32 0.0, %v5386
  %v5388 = vpop.f32.mrb[0].mxu0
  %v5389 = vadd.f32 0.0, %v5388
  %5390 = vmatprep.mubr.bf16.mxu0 0
  %5391 = vmatmul.mubr.bf16.gmra.mrb[0].mxu0 %v5340
  %v5392 = vpop.f32.mrb[0].mxu0
  %v5393 = vadd.f32 0.0, %v5392
  %v5394 = vpop.f32.mrb[0].mxu0
  %v5395 = vadd.f32 0.0, %v5394
  %v5396 = vpop.f32.mrb[0].mxu0
  %v5397 = vadd.f32 0.0, %v5396
  %v5398 = vpop.f32.mrb[0].mxu0
  %v5399 = vadd.f32 0.0, %v5398
  %5400 = vmatprep.mubr.bf16.mxu0 0
  %5401 = vmatmul.mubr.bf16.gmra.mrb[0].mxu0 %v5343
  %v5402 = vpop.f32.mrb[0].mxu0
  %v5403 = vadd.f32 0.0, %v5402
  %v5404 = vpop.f32.mrb[0].mxu0
  %v5405 = vadd.f32 0.0, %v5404
  %v5406 = vpop.f32.mrb[0].mxu0
  %v5407 = vadd.f32 0.0, %v5406
  %v5408 = vpop.f32.mrb[0].mxu0
  %v5409 = vadd.f32 0.0, %v5408
  %5410 = vmatprep.mubr.bf16.mxu0 0
  %5411 = vmatmul.mubr.bf16.gmra.mrb[0].mxu0 %v5346
  %v5412 = vpop.f32.mrb[0].mxu0
  %v5413 = vadd.f32 0.0, %v5412
  %v5414 = vpop.f32.mrb[0].mxu0
  %v5415 = vadd.f32 0.0, %v5414
  %v5416 = vpop.f32.mrb[0].mxu0
  %v5417 = vadd.f32 0.0, %v5416
  %v5418 = vpop.f32.mrb[0].mxu0
  %v5419 = vadd.f32 0.0, %v5418
  %5420 = vdwg.mxu0
  %5421 = vmatprep.subr.bf16.mxu0 %v3827
  %5422 = vmatpush1.bf16.msra.mxu0 %v3826
  %5423 = vmatprep.subr.bf16.mxu0 %v3831
  %5424 = vmatpush1.bf16.msra.mxu0 %v3830
  %5425 = vmatprep.subr.bf16.mxu0 %v3835
  %5426 = vmatpush1.bf16.msra.mxu0 %v3834
  %5427 = vmatprep.subr.bf16.mxu0 %v3839
  %5428 = vmatpush1.bf16.msra.mxu0 %v3838
  %5429 = vmatprep.subr.bf16.mxu0 0
  %5430 = vmatpush1.bf16.msra.mxu0 0
  %5431 = vmatprep.subr.bf16.mxu0 0
  %5432 = vmatpush1.bf16.msra.mxu0 0
  %5433 = vmatprep.subr.bf16.mxu0 0
  %5434 = vmatpush1.bf16.msra.mxu0 0
  %5435 = vmatprep.subr.bf16.mxu0 0
  %5436 = vmatpush1.bf16.msra.mxu0 0
  %5437 = vmatprep.subr.bf16.mxu0 0
  %5438 = vmatpush1.bf16.msra.mxu0 0
  %5439 = vmatprep.subr.bf16.mxu0 0
  %5440 = vmatpush1.bf16.msra.mxu0 0
  %5441 = vmatprep.subr.bf16.mxu0 0
  %5442 = vmatpush1.bf16.msra.mxu0 0
  %5443 = vmatprep.subr.bf16.mxu0 0
  %5444 = vmatpush1.bf16.msra.mxu0 0
  %5445 = vmatprep.subr.bf16.mxu0 0
  %5446 = vmatpush1.bf16.msra.mxu0 0
  %5447 = vmatprep.subr.bf16.mxu0 0
  %5448 = vmatpush1.bf16.msra.mxu0 0
  %5449 = vmatprep.subr.bf16.mxu0 0
  %5450 = vmatpush1.bf16.msra.mxu0 0
  %5451 = vmatprep.subr.bf16.mxu0 0
  %5452 = vmatpush1.bf16.msra.mxu0 0
  %5453 = vmatprep.mubr.bf16.mxu0 0
  %5454 = vmatmul.mubr.bf16.gmra.mrb[0].mxu0 %v5337
  %v5455 = vpop.f32.mrb[0].mxu0
  %v5456 = vadd.f32 0.0, %v5455
  %v5457 = vpop.f32.mrb[0].mxu0
  %v5458 = vadd.f32 0.0, %v5457
  %v5459 = vpop.f32.mrb[0].mxu0
  %v5460 = vadd.f32 0.0, %v5459
  %v5461 = vpop.f32.mrb[0].mxu0
  %v5462 = vadd.f32 0.0, %v5461
  %5463 = vmatprep.mubr.bf16.mxu0 0
  %5464 = vmatmul.mubr.bf16.gmra.mrb[0].mxu0 %v5340
  %v5465 = vpop.f32.mrb[0].mxu0
  %v5466 = vadd.f32 0.0, %v5465
  %v5467 = vpop.f32.mrb[0].mxu0
  %v5468 = vadd.f32 0.0, %v5467
  %v5469 = vpop.f32.mrb[0].mxu0
  %v5470 = vadd.f32 0.0, %v5469
  %v5471 = vpop.f32.mrb[0].mxu0
  %v5472 = vadd.f32 0.0, %v5471
  %5473 = vmatprep.mubr.bf16.mxu0 0
  %5474 = vmatmul.mubr.bf16.gmra.mrb[0].mxu0 %v5343
  %v5475 = vpop.f32.mrb[0].mxu0
  %v5476 = vadd.f32 0.0, %v5475
  %v5477 = vpop.f32.mrb[0].mxu0
  %v5478 = vadd.f32 0.0, %v5477
  %v5479 = vpop.f32.mrb[0].mxu0
  %v5480 = vadd.f32 0.0, %v5479
  %v5481 = vpop.f32.mrb[0].mxu0
  %v5482 = vadd.f32 0.0, %v5481
  %5483 = vmatprep.mubr.bf16.mxu0 0
  %5484 = vmatmul.mubr.bf16.gmra.mrb[0].mxu0 %v5346
  %v5485 = vpop.f32.mrb[0].mxu0
  %v5486 = vadd.f32 0.0, %v5485
  %v5487 = vpop.f32.mrb[0].mxu0
  %v5488 = vadd.f32 0.0, %v5487
  %v5489 = vpop.f32.mrb[0].mxu0
  %v5490 = vadd.f32 0.0, %v5489
  %v5491 = vpop.f32.mrb[0].mxu0
  %v5492 = vadd.f32 0.0, %v5491
  %5493 = vdwg.mxu0
  %v5494 = vpack.c.bf16 %v5387, %v5383
  %v5495 = vpack.c.bf16 %v5389, %v5385
  %v5496 = vpack.c.bf16 %v5460, %v5456
  %v5497 = vpack.c.bf16 %v5462, %v5458
  %v5498 = vpack.c.bf16 %v5397, %v5393
  %v5499 = vpack.c.bf16 %v5399, %v5395
  %v5500 = vpack.c.bf16 %v5470, %v5466
  %v5501 = vpack.c.bf16 %v5472, %v5468
  %v5502 = vpack.c.bf16 %v5407, %v5403
  %v5503 = vpack.c.bf16 %v5409, %v5405
  %v5504 = vpack.c.bf16 %v5480, %v5476
  %v5505 = vpack.c.bf16 %v5482, %v5478
  %v5506 = vpack.c.bf16 %v5417, %v5413
  %v5507 = vpack.c.bf16 %v5419, %v5415
  %v5508 = vpack.c.bf16 %v5490, %v5486
  %v5509 = vpack.c.bf16 %v5492, %v5488
  %s5510 = scalar_lea.vmem %s10, 1024
  %v5511 = vld [vmem:[%s5510] sm:$0xff]
  %v5512 = vld [vmem:[%s5510 + $0x8] sm:$0xff]
  %v5513 = vld [vmem:[%s5510 + $0x10] sm:$0xff]
  %v5514 = vld [vmem:[%s5510 + $0x18] sm:$0xff]
  %v5515 = vld [vmem:[%s5510 + $0x20] sm:$0xff]
  %v5516 = vld [vmem:[%s5510 + $0x28] sm:$0xff]
  %v5517 = vld [vmem:[%s5510 + $0x30] sm:$0xff]
  %v5518 = vld [vmem:[%s5510 + $0x38] sm:$0xff]
  %v5519 = vld [vmem:[%s5510 + $0x40] sm:$0xff]
  %v5520 = vld [vmem:[%s5510 + $0x48] sm:$0xff]
  %v5521 = vld [vmem:[%s5510 + $0x50] sm:$0xff]
  %v5522 = vld [vmem:[%s5510 + $0x58] sm:$0xff]
  %v5523 = vld [vmem:[%s5510 + $0x60] sm:$0xff]
  %v5524 = vld [vmem:[%s5510 + $0x68] sm:$0xff]
  %v5525 = vld [vmem:[%s5510 + $0x70] sm:$0xff]
  %v5526 = vld [vmem:[%s5510 + $0x78] sm:$0xff]
  %v5527 = vld [vmem:[%s5510 + $0x80] sm:$0xff]
  %v5528 = vld [vmem:[%s5510 + $0x88] sm:$0xff]
  %v5529 = vld [vmem:[%s5510 + $0x90] sm:$0xff]
  %v5530 = vld [vmem:[%s5510 + $0x98] sm:$0xff]
  %v5531 = vld [vmem:[%s5510 + $0xa0] sm:$0xff]
  %v5532 = vld [vmem:[%s5510 + $0xa8] sm:$0xff]
  %v5533 = vld [vmem:[%s5510 + $0xb0] sm:$0xff]
  %v5534 = vld [vmem:[%s5510 + $0xb8] sm:$0xff]
  %v5535 = vld [vmem:[%s5510 + $0xc0] sm:$0xff]
  %v5536 = vld [vmem:[%s5510 + $0xc8] sm:$0xff]
  %v5537 = vld [vmem:[%s5510 + $0xd0] sm:$0xff]
  %v5538 = vld [vmem:[%s5510 + $0xd8] sm:$0xff]
  %v5539 = vld [vmem:[%s5510 + $0xe0] sm:$0xff]
  %v5540 = vld [vmem:[%s5510 + $0xe8] sm:$0xff]
  %v5541 = vld [vmem:[%s5510 + $0xf0] sm:$0xff]
  %v5542 = vld [vmem:[%s5510 + $0xf8] sm:$0xff]
  %v5543 = vld [vmem:[%s5510 + $0x100] sm:$0xff]
  %v5544 = vld [vmem:[%s5510 + $0x108] sm:$0xff]
  %v5545 = vld [vmem:[%s5510 + $0x110] sm:$0xff]
  %v5546 = vld [vmem:[%s5510 + $0x118] sm:$0xff]
  %v5547 = vld [vmem:[%s5510 + $0x120] sm:$0xff]
  %v5548 = vld [vmem:[%s5510 + $0x128] sm:$0xff]
  %v5549 = vld [vmem:[%s5510 + $0x130] sm:$0xff]
  %v5550 = vld [vmem:[%s5510 + $0x138] sm:$0xff]
  %v5551 = vld [vmem:[%s5510 + $0x140] sm:$0xff]
  %v5552 = vld [vmem:[%s5510 + $0x148] sm:$0xff]
  %v5553 = vld [vmem:[%s5510 + $0x150] sm:$0xff]
  %v5554 = vld [vmem:[%s5510 + $0x158] sm:$0xff]
  %v5555 = vld [vmem:[%s5510 + $0x160] sm:$0xff]
  %v5556 = vld [vmem:[%s5510 + $0x168] sm:$0xff]
  %v5557 = vld [vmem:[%s5510 + $0x170] sm:$0xff]
  %v5558 = vld [vmem:[%s5510 + $0x178] sm:$0xff]
  %v5559 = vld [vmem:[%s5510 + $0x180] sm:$0xff]
  %v5560 = vld [vmem:[%s5510 + $0x188] sm:$0xff]
  %v5561 = vld [vmem:[%s5510 + $0x190] sm:$0xff]
  %v5562 = vld [vmem:[%s5510 + $0x198] sm:$0xff]
  %v5563 = vld [vmem:[%s5510 + $0x1a0] sm:$0xff]
  %v5564 = vld [vmem:[%s5510 + $0x1a8] sm:$0xff]
  %v5565 = vld [vmem:[%s5510 + $0x1b0] sm:$0xff]
  %v5566 = vld [vmem:[%s5510 + $0x1b8] sm:$0xff]
  %v5567 = vld [vmem:[%s5510 + $0x1c0] sm:$0xff]
  %v5568 = vld [vmem:[%s5510 + $0x1c8] sm:$0xff]
  %v5569 = vld [vmem:[%s5510 + $0x1d0] sm:$0xff]
  %v5570 = vld [vmem:[%s5510 + $0x1d8] sm:$0xff]
  %v5571 = vld [vmem:[%s5510 + $0x1e0] sm:$0xff]
  %v5572 = vld [vmem:[%s5510 + $0x1e8] sm:$0xff]
  %v5573 = vld [vmem:[%s5510 + $0x1f0] sm:$0xff]
  %v5574 = vld [vmem:[%s5510 + $0x1f8] sm:$0xff]
  %v5639 = vunpack.c.l.b16 %v5511
  %v5640 = vunpack.c.h.b16 %v5511
  %v5641 = vunpack.c.l.b16 %v5512
  %v5642 = vunpack.c.h.b16 %v5512
  %v5643 = vunpack.c.l.b16 %v5513
  %v5644 = vunpack.c.h.b16 %v5513
  %v5645 = vunpack.c.l.b16 %v5514
  %v5646 = vunpack.c.h.b16 %v5514
  %v5647 = vunpack.c.l.b16 %v5515
  %v5648 = vunpack.c.h.b16 %v5515
  %v5649 = vunpack.c.l.b16 %v5516
  %v5650 = vunpack.c.h.b16 %v5516
  %v5651 = vunpack.c.l.b16 %v5517
  %v5652 = vunpack.c.h.b16 %v5517
  %v5653 = vunpack.c.l.b16 %v5518
  %v5654 = vunpack.c.h.b16 %v5518
  %v5655 = vunpack.c.l.b16 %v5519
  %v5656 = vunpack.c.h.b16 %v5519
  %v5657 = vunpack.c.l.b16 %v5520
  %v5658 = vunpack.c.h.b16 %v5520
  %v5659 = vunpack.c.l.b16 %v5521
  %v5660 = vunpack.c.h.b16 %v5521
  %v5661 = vunpack.c.l.b16 %v5522
  %v5662 = vunpack.c.h.b16 %v5522
  %v5663 = vunpack.c.l.b16 %v5523
  %v5664 = vunpack.c.h.b16 %v5523
  %v5665 = vunpack.c.l.b16 %v5524
  %v5666 = vunpack.c.h.b16 %v5524
  %v5667 = vunpack.c.l.b16 %v5525
  %v5668 = vunpack.c.h.b16 %v5525
  %v5669 = vunpack.c.l.b16 %v5526
  %v5670 = vunpack.c.h.b16 %v5526
  %v5671 = vunpack.c.l.b16 %v5527
  %v5672 = vunpack.c.h.b16 %v5527
  %v5673 = vunpack.c.l.b16 %v5528
  %v5674 = vunpack.c.h.b16 %v5528
  %v5675 = vunpack.c.l.b16 %v5529
  %v5676 = vunpack.c.h.b16 %v5529
  %v5677 = vunpack.c.l.b16 %v5530
  %v5678 = vunpack.c.h.b16 %v5530
  %v5679 = vunpack.c.l.b16 %v5531
  %v5680 = vunpack.c.h.b16 %v5531
  %v5681 = vunpack.c.l.b16 %v5532
  %v5682 = vunpack.c.h.b16 %v5532
  %v5683 = vunpack.c.l.b16 %v5533
  %v5684 = vunpack.c.h.b16 %v5533
  %v5685 = vunpack.c.l.b16 %v5534
  %v5686 = vunpack.c.h.b16 %v5534
  %v5687 = vunpack.c.l.b16 %v5535
  %v5688 = vunpack.c.h.b16 %v5535
  %v5689 = vunpack.c.l.b16 %v5536
  %v5690 = vunpack.c.h.b16 %v5536
  %v5691 = vunpack.c.l.b16 %v5537
  %v5692 = vunpack.c.h.b16 %v5537
  %v5693 = vunpack.c.l.b16 %v5538
  %v5694 = vunpack.c.h.b16 %v5538
  %v5695 = vunpack.c.l.b16 %v5539
  %v5696 = vunpack.c.h.b16 %v5539
  %v5697 = vunpack.c.l.b16 %v5540
  %v5698 = vunpack.c.h.b16 %v5540
  %v5699 = vunpack.c.l.b16 %v5541
  %v5700 = vunpack.c.h.b16 %v5541
  %v5701 = vunpack.c.l.b16 %v5542
  %v5702 = vunpack.c.h.b16 %v5542
  %v5703 = vunpack.c.l.b16 %v5543
  %v5704 = vunpack.c.h.b16 %v5543
  %v5705 = vunpack.c.l.b16 %v5544
  %v5706 = vunpack.c.h.b16 %v5544
  %v5707 = vunpack.c.l.b16 %v5545
  %v5708 = vunpack.c.h.b16 %v5545
  %v5709 = vunpack.c.l.b16 %v5546
  %v5710 = vunpack.c.h.b16 %v5546
  %v5711 = vunpack.c.l.b16 %v5547
  %v5712 = vunpack.c.h.b16 %v5547
  %v5713 = vunpack.c.l.b16 %v5548
  %v5714 = vunpack.c.h.b16 %v5548
  %v5715 = vunpack.c.l.b16 %v5549
  %v5716 = vunpack.c.h.b16 %v5549
  %v5717 = vunpack.c.l.b16 %v5550
  %v5718 = vunpack.c.h.b16 %v5550
  %v5719 = vunpack.c.l.b16 %v5551
  %v5720 = vunpack.c.h.b16 %v5551
  %v5721 = vunpack.c.l.b16 %v5552
  %v5722 = vunpack.c.h.b16 %v5552
  %v5723 = vunpack.c.l.b16 %v5553
  %v5724 = vunpack.c.h.b16 %v5553
  %v5725 = vunpack.c.l.b16 %v5554
  %v5726 = vunpack.c.h.b16 %v5554
  %v5727 = vunpack.c.l.b16 %v5555
  %v5728 = vunpack.c.h.b16 %v5555
  %v5729 = vunpack.c.l.b16 %v5556
  %v5730 = vunpack.c.h.b16 %v5556
  %v5731 = vunpack.c.l.b16 %v5557
  %v5732 = vunpack.c.h.b16 %v5557
  %v5733 = vunpack.c.l.b16 %v5558
  %v5734 = vunpack.c.h.b16 %v5558
  %v5735 = vunpack.c.l.b16 %v5559
  %v5736 = vunpack.c.h.b16 %v5559
  %v5737 = vunpack.c.l.b16 %v5560
  %v5738 = vunpack.c.h.b16 %v5560
  %v5739 = vunpack.c.l.b16 %v5561
  %v5740 = vunpack.c.h.b16 %v5561
  %v5741 = vunpack.c.l.b16 %v5562
  %v5742 = vunpack.c.h.b16 %v5562
  %v5743 = vunpack.c.l.b16 %v5563
  %v5744 = vunpack.c.h.b16 %v5563
  %v5745 = vunpack.c.l.b16 %v5564
  %v5746 = vunpack.c.h.b16 %v5564
  %v5747 = vunpack.c.l.b16 %v5565
  %v5748 = vunpack.c.h.b16 %v5565
  %v5749 = vunpack.c.l.b16 %v5566
  %v5750 = vunpack.c.h.b16 %v5566
  %v5751 = vunpack.c.l.b16 %v5567
  %v5752 = vunpack.c.h.b16 %v5567
  %v5753 = vunpack.c.l.b16 %v5568
  %v5754 = vunpack.c.h.b16 %v5568
  %v5755 = vunpack.c.l.b16 %v5569
  %v5756 = vunpack.c.h.b16 %v5569
  %v5757 = vunpack.c.l.b16 %v5570
  %v5758 = vunpack.c.h.b16 %v5570
  %v5759 = vunpack.c.l.b16 %v5571
  %v5760 = vunpack.c.h.b16 %v5571
  %v5761 = vunpack.c.l.b16 %v5572
  %v5762 = vunpack.c.h.b16 %v5572
  %v5763 = vunpack.c.l.b16 %v5573
  %v5764 = vunpack.c.h.b16 %v5573
  %v5765 = vunpack.c.l.b16 %v5574
  %v5766 = vunpack.c.h.b16 %v5574
  %v5767 = vpack.c.b16 %v5641, %v5639
  %v5768 = vpack.c.b16 %v5642, %v5640
  %v5769 = vpack.c.b16 %v5645, %v5643
  %v5770 = vpack.c.b16 %v5646, %v5644
  %v5771 = vpack.c.b16 %v5649, %v5647
  %v5772 = vpack.c.b16 %v5650, %v5648
  %v5773 = vpack.c.b16 %v5653, %v5651
  %v5774 = vpack.c.b16 %v5654, %v5652
  %v5775 = vpack.c.b16 %v5657, %v5655
  %v5776 = vpack.c.b16 %v5658, %v5656
  %v5777 = vpack.c.b16 %v5661, %v5659
  %v5778 = vpack.c.b16 %v5662, %v5660
  %v5779 = vpack.c.b16 %v5665, %v5663
  %v5780 = vpack.c.b16 %v5666, %v5664
  %v5781 = vpack.c.b16 %v5669, %v5667
  %v5782 = vpack.c.b16 %v5670, %v5668
  %v5783 = vpack.c.b16 %v5673, %v5671
  %v5784 = vpack.c.b16 %v5674, %v5672
  %v5785 = vpack.c.b16 %v5677, %v5675
  %v5786 = vpack.c.b16 %v5678, %v5676
  %v5787 = vpack.c.b16 %v5681, %v5679
  %v5788 = vpack.c.b16 %v5682, %v5680
  %v5789 = vpack.c.b16 %v5685, %v5683
  %v5790 = vpack.c.b16 %v5686, %v5684
  %v5791 = vpack.c.b16 %v5689, %v5687
  %v5792 = vpack.c.b16 %v5690, %v5688
  %v5793 = vpack.c.b16 %v5693, %v5691
  %v5794 = vpack.c.b16 %v5694, %v5692
  %v5795 = vpack.c.b16 %v5697, %v5695
  %v5796 = vpack.c.b16 %v5698, %v5696
  %v5797 = vpack.c.b16 %v5701, %v5699
  %v5798 = vpack.c.b16 %v5702, %v5700
  %v5799 = vpack.c.b16 %v5705, %v5703
  %v5800 = vpack.c.b16 %v5706, %v5704
  %v5801 = vpack.c.b16 %v5709, %v5707
  %v5802 = vpack.c.b16 %v5710, %v5708
  %v5803 = vpack.c.b16 %v5713, %v5711
  %v5804 = vpack.c.b16 %v5714, %v5712
  %v5805 = vpack.c.b16 %v5717, %v5715
  %v5806 = vpack.c.b16 %v5718, %v5716
  %v5807 = vpack.c.b16 %v5721, %v5719
  %v5808 = vpack.c.b16 %v5722, %v5720
  %v5809 = vpack.c.b16 %v5725, %v5723
  %v5810 = vpack.c.b16 %v5726, %v5724
  %v5811 = vpack.c.b16 %v5729, %v5727
  %v5812 = vpack.c.b16 %v5730, %v5728
  %v5813 = vpack.c.b16 %v5733, %v5731
  %v5814 = vpack.c.b16 %v5734, %v5732
  %v5815 = vpack.c.b16 %v5737, %v5735
  %v5816 = vpack.c.b16 %v5738, %v5736
  %v5817 = vpack.c.b16 %v5741, %v5739
  %v5818 = vpack.c.b16 %v5742, %v5740
  %v5819 = vpack.c.b16 %v5745, %v5743
  %v5820 = vpack.c.b16 %v5746, %v5744
  %v5821 = vpack.c.b16 %v5749, %v5747
  %v5822 = vpack.c.b16 %v5750, %v5748
  %v5823 = vpack.c.b16 %v5753, %v5751
  %v5824 = vpack.c.b16 %v5754, %v5752
  %v5825 = vpack.c.b16 %v5757, %v5755
  %v5826 = vpack.c.b16 %v5758, %v5756
  %v5827 = vpack.c.b16 %v5761, %v5759
  %v5828 = vpack.c.b16 %v5762, %v5760
  %v5829 = vpack.c.b16 %v5765, %v5763
  %v5830 = vpack.c.b16 %v5766, %v5764
  %5895 = vmatprep.subr.bf16.mxu0 %v5768
  %5896 = vmatpush1.bf16.msra.mxu0 %v5767
  %5897 = vmatprep.subr.bf16.mxu0 %v5770
  %5898 = vmatpush1.bf16.msra.mxu0 %v5769
  %5899 = vmatprep.subr.bf16.mxu0 %v5772
  %5900 = vmatpush1.bf16.msra.mxu0 %v5771
  %5901 = vmatprep.subr.bf16.mxu0 %v5774
  %5902 = vmatpush1.bf16.msra.mxu0 %v5773
  %5903 = vmatprep.subr.bf16.mxu0 %v5776
  %5904 = vmatpush1.bf16.msra.mxu0 %v5775
  %5905 = vmatprep.subr.bf16.mxu0 %v5778
  %5906 = vmatpush1.bf16.msra.mxu0 %v5777
  %5907 = vmatprep.subr.bf16.mxu0 %v5780
  %5908 = vmatpush1.bf16.msra.mxu0 %v5779
  %5909 = vmatprep.subr.bf16.mxu0 %v5782
  %5910 = vmatpush1.bf16.msra.mxu0 %v5781
  %5911 = vmatprep.subr.bf16.mxu0 %v5784
  %5912 = vmatpush1.bf16.msra.mxu0 %v5783
  %5913 = vmatprep.subr.bf16.mxu0 %v5786
  %5914 = vmatpush1.bf16.msra.mxu0 %v5785
  %5915 = vmatprep.subr.bf16.mxu0 %v5788
  %5916 = vmatpush1.bf16.msra.mxu0 %v5787
  %5917 = vmatprep.subr.bf16.mxu0 %v5790
  %5918 = vmatpush1.bf16.msra.mxu0 %v5789
  %5919 = vmatprep.subr.bf16.mxu0 %v5792
  %5920 = vmatpush1.bf16.msra.mxu0 %v5791
  %5921 = vmatprep.subr.bf16.mxu0 %v5794
  %5922 = vmatpush1.bf16.msra.mxu0 %v5793
  %5923 = vmatprep.subr.bf16.mxu0 %v5796
  %5924 = vmatpush1.bf16.msra.mxu0 %v5795
  %5925 = vmatprep.subr.bf16.mxu0 %v5798
  %5926 = vmatpush1.bf16.msra.mxu0 %v5797
  %5927 = vmatprep.mubr.bf16.mxu0 %v5495
  %5928 = vmatmul.mubr.bf16.gmra.mrb[0].mxu0 %v5494
  %v5929 = vpop.f32.mrb[0].mxu0
  %v5930 = vadd.f32 0.0, %v5929
  %v5931 = vpop.f32.mrb[0].mxu0
  %v5932 = vadd.f32 0.0, %v5931
  %v5933 = vpop.f32.mrb[0].mxu0
  %v5934 = vadd.f32 0.0, %v5933
  %v5935 = vpop.f32.mrb[0].mxu0
  %v5936 = vadd.f32 0.0, %v5935
  %5937 = vmatprep.mubr.bf16.mxu0 %v5499
  %5938 = vmatmul.mubr.bf16.gmra.mrb[0].mxu0 %v5498
  %v5939 = vpop.f32.mrb[0].mxu0
  %v5940 = vadd.f32 0.0, %v5939
  %v5941 = vpop.f32.mrb[0].mxu0
  %v5942 = vadd.f32 0.0, %v5941
  %v5943 = vpop.f32.mrb[0].mxu0
  %v5944 = vadd.f32 0.0, %v5943
  %v5945 = vpop.f32.mrb[0].mxu0
  %v5946 = vadd.f32 0.0, %v5945
  %5947 = vmatprep.mubr.bf16.mxu0 %v5503
  %5948 = vmatmul.mubr.bf16.gmra.mrb[0].mxu0 %v5502
  %v5949 = vpop.f32.mrb[0].mxu0
  %v5950 = vadd.f32 0.0, %v5949
  %v5951 = vpop.f32.mrb[0].mxu0
  %v5952 = vadd.f32 0.0, %v5951
  %v5953 = vpop.f32.mrb[0].mxu0
  %v5954 = vadd.f32 0.0, %v5953
  %v5955 = vpop.f32.mrb[0].mxu0
  %v5956 = vadd.f32 0.0, %v5955
  %5957 = vmatprep.mubr.bf16.mxu0 %v5507
  %5958 = vmatmul.mubr.bf16.gmra.mrb[0].mxu0 %v5506
  %v5959 = vpop.f32.mrb[0].mxu0
  %v5960 = vadd.f32 0.0, %v5959
  %v5961 = vpop.f32.mrb[0].mxu0
  %v5962 = vadd.f32 0.0, %v5961
  %v5963 = vpop.f32.mrb[0].mxu0
  %v5964 = vadd.f32 0.0, %v5963
  %v5965 = vpop.f32.mrb[0].mxu0
  %v5966 = vadd.f32 0.0, %v5965
  %5967 = vdwg.mxu0
  %5968 = vmatprep.subr.bf16.mxu0 %v5800
  %5969 = vmatpush1.bf16.msra.mxu0 %v5799
  %5970 = vmatprep.subr.bf16.mxu0 %v5802
  %5971 = vmatpush1.bf16.msra.mxu0 %v5801
  %5972 = vmatprep.subr.bf16.mxu0 %v5804
  %5973 = vmatpush1.bf16.msra.mxu0 %v5803
  %5974 = vmatprep.subr.bf16.mxu0 %v5806
  %5975 = vmatpush1.bf16.msra.mxu0 %v5805
  %5976 = vmatprep.subr.bf16.mxu0 %v5808
  %5977 = vmatpush1.bf16.msra.mxu0 %v5807
  %5978 = vmatprep.subr.bf16.mxu0 %v5810
  %5979 = vmatpush1.bf16.msra.mxu0 %v5809
  %5980 = vmatprep.subr.bf16.mxu0 %v5812
  %5981 = vmatpush1.bf16.msra.mxu0 %v5811
  %5982 = vmatprep.subr.bf16.mxu0 %v5814
  %5983 = vmatpush1.bf16.msra.mxu0 %v5813
  %5984 = vmatprep.subr.bf16.mxu0 %v5816
  %5985 = vmatpush1.bf16.msra.mxu0 %v5815
  %5986 = vmatprep.subr.bf16.mxu0 %v5818
  %5987 = vmatpush1.bf16.msra.mxu0 %v5817
  %5988 = vmatprep.subr.bf16.mxu0 %v5820
  %5989 = vmatpush1.bf16.msra.mxu0 %v5819
  %5990 = vmatprep.subr.bf16.mxu0 %v5822
  %5991 = vmatpush1.bf16.msra.mxu0 %v5821
  %5992 = vmatprep.subr.bf16.mxu0 %v5824
  %5993 = vmatpush1.bf16.msra.mxu0 %v5823
  %5994 = vmatprep.subr.bf16.mxu0 %v5826
  %5995 = vmatpush1.bf16.msra.mxu0 %v5825
  %5996 = vmatprep.subr.bf16.mxu0 %v5828
  %5997 = vmatpush1.bf16.msra.mxu0 %v5827
  %5998 = vmatprep.subr.bf16.mxu0 %v5830
  %5999 = vmatpush1.bf16.msra.mxu0 %v5829
  %6000 = vmatprep.mubr.bf16.mxu0 %v5497
  %6001 = vmatmul.mubr.bf16.gmra.mrb[0].mxu0 %v5496
  %v6002 = vpop.f32.mrb[0].mxu0
  %v6003 = vadd.f32 %v5930, %v6002
  %v6004 = vpop.f32.mrb[0].mxu0
  %v6005 = vadd.f32 %v5932, %v6004
  %v6006 = vpop.f32.mrb[0].mxu0
  %v6007 = vadd.f32 %v5934, %v6006
  %v6008 = vpop.f32.mrb[0].mxu0
  %v6009 = vadd.f32 %v5936, %v6008
  %6010 = vmatprep.mubr.bf16.mxu0 %v5501
  %6011 = vmatmul.mubr.bf16.gmra.mrb[0].mxu0 %v5500
  %v6012 = vpop.f32.mrb[0].mxu0
  %v6013 = vadd.f32 %v5940, %v6012
  %v6014 = vpop.f32.mrb[0].mxu0
  %v6015 = vadd.f32 %v5942, %v6014
  %v6016 = vpop.f32.mrb[0].mxu0
  %v6017 = vadd.f32 %v5944, %v6016
  %v6018 = vpop.f32.mrb[0].mxu0
  %v6019 = vadd.f32 %v5946, %v6018
  %6020 = vmatprep.mubr.bf16.mxu0 %v5505
  %6021 = vmatmul.mubr.bf16.gmra.mrb[0].mxu0 %v5504
  %v6022 = vpop.f32.mrb[0].mxu0
  %v6023 = vadd.f32 %v5950, %v6022
  %v6024 = vpop.f32.mrb[0].mxu0
  %v6025 = vadd.f32 %v5952, %v6024
  %v6026 = vpop.f32.mrb[0].mxu0
  %v6027 = vadd.f32 %v5954, %v6026
  %v6028 = vpop.f32.mrb[0].mxu0
  %v6029 = vadd.f32 %v5956, %v6028
  %6030 = vmatprep.mubr.bf16.mxu0 %v5509
  %6031 = vmatmul.mubr.bf16.gmra.mrb[0].mxu0 %v5508
  %v6032 = vpop.f32.mrb[0].mxu0
  %v6033 = vadd.f32 %v5960, %v6032
  %v6034 = vpop.f32.mrb[0].mxu0
  %v6035 = vadd.f32 %v5962, %v6034
  %v6036 = vpop.f32.mrb[0].mxu0
  %v6037 = vadd.f32 %v5964, %v6036
  %v6038 = vpop.f32.mrb[0].mxu0
  %v6039 = vadd.f32 %v5966, %v6038
  %6040 = vdwg.mxu0
  %v6041 = vadd.f32 %v5269, %v6003
  %v6042 = vadd.f32 %v5271, %v6005
  %v6043 = vadd.f32 %v5273, %v6007
  %v6044 = vadd.f32 %v5275, %v6009
  %v6045 = vadd.f32 %v5279, %v6013
  %v6046 = vadd.f32 %v5281, %v6015
  %v6047 = vadd.f32 %v5283, %v6017
  %v6048 = vadd.f32 %v5285, %v6019
  %v6049 = vadd.f32 %v5289, %v6023
  %v6050 = vadd.f32 %v5291, %v6025
  %v6051 = vadd.f32 %v5293, %v6027
  %v6052 = vadd.f32 %v5295, %v6029
  %v6053 = vadd.f32 %v5299, %v6033
  %v6054 = vadd.f32 %v5301, %v6035
  %v6055 = vadd.f32 %v5303, %v6037
  %v6056 = vadd.f32 %v5305, %v6039
  %v6057 = vld [vmem:[%s11] sm:$0x3]
  %v6059 = vlaneseq
  %v6060 = vshrl.u32 %v6059, 7
  %v6061 = vsub.s32 0, %v6060
  %v6062 = vrot.slane %v6057, %v6061
  %v6063 = vlaneseq
  %v6064 = vshrl.u32 %v6063, 7
  %v6065 = vsub.s32 1, %v6064
  %v6066 = vrot.slane %v6057, %v6065
  %v6069 = vmul.f32 %v6041, %v6062
  %v6070 = vmul.f32 %v6042, %v6066
  %v6071 = vmul.f32 %v6043, %v6062
  %v6072 = vmul.f32 %v6044, %v6066
  %v6073 = vmul.f32 %v6045, %v6062
  %v6074 = vmul.f32 %v6046, %v6066
  %v6075 = vmul.f32 %v6047, %v6062
  %v6076 = vmul.f32 %v6048, %v6066
  %v6077 = vmul.f32 %v6049, %v6062
  %v6078 = vmul.f32 %v6050, %v6066
  %v6079 = vmul.f32 %v6051, %v6062
  %v6080 = vmul.f32 %v6052, %v6066
  %v6081 = vmul.f32 %v6053, %v6062
  %v6082 = vmul.f32 %v6054, %v6066
  %v6083 = vmul.f32 %v6055, %v6062
  %v6084 = vmul.f32 %v6056, %v6066
  %v6085 = vld [vmem:[%s12] sm:$0x3]
  %v6087 = vlaneseq
  %v6088 = vshrl.u32 %v6087, 7
  %v6089 = vsub.s32 0, %v6088
  %v6090 = vrot.slane %v6085, %v6089
  %v6091 = vlaneseq
  %v6092 = vshrl.u32 %v6091, 7
  %v6093 = vsub.s32 1, %v6092
  %v6094 = vrot.slane %v6085, %v6093
  %v6097 = vadd.f32 %v6069, %v6090
  %v6098 = vadd.f32 %v6070, %v6094
  %v6099 = vadd.f32 %v6071, %v6090
  %v6100 = vadd.f32 %v6072, %v6094
  %v6101 = vadd.f32 %v6073, %v6090
  %v6102 = vadd.f32 %v6074, %v6094
  %v6103 = vadd.f32 %v6075, %v6090
  %v6104 = vadd.f32 %v6076, %v6094
  %v6105 = vadd.f32 %v6077, %v6090
  %v6106 = vadd.f32 %v6078, %v6094
  %v6107 = vadd.f32 %v6079, %v6090
  %v6108 = vadd.f32 %v6080, %v6094
  %v6109 = vadd.f32 %v6081, %v6090
  %v6110 = vadd.f32 %v6082, %v6094
  %v6111 = vadd.f32 %v6083, %v6090
  %v6112 = vadd.f32 %v6084, %v6094
  %v6113 = vmax.f32 %v6097, 0.0
  %v6114 = vmax.f32 %v6098, 0.0
  %v6115 = vmax.f32 %v6099, 0.0
  %v6116 = vmax.f32 %v6100, 0.0
  %v6117 = vmax.f32 %v6101, 0.0
  %v6118 = vmax.f32 %v6102, 0.0
  %v6119 = vmax.f32 %v6103, 0.0
  %v6120 = vmax.f32 %v6104, 0.0
  %v6121 = vmax.f32 %v6105, 0.0
  %v6122 = vmax.f32 %v6106, 0.0
  %v6123 = vmax.f32 %v6107, 0.0
  %v6124 = vmax.f32 %v6108, 0.0
  %v6125 = vmax.f32 %v6109, 0.0
  %v6126 = vmax.f32 %v6110, 0.0
  %v6127 = vmax.f32 %v6111, 0.0
  %v6128 = vmax.f32 %v6112, 0.0
  %v6129 = vld [vmem:[%s13] sm:$0xf]
  %v6130 = vld [vmem:[%s13 + $0x4] sm:$0xf]
  %v6131 = vld [vmem:[%s13 + $0x8] sm:$0xf]
  %v6132 = vld [vmem:[%s13 + $0xc] sm:$0xf]
  %v6133 = vld [vmem:[%s13 + $0x10] sm:$0xf]
  %v6134 = vld [vmem:[%s13 + $0x14] sm:$0xf]
  %v6135 = vld [vmem:[%s13 + $0x18] sm:$0xf]
  %v6136 = vld [vmem:[%s13 + $0x1c] sm:$0xf]
  %v6137 = vld [vmem:[%s13 + $0x20] sm:$0xf]
  %v6138 = vld [vmem:[%s13 + $0x24] sm:$0xf]
  %v6139 = vld [vmem:[%s13 + $0x28] sm:$0xf]
  %v6140 = vld [vmem:[%s13 + $0x2c] sm:$0xf]
  %v6141 = vld [vmem:[%s13 + $0x30] sm:$0xf]
  %v6142 = vld [vmem:[%s13 + $0x34] sm:$0xf]
  %v6143 = vld [vmem:[%s13 + $0x38] sm:$0xf]
  %v6144 = vld [vmem:[%s13 + $0x3c] sm:$0xf]
  %v6145 = vpack.c.bf16 %v6115, %v6113
  %v6146 = vpack.c.bf16 %v6116, %v6114
  %v6147 = vpack.c.bf16 %v6119, %v6117
  %v6148 = vpack.c.bf16 %v6120, %v6118
  %v6149 = vpack.c.bf16 %v6123, %v6121
  %v6150 = vpack.c.bf16 %v6124, %v6122
  %v6151 = vpack.c.bf16 %v6127, %v6125
  %v6152 = vpack.c.bf16 %v6128, %v6126
  %v6169 = vunpack.c.l.b16 %v6129
  %v6170 = vunpack.c.l.b16 %v6130
  %v6171 = vunpack.c.l.b16 %v6131
  %v6172 = vunpack.c.l.b16 %v6132
  %v6173 = vunpack.c.l.b16 %v6133
  %v6174 = vunpack.c.l.b16 %v6134
  %v6175 = vunpack.c.l.b16 %v6135
  %v6176 = vunpack.c.l.b16 %v6136
  %v6177 = vunpack.c.l.b16 %v6137
  %v6178 = vunpack.c.l.b16 %v6138
  %v6179 = vunpack.c.l.b16 %v6139
  %v6180 = vunpack.c.l.b16 %v6140
  %v6181 = vunpack.c.l.b16 %v6141
  %v6182 = vunpack.c.l.b16 %v6142
  %v6183 = vunpack.c.l.b16 %v6143
  %v6184 = vunpack.c.l.b16 %v6144
  %v6185 = vpack.c.b16 %v6170, %v6169
  %v6186 = vpack.c.b16 %v6172, %v6171
  %v6187 = vpack.c.b16 %v6174, %v6173
  %v6188 = vpack.c.b16 %v6176, %v6175
  %v6189 = vpack.c.b16 %v6178, %v6177
  %v6190 = vpack.c.b16 %v6180, %v6179
  %v6191 = vpack.c.b16 %v6182, %v6181
  %v6192 = vpack.c.b16 %v6184, %v6183
  %v6194 = vsel %vm3868, %v6185, 0
  %v6197 = vsel %vm3868, %v6186, 0
  %v6200 = vsel %vm3868, %v6187, 0
  %v6203 = vsel %vm3868, %v6188, 0
  %v6206 = vsel %vm3868, %v6189, 0
  %v6209 = vsel %vm3868, %v6190, 0
  %v6212 = vsel %vm3868, %v6191, 0
  %v6215 = vsel %vm3868, %v6192, 0
  %6217 = vmatprep.subr.bf16.mxu0 %v6146
  %6218 = vmatpush1.bf16.msra.mxu0 %v6145
  %6219 = vmatprep.subr.bf16.mxu0 %v6148
  %6220 = vmatpush1.bf16.msra.mxu0 %v6147
  %6221 = vmatprep.subr.bf16.mxu0 %v6150
  %6222 = vmatpush1.bf16.msra.mxu0 %v6149
  %6223 = vmatprep.subr.bf16.mxu0 %v6152
  %6224 = vmatpush1.bf16.msra.mxu0 %v6151
  %6225 = vmatprep.subr.bf16.mxu0 0
  %6226 = vmatpush1.bf16.msra.mxu0 0
  %6227 = vmatprep.subr.bf16.mxu0 0
  %6228 = vmatpush1.bf16.msra.mxu0 0
  %6229 = vmatprep.subr.bf16.mxu0 0
  %6230 = vmatpush1.bf16.msra.mxu0 0
  %6231 = vmatprep.subr.bf16.mxu0 0
  %6232 = vmatpush1.bf16.msra.mxu0 0
  %6233 = vmatprep.subr.bf16.mxu0 0
  %6234 = vmatpush1.bf16.msra.mxu0 0
  %6235 = vmatprep.subr.bf16.mxu0 0
  %6236 = vmatpush1.bf16.msra.mxu0 0
  %6237 = vmatprep.subr.bf16.mxu0 0
  %6238 = vmatpush1.bf16.msra.mxu0 0
  %6239 = vmatprep.subr.bf16.mxu0 0
  %6240 = vmatpush1.bf16.msra.mxu0 0
  %6241 = vmatprep.subr.bf16.mxu0 0
  %6242 = vmatpush1.bf16.msra.mxu0 0
  %6243 = vmatprep.subr.bf16.mxu0 0
  %6244 = vmatpush1.bf16.msra.mxu0 0
  %6245 = vmatprep.subr.bf16.mxu0 0
  %6246 = vmatpush1.bf16.msra.mxu0 0
  %6247 = vmatprep.subr.bf16.mxu0 0
  %6248 = vmatpush1.bf16.msra.mxu0 0
  %6249 = vmatprep.mubr.bf16.mxu0 0
  %6250 = vmatmul.mubr.bf16.gmra.mrb[0].mxu0 %v6194
  %v6251 = vpop.f32.mrb[0].mxu0
  %v6252 = vadd.f32 0.0, %v6251
  %v6253 = vpop.f32.mrb[0].mxu0
  %v6254 = vadd.f32 0.0, %v6253
  %v6255 = vpop.f32.mrb[0].mxu0
  %v6256 = vadd.f32 0.0, %v6255
  %v6257 = vpop.f32.mrb[0].mxu0
  %v6258 = vadd.f32 0.0, %v6257
  %6259 = vmatprep.mubr.bf16.mxu0 0
  %6260 = vmatmul.mubr.bf16.gmra.mrb[0].mxu0 %v6197
  %v6261 = vpop.f32.mrb[0].mxu0
  %v6262 = vadd.f32 0.0, %v6261
  %v6263 = vpop.f32.mrb[0].mxu0
  %v6264 = vadd.f32 0.0, %v6263
  %v6265 = vpop.f32.mrb[0].mxu0
  %v6266 = vadd.f32 0.0, %v6265
  %v6267 = vpop.f32.mrb[0].mxu0
  %v6268 = vadd.f32 0.0, %v6267
  %6269 = vmatprep.mubr.bf16.mxu0 0
  %6270 = vmatmul.mubr.bf16.gmra.mrb[0].mxu0 %v6200
  %v6271 = vpop.f32.mrb[0].mxu0
  %v6272 = vadd.f32 0.0, %v6271
  %v6273 = vpop.f32.mrb[0].mxu0
  %v6274 = vadd.f32 0.0, %v6273
  %v6275 = vpop.f32.mrb[0].mxu0
  %v6276 = vadd.f32 0.0, %v6275
  %v6277 = vpop.f32.mrb[0].mxu0
  %v6278 = vadd.f32 0.0, %v6277
  %6279 = vmatprep.mubr.bf16.mxu0 0
  %6280 = vmatmul.mubr.bf16.gmra.mrb[0].mxu0 %v6203
  %v6281 = vpop.f32.mrb[0].mxu0
  %v6282 = vadd.f32 0.0, %v6281
  %v6283 = vpop.f32.mrb[0].mxu0
  %v6284 = vadd.f32 0.0, %v6283
  %v6285 = vpop.f32.mrb[0].mxu0
  %v6286 = vadd.f32 0.0, %v6285
  %v6287 = vpop.f32.mrb[0].mxu0
  %v6288 = vadd.f32 0.0, %v6287
  %6289 = vmatprep.mubr.bf16.mxu0 0
  %6290 = vmatmul.mubr.bf16.gmra.mrb[0].mxu0 %v6206
  %v6291 = vpop.f32.mrb[0].mxu0
  %v6292 = vadd.f32 0.0, %v6291
  %v6293 = vpop.f32.mrb[0].mxu0
  %v6294 = vadd.f32 0.0, %v6293
  %v6295 = vpop.f32.mrb[0].mxu0
  %v6296 = vadd.f32 0.0, %v6295
  %v6297 = vpop.f32.mrb[0].mxu0
  %v6298 = vadd.f32 0.0, %v6297
  %6299 = vmatprep.mubr.bf16.mxu0 0
  %6300 = vmatmul.mubr.bf16.gmra.mrb[0].mxu0 %v6209
  %v6301 = vpop.f32.mrb[0].mxu0
  %v6302 = vadd.f32 0.0, %v6301
  %v6303 = vpop.f32.mrb[0].mxu0
  %v6304 = vadd.f32 0.0, %v6303
  %v6305 = vpop.f32.mrb[0].mxu0
  %v6306 = vadd.f32 0.0, %v6305
  %v6307 = vpop.f32.mrb[0].mxu0
  %v6308 = vadd.f32 0.0, %v6307
  %6309 = vmatprep.mubr.bf16.mxu0 0
  %6310 = vmatmul.mubr.bf16.gmra.mrb[0].mxu0 %v6212
  %v6311 = vpop.f32.mrb[0].mxu0
  %v6312 = vadd.f32 0.0, %v6311
  %v6313 = vpop.f32.mrb[0].mxu0
  %v6314 = vadd.f32 0.0, %v6313
  %v6315 = vpop.f32.mrb[0].mxu0
  %v6316 = vadd.f32 0.0, %v6315
  %v6317 = vpop.f32.mrb[0].mxu0
  %v6318 = vadd.f32 0.0, %v6317
  %6319 = vmatprep.mubr.bf16.mxu0 0
  %6320 = vmatmul.mubr.bf16.gmra.mrb[0].mxu0 %v6215
  %v6321 = vpop.f32.mrb[0].mxu0
  %v6322 = vadd.f32 0.0, %v6321
  %v6323 = vpop.f32.mrb[0].mxu0
  %v6324 = vadd.f32 0.0, %v6323
  %v6325 = vpop.f32.mrb[0].mxu0
  %v6326 = vadd.f32 0.0, %v6325
  %v6327 = vpop.f32.mrb[0].mxu0
  %v6328 = vadd.f32 0.0, %v6327
  %6329 = vdwg.mxu0
  %v6330 = vpack.c.bf16 %v6256, %v6252
  %v6331 = vpack.c.bf16 %v6258, %v6254
  %v6332 = vpack.c.bf16 %v6266, %v6262
  %v6333 = vpack.c.bf16 %v6268, %v6264
  %v6334 = vpack.c.bf16 %v6276, %v6272
  %v6335 = vpack.c.bf16 %v6278, %v6274
  %v6336 = vpack.c.bf16 %v6286, %v6282
  %v6337 = vpack.c.bf16 %v6288, %v6284
  %v6338 = vpack.c.bf16 %v6296, %v6292
  %v6339 = vpack.c.bf16 %v6298, %v6294
  %v6340 = vpack.c.bf16 %v6306, %v6302
  %v6341 = vpack.c.bf16 %v6308, %v6304
  %v6342 = vpack.c.bf16 %v6316, %v6312
  %v6343 = vpack.c.bf16 %v6318, %v6314
  %v6344 = vpack.c.bf16 %v6326, %v6322
  %v6345 = vpack.c.bf16 %v6328, %v6324
  %v6346 = vld [vmem:[%s14] sm:$0xff]
  %v6347 = vld [vmem:[%s14 + $0x8] sm:$0xff]
  %v6348 = vld [vmem:[%s14 + $0x10] sm:$0xff]
  %v6349 = vld [vmem:[%s14 + $0x18] sm:$0xff]
  %v6350 = vld [vmem:[%s14 + $0x20] sm:$0xff]
  %v6351 = vld [vmem:[%s14 + $0x28] sm:$0xff]
  %v6352 = vld [vmem:[%s14 + $0x30] sm:$0xff]
  %v6353 = vld [vmem:[%s14 + $0x38] sm:$0xff]
  %v6354 = vld [vmem:[%s14 + $0x40] sm:$0xff]
  %v6355 = vld [vmem:[%s14 + $0x48] sm:$0xff]
  %v6356 = vld [vmem:[%s14 + $0x50] sm:$0xff]
  %v6357 = vld [vmem:[%s14 + $0x58] sm:$0xff]
  %v6358 = vld [vmem:[%s14 + $0x60] sm:$0xff]
  %v6359 = vld [vmem:[%s14 + $0x68] sm:$0xff]
  %v6360 = vld [vmem:[%s14 + $0x70] sm:$0xff]
  %v6361 = vld [vmem:[%s14 + $0x78] sm:$0xff]
  %v6362 = vld [vmem:[%s14 + $0x80] sm:$0xff]
  %v6363 = vld [vmem:[%s14 + $0x88] sm:$0xff]
  %v6364 = vld [vmem:[%s14 + $0x90] sm:$0xff]
  %v6365 = vld [vmem:[%s14 + $0x98] sm:$0xff]
  %v6366 = vld [vmem:[%s14 + $0xa0] sm:$0xff]
  %v6367 = vld [vmem:[%s14 + $0xa8] sm:$0xff]
  %v6368 = vld [vmem:[%s14 + $0xb0] sm:$0xff]
  %v6369 = vld [vmem:[%s14 + $0xb8] sm:$0xff]
  %v6370 = vld [vmem:[%s14 + $0xc0] sm:$0xff]
  %v6371 = vld [vmem:[%s14 + $0xc8] sm:$0xff]
  %v6372 = vld [vmem:[%s14 + $0xd0] sm:$0xff]
  %v6373 = vld [vmem:[%s14 + $0xd8] sm:$0xff]
  %v6374 = vld [vmem:[%s14 + $0xe0] sm:$0xff]
  %v6375 = vld [vmem:[%s14 + $0xe8] sm:$0xff]
  %v6376 = vld [vmem:[%s14 + $0xf0] sm:$0xff]
  %v6377 = vld [vmem:[%s14 + $0xf8] sm:$0xff]
  %v6378 = vld [vmem:[%s14 + $0x100] sm:$0xff]
  %v6379 = vld [vmem:[%s14 + $0x108] sm:$0xff]
  %v6380 = vld [vmem:[%s14 + $0x110] sm:$0xff]
  %v6381 = vld [vmem:[%s14 + $0x118] sm:$0xff]
  %v6382 = vld [vmem:[%s14 + $0x120] sm:$0xff]
  %v6383 = vld [vmem:[%s14 + $0x128] sm:$0xff]
  %v6384 = vld [vmem:[%s14 + $0x130] sm:$0xff]
  %v6385 = vld [vmem:[%s14 + $0x138] sm:$0xff]
  %v6386 = vld [vmem:[%s14 + $0x140] sm:$0xff]
  %v6387 = vld [vmem:[%s14 + $0x148] sm:$0xff]
  %v6388 = vld [vmem:[%s14 + $0x150] sm:$0xff]
  %v6389 = vld [vmem:[%s14 + $0x158] sm:$0xff]
  %v6390 = vld [vmem:[%s14 + $0x160] sm:$0xff]
  %v6391 = vld [vmem:[%s14 + $0x168] sm:$0xff]
  %v6392 = vld [vmem:[%s14 + $0x170] sm:$0xff]
  %v6393 = vld [vmem:[%s14 + $0x178] sm:$0xff]
  %v6394 = vld [vmem:[%s14 + $0x180] sm:$0xff]
  %v6395 = vld [vmem:[%s14 + $0x188] sm:$0xff]
  %v6396 = vld [vmem:[%s14 + $0x190] sm:$0xff]
  %v6397 = vld [vmem:[%s14 + $0x198] sm:$0xff]
  %v6398 = vld [vmem:[%s14 + $0x1a0] sm:$0xff]
  %v6399 = vld [vmem:[%s14 + $0x1a8] sm:$0xff]
  %v6400 = vld [vmem:[%s14 + $0x1b0] sm:$0xff]
  %v6401 = vld [vmem:[%s14 + $0x1b8] sm:$0xff]
  %v6402 = vld [vmem:[%s14 + $0x1c0] sm:$0xff]
  %v6403 = vld [vmem:[%s14 + $0x1c8] sm:$0xff]
  %v6404 = vld [vmem:[%s14 + $0x1d0] sm:$0xff]
  %v6405 = vld [vmem:[%s14 + $0x1d8] sm:$0xff]
  %v6406 = vld [vmem:[%s14 + $0x1e0] sm:$0xff]
  %v6407 = vld [vmem:[%s14 + $0x1e8] sm:$0xff]
  %v6408 = vld [vmem:[%s14 + $0x1f0] sm:$0xff]
  %v6409 = vld [vmem:[%s14 + $0x1f8] sm:$0xff]
  %v6474 = vunpack.c.l.b16 %v6346
  %v6475 = vunpack.c.h.b16 %v6346
  %v6476 = vunpack.c.l.b16 %v6347
  %v6477 = vunpack.c.h.b16 %v6347
  %v6478 = vunpack.c.l.b16 %v6348
  %v6479 = vunpack.c.h.b16 %v6348
  %v6480 = vunpack.c.l.b16 %v6349
  %v6481 = vunpack.c.h.b16 %v6349
  %v6482 = vunpack.c.l.b16 %v6350
  %v6483 = vunpack.c.h.b16 %v6350
  %v6484 = vunpack.c.l.b16 %v6351
  %v6485 = vunpack.c.h.b16 %v6351
  %v6486 = vunpack.c.l.b16 %v6352
  %v6487 = vunpack.c.h.b16 %v6352
  %v6488 = vunpack.c.l.b16 %v6353
  %v6489 = vunpack.c.h.b16 %v6353
  %v6490 = vunpack.c.l.b16 %v6354
  %v6491 = vunpack.c.h.b16 %v6354
  %v6492 = vunpack.c.l.b16 %v6355
  %v6493 = vunpack.c.h.b16 %v6355
  %v6494 = vunpack.c.l.b16 %v6356
  %v6495 = vunpack.c.h.b16 %v6356
  %v6496 = vunpack.c.l.b16 %v6357
  %v6497 = vunpack.c.h.b16 %v6357
  %v6498 = vunpack.c.l.b16 %v6358
  %v6499 = vunpack.c.h.b16 %v6358
  %v6500 = vunpack.c.l.b16 %v6359
  %v6501 = vunpack.c.h.b16 %v6359
  %v6502 = vunpack.c.l.b16 %v6360
  %v6503 = vunpack.c.h.b16 %v6360
  %v6504 = vunpack.c.l.b16 %v6361
  %v6505 = vunpack.c.h.b16 %v6361
  %v6506 = vunpack.c.l.b16 %v6362
  %v6507 = vunpack.c.h.b16 %v6362
  %v6508 = vunpack.c.l.b16 %v6363
  %v6509 = vunpack.c.h.b16 %v6363
  %v6510 = vunpack.c.l.b16 %v6364
  %v6511 = vunpack.c.h.b16 %v6364
  %v6512 = vunpack.c.l.b16 %v6365
  %v6513 = vunpack.c.h.b16 %v6365
  %v6514 = vunpack.c.l.b16 %v6366
  %v6515 = vunpack.c.h.b16 %v6366
  %v6516 = vunpack.c.l.b16 %v6367
  %v6517 = vunpack.c.h.b16 %v6367
  %v6518 = vunpack.c.l.b16 %v6368
  %v6519 = vunpack.c.h.b16 %v6368
  %v6520 = vunpack.c.l.b16 %v6369
  %v6521 = vunpack.c.h.b16 %v6369
  %v6522 = vunpack.c.l.b16 %v6370
  %v6523 = vunpack.c.h.b16 %v6370
  %v6524 = vunpack.c.l.b16 %v6371
  %v6525 = vunpack.c.h.b16 %v6371
  %v6526 = vunpack.c.l.b16 %v6372
  %v6527 = vunpack.c.h.b16 %v6372
  %v6528 = vunpack.c.l.b16 %v6373
  %v6529 = vunpack.c.h.b16 %v6373
  %v6530 = vunpack.c.l.b16 %v6374
  %v6531 = vunpack.c.h.b16 %v6374
  %v6532 = vunpack.c.l.b16 %v6375
  %v6533 = vunpack.c.h.b16 %v6375
  %v6534 = vunpack.c.l.b16 %v6376
  %v6535 = vunpack.c.h.b16 %v6376
  %v6536 = vunpack.c.l.b16 %v6377
  %v6537 = vunpack.c.h.b16 %v6377
  %v6538 = vunpack.c.l.b16 %v6378
  %v6539 = vunpack.c.h.b16 %v6378
  %v6540 = vunpack.c.l.b16 %v6379
  %v6541 = vunpack.c.h.b16 %v6379
  %v6542 = vunpack.c.l.b16 %v6380
  %v6543 = vunpack.c.h.b16 %v6380
  %v6544 = vunpack.c.l.b16 %v6381
  %v6545 = vunpack.c.h.b16 %v6381
  %v6546 = vunpack.c.l.b16 %v6382
  %v6547 = vunpack.c.h.b16 %v6382
  %v6548 = vunpack.c.l.b16 %v6383
  %v6549 = vunpack.c.h.b16 %v6383
  %v6550 = vunpack.c.l.b16 %v6384
  %v6551 = vunpack.c.h.b16 %v6384
  %v6552 = vunpack.c.l.b16 %v6385
  %v6553 = vunpack.c.h.b16 %v6385
  %v6554 = vunpack.c.l.b16 %v6386
  %v6555 = vunpack.c.h.b16 %v6386
  %v6556 = vunpack.c.l.b16 %v6387
  %v6557 = vunpack.c.h.b16 %v6387
  %v6558 = vunpack.c.l.b16 %v6388
  %v6559 = vunpack.c.h.b16 %v6388
  %v6560 = vunpack.c.l.b16 %v6389
  %v6561 = vunpack.c.h.b16 %v6389
  %v6562 = vunpack.c.l.b16 %v6390
  %v6563 = vunpack.c.h.b16 %v6390
  %v6564 = vunpack.c.l.b16 %v6391
  %v6565 = vunpack.c.h.b16 %v6391
  %v6566 = vunpack.c.l.b16 %v6392
  %v6567 = vunpack.c.h.b16 %v6392
  %v6568 = vunpack.c.l.b16 %v6393
  %v6569 = vunpack.c.h.b16 %v6393
  %v6570 = vunpack.c.l.b16 %v6394
  %v6571 = vunpack.c.h.b16 %v6394
  %v6572 = vunpack.c.l.b16 %v6395
  %v6573 = vunpack.c.h.b16 %v6395
  %v6574 = vunpack.c.l.b16 %v6396
  %v6575 = vunpack.c.h.b16 %v6396
  %v6576 = vunpack.c.l.b16 %v6397
  %v6577 = vunpack.c.h.b16 %v6397
  %v6578 = vunpack.c.l.b16 %v6398
  %v6579 = vunpack.c.h.b16 %v6398
  %v6580 = vunpack.c.l.b16 %v6399
  %v6581 = vunpack.c.h.b16 %v6399
  %v6582 = vunpack.c.l.b16 %v6400
  %v6583 = vunpack.c.h.b16 %v6400
  %v6584 = vunpack.c.l.b16 %v6401
  %v6585 = vunpack.c.h.b16 %v6401
  %v6586 = vunpack.c.l.b16 %v6402
  %v6587 = vunpack.c.h.b16 %v6402
  %v6588 = vunpack.c.l.b16 %v6403
  %v6589 = vunpack.c.h.b16 %v6403
  %v6590 = vunpack.c.l.b16 %v6404
  %v6591 = vunpack.c.h.b16 %v6404
  %v6592 = vunpack.c.l.b16 %v6405
  %v6593 = vunpack.c.h.b16 %v6405
  %v6594 = vunpack.c.l.b16 %v6406
  %v6595 = vunpack.c.h.b16 %v6406
  %v6596 = vunpack.c.l.b16 %v6407
  %v6597 = vunpack.c.h.b16 %v6407
  %v6598 = vunpack.c.l.b16 %v6408
  %v6599 = vunpack.c.h.b16 %v6408
  %v6600 = vunpack.c.l.b16 %v6409
  %v6601 = vunpack.c.h.b16 %v6409
  %v6602 = vpack.c.b16 %v6478, %v6474
  %v6603 = vpack.c.b16 %v6479, %v6475
  %v6604 = vpack.c.b16 %v6480, %v6476
  %v6605 = vpack.c.b16 %v6481, %v6477
  %v6606 = vpack.c.b16 %v6486, %v6482
  %v6607 = vpack.c.b16 %v6487, %v6483
  %v6608 = vpack.c.b16 %v6488, %v6484
  %v6609 = vpack.c.b16 %v6489, %v6485
  %v6610 = vpack.c.b16 %v6494, %v6490
  %v6611 = vpack.c.b16 %v6495, %v6491
  %v6612 = vpack.c.b16 %v6496, %v6492
  %v6613 = vpack.c.b16 %v6497, %v6493
  %v6614 = vpack.c.b16 %v6502, %v6498
  %v6615 = vpack.c.b16 %v6503, %v6499
  %v6616 = vpack.c.b16 %v6504, %v6500
  %v6617 = vpack.c.b16 %v6505, %v6501
  %v6618 = vpack.c.b16 %v6510, %v6506
  %v6619 = vpack.c.b16 %v6511, %v6507
  %v6620 = vpack.c.b16 %v6512, %v6508
  %v6621 = vpack.c.b16 %v6513, %v6509
  %v6622 = vpack.c.b16 %v6518, %v6514
  %v6623 = vpack.c.b16 %v6519, %v6515
  %v6624 = vpack.c.b16 %v6520, %v6516
  %v6625 = vpack.c.b16 %v6521, %v6517
  %v6626 = vpack.c.b16 %v6526, %v6522
  %v6627 = vpack.c.b16 %v6527, %v6523
  %v6628 = vpack.c.b16 %v6528, %v6524
  %v6629 = vpack.c.b16 %v6529, %v6525
  %v6630 = vpack.c.b16 %v6534, %v6530
  %v6631 = vpack.c.b16 %v6535, %v6531
  %v6632 = vpack.c.b16 %v6536, %v6532
  %v6633 = vpack.c.b16 %v6537, %v6533
  %v6634 = vpack.c.b16 %v6542, %v6538
  %v6635 = vpack.c.b16 %v6543, %v6539
  %v6636 = vpack.c.b16 %v6544, %v6540
  %v6637 = vpack.c.b16 %v6545, %v6541
  %v6638 = vpack.c.b16 %v6550, %v6546
  %v6639 = vpack.c.b16 %v6551, %v6547
  %v6640 = vpack.c.b16 %v6552, %v6548
  %v6641 = vpack.c.b16 %v6553, %v6549
  %v6642 = vpack.c.b16 %v6558, %v6554
  %v6643 = vpack.c.b16 %v6559, %v6555
  %v6644 = vpack.c.b16 %v6560, %v6556
  %v6645 = vpack.c.b16 %v6561, %v6557
  %v6646 = vpack.c.b16 %v6566, %v6562
  %v6647 = vpack.c.b16 %v6567, %v6563
  %v6648 = vpack.c.b16 %v6568, %v6564
  %v6649 = vpack.c.b16 %v6569, %v6565
  %v6650 = vpack.c.b16 %v6574, %v6570
  %v6651 = vpack.c.b16 %v6575, %v6571
  %v6652 = vpack.c.b16 %v6576, %v6572
  %v6653 = vpack.c.b16 %v6577, %v6573
  %v6654 = vpack.c.b16 %v6582, %v6578
  %v6655 = vpack.c.b16 %v6583, %v6579
  %v6656 = vpack.c.b16 %v6584, %v6580
  %v6657 = vpack.c.b16 %v6585, %v6581
  %v6658 = vpack.c.b16 %v6590, %v6586
  %v6659 = vpack.c.b16 %v6591, %v6587
  %v6660 = vpack.c.b16 %v6592, %v6588
  %v6661 = vpack.c.b16 %v6593, %v6589
  %v6662 = vpack.c.b16 %v6598, %v6594
  %v6663 = vpack.c.b16 %v6599, %v6595
  %v6664 = vpack.c.b16 %v6600, %v6596
  %v6665 = vpack.c.b16 %v6601, %v6597
  %6730 = vmatprep.subr.bf16.mxu0 %v6603
  %6731 = vmatpush1.bf16.msra.mxu0 %v6602
  %6732 = vmatprep.subr.bf16.mxu0 %v6607
  %6733 = vmatpush1.bf16.msra.mxu0 %v6606
  %6734 = vmatprep.subr.bf16.mxu0 %v6611
  %6735 = vmatpush1.bf16.msra.mxu0 %v6610
  %6736 = vmatprep.subr.bf16.mxu0 %v6615
  %6737 = vmatpush1.bf16.msra.mxu0 %v6614
  %6738 = vmatprep.subr.bf16.mxu0 %v6619
  %6739 = vmatpush1.bf16.msra.mxu0 %v6618
  %6740 = vmatprep.subr.bf16.mxu0 %v6623
  %6741 = vmatpush1.bf16.msra.mxu0 %v6622
  %6742 = vmatprep.subr.bf16.mxu0 %v6627
  %6743 = vmatpush1.bf16.msra.mxu0 %v6626
  %6744 = vmatprep.subr.bf16.mxu0 %v6631
  %6745 = vmatpush1.bf16.msra.mxu0 %v6630
  %6746 = vmatprep.subr.bf16.mxu0 %v6635
  %6747 = vmatpush1.bf16.msra.mxu0 %v6634
  %6748 = vmatprep.subr.bf16.mxu0 %v6639
  %6749 = vmatpush1.bf16.msra.mxu0 %v6638
  %6750 = vmatprep.subr.bf16.mxu0 %v6643
  %6751 = vmatpush1.bf16.msra.mxu0 %v6642
  %6752 = vmatprep.subr.bf16.mxu0 %v6647
  %6753 = vmatpush1.bf16.msra.mxu0 %v6646
  %6754 = vmatprep.subr.bf16.mxu0 %v6651
  %6755 = vmatpush1.bf16.msra.mxu0 %v6650
  %6756 = vmatprep.subr.bf16.mxu0 %v6655
  %6757 = vmatpush1.bf16.msra.mxu0 %v6654
  %6758 = vmatprep.subr.bf16.mxu0 %v6659
  %6759 = vmatpush1.bf16.msra.mxu0 %v6658
  %6760 = vmatprep.subr.bf16.mxu0 %v6663
  %6761 = vmatpush1.bf16.msra.mxu0 %v6662
  %6762 = vmatprep.mubr.bf16.mxu0 %v6331
  %6763 = vmatmul.mubr.bf16.gmra.mrb[0].mxu0 %v6330
  %v6764 = vpop.f32.mrb[0].mxu0
  %v6765 = vadd.f32 0.0, %v6764
  %v6766 = vpop.f32.mrb[0].mxu0
  %v6767 = vadd.f32 0.0, %v6766
  %v6768 = vpop.f32.mrb[0].mxu0
  %v6769 = vadd.f32 0.0, %v6768
  %v6770 = vpop.f32.mrb[0].mxu0
  %v6771 = vadd.f32 0.0, %v6770
  %6772 = vmatprep.mubr.bf16.mxu0 %v6333
  %6773 = vmatmul.mubr.bf16.gmra.mrb[0].mxu0 %v6332
  %v6774 = vpop.f32.mrb[0].mxu0
  %v6775 = vadd.f32 0.0, %v6774
  %v6776 = vpop.f32.mrb[0].mxu0
  %v6777 = vadd.f32 0.0, %v6776
  %v6778 = vpop.f32.mrb[0].mxu0
  %v6779 = vadd.f32 0.0, %v6778
  %v6780 = vpop.f32.mrb[0].mxu0
  %v6781 = vadd.f32 0.0, %v6780
  %6782 = vmatprep.mubr.bf16.mxu0 %v6335
  %6783 = vmatmul.mubr.bf16.gmra.mrb[0].mxu0 %v6334
  %v6784 = vpop.f32.mrb[0].mxu0
  %v6785 = vadd.f32 0.0, %v6784
  %v6786 = vpop.f32.mrb[0].mxu0
  %v6787 = vadd.f32 0.0, %v6786
  %v6788 = vpop.f32.mrb[0].mxu0
  %v6789 = vadd.f32 0.0, %v6788
  %v6790 = vpop.f32.mrb[0].mxu0
  %v6791 = vadd.f32 0.0, %v6790
  %6792 = vmatprep.mubr.bf16.mxu0 %v6337
  %6793 = vmatmul.mubr.bf16.gmra.mrb[0].mxu0 %v6336
  %v6794 = vpop.f32.mrb[0].mxu0
  %v6795 = vadd.f32 0.0, %v6794
  %v6796 = vpop.f32.mrb[0].mxu0
  %v6797 = vadd.f32 0.0, %v6796
  %v6798 = vpop.f32.mrb[0].mxu0
  %v6799 = vadd.f32 0.0, %v6798
  %v6800 = vpop.f32.mrb[0].mxu0
  %v6801 = vadd.f32 0.0, %v6800
  %6802 = vmatprep.mubr.bf16.mxu0 %v6339
  %6803 = vmatmul.mubr.bf16.gmra.mrb[0].mxu0 %v6338
  %v6804 = vpop.f32.mrb[0].mxu0
  %v6805 = vadd.f32 0.0, %v6804
  %v6806 = vpop.f32.mrb[0].mxu0
  %v6807 = vadd.f32 0.0, %v6806
  %v6808 = vpop.f32.mrb[0].mxu0
  %v6809 = vadd.f32 0.0, %v6808
  %v6810 = vpop.f32.mrb[0].mxu0
  %v6811 = vadd.f32 0.0, %v6810
  %6812 = vmatprep.mubr.bf16.mxu0 %v6341
  %6813 = vmatmul.mubr.bf16.gmra.mrb[0].mxu0 %v6340
  %v6814 = vpop.f32.mrb[0].mxu0
  %v6815 = vadd.f32 0.0, %v6814
  %v6816 = vpop.f32.mrb[0].mxu0
  %v6817 = vadd.f32 0.0, %v6816
  %v6818 = vpop.f32.mrb[0].mxu0
  %v6819 = vadd.f32 0.0, %v6818
  %v6820 = vpop.f32.mrb[0].mxu0
  %v6821 = vadd.f32 0.0, %v6820
  %6822 = vmatprep.mubr.bf16.mxu0 %v6343
  %6823 = vmatmul.mubr.bf16.gmra.mrb[0].mxu0 %v6342
  %v6824 = vpop.f32.mrb[0].mxu0
  %v6825 = vadd.f32 0.0, %v6824
  %v6826 = vpop.f32.mrb[0].mxu0
  %v6827 = vadd.f32 0.0, %v6826
  %v6828 = vpop.f32.mrb[0].mxu0
  %v6829 = vadd.f32 0.0, %v6828
  %v6830 = vpop.f32.mrb[0].mxu0
  %v6831 = vadd.f32 0.0, %v6830
  %6832 = vmatprep.mubr.bf16.mxu0 %v6345
  %6833 = vmatmul.mubr.bf16.gmra.mrb[0].mxu0 %v6344
  %v6834 = vpop.f32.mrb[0].mxu0
  %v6835 = vadd.f32 0.0, %v6834
  %v6836 = vpop.f32.mrb[0].mxu0
  %v6837 = vadd.f32 0.0, %v6836
  %v6838 = vpop.f32.mrb[0].mxu0
  %v6839 = vadd.f32 0.0, %v6838
  %v6840 = vpop.f32.mrb[0].mxu0
  %v6841 = vadd.f32 0.0, %v6840
  %6842 = vdwg.mxu0
  %6843 = vmatprep.subr.bf16.mxu0 %v6605
  %6844 = vmatpush1.bf16.msra.mxu0 %v6604
  %6845 = vmatprep.subr.bf16.mxu0 %v6609
  %6846 = vmatpush1.bf16.msra.mxu0 %v6608
  %6847 = vmatprep.subr.bf16.mxu0 %v6613
  %6848 = vmatpush1.bf16.msra.mxu0 %v6612
  %6849 = vmatprep.subr.bf16.mxu0 %v6617
  %6850 = vmatpush1.bf16.msra.mxu0 %v6616
  %6851 = vmatprep.subr.bf16.mxu0 %v6621
  %6852 = vmatpush1.bf16.msra.mxu0 %v6620
  %6853 = vmatprep.subr.bf16.mxu0 %v6625
  %6854 = vmatpush1.bf16.msra.mxu0 %v6624
  %6855 = vmatprep.subr.bf16.mxu0 %v6629
  %6856 = vmatpush1.bf16.msra.mxu0 %v6628
  %6857 = vmatprep.subr.bf16.mxu0 %v6633
  %6858 = vmatpush1.bf16.msra.mxu0 %v6632
  %6859 = vmatprep.subr.bf16.mxu0 %v6637
  %6860 = vmatpush1.bf16.msra.mxu0 %v6636
  %6861 = vmatprep.subr.bf16.mxu0 %v6641
  %6862 = vmatpush1.bf16.msra.mxu0 %v6640
  %6863 = vmatprep.subr.bf16.mxu0 %v6645
  %6864 = vmatpush1.bf16.msra.mxu0 %v6644
  %6865 = vmatprep.subr.bf16.mxu0 %v6649
  %6866 = vmatpush1.bf16.msra.mxu0 %v6648
  %6867 = vmatprep.subr.bf16.mxu0 %v6653
  %6868 = vmatpush1.bf16.msra.mxu0 %v6652
  %6869 = vmatprep.subr.bf16.mxu0 %v6657
  %6870 = vmatpush1.bf16.msra.mxu0 %v6656
  %6871 = vmatprep.subr.bf16.mxu0 %v6661
  %6872 = vmatpush1.bf16.msra.mxu0 %v6660
  %6873 = vmatprep.subr.bf16.mxu0 %v6665
  %6874 = vmatpush1.bf16.msra.mxu0 %v6664
  %6875 = vmatprep.mubr.bf16.mxu0 %v6331
  %6876 = vmatmul.mubr.bf16.gmra.mrb[0].mxu0 %v6330
  %v6877 = vpop.f32.mrb[0].mxu0
  %v6878 = vadd.f32 0.0, %v6877
  %v6879 = vpop.f32.mrb[0].mxu0
  %v6880 = vadd.f32 0.0, %v6879
  %v6881 = vpop.f32.mrb[0].mxu0
  %v6882 = vadd.f32 0.0, %v6881
  %v6883 = vpop.f32.mrb[0].mxu0
  %v6884 = vadd.f32 0.0, %v6883
  %6885 = vmatprep.mubr.bf16.mxu0 %v6333
  %6886 = vmatmul.mubr.bf16.gmra.mrb[0].mxu0 %v6332
  %v6887 = vpop.f32.mrb[0].mxu0
  %v6888 = vadd.f32 0.0, %v6887
  %v6889 = vpop.f32.mrb[0].mxu0
  %v6890 = vadd.f32 0.0, %v6889
  %v6891 = vpop.f32.mrb[0].mxu0
  %v6892 = vadd.f32 0.0, %v6891
  %v6893 = vpop.f32.mrb[0].mxu0
  %v6894 = vadd.f32 0.0, %v6893
  %6895 = vmatprep.mubr.bf16.mxu0 %v6335
  %6896 = vmatmul.mubr.bf16.gmra.mrb[0].mxu0 %v6334
  %v6897 = vpop.f32.mrb[0].mxu0
  %v6898 = vadd.f32 0.0, %v6897
  %v6899 = vpop.f32.mrb[0].mxu0
  %v6900 = vadd.f32 0.0, %v6899
  %v6901 = vpop.f32.mrb[0].mxu0
  %v6902 = vadd.f32 0.0, %v6901
  %v6903 = vpop.f32.mrb[0].mxu0
  %v6904 = vadd.f32 0.0, %v6903
  %6905 = vmatprep.mubr.bf16.mxu0 %v6337
  %6906 = vmatmul.mubr.bf16.gmra.mrb[0].mxu0 %v6336
  %v6907 = vpop.f32.mrb[0].mxu0
  %v6908 = vadd.f32 0.0, %v6907
  %v6909 = vpop.f32.mrb[0].mxu0
  %v6910 = vadd.f32 0.0, %v6909
  %v6911 = vpop.f32.mrb[0].mxu0
  %v6912 = vadd.f32 0.0, %v6911
  %v6913 = vpop.f32.mrb[0].mxu0
  %v6914 = vadd.f32 0.0, %v6913
  %6915 = vmatprep.mubr.bf16.mxu0 %v6339
  %6916 = vmatmul.mubr.bf16.gmra.mrb[0].mxu0 %v6338
  %v6917 = vpop.f32.mrb[0].mxu0
  %v6918 = vadd.f32 0.0, %v6917
  %v6919 = vpop.f32.mrb[0].mxu0
  %v6920 = vadd.f32 0.0, %v6919
  %v6921 = vpop.f32.mrb[0].mxu0
  %v6922 = vadd.f32 0.0, %v6921
  %v6923 = vpop.f32.mrb[0].mxu0
  %v6924 = vadd.f32 0.0, %v6923
  %6925 = vmatprep.mubr.bf16.mxu0 %v6341
  %6926 = vmatmul.mubr.bf16.gmra.mrb[0].mxu0 %v6340
  %v6927 = vpop.f32.mrb[0].mxu0
  %v6928 = vadd.f32 0.0, %v6927
  %v6929 = vpop.f32.mrb[0].mxu0
  %v6930 = vadd.f32 0.0, %v6929
  %v6931 = vpop.f32.mrb[0].mxu0
  %v6932 = vadd.f32 0.0, %v6931
  %v6933 = vpop.f32.mrb[0].mxu0
  %v6934 = vadd.f32 0.0, %v6933
  %6935 = vmatprep.mubr.bf16.mxu0 %v6343
  %6936 = vmatmul.mubr.bf16.gmra.mrb[0].mxu0 %v6342
  %v6937 = vpop.f32.mrb[0].mxu0
  %v6938 = vadd.f32 0.0, %v6937
  %v6939 = vpop.f32.mrb[0].mxu0
  %v6940 = vadd.f32 0.0, %v6939
  %v6941 = vpop.f32.mrb[0].mxu0
  %v6942 = vadd.f32 0.0, %v6941
  %v6943 = vpop.f32.mrb[0].mxu0
  %v6944 = vadd.f32 0.0, %v6943
  %6945 = vmatprep.mubr.bf16.mxu0 %v6345
  %6946 = vmatmul.mubr.bf16.gmra.mrb[0].mxu0 %v6344
  %v6947 = vpop.f32.mrb[0].mxu0
  %v6948 = vadd.f32 0.0, %v6947
  %v6949 = vpop.f32.mrb[0].mxu0
  %v6950 = vadd.f32 0.0, %v6949
  %v6951 = vpop.f32.mrb[0].mxu0
  %v6952 = vadd.f32 0.0, %v6951
  %v6953 = vpop.f32.mrb[0].mxu0
  %v6954 = vadd.f32 0.0, %v6953
  %6955 = vdwg.mxu0
  %6956 = vst [vmem:[%s15] sm:$0xff] %v6765
  %6957 = vst [vmem:[%s15 + $0x8] sm:$0xff] %v6767
  %6958 = vst [vmem:[%s15 + $0x10] sm:$0xff] %v6878
  %6959 = vst [vmem:[%s15 + $0x18] sm:$0xff] %v6880
  %6960 = vst [vmem:[%s15 + $0x20] sm:$0xff] %v6769
  %6961 = vst [vmem:[%s15 + $0x28] sm:$0xff] %v6771
  %6962 = vst [vmem:[%s15 + $0x30] sm:$0xff] %v6882
  %6963 = vst [vmem:[%s15 + $0x38] sm:$0xff] %v6884
  %6964 = vst [vmem:[%s15 + $0x40] sm:$0xff] %v6775
  %6965 = vst [vmem:[%s15 + $0x48] sm:$0xff] %v6777
  %6966 = vst [vmem:[%s15 + $0x50] sm:$0xff] %v6888
  %6967 = vst [vmem:[%s15 + $0x58] sm:$0xff] %v6890
  %6968 = vst [vmem:[%s15 + $0x60] sm:$0xff] %v6779
  %6969 = vst [vmem:[%s15 + $0x68] sm:$0xff] %v6781
  %6970 = vst [vmem:[%s15 + $0x70] sm:$0xff] %v6892
  %6971 = vst [vmem:[%s15 + $0x78] sm:$0xff] %v6894
  %6972 = vst [vmem:[%s15 + $0x80] sm:$0xff] %v6785
  %6973 = vst [vmem:[%s15 + $0x88] sm:$0xff] %v6787
  %6974 = vst [vmem:[%s15 + $0x90] sm:$0xff] %v6898
  %6975 = vst [vmem:[%s15 + $0x98] sm:$0xff] %v6900
  %6976 = vst [vmem:[%s15 + $0xa0] sm:$0xff] %v6789
  %6977 = vst [vmem:[%s15 + $0xa8] sm:$0xff] %v6791
  %6978 = vst [vmem:[%s15 + $0xb0] sm:$0xff] %v6902
  %6979 = vst [vmem:[%s15 + $0xb8] sm:$0xff] %v6904
  %6980 = vst [vmem:[%s15 + $0xc0] sm:$0xff] %v6795
  %6981 = vst [vmem:[%s15 + $0xc8] sm:$0xff] %v6797
  %6982 = vst [vmem:[%s15 + $0xd0] sm:$0xff] %v6908
  %6983 = vst [vmem:[%s15 + $0xd8] sm:$0xff] %v6910
  %6984 = vst [vmem:[%s15 + $0xe0] sm:$0xff] %v6799
  %6985 = vst [vmem:[%s15 + $0xe8] sm:$0xff] %v6801
  %6986 = vst [vmem:[%s15 + $0xf0] sm:$0xff] %v6912
  %6987 = vst [vmem:[%s15 + $0xf8] sm:$0xff] %v6914
  %6988 = vst [vmem:[%s15 + $0x100] sm:$0xff] %v6805
  %6989 = vst [vmem:[%s15 + $0x108] sm:$0xff] %v6807
  %6990 = vst [vmem:[%s15 + $0x110] sm:$0xff] %v6918
  %6991 = vst [vmem:[%s15 + $0x118] sm:$0xff] %v6920
  %6992 = vst [vmem:[%s15 + $0x120] sm:$0xff] %v6809
  %6993 = vst [vmem:[%s15 + $0x128] sm:$0xff] %v6811
  %6994 = vst [vmem:[%s15 + $0x130] sm:$0xff] %v6922
  %6995 = vst [vmem:[%s15 + $0x138] sm:$0xff] %v6924
  %6996 = vst [vmem:[%s15 + $0x140] sm:$0xff] %v6815
  %6997 = vst [vmem:[%s15 + $0x148] sm:$0xff] %v6817
  %6998 = vst [vmem:[%s15 + $0x150] sm:$0xff] %v6928
  %6999 = vst [vmem:[%s15 + $0x158] sm:$0xff] %v6930
  %7000 = vst [vmem:[%s15 + $0x160] sm:$0xff] %v6819
  %7001 = vst [vmem:[%s15 + $0x168] sm:$0xff] %v6821
  %7002 = vst [vmem:[%s15 + $0x170] sm:$0xff] %v6932
  %7003 = vst [vmem:[%s15 + $0x178] sm:$0xff] %v6934
  %7004 = vst [vmem:[%s15 + $0x180] sm:$0xff] %v6825
  %7005 = vst [vmem:[%s15 + $0x188] sm:$0xff] %v6827
  %7006 = vst [vmem:[%s15 + $0x190] sm:$0xff] %v6938
  %7007 = vst [vmem:[%s15 + $0x198] sm:$0xff] %v6940
  %7008 = vst [vmem:[%s15 + $0x1a0] sm:$0xff] %v6829
  %7009 = vst [vmem:[%s15 + $0x1a8] sm:$0xff] %v6831
  %7010 = vst [vmem:[%s15 + $0x1b0] sm:$0xff] %v6942
  %7011 = vst [vmem:[%s15 + $0x1b8] sm:$0xff] %v6944
  %7012 = vst [vmem:[%s15 + $0x1c0] sm:$0xff] %v6835
  %7013 = vst [vmem:[%s15 + $0x1c8] sm:$0xff] %v6837
  %7014 = vst [vmem:[%s15 + $0x1d0] sm:$0xff] %v6948
  %7015 = vst [vmem:[%s15 + $0x1d8] sm:$0xff] %v6950
  %7016 = vst [vmem:[%s15 + $0x1e0] sm:$0xff] %v6839
  %7017 = vst [vmem:[%s15 + $0x1e8] sm:$0xff] %v6841
  %7018 = vst [vmem:[%s15 + $0x1f0] sm:$0xff] %v6952
  %7019 = vst [vmem:[%s15 + $0x1f8] sm:$0xff] %v6954
  // Predicated region
  $region62: #{_lambda_.3} parent=0 // pred_check
    _
  $region63: #{_lambda_.3} parent=0 // pred_check_branch
    %7021 = sbr.rel (0) target = $region65
  $region64: #{_lambda_.3} parent=0 // pred_region
    _
  $region65: #{_lambda_.3} parent=0 // pred_fallthru
    _
  // Predicated region
  $region66: #{_lambda_.3} parent=0 // pred_check
    _
  $region67: #{_lambda_.3} parent=0 // pred_check_branch
    %7023 = sbr.rel (0) target = $region69
  $region68: #{_lambda_.3} parent=0 // pred_region
    _
  $region69: #{_lambda_.3} parent=0 // pred_fallthru
    _

</llo_original>
